<compile_context>
chip_gen: v5e
topology: v5e:2x2
jax: 0.10.0
libtpu: 0.0.40
codegen_flags: <defaults>
</compile_context>

<pallas_src>
import functools
import math

import jax
import jax.numpy as jnp
from jax.experimental import pallas as pl
from jax.experimental.pallas import tpu as pltpu

# ----------------------------------------------------------------------------
# Scaled-down Wav2Vec2 config (structure matches Wav2Vec2Config defaults)
# ----------------------------------------------------------------------------
CONV_DIM = (128, 128, 128)       # real: (512,)*7
CONV_KERNEL = (10, 3, 2)         # real: (10,3,3,3,3,2,2)
CONV_STRIDE = (5, 2, 2)          # real: (5,2,2,2,2,2,2)
HIDDEN = 128                     # real: 768
NUM_HEADS = 4                    # real: 12
HEAD_DIM = HIDDEN // NUM_HEADS
FFN = 256                        # real: 3072
NUM_LAYERS = 2                   # real: 12
NUM_CLASSES = 4
POS_CONV_KERNEL = 4              # real: 128
POS_CONV_GROUPS = 2              # real: 16
LN_EPS = 1e-5

_VMEM_LIMIT_BYTES = 32 * 1024 * 1024   # above the 16 MiB v5e scoped default


def _cparams():
    # every grid below is 1-D and carry-free -> "parallel" (megacore shardable)
    return pltpu.CompilerParams(dimension_semantics=("parallel",),
                                vmem_limit_bytes=_VMEM_LIMIT_BYTES)


def _round_up(x, m):
    return ((x + m - 1) // m) * m


def _gelu(x):
    # tanh-approx GELU (see TODO above)
    return jax.nn.gelu(x, approximate=True)


def _ln(x, g, b, eps):
    mu = jnp.mean(x, axis=-1, keepdims=True)
    var = jnp.mean(jnp.square(x - mu), axis=-1, keepdims=True)
    return (x - mu) * jax.lax.rsqrt(var + eps) * g + b


def _masked_time_mean(y, ln):
    # (1,T) mask row x (T,C) matmul on the MXU; exact division by the clamped length.
    t = jax.lax.broadcasted_iota(jnp.int32, (1, y.shape[0]), 1).astype(jnp.float32)
    mask = (t < ln).astype(jnp.float32)
    return jnp.dot(mask, y, preferred_element_type=jnp.float32) / ln


# ----------------------------------------------------------------------------
# Kernel 1: conv layer 0 (Cin=1) as ONE MXU matmul over (T_out, K) tap frames,
#           fused with GroupNorm(groups==channels) + GELU + masked time-mean
# ----------------------------------------------------------------------------
def _conv0_gn_gelu_mean_kernel(f_ref, w_ref, g_ref, b_ref, len_ref, o_ref, mean_ref,
                               *, eps):
    frames = f_ref[0].astype(jnp.bfloat16)                     # (T0, K)
    y = jnp.dot(frames, w_ref[...], preferred_element_type=jnp.float32)   # (T0, C)
    # GroupNorm with num_groups == num_channels: per-channel stats over full time
    mu = jnp.mean(y, axis=0, keepdims=True)
    var = jnp.mean(jnp.square(y - mu), axis=0, keepdims=True)
    y = (y - mu) * jax.lax.rsqrt(var + eps) * g_ref[...] + b_ref[...]
    y = _gelu(y)
    o_ref[0] = y
    mean_ref[0] = _masked_time_mean(y, len_ref[0])


def pallas_conv0(audio, w_ko, gn_gamma, gn_beta, mean_lens):
    B, T = audio.shape
    K, Cout = w_ko.shape
    stride = CONV_STRIDE[0]
    T_out = (T - K) // stride + 1
    assert T_out > 0, "input shorter than conv receptive field"
    # (B, T_out, K) tap frames via K strided slices of the raw waveform (small: ~K/stride
    # times the waveform); keeps every MAC of the heaviest conv on the MXU.
    frames = jnp.stack(
        [audio[:, k:k + (T_out - 1) * stride + 1:stride] for k in range(K)], axis=-1)
    lens = jnp.maximum(mean_lens.astype(jnp.float32), 1.0).reshape(B, 1, 1)
    y, mean = pl.pallas_call(
        functools.partial(_conv0_gn_gelu_mean_kernel, eps=LN_EPS),
        out_shape=(jax.ShapeDtypeStruct((B, T_out, Cout), jnp.float32),
                   jax.ShapeDtypeStruct((B, 1, Cout), jnp.float32)),
        grid=(B,),
        in_specs=[pl.BlockSpec((1, T_out, K), lambda b: (b, 0, 0)),
                  pl.BlockSpec((K, Cout), lambda b: (0, 0)),
                  pl.BlockSpec((1, Cout), lambda b: (0, 0)),
                  pl.BlockSpec((1, Cout), lambda b: (0, 0)),
                  pl.BlockSpec((1, 1, 1), lambda b: (b, 0, 0))],
        out_specs=(pl.BlockSpec((1, T_out, Cout), lambda b: (b, 0, 0)),
                   pl.BlockSpec((1, 1, Cout), lambda b: (b, 0, 0))),
        compiler_params=_cparams(),
    )(frames, w_ko, gn_gamma.reshape(1, Cout), gn_beta.reshape(1, Cout), lens)
    return y, mean[:, 0, :]


# ----------------------------------------------------------------------------
# Kernel 2: conv layers 1.. : K shifted (T_out,Cin)x(Cin,Cout) MXU matmuls over an
#           f32 accumulator + GELU + masked time-mean (no im2col gather)
# ----------------------------------------------------------------------------
def _conv_gelu_mean_kernel(x_ref, w_ref, len_ref, o_ref, mean_ref,
                           *, K, stride, t_out, cin):
    x = x_ref[0]                                               # (Tq, stride*cin) f32
    cout = w_ref.shape[2]
    acc = jnp.zeros((t_out, cout), jnp.float32)
    for k in range(K):                                         # static unroll (K <= 3)
        q, r = divmod(k, stride)
        xs = x[q:q + t_out, r * cin:(r + 1) * cin].astype(jnp.bfloat16)
        acc = acc + jnp.dot(xs, w_ref[k], preferred_element_type=jnp.float32)
    y = _gelu(acc)
    o_ref[0] = y
    mean_ref[0] = _masked_time_mean(y, len_ref[0])


def pallas_conv_gelu_mean(x_btc, w_kio, stride, mean_lens):
    B, T, Cin = x_btc.shape
    K, _, Cout = w_kio.shape
    T_out = (T - K) // stride + 1
    assert T_out > 0, "input shorter than conv receptive field"
    Tq = T_out + (K - 1) // stride
    T_pad = Tq * stride
    if T_pad > T:
        # one trailing frame of slack so the strided reshape is valid; never read by conv
        xw = jnp.pad(x_btc, ((0, 0), (0, T_pad - T), (0, 0)))
    else:
        xw = x_btc[:, :T_pad, :]
    x_r = xw.reshape(B, Tq, stride * Cin)                       # contiguous reshape
    lens = jnp.maximum(mean_lens.astype(jnp.float32), 1.0).reshape(B, 1, 1)
    y, mean = pl.pallas_call(
        functools.partial(_conv_gelu_mean_kernel, K=K, stride=stride, t_out=T_out, cin=Cin),
        out_shape=(jax.ShapeDtypeStruct((B, T_out, Cout), jnp.float32),
                   jax.ShapeDtypeStruct((B, 1, Cout), jnp.float32)),
        grid=(B,),
        in_specs=[pl.BlockSpec((1, Tq, stride * Cin), lambda b: (b, 0, 0)),
                  pl.BlockSpec((K, Cin, Cout), lambda b: (0, 0, 0)),
                  pl.BlockSpec((1, 1, 1), lambda b: (b, 0, 0))],
        out_specs=(pl.BlockSpec((1, T_out, Cout), lambda b: (b, 0, 0)),
                   pl.BlockSpec((1, 1, Cout), lambda b: (b, 0, 0))),
        compiler_params=_cparams(),
    )(x_r, w_kio, lens)
    return y, mean[:, 0, :]


# ----------------------------------------------------------------------------
# Kernel 3: fused LayerNorm -> Linear (feature projection)
# ----------------------------------------------------------------------------
def _ln_matmul_kernel(x_ref, g_ref, b_ref, w_ref, bias_ref, o_ref, *, eps):
    xn = _ln(x_ref[...], g_ref[...], b_ref[...], eps)
    o_ref[...] = jnp.dot(xn.astype(jnp.bfloat16), w_ref[...],
                         preferred_element_type=jnp.float32) + bias_ref[...]


def pallas_ln_matmul(x, g, b, w_bf16, bias, eps=LN_EPS, tile_m=256):
    M, K = x.shape
    N = w_bf16.shape[1]
    tm = min(tile_m, _round_up(M, 8))
    Mp = _round_up(M, tm)
    xp = x if Mp == M else jnp.pad(x, ((0, Mp - M), (0, 0)))
    out = pl.pallas_call(
        functools.partial(_ln_matmul_kernel, eps=eps),
        out_shape=jax.ShapeDtypeStruct((Mp, N), jnp.float32),
        grid=(Mp // tm,),
        in_specs=[pl.BlockSpec((tm, K), lambda i: (i, 0)),
                  pl.BlockSpec((1, K), lambda i: (0, 0)),
                  pl.BlockSpec((1, K), lambda i: (0, 0)),
                  pl.BlockSpec((K, N), lambda i: (0, 0)),
                  pl.BlockSpec((1, N), lambda i: (0, 0))],
        out_specs=pl.BlockSpec((tm, N), lambda i: (i, 0)),
        compiler_params=_cparams(),
    )(xp, g.reshape(1, K), b.reshape(1, K), w_bf16, bias.reshape(1, N))
    return out[:M]


# ----------------------------------------------------------------------------
# Kernel 4: positional conv (block-diagonal (K,C,C) weight, one matmul per tap)
#           + fused padded-frame masking + GELU + residual + encoder LayerNorm;
#           halo/zero-pad built in-kernel (no wrapper-side pad of (B,L,C))
# ----------------------------------------------------------------------------
def _posconv_ln_kernel(x_ref, m_ref, w_ref, b_ref, g_ref, be_ref, o_ref, *, K, pad, eps):
    x = x_ref[0] * m_ref[0]                                    # zero padded frames (HF)
    L, C = x.shape
    z = jnp.zeros((pad, C), jnp.float32)
    xp = jnp.concatenate([z, x, z], axis=0)                    # (L + 2*pad, C) halo
    acc = jnp.zeros((L, C), jnp.float32)
    for k in range(K):                                         # static unroll (K=4)
        acc = acc + jnp.dot(xp[k:k + L].astype(jnp.bfloat16), w_ref[k],
                            preferred_element_type=jnp.float32)
    pos = _gelu(acc + b_ref[...])                              # SamePad drop-last == keep L
    o_ref[0] = _ln(x + pos, g_ref[...], be_ref[...], eps)


def pallas_posconv_ln(hidden, mask3, w_pos, bias, ln_g, ln_b, eps=LN_EPS):
    B, L, C = hidden.shape
    K = w_pos.shape[0]
    pad = K // 2
    return pl.pallas_call(
        functools.partial(_posconv_ln_kernel, K=K, pad=pad, eps=eps),
        out_shape=jax.ShapeDtypeStruct((B, L, C), jnp.float32),
        grid=(B,),
        in_specs=[pl.BlockSpec((1, L, C), lambda b: (b, 0, 0)),
                  pl.BlockSpec((1, L, 1), lambda b: (b, 0, 0)),
                  pl.BlockSpec((K, C, C), lambda b: (0, 0, 0)),
                  pl.BlockSpec((1, C), lambda b: (0, 0)),
                  pl.BlockSpec((1, C), lambda b: (0, 0)),
                  pl.BlockSpec((1, C), lambda b: (0, 0))],
        out_specs=pl.BlockSpec((1, L, C), lambda b: (b, 0, 0)),
        compiler_params=_cparams(),
    )(hidden, mask3, w_pos, bias.reshape(1, C), ln_g.reshape(1, C), ln_b.reshape(1, C))


# ----------------------------------------------------------------------------
# Kernel 5: fused QKV projection + masked multi-head attention; grid over B,
#           heads handled in-kernel with direct column-slice stores; bf16 output
# ----------------------------------------------------------------------------
def _qkv_attn_kernel(x_ref, wqkv_ref, bqkv_ref, bias_ref, o_ref,
                     *, num_heads, head_dim, scale):
    x = x_ref[0].astype(jnp.bfloat16)                          # (L, C)
    qkv = jnp.dot(x, wqkv_ref[...],
                  preferred_element_type=jnp.float32) + bqkv_ref[...]   # (L, 3C) f32
    bias = bias_ref[0]                                         # (1, L) additive key mask
    C = num_heads * head_dim
    for h in range(num_heads):                                 # static unroll over heads
        q = qkv[:, h * head_dim:(h + 1) * head_dim].astype(jnp.bfloat16)
        k = qkv[:, C + h * head_dim:C + (h + 1) * head_dim].astype(jnp.bfloat16)
        v = qkv[:, 2 * C + h * head_dim:2 * C + (h + 1) * head_dim].astype(jnp.bfloat16)
        s = jax.lax.dot_general(q, k, (((1,), (1,)), ((), ())),
                                preferred_element_type=jnp.float32) * scale + bias
        s = s - jnp.max(s, axis=-1, keepdims=True)
        p = jnp.exp(s)
        p = p / jnp.sum(p, axis=-1, keepdims=True)             # exact f32 normalization
        o_h = jnp.dot(p.astype(jnp.bfloat16), v, preferred_element_type=jnp.float32)
        o_ref[0, :, h * head_dim:(h + 1) * head_dim] = o_h.astype(jnp.bfloat16)


def pallas_qkv_attention(hidden, w_qkv, b_qkv, attn_bias, num_heads):
    # hidden: (B, L, C) f32; w_qkv: (C, 3C) bf16; attn_bias: (B, 1, L)
    B, L, C = hidden.shape
    threeC = w_qkv.shape[1]
    hd = C // num_heads
    scale = 1.0 / math.sqrt(hd)
    return pl.pallas_call(
        functools.partial(_qkv_attn_kernel, num_heads=num_heads, head_dim=hd, scale=scale),
        out_shape=jax.ShapeDtypeStruct((B, L, C), jnp.bfloat16),
        grid=(B,),
        in_specs=[pl.BlockSpec((1, L, C), lambda b: (b, 0, 0)),
                  pl.BlockSpec((C, threeC), lambda b: (0, 0)),
                  pl.BlockSpec((1, threeC), lambda b: (0, 0)),
                  pl.BlockSpec((1, 1, L), lambda b: (b, 0, 0))],
        out_specs=pl.BlockSpec((1, L, C), lambda b: (b, 0, 0)),
        compiler_params=_cparams(),
    )(hidden, w_qkv, b_qkv.reshape(1, threeC), attn_bias)


# ----------------------------------------------------------------------------
# Kernel 6: fused post-attention half of an encoder layer:
#           out-proj + residual + LN1 + FFN(w1, gelu, w2) + residual + LN2
# ----------------------------------------------------------------------------
def _post_attn_kernel(x_ref, a_ref, wo_ref, bo_ref, g1_ref, b1_ref,
                      w1_ref, bb1_ref, w2_ref, bb2_ref, g2_ref, b2_ref, o_ref, *, eps):
    x = x_ref[...]                                             # (tm, C) f32
    a = a_ref[...]                                             # (tm, C) bf16 (attention)
    h = x + jnp.dot(a, wo_ref[...], preferred_element_type=jnp.float32) + bo_ref[...]
    h = _ln(h, g1_ref[...], b1_ref[...], eps)
    # TODO(synk): at real scale chunk the FFN over F with an f32 accumulator.
    ff = _gelu(jnp.dot(h.astype(jnp.bfloat16), w1_ref[...],
                       preferred_element_type=jnp.float32) + bb1_ref[...])
    ff = jnp.dot(ff.astype(jnp.bfloat16), w2_ref[...],
                 preferred_element_type=jnp.float32) + bb2_ref[...]
    o_ref[...] = _ln(h + ff, g2_ref[...], b2_ref[...], eps)


def pallas_post_attn(x2, a2, wo, bo, g1, b1, w1, bb1, w2, bb2, g2, b2,
                     eps=LN_EPS, tile_m=256):
    M, C = x2.shape
    F = w1.shape[1]
    tm = min(tile_m, _round_up(M, 8))
    Mp = _round_up(M, tm)
    if Mp != M:
        x2 = jnp.pad(x2, ((0, Mp - M), (0, 0)))
        a2 = jnp.pad(a2, ((0, Mp - M), (0, 0)))
    row = lambda v: v.reshape(1, -1)
    out = pl.pallas_call(
        functools.partial(_post_attn_kernel, eps=eps),
        out_shape=jax.ShapeDtypeStruct((Mp, C), jnp.float32),
        grid=(Mp // tm,),
        in_specs=[
            pl.BlockSpec((tm, C), lambda i: (i, 0)),
            pl.BlockSpec((tm, C), lambda i: (i, 0)),
            pl.BlockSpec((C, C), lambda i: (0, 0)),
            pl.BlockSpec((1, C), lambda i: (0, 0)),
            pl.BlockSpec((1, C), lambda i: (0, 0)),
            pl.BlockSpec((1, C), lambda i: (0, 0)),
            pl.BlockSpec((C, F), lambda i: (0, 0)),
            pl.BlockSpec((1, F), lambda i: (0, 0)),
            pl.BlockSpec((F, C), lambda i: (0, 0)),
            pl.BlockSpec((1, C), lambda i: (0, 0)),
            pl.BlockSpec((1, C), lambda i: (0, 0)),
            pl.BlockSpec((1, C), lambda i: (0, 0)),
        ],
        out_specs=pl.BlockSpec((tm, C), lambda i: (i, 0)),
        compiler_params=_cparams(),
    )(x2, a2, wo, row(bo), row(g1), row(b1), w1, row(bb1), w2, row(bb2), row(g2), row(b2))
    return out[:M]


# ----------------------------------------------------------------------------
# Kernel 7: masked time-mean (MXU mask-row matmul) + ReLU + classifier Linear
# ----------------------------------------------------------------------------
def _mean_cls_kernel(x_ref, len_ref, w_ref, b_ref, o_ref):
    emb = _masked_time_mean(x_ref[0], len_ref[0])              # (1, C)
    emb = jnp.maximum(emb, 0.0)                                # classifier ReLU
    o_ref[0] = jnp.dot(emb, w_ref[...], preferred_element_type=jnp.float32) + b_ref[...]


def pallas_masked_mean_cls(hidden, out_len, w, b):
    B, L, C = hidden.shape
    N = w.shape[1]
    lens = jnp.maximum(out_len.astype(jnp.float32), 1.0).reshape(B, 1, 1)
    out = pl.pallas_call(
        _mean_cls_kernel,
        out_shape=jax.ShapeDtypeStruct((B, 1, N), jnp.float32),
        grid=(B,),
        in_specs=[pl.BlockSpec((1, L, C), lambda i: (i, 0, 0)),
                  pl.BlockSpec((1, 1, 1), lambda i: (i, 0, 0)),
                  pl.BlockSpec((C, N), lambda i: (0, 0)),
                  pl.BlockSpec((1, N), lambda i: (0, 0))],
        out_specs=pl.BlockSpec((1, 1, N), lambda i: (i, 0, 0)),
        compiler_params=_cparams(),
    )(hidden, lens, w, b.reshape(1, N))
    return out[:, 0, :]


# ----------------------------------------------------------------------------
# Model pieces
# ----------------------------------------------------------------------------
def get_feat_extract_output_lengths(lengths, kernels, strides):
    ln = lengths
    for k, s in zip(kernels, strides):
        ln = (ln - k) // s + 1
    return ln


def feature_extractor(params, audio, length):
    # audio (B, T) -> final hidden (B, L_fe, C_fe) + hierarchical (summed masked-mean) feature
    out_len = get_feat_extract_output_lengths(length, CONV_KERNEL[:1], CONV_STRIDE[:1])
    x, hier = pallas_conv0(audio, params["conv"][0]["weight_ko"],
                           params["conv"][0]["gn_gamma"], params["conv"][0]["gn_beta"],
                           out_len)
    for li in range(1, len(CONV_KERNEL)):
        out_len = get_feat_extract_output_lengths(
            length, CONV_KERNEL[:li + 1], CONV_STRIDE[:li + 1])
        x, m = pallas_conv_gelu_mean(x, params["conv"][li]["weight_kio"],
                                     CONV_STRIDE[li], out_len)
        hier = hier + m
    return x, hier


def encoder_layer(lp, hidden, attn_bias):
    B, L, C = hidden.shape
    attn = pallas_qkv_attention(hidden, lp["w_qkv"], lp["b_qkv"], attn_bias, NUM_HEADS)
    out = pallas_post_attn(hidden.reshape(B * L, C), attn.reshape(B * L, C),
                           lp["wo"], lp["bo"], lp["ln1_g"], lp["ln1_b"],
                           lp["w1"], lp["b1"], lp["w2"], lp["b2"],
                           lp["ln2_g"], lp["ln2_b"])
    return out.reshape(B, L, C)


def encoder(params, hidden, length):
    B, L, C = hidden.shape
    out_len = get_feat_extract_output_lengths(length, CONV_KERNEL, CONV_STRIDE)
    mask = (jnp.arange(L)[None, :] < out_len[:, None]).astype(jnp.float32)  # (B, L)
    attn_bias = ((1.0 - mask) * (-1e9))[:, None, :]                         # (B, 1, L)
    # padded-frame zeroing + pos-conv + GELU + residual + encoder LayerNorm, all fused
    hidden = pallas_posconv_ln(hidden, mask[:, :, None],
                               params["pos_conv_w"], params["pos_conv_b"],
                               params["enc_ln_g"], params["enc_ln_b"])
    for lp in params["layers"]:
        hidden = encoder_layer(lp, hidden, attn_bias)
    return hidden, out_len


def wav2vec2_emonet_forward(params, audio, length):
    x, hier = feature_extractor(params, audio, length)            # (B, L_fe, C_fe), (B, C_fe)
    # hierarchical feature appended as one extra time step (== cat on dim=-1 in NCW)
    x = jnp.concatenate([x, hier[:, None, :]], axis=1)            # (B, L_fe+1, C_fe)
    B, Lp1, Cfe = x.shape
    hidden = pallas_ln_matmul(x.reshape(B * Lp1, Cfe),
                              params["fp_ln_g"], params["fp_ln_b"],
                              params["fp_w"], params["fp_b"]).reshape(B, Lp1, HIDDEN)
    hidden, out_len = encoder(params, hidden, length)
    logits = pallas_masked_mean_cls(hidden, out_len, params["cls_w"], params["cls_b"])
    return logits


# ----------------------------------------------------------------------------
# Deterministic parameter init (bf16 matmul weights, f32 biases / norm params)
# ----------------------------------------------------------------------------
def init_params(key):
    keys = iter(jax.random.split(key, 128))

    def nrm(shape, scale=0.02):
        return scale * jax.random.normal(next(keys), shape, jnp.float32)

    bf = lambda a: a.astype(jnp.bfloat16)

    params = {}
    conv = []
    # layer 0: Cin = 1, weight stored (K, Cout) for the single-tap-frame matmul kernel
    w0 = nrm((CONV_DIM[0], 1, CONV_KERNEL[0]), 0.1)               # torch (Cout, 1, K)
    conv.append({
        "weight_ko": bf(jnp.transpose(w0[:, 0, :], (1, 0))),      # (K, Cout)
        "gn_gamma": 1.0 + nrm((CONV_DIM[0],), 0.01),
        "gn_beta": nrm((CONV_DIM[0],), 0.01),
    })
    cin = CONV_DIM[0]
    for li in range(1, len(CONV_KERNEL)):
        cout = CONV_DIM[li]
        w = nrm((cout, cin, CONV_KERNEL[li]), 0.1)                 # torch (Cout, Cin, K)
        conv.append({"weight_kio": bf(jnp.transpose(w, (2, 1, 0)))})   # (K, Cin, Cout)
        cin = cout
    params["conv"] = conv

    C = CONV_DIM[-1]
    params["fp_ln_g"] = 1.0 + nrm((C,), 0.01)
    params["fp_ln_b"] = nrm((C,), 0.01)
    params["fp_w"] = bf(nrm((C, HIDDEN)))
    params["fp_b"] = nrm((HIDDEN,))

    # grouped positional conv densified to a block-diagonal (K, C, C) weight
    G, K = POS_CONV_GROUPS, POS_CONV_KERNEL
    Cg = HIDDEN // G
    w_g = nrm((HIDDEN, Cg, K), 0.05)                               # torch (Cout, Cin/G, K)
    w_dense = jnp.zeros((K, HIDDEN, HIDDEN), jnp.float32)
    for g in range(G):
        blk = w_g[g * Cg:(g + 1) * Cg]                             # (Cg_out, Cg_in, K)
        w_dense = w_dense.at[:, g * Cg:(g + 1) * Cg, g * Cg:(g + 1) * Cg].set(
            jnp.transpose(blk, (2, 1, 0)))                         # (K, Cg_in, Cg_out)
    params["pos_conv_w"] = bf(w_dense)
    params["pos_conv_b"] = nrm((HIDDEN,))
    params["enc_ln_g"] = 1.0 + nrm((HIDDEN,), 0.01)
    params["enc_ln_b"] = nrm((HIDDEN,), 0.01)

    layers = []
    for _ in range(NUM_LAYERS):
        wq, wk, wv = nrm((HIDDEN, HIDDEN)), nrm((HIDDEN, HIDDEN)), nrm((HIDDEN, HIDDEN))
        bq, bk, bv = nrm((HIDDEN,)), nrm((HIDDEN,)), nrm((HIDDEN,))
        layers.append({
            "w_qkv": bf(jnp.concatenate([wq, wk, wv], axis=1)),    # fused (C, 3C)
            "b_qkv": jnp.concatenate([bq, bk, bv]),
            "wo": bf(nrm((HIDDEN, HIDDEN))), "bo": nrm((HIDDEN,)),
            "ln1_g": 1.0 + nrm((HIDDEN,), 0.01), "ln1_b": nrm((HIDDEN,), 0.01),
            "w1": bf(nrm((HIDDEN, FFN))), "b1": nrm((FFN,)),
            "w2": bf(nrm((FFN, HIDDEN))), "b2": nrm((HIDDEN,)),
            "ln2_g": 1.0 + nrm((HIDDEN,), 0.01), "ln2_b": nrm((HIDDEN,), 0.01),
        })
    params["layers"] = layers

    params["cls_w"] = nrm((HIDDEN, NUM_CLASSES))
    params["cls_b"] = nrm((NUM_CLASSES,))
    return params


# ----------------------------------------------------------------------------
if __name__ == "__main__":
    key = jax.random.PRNGKey(0)
    pkey, xkey = jax.random.split(key)
    params = init_params(pkey)

    B, T = 2, 400                                  # small raw-waveform input
    audio = jax.random.normal(xkey, (B, T), jnp.float32)
    length = jnp.array([400, 320], jnp.int32)      # valid samples per batch element

    fwd = jax.jit(wav2vec2_emonet_forward)
    logits = fwd(params, audio, length)
    logits = jax.block_until_ready(logits)
    assert logits.shape == (B, NUM_CLASSES)
    assert bool(jnp.all(jnp.isfinite(logits)))
    print("KERNEL_OK")
</pallas_src>

<mosaic_0001>
module attributes {stable_mosaic.version = 11 : i64} {
  func.func @_conv0_gn_gelu_mean_kernel(%arg0: i32, %arg1: memref<1x79x10xf32, #tpu.memory_space<vmem>>, %arg2: memref<10x128xbf16, #tpu.memory_space<vmem>>, %arg3: memref<1x128xf32, #tpu.memory_space<vmem>>, %arg4: memref<1x128xf32, #tpu.memory_space<vmem>>, %arg5: memref<1x1x1xf32, #tpu.memory_space<vmem>>, %arg6: memref<1x79x128xf32, #tpu.memory_space<vmem>>, %arg7: memref<1x1x128xf32, #tpu.memory_space<vmem>>) attributes {dimension_semantics = [#tpu.dimension_semantics<parallel>], iteration_bounds = array<i64: 2>, scalar_prefetch = 0 : i64, scratch_operands = 0 : i64, tpu.core_type = #tpu.core_type<tc>, window_params = [{transform_indices = @transform_0, window_bounds = array<i64: 1, 79, 10>}, {pipeline_mode = #tpu.pipeline_mode<synchronous>, transform_indices = @transform_1, window_bounds = array<i64: 10, 128>}, {pipeline_mode = #tpu.pipeline_mode<synchronous>, transform_indices = @transform_2, window_bounds = array<i64: 1, 128>}, {pipeline_mode = #tpu.pipeline_mode<synchronous>, transform_indices = @transform_3, window_bounds = array<i64: 1, 128>}, {transform_indices = @transform_4, window_bounds = array<i64: 1, 1, 1>}, {transform_indices = @transform_5, window_bounds = array<i64: 1, 79, 128>}, {transform_indices = @transform_6, window_bounds = array<i64: 1, 1, 128>}]} {
    %c0 = arith.constant 0 : index
    %c0_0 = arith.constant 0 : index
    %c0_1 = arith.constant 0 : index
    %0 = vector.load %arg1[%c0, %c0_0, %c0_1] : memref<1x79x10xf32, #tpu.memory_space<vmem>>, vector<1x79x10xf32>
    %1 = vector.shape_cast %0 : vector<1x79x10xf32> to vector<79x10xf32>
    %2 = arith.truncf %1 : vector<79x10xf32> to vector<79x10xbf16>
    %c0_2 = arith.constant 0 : index
    %c0_3 = arith.constant 0 : index
    %3 = vector.load %arg2[%c0_2, %c0_3] : memref<10x128xbf16, #tpu.memory_space<vmem>>, vector<10x128xbf16>
    %cst = arith.constant dense<0.000000e+00> : vector<79x128xf32>
    %4 = tpu.matmul %2, %3, %cst {dimension_numbers = #tpu.dot_dimension_numbers<[1], [0], [0], [1], [0, 0, 1, 1], [], []>} : vector<79x10xbf16>, vector<10x128xbf16>, vector<79x128xf32> -> vector<79x128xf32>
    %cst_4 = arith.constant dense<0.000000e+00> : vector<128xf32>
    %5 = vector.multi_reduction <add>, %4, %cst_4 [0] : vector<79x128xf32> to vector<128xf32>
    %6 = vector.shape_cast %5 : vector<128xf32> to vector<1x128xf32>
    %cst_5 = arith.constant 7.900000e+01 : f32
    %7 = vector.broadcast %cst_5 : f32 to vector<1x128xf32>
    %8 = arith.divf %6, %7 : vector<1x128xf32>
    %9 = vector.broadcast %8 : vector<1x128xf32> to vector<79x128xf32>
    %10 = arith.subf %4, %9 : vector<79x128xf32>
    %11 = arith.mulf %10, %10 : vector<79x128xf32>
    %cst_6 = arith.constant dense<0.000000e+00> : vector<128xf32>
    %12 = vector.multi_reduction <add>, %11, %cst_6 [0] : vector<79x128xf32> to vector<128xf32>
    %13 = vector.shape_cast %12 : vector<128xf32> to vector<1x128xf32>
    %cst_7 = arith.constant 7.900000e+01 : f32
    %14 = vector.broadcast %cst_7 : f32 to vector<1x128xf32>
    %15 = arith.divf %13, %14 : vector<1x128xf32>
    %16 = vector.broadcast %8 : vector<1x128xf32> to vector<79x128xf32>
    %17 = arith.subf %4, %16 : vector<79x128xf32>
    %cst_8 = arith.constant 9.99999974E-6 : f32
    %18 = vector.broadcast %cst_8 : f32 to vector<1x128xf32>
    %19 = arith.addf %15, %18 : vector<1x128xf32>
    %20 = math.rsqrt %19 : vector<1x128xf32>
    %21 = vector.broadcast %20 : vector<1x128xf32> to vector<79x128xf32>
    %22 = arith.mulf %17, %21 : vector<79x128xf32>
    %c0_9 = arith.constant 0 : index
    %c0_10 = arith.constant 0 : index
    %23 = vector.load %arg3[%c0_9, %c0_10] : memref<1x128xf32, #tpu.memory_space<vmem>>, vector<1x128xf32>
    %24 = vector.broadcast %23 : vector<1x128xf32> to vector<79x128xf32>
    %25 = arith.mulf %22, %24 : vector<79x128xf32>
    %c0_11 = arith.constant 0 : index
    %c0_12 = arith.constant 0 : index
    %26 = vector.load %arg4[%c0_11, %c0_12] : memref<1x128xf32, #tpu.memory_space<vmem>>, vector<1x128xf32>
    %27 = vector.broadcast %26 : vector<1x128xf32> to vector<79x128xf32>
    %28 = arith.addf %25, %27 : vector<79x128xf32>
    %29 = arith.mulf %28, %28 : vector<79x128xf32>
    %30 = arith.mulf %28, %29 : vector<79x128xf32>
    %cst_13 = arith.constant 4.471500e-02 : f32
    %31 = vector.broadcast %cst_13 : f32 to vector<79x128xf32>
    %32 = arith.mulf %31, %30 : vector<79x128xf32>
    %33 = arith.addf %28, %32 : vector<79x128xf32>
    %cst_14 = arith.constant 0.797884583 : f32
    %34 = vector.broadcast %cst_14 : f32 to vector<79x128xf32>
    %35 = arith.mulf %34, %33 : vector<79x128xf32>
    %36 = math.tanh %35 : vector<79x128xf32>
    %cst_15 = arith.constant 1.000000e+00 : f32
    %37 = vector.broadcast %cst_15 : f32 to vector<79x128xf32>
    %38 = arith.addf %37, %36 : vector<79x128xf32>
    %cst_16 = arith.constant 5.000000e-01 : f32
    %39 = vector.broadcast %cst_16 : f32 to vector<79x128xf32>
    %40 = arith.mulf %39, %38 : vector<79x128xf32>
    %41 = arith.mulf %28, %40 : vector<79x128xf32>
    %c0_17 = arith.constant 0 : index
    %c0_18 = arith.constant 0 : index
    %c0_19 = arith.constant 0 : index
    %42 = vector.load %arg6[%c0_17, %c0_18, %c0_19] : memref<1x79x128xf32, #tpu.memory_space<vmem>>, vector<1x79x128xf32>
    %43 = vector.shape_cast %42 : vector<1x79x128xf32> to vector<79x128xf32>
    %44 = vector.shape_cast %41 : vector<79x128xf32> to vector<1x79x128xf32>
    tpu.vector_store %arg6[%c0_17, %c0_18, %c0_19], %44 {strides = array<i32>} : memref<1x79x128xf32, #tpu.memory_space<vmem>>, vector<1x79x128xf32>,
    %c0_20 = arith.constant 0 : index
    %c0_21 = arith.constant 0 : index
    %c0_22 = arith.constant 0 : index
    %45 = vector.load %arg5[%c0_20, %c0_21, %c0_22] : memref<1x1x1xf32, #tpu.memory_space<vmem>>, vector<1x1x1xf32>
    %46 = vector.shape_cast %45 : vector<1x1x1xf32> to vector<1x1xf32>
    %47 = tpu.iota {dimensions = array<i32: 1>} : vector<1x79xi32>
    %48 = arith.sitofp %47 : vector<1x79xi32> to vector<1x79xf32>
    %49 = vector.broadcast %46 : vector<1x1xf32> to vector<1x79xf32>
    %50 = arith.cmpf olt, %48, %49 : vector<1x79xf32>
    %51 = arith.extui %50 : vector<1x79xi1> to vector<1x79xi32>
    %52 = arith.sitofp %51 : vector<1x79xi32> to vector<1x79xf32>
    %cst_23 = arith.constant dense<0.000000e+00> : vector<1x128xf32>
    %53 = tpu.matmul %52, %41, %cst_23 {dimension_numbers = #tpu.dot_dimension_numbers<[1], [0], [0], [1], [0, 0, 1, 1], [], []>} : vector<1x79xf32>, vector<79x128xf32>, vector<1x128xf32> -> vector<1x128xf32>
    %54 = vector.broadcast %46 : vector<1x1xf32> to vector<1x128xf32>
    %55 = arith.divf %53, %54 : vector<1x128xf32>
    %c0_24 = arith.constant 0 : index
    %c0_25 = arith.constant 0 : index
    %c0_26 = arith.constant 0 : index
    %56 = vector.load %arg7[%c0_24, %c0_25, %c0_26] : memref<1x1x128xf32, #tpu.memory_space<vmem>>, vector<1x1x128xf32>
    %57 = vector.shape_cast %56 : vector<1x1x128xf32> to vector<1x128xf32>
    %58 = vector.shape_cast %55 : vector<1x128xf32> to vector<1x1x128xf32>
    tpu.vector_store %arg7[%c0_24, %c0_25, %c0_26], %58 {strides = array<i32>} : memref<1x1x128xf32, #tpu.memory_space<vmem>>, vector<1x1x128xf32>,
    return
  }
  func.func @transform_0(%arg0: i32) -> (i32, i32, i32) {
    %c0_i32 = arith.constant 0 : i32
    %c0_i32_0 = arith.constant 0 : i32
    %c0_i32_1 = arith.constant 0 : i32
    return %arg0, %c0_i32, %c0_i32_0 : i32, i32, i32
  }
  func.func @transform_1(%arg0: i32) -> (i32, i32) {
    %c0_i32 = arith.constant 0 : i32
    %c0_i32_0 = arith.constant 0 : i32
    %c0_i32_1 = arith.constant 0 : i32
    return %c0_i32, %c0_i32_0 : i32, i32
  }
  func.func @transform_2(%arg0: i32) -> (i32, i32) {
    %c0_i32 = arith.constant 0 : i32
    %c0_i32_0 = arith.constant 0 : i32
    %c0_i32_1 = arith.constant 0 : i32
    return %c0_i32, %c0_i32_0 : i32, i32
  }
  func.func @transform_3(%arg0: i32) -> (i32, i32) {
    %c0_i32 = arith.constant 0 : i32
    %c0_i32_0 = arith.constant 0 : i32
    %c0_i32_1 = arith.constant 0 : i32
    return %c0_i32, %c0_i32_0 : i32, i32
  }
  func.func @transform_4(%arg0: i32) -> (i32, i32, i32) {
    %c0_i32 = arith.constant 0 : i32
    %c0_i32_0 = arith.constant 0 : i32
    %c0_i32_1 = arith.constant 0 : i32
    return %arg0, %c0_i32, %c0_i32_0 : i32, i32, i32
  }
  func.func @transform_5(%arg0: i32) -> (i32, i32, i32) {
    %c0_i32 = arith.constant 0 : i32
    %c0_i32_0 = arith.constant 0 : i32
    %c0_i32_1 = arith.constant 0 : i32
    return %arg0, %c0_i32, %c0_i32_0 : i32, i32, i32
  }
  func.func @transform_6(%arg0: i32) -> (i32, i32, i32) {
    %c0_i32 = arith.constant 0 : i32
    %c0_i32_0 = arith.constant 0 : i32
    %c0_i32_1 = arith.constant 0 : i32
    return %arg0, %c0_i32, %c0_i32_0 : i32, i32, i32
  }
}

module attributes {stable_mosaic.version = 11 : i64} {
  func.func @_conv_gelu_mean_kernel(%arg0: i32, %arg1: memref<1x40x256xf32, #tpu.memory_space<vmem>>, %arg2: memref<3x128x128xbf16, #tpu.memory_space<vmem>>, %arg3: memref<1x1x1xf32, #tpu.memory_space<vmem>>, %arg4: memref<1x39x128xf32, #tpu.memory_space<vmem>>, %arg5: memref<1x1x128xf32, #tpu.memory_space<vmem>>) attributes {dimension_semantics = [#tpu.dimension_semantics<parallel>], iteration_bounds = array<i64: 2>, scalar_prefetch = 0 : i64, scratch_operands = 0 : i64, tpu.core_type = #tpu.core_type<tc>, window_params = [{transform_indices = @transform_0, window_bounds = array<i64: 1, 40, 256>}, {pipeline_mode = #tpu.pipeline_mode<synchronous>, transform_indices = @transform_1, window_bounds = array<i64: 3, 128, 128>}, {transform_indices = @transform_2, window_bounds = array<i64: 1, 1, 1>}, {transform_indices = @transform_3, window_bounds = array<i64: 1, 39, 128>}, {transform_indices = @transform_4, window_bounds = array<i64: 1, 1, 128>}]} {
    %c0 = arith.constant 0 : index
    %c0_0 = arith.constant 0 : index
    %c0_1 = arith.constant 0 : index
    %0 = vector.load %arg1[%c0, %c0_0, %c0_1] : memref<1x40x256xf32, #tpu.memory_space<vmem>>, vector<1x40x256xf32>
    %1 = vector.shape_cast %0 : vector<1x40x256xf32> to vector<40x256xf32>
    %cst = arith.constant 0.000000e+00 : f32
    %2 = vector.broadcast %cst : f32 to vector<39x128xf32>
    %3 = vector.extract_strided_slice %1 {offsets = [0, 0], sizes = [39, 128], strides = [1, 1]} : vector<40x256xf32> to vector<39x128xf32>
    %4 = arith.truncf %3 : vector<39x128xf32> to vector<39x128xbf16>
    %c0_2 = arith.constant 0 : index
    %c0_3 = arith.constant 0 : index
    %c0_4 = arith.constant 0 : index
    %5 = vector.load %arg2[%c0_2, %c0_3, %c0_4] : memref<3x128x128xbf16, #tpu.memory_space<vmem>>, vector<1x128x128xbf16>
    %6 = vector.shape_cast %5 : vector<1x128x128xbf16> to vector<128x128xbf16>
    %cst_5 = arith.constant dense<0.000000e+00> : vector<39x128xf32>
    %7 = tpu.matmul %4, %6, %cst_5 {dimension_numbers = #tpu.dot_dimension_numbers<[1], [0], [0], [1], [0, 0, 1, 1], [], []>} : vector<39x128xbf16>, vector<128x128xbf16>, vector<39x128xf32> -> vector<39x128xf32>
    %8 = arith.addf %2, %7 : vector<39x128xf32>
    %9 = vector.extract_strided_slice %1 {offsets = [0, 128], sizes = [39, 128], strides = [1, 1]} : vector<40x256xf32> to vector<39x128xf32>
    %10 = arith.truncf %9 : vector<39x128xf32> to vector<39x128xbf16>
    %c1 = arith.constant 1 : index
    %c0_6 = arith.constant 0 : index
    %c0_7 = arith.constant 0 : index
    %11 = vector.load %arg2[%c1, %c0_6, %c0_7] : memref<3x128x128xbf16, #tpu.memory_space<vmem>>, vector<1x128x128xbf16>
    %12 = vector.shape_cast %11 : vector<1x128x128xbf16> to vector<128x128xbf16>
    %cst_8 = arith.constant dense<0.000000e+00> : vector<39x128xf32>
    %13 = tpu.matmul %10, %12, %cst_8 {dimension_numbers = #tpu.dot_dimension_numbers<[1], [0], [0], [1], [0, 0, 1, 1], [], []>} : vector<39x128xbf16>, vector<128x128xbf16>, vector<39x128xf32> -> vector<39x128xf32>
    %14 = arith.addf %8, %13 : vector<39x128xf32>
    %15 = vector.extract_strided_slice %1 {offsets = [1, 0], sizes = [39, 128], strides = [1, 1]} : vector<40x256xf32> to vector<39x128xf32>
    %16 = arith.truncf %15 : vector<39x128xf32> to vector<39x128xbf16>
    %c2 = arith.constant 2 : index
    %c0_9 = arith.constant 0 : index
    %c0_10 = arith.constant 0 : index
    %17 = vector.load %arg2[%c2, %c0_9, %c0_10] : memref<3x128x128xbf16, #tpu.memory_space<vmem>>, vector<1x128x128xbf16>
    %18 = vector.shape_cast %17 : vector<1x128x128xbf16> to vector<128x128xbf16>
    %cst_11 = arith.constant dense<0.000000e+00> : vector<39x128xf32>
    %19 = tpu.matmul %16, %18, %cst_11 {dimension_numbers = #tpu.dot_dimension_numbers<[1], [0], [0], [1], [0, 0, 1, 1], [], []>} : vector<39x128xbf16>, vector<128x128xbf16>, vector<39x128xf32> -> vector<39x128xf32>
    %20 = arith.addf %14, %19 : vector<39x128xf32>
    %21 = arith.mulf %20, %20 : vector<39x128xf32>
    %22 = arith.mulf %20, %21 : vector<39x128xf32>
    %cst_12 = arith.constant 4.471500e-02 : f32
    %23 = vector.broadcast %cst_12 : f32 to vector<39x128xf32>
    %24 = arith.mulf %23, %22 : vector<39x128xf32>
    %25 = arith.addf %20, %24 : vector<39x128xf32>
    %cst_13 = arith.constant 0.797884583 : f32
    %26 = vector.broadcast %cst_13 : f32 to vector<39x128xf32>
    %27 = arith.mulf %26, %25 : vector<39x128xf32>
    %28 = math.tanh %27 : vector<39x128xf32>
    %cst_14 = arith.constant 1.000000e+00 : f32
    %29 = vector.broadcast %cst_14 : f32 to vector<39x128xf32>
    %30 = arith.addf %29, %28 : vector<39x128xf32>
    %cst_15 = arith.constant 5.000000e-01 : f32
    %31 = vector.broadcast %cst_15 : f32 to vector<39x128xf32>
    %32 = arith.mulf %31, %30 : vector<39x128xf32>
    %33 = arith.mulf %20, %32 : vector<39x128xf32>
    %c0_16 = arith.constant 0 : index
    %c0_17 = arith.constant 0 : index
    %c0_18 = arith.constant 0 : index
    %34 = vector.load %arg4[%c0_16, %c0_17, %c0_18] : memref<1x39x128xf32, #tpu.memory_space<vmem>>, vector<1x39x128xf32>
    %35 = vector.shape_cast %34 : vector<1x39x128xf32> to vector<39x128xf32>
    %36 = vector.shape_cast %33 : vector<39x128xf32> to vector<1x39x128xf32>
    tpu.vector_store %arg4[%c0_16, %c0_17, %c0_18], %36 {strides = array<i32>} : memref<1x39x128xf32, #tpu.memory_space<vmem>>, vector<1x39x128xf32>,
    %c0_19 = arith.constant 0 : index
    %c0_20 = arith.constant 0 : index
    %c0_21 = arith.constant 0 : index
    %37 = vector.load %arg3[%c0_19, %c0_20, %c0_21] : memref<1x1x1xf32, #tpu.memory_space<vmem>>, vector<1x1x1xf32>
    %38 = vector.shape_cast %37 : vector<1x1x1xf32> to vector<1x1xf32>
    %39 = tpu.iota {dimensions = array<i32: 1>} : vector<1x39xi32>
    %40 = arith.sitofp %39 : vector<1x39xi32> to vector<1x39xf32>
    %41 = vector.broadcast %38 : vector<1x1xf32> to vector<1x39xf32>
    %42 = arith.cmpf olt, %40, %41 : vector<1x39xf32>
    %43 = arith.extui %42 : vector<1x39xi1> to vector<1x39xi32>
    %44 = arith.sitofp %43 : vector<1x39xi32> to vector<1x39xf32>
    %cst_22 = arith.constant dense<0.000000e+00> : vector<1x128xf32>
    %45 = tpu.matmul %44, %33, %cst_22 {dimension_numbers = #tpu.dot_dimension_numbers<[1], [0], [0], [1], [0, 0, 1, 1], [], []>} : vector<1x39xf32>, vector<39x128xf32>, vector<1x128xf32> -> vector<1x128xf32>
    %46 = vector.broadcast %38 : vector<1x1xf32> to vector<1x128xf32>
    %47 = arith.divf %45, %46 : vector<1x128xf32>
    %c0_23 = arith.constant 0 : index
    %c0_24 = arith.constant 0 : index
    %c0_25 = arith.constant 0 : index
    %48 = vector.load %arg5[%c0_23, %c0_24, %c0_25] : memref<1x1x128xf32, #tpu.memory_space<vmem>>, vector<1x1x128xf32>
    %49 = vector.shape_cast %48 : vector<1x1x128xf32> to vector<1x128xf32>
    %50 = vector.shape_cast %47 : vector<1x128xf32> to vector<1x1x128xf32>
    tpu.vector_store %arg5[%c0_23, %c0_24, %c0_25], %50 {strides = array<i32>} : memref<1x1x128xf32, #tpu.memory_space<vmem>>, vector<1x1x128xf32>,
    return
  }
  func.func @transform_0(%arg0: i32) -> (i32, i32, i32) {
    %c0_i32 = arith.constant 0 : i32
    %c0_i32_0 = arith.constant 0 : i32
    %c0_i32_1 = arith.constant 0 : i32
    return %arg0, %c0_i32, %c0_i32_0 : i32, i32, i32
  }
  func.func @transform_1(%arg0: i32) -> (i32, i32, i32) {
    %c0_i32 = arith.constant 0 : i32
    %c0_i32_0 = arith.constant 0 : i32
    %c0_i32_1 = arith.constant 0 : i32
    %c0_i32_2 = arith.constant 0 : i32
    return %c0_i32, %c0_i32_0, %c0_i32_1 : i32, i32, i32
  }
  func.func @transform_2(%arg0: i32) -> (i32, i32, i32) {
    %c0_i32 = arith.constant 0 : i32
    %c0_i32_0 = arith.constant 0 : i32
    %c0_i32_1 = arith.constant 0 : i32
    return %arg0, %c0_i32, %c0_i32_0 : i32, i32, i32
  }
  func.func @transform_3(%arg0: i32) -> (i32, i32, i32) {
    %c0_i32 = arith.constant 0 : i32
    %c0_i32_0 = arith.constant 0 : i32
    %c0_i32_1 = arith.constant 0 : i32
    return %arg0, %c0_i32, %c0_i32_0 : i32, i32, i32
  }
  func.func @transform_4(%arg0: i32) -> (i32, i32, i32) {
    %c0_i32 = arith.constant 0 : i32
    %c0_i32_0 = arith.constant 0 : i32
    %c0_i32_1 = arith.constant 0 : i32
    return %arg0, %c0_i32, %c0_i32_0 : i32, i32, i32
  }
}

module attributes {stable_mosaic.version = 11 : i64} {
  func.func @_conv_gelu_mean_kernel(%arg0: i32, %arg1: memref<1x19x256xf32, #tpu.memory_space<vmem>>, %arg2: memref<2x128x128xbf16, #tpu.memory_space<vmem>>, %arg3: memref<1x1x1xf32, #tpu.memory_space<vmem>>, %arg4: memref<1x19x128xf32, #tpu.memory_space<vmem>>, %arg5: memref<1x1x128xf32, #tpu.memory_space<vmem>>) attributes {dimension_semantics = [#tpu.dimension_semantics<parallel>], iteration_bounds = array<i64: 2>, scalar_prefetch = 0 : i64, scratch_operands = 0 : i64, tpu.core_type = #tpu.core_type<tc>, window_params = [{transform_indices = @transform_0, window_bounds = array<i64: 1, 19, 256>}, {pipeline_mode = #tpu.pipeline_mode<synchronous>, transform_indices = @transform_1, window_bounds = array<i64: 2, 128, 128>}, {transform_indices = @transform_2, window_bounds = array<i64: 1, 1, 1>}, {transform_indices = @transform_3, window_bounds = array<i64: 1, 19, 128>}, {transform_indices = @transform_4, window_bounds = array<i64: 1, 1, 128>}]} {
    %c0 = arith.constant 0 : index
    %c0_0 = arith.constant 0 : index
    %c0_1 = arith.constant 0 : index
    %0 = vector.load %arg1[%c0, %c0_0, %c0_1] : memref<1x19x256xf32, #tpu.memory_space<vmem>>, vector<1x19x256xf32>
    %1 = vector.shape_cast %0 : vector<1x19x256xf32> to vector<19x256xf32>
    %cst = arith.constant 0.000000e+00 : f32
    %2 = vector.broadcast %cst : f32 to vector<19x128xf32>
    %3 = vector.extract_strided_slice %1 {offsets = [0, 0], sizes = [19, 128], strides = [1, 1]} : vector<19x256xf32> to vector<19x128xf32>
    %4 = arith.truncf %3 : vector<19x128xf32> to vector<19x128xbf16>
    %c0_2 = arith.constant 0 : index
    %c0_3 = arith.constant 0 : index
    %c0_4 = arith.constant 0 : index
    %5 = vector.load %arg2[%c0_2, %c0_3, %c0_4] : memref<2x128x128xbf16, #tpu.memory_space<vmem>>, vector<1x128x128xbf16>
    %6 = vector.shape_cast %5 : vector<1x128x128xbf16> to vector<128x128xbf16>
    %cst_5 = arith.constant dense<0.000000e+00> : vector<19x128xf32>
    %7 = tpu.matmul %4, %6, %cst_5 {dimension_numbers = #tpu.dot_dimension_numbers<[1], [0], [0], [1], [0, 0, 1, 1], [], []>} : vector<19x128xbf16>, vector<128x128xbf16>, vector<19x128xf32> -> vector<19x128xf32>
    %8 = arith.addf %2, %7 : vector<19x128xf32>
    %9 = vector.extract_strided_slice %1 {offsets = [0, 128], sizes = [19, 128], strides = [1, 1]} : vector<19x256xf32> to vector<19x128xf32>
    %10 = arith.truncf %9 : vector<19x128xf32> to vector<19x128xbf16>
    %c1 = arith.constant 1 : index
    %c0_6 = arith.constant 0 : index
    %c0_7 = arith.constant 0 : index
    %11 = vector.load %arg2[%c1, %c0_6, %c0_7] : memref<2x128x128xbf16, #tpu.memory_space<vmem>>, vector<1x128x128xbf16>
    %12 = vector.shape_cast %11 : vector<1x128x128xbf16> to vector<128x128xbf16>
    %cst_8 = arith.constant dense<0.000000e+00> : vector<19x128xf32>
    %13 = tpu.matmul %10, %12, %cst_8 {dimension_numbers = #tpu.dot_dimension_numbers<[1], [0], [0], [1], [0, 0, 1, 1], [], []>} : vector<19x128xbf16>, vector<128x128xbf16>, vector<19x128xf32> -> vector<19x128xf32>
    %14 = arith.addf %8, %13 : vector<19x128xf32>
    %15 = arith.mulf %14, %14 : vector<19x128xf32>
    %16 = arith.mulf %14, %15 : vector<19x128xf32>
    %cst_9 = arith.constant 4.471500e-02 : f32
    %17 = vector.broadcast %cst_9 : f32 to vector<19x128xf32>
    %18 = arith.mulf %17, %16 : vector<19x128xf32>
    %19 = arith.addf %14, %18 : vector<19x128xf32>
    %cst_10 = arith.constant 0.797884583 : f32
    %20 = vector.broadcast %cst_10 : f32 to vector<19x128xf32>
    %21 = arith.mulf %20, %19 : vector<19x128xf32>
    %22 = math.tanh %21 : vector<19x128xf32>
    %cst_11 = arith.constant 1.000000e+00 : f32
    %23 = vector.broadcast %cst_11 : f32 to vector<19x128xf32>
    %24 = arith.addf %23, %22 : vector<19x128xf32>
    %cst_12 = arith.constant 5.000000e-01 : f32
    %25 = vector.broadcast %cst_12 : f32 to vector<19x128xf32>
    %26 = arith.mulf %25, %24 : vector<19x128xf32>
    %27 = arith.mulf %14, %26 : vector<19x128xf32>
    %c0_13 = arith.constant 0 : index
    %c0_14 = arith.constant 0 : index
    %c0_15 = arith.constant 0 : index
    %28 = vector.load %arg4[%c0_13, %c0_14, %c0_15] : memref<1x19x128xf32, #tpu.memory_space<vmem>>, vector<1x19x128xf32>
    %29 = vector.shape_cast %28 : vector<1x19x128xf32> to vector<19x128xf32>
    %30 = vector.shape_cast %27 : vector<19x128xf32> to vector<1x19x128xf32>
    tpu.vector_store %arg4[%c0_13, %c0_14, %c0_15], %30 {strides = array<i32>} : memref<1x19x128xf32, #tpu.memory_space<vmem>>, vector<1x19x128xf32>,
    %c0_16 = arith.constant 0 : index
    %c0_17 = arith.constant 0 : index
    %c0_18 = arith.constant 0 : index
    %31 = vector.load %arg3[%c0_16, %c0_17, %c0_18] : memref<1x1x1xf32, #tpu.memory_space<vmem>>, vector<1x1x1xf32>
    %32 = vector.shape_cast %31 : vector<1x1x1xf32> to vector<1x1xf32>
    %33 = tpu.iota {dimensions = array<i32: 1>} : vector<1x19xi32>
    %34 = arith.sitofp %33 : vector<1x19xi32> to vector<1x19xf32>
    %35 = vector.broadcast %32 : vector<1x1xf32> to vector<1x19xf32>
    %36 = arith.cmpf olt, %34, %35 : vector<1x19xf32>
    %37 = arith.extui %36 : vector<1x19xi1> to vector<1x19xi32>
    %38 = arith.sitofp %37 : vector<1x19xi32> to vector<1x19xf32>
    %cst_19 = arith.constant dense<0.000000e+00> : vector<1x128xf32>
    %39 = tpu.matmul %38, %27, %cst_19 {dimension_numbers = #tpu.dot_dimension_numbers<[1], [0], [0], [1], [0, 0, 1, 1], [], []>} : vector<1x19xf32>, vector<19x128xf32>, vector<1x128xf32> -> vector<1x128xf32>
    %40 = vector.broadcast %32 : vector<1x1xf32> to vector<1x128xf32>
    %41 = arith.divf %39, %40 : vector<1x128xf32>
    %c0_20 = arith.constant 0 : index
    %c0_21 = arith.constant 0 : index
    %c0_22 = arith.constant 0 : index
    %42 = vector.load %arg5[%c0_20, %c0_21, %c0_22] : memref<1x1x128xf32, #tpu.memory_space<vmem>>, vector<1x1x128xf32>
    %43 = vector.shape_cast %42 : vector<1x1x128xf32> to vector<1x128xf32>
    %44 = vector.shape_cast %41 : vector<1x128xf32> to vector<1x1x128xf32>
    tpu.vector_store %arg5[%c0_20, %c0_21, %c0_22], %44 {strides = array<i32>} : memref<1x1x128xf32, #tpu.memory_space<vmem>>, vector<1x1x128xf32>,
    return
  }
  func.func @transform_0(%arg0: i32) -> (i32, i32, i32) {
    %c0_i32 = arith.constant 0 : i32
    %c0_i32_0 = arith.constant 0 : i32
    %c0_i32_1 = arith.constant 0 : i32
    return %arg0, %c0_i32, %c0_i32_0 : i32, i32, i32
  }
  func.func @transform_1(%arg0: i32) -> (i32, i32, i32) {
    %c0_i32 = arith.constant 0 : i32
    %c0_i32_0 = arith.constant 0 : i32
    %c0_i32_1 = arith.constant 0 : i32
    %c0_i32_2 = arith.constant 0 : i32
    return %c0_i32, %c0_i32_0, %c0_i32_1 : i32, i32, i32
  }
  func.func @transform_2(%arg0: i32) -> (i32, i32, i32) {
    %c0_i32 = arith.constant 0 : i32
    %c0_i32_0 = arith.constant 0 : i32
    %c0_i32_1 = arith.constant 0 : i32
    return %arg0, %c0_i32, %c0_i32_0 : i32, i32, i32
  }
  func.func @transform_3(%arg0: i32) -> (i32, i32, i32) {
    %c0_i32 = arith.constant 0 : i32
    %c0_i32_0 = arith.constant 0 : i32
    %c0_i32_1 = arith.constant 0 : i32
    return %arg0, %c0_i32, %c0_i32_0 : i32, i32, i32
  }
  func.func @transform_4(%arg0: i32) -> (i32, i32, i32) {
    %c0_i32 = arith.constant 0 : i32
    %c0_i32_0 = arith.constant 0 : i32
    %c0_i32_1 = arith.constant 0 : i32
    return %arg0, %c0_i32, %c0_i32_0 : i32, i32, i32
  }
}

module attributes {stable_mosaic.version = 11 : i64} {
  func.func @_ln_matmul_kernel(%arg0: i32, %arg1: memref<40x128xf32, #tpu.memory_space<vmem>>, %arg2: memref<1x128xf32, #tpu.memory_space<vmem>>, %arg3: memref<1x128xf32, #tpu.memory_space<vmem>>, %arg4: memref<128x128xbf16, #tpu.memory_space<vmem>>, %arg5: memref<1x128xf32, #tpu.memory_space<vmem>>, %arg6: memref<40x128xf32, #tpu.memory_space<vmem>>) attributes {dimension_semantics = [#tpu.dimension_semantics<parallel>], iteration_bounds = array<i64: 1>, scalar_prefetch = 0 : i64, scratch_operands = 0 : i64, tpu.core_type = #tpu.core_type<tc>, window_params = [{transform_indices = @transform_0, window_bounds = array<i64: 40, 128>}, {pipeline_mode = #tpu.pipeline_mode<synchronous>, transform_indices = @transform_1, window_bounds = array<i64: 1, 128>}, {pipeline_mode = #tpu.pipeline_mode<synchronous>, transform_indices = @transform_2, window_bounds = array<i64: 1, 128>}, {pipeline_mode = #tpu.pipeline_mode<synchronous>, transform_indices = @transform_3, window_bounds = array<i64: 128, 128>}, {pipeline_mode = #tpu.pipeline_mode<synchronous>, transform_indices = @transform_4, window_bounds = array<i64: 1, 128>}, {transform_indices = @transform_5, window_bounds = array<i64: 40, 128>}]} {
    %c0 = arith.constant 0 : index
    %c0_0 = arith.constant 0 : index
    %0 = vector.load %arg1[%c0, %c0_0] : memref<40x128xf32, #tpu.memory_space<vmem>>, vector<40x128xf32>
    %c0_1 = arith.constant 0 : index
    %c0_2 = arith.constant 0 : index
    %1 = vector.load %arg2[%c0_1, %c0_2] : memref<1x128xf32, #tpu.memory_space<vmem>>, vector<1x128xf32>
    %c0_3 = arith.constant 0 : index
    %c0_4 = arith.constant 0 : index
    %2 = vector.load %arg3[%c0_3, %c0_4] : memref<1x128xf32, #tpu.memory_space<vmem>>, vector<1x128xf32>
    %cst = arith.constant dense<0.000000e+00> : vector<40xf32>
    %3 = vector.multi_reduction <add>, %0, %cst [1] : vector<40x128xf32> to vector<40xf32>
    %4 = vector.shape_cast %3 : vector<40xf32> to vector<40x1xf32>
    %cst_5 = arith.constant 1.280000e+02 : f32
    %5 = vector.broadcast %cst_5 : f32 to vector<40x1xf32>
    %6 = arith.divf %4, %5 : vector<40x1xf32>
    %7 = vector.broadcast %6 : vector<40x1xf32> to vector<40x128xf32>
    %8 = arith.subf %0, %7 : vector<40x128xf32>
    %9 = arith.mulf %8, %8 : vector<40x128xf32>
    %cst_6 = arith.constant dense<0.000000e+00> : vector<40xf32>
    %10 = vector.multi_reduction <add>, %9, %cst_6 [1] : vector<40x128xf32> to vector<40xf32>
    %11 = vector.shape_cast %10 : vector<40xf32> to vector<40x1xf32>
    %cst_7 = arith.constant 1.280000e+02 : f32
    %12 = vector.broadcast %cst_7 : f32 to vector<40x1xf32>
    %13 = arith.divf %11, %12 : vector<40x1xf32>
    %14 = vector.broadcast %6 : vector<40x1xf32> to vector<40x128xf32>
    %15 = arith.subf %0, %14 : vector<40x128xf32>
    %cst_8 = arith.constant 9.99999974E-6 : f32
    %16 = vector.broadcast %cst_8 : f32 to vector<40x1xf32>
    %17 = arith.addf %13, %16 : vector<40x1xf32>
    %18 = math.rsqrt %17 : vector<40x1xf32>
    %19 = vector.broadcast %18 : vector<40x1xf32> to vector<40x128xf32>
    %20 = arith.mulf %15, %19 : vector<40x128xf32>
    %21 = vector.broadcast %1 : vector<1x128xf32> to vector<40x128xf32>
    %22 = arith.mulf %20, %21 : vector<40x128xf32>
    %23 = vector.broadcast %2 : vector<1x128xf32> to vector<40x128xf32>
    %24 = arith.addf %22, %23 : vector<40x128xf32>
    %25 = arith.truncf %24 : vector<40x128xf32> to vector<40x128xbf16>
    %c0_9 = arith.constant 0 : index
    %c0_10 = arith.constant 0 : index
    %26 = vector.load %arg4[%c0_9, %c0_10] : memref<128x128xbf16, #tpu.memory_space<vmem>>, vector<128x128xbf16>
    %cst_11 = arith.constant dense<0.000000e+00> : vector<40x128xf32>
    %27 = tpu.matmul %25, %26, %cst_11 {dimension_numbers = #tpu.dot_dimension_numbers<[1], [0], [0], [1], [0, 0, 1, 1], [], []>} : vector<40x128xbf16>, vector<128x128xbf16>, vector<40x128xf32> -> vector<40x128xf32>
    %c0_12 = arith.constant 0 : index
    %c0_13 = arith.constant 0 : index
    %28 = vector.load %arg5[%c0_12, %c0_13] : memref<1x128xf32, #tpu.memory_space<vmem>>, vector<1x128xf32>
    %29 = vector.broadcast %28 : vector<1x128xf32> to vector<40x128xf32>
    %30 = arith.addf %27, %29 : vector<40x128xf32>
    %c0_14 = arith.constant 0 : index
    %c0_15 = arith.constant 0 : index
    %31 = vector.load %arg6[%c0_14, %c0_15] : memref<40x128xf32, #tpu.memory_space<vmem>>, vector<40x128xf32>
    tpu.vector_store %arg6[%c0_14, %c0_15], %30 {strides = array<i32>} : memref<40x128xf32, #tpu.memory_space<vmem>>, vector<40x128xf32>,
    return
  }
  func.func @transform_0(%arg0: i32) -> (i32, i32) {
    %c0_i32 = arith.constant 0 : i32
    %c0_i32_0 = arith.constant 0 : i32
    return %arg0, %c0_i32 : i32, i32
  }
  func.func @transform_1(%arg0: i32) -> (i32, i32) {
    %c0_i32 = arith.constant 0 : i32
    %c0_i32_0 = arith.constant 0 : i32
    %c0_i32_1 = arith.constant 0 : i32
    return %c0_i32, %c0_i32_0 : i32, i32
  }
  func.func @transform_2(%arg0: i32) -> (i32, i32) {
    %c0_i32 = arith.constant 0 : i32
    %c0_i32_0 = arith.constant 0 : i32
    %c0_i32_1 = arith.constant 0 : i32
    return %c0_i32, %c0_i32_0 : i32, i32
  }
  func.func @transform_3(%arg0: i32) -> (i32, i32) {
    %c0_i32 = arith.constant 0 : i32
    %c0_i32_0 = arith.constant 0 : i32
    %c0_i32_1 = arith.constant 0 : i32
    return %c0_i32, %c0_i32_0 : i32, i32
  }
  func.func @transform_4(%arg0: i32) -> (i32, i32) {
    %c0_i32 = arith.constant 0 : i32
    %c0_i32_0 = arith.constant 0 : i32
    %c0_i32_1 = arith.constant 0 : i32
    return %c0_i32, %c0_i32_0 : i32, i32
  }
  func.func @transform_5(%arg0: i32) -> (i32, i32) {
    %c0_i32 = arith.constant 0 : i32
    %c0_i32_0 = arith.constant 0 : i32
    return %arg0, %c0_i32 : i32, i32
  }
}

module attributes {stable_mosaic.version = 11 : i64} {
  func.func @_posconv_ln_kernel(%arg0: i32, %arg1: memref<1x20x128xf32, #tpu.memory_space<vmem>>, %arg2: memref<1x20x1xf32, #tpu.memory_space<vmem>>, %arg3: memref<4x128x128xbf16, #tpu.memory_space<vmem>>, %arg4: memref<1x128xf32, #tpu.memory_space<vmem>>, %arg5: memref<1x128xf32, #tpu.memory_space<vmem>>, %arg6: memref<1x128xf32, #tpu.memory_space<vmem>>, %arg7: memref<1x20x128xf32, #tpu.memory_space<vmem>>) attributes {dimension_semantics = [#tpu.dimension_semantics<parallel>], iteration_bounds = array<i64: 2>, scalar_prefetch = 0 : i64, scratch_operands = 0 : i64, tpu.core_type = #tpu.core_type<tc>, window_params = [{transform_indices = @transform_0, window_bounds = array<i64: 1, 20, 128>}, {transform_indices = @transform_1, window_bounds = array<i64: 1, 20, 1>}, {pipeline_mode = #tpu.pipeline_mode<synchronous>, transform_indices = @transform_2, window_bounds = array<i64: 4, 128, 128>}, {pipeline_mode = #tpu.pipeline_mode<synchronous>, transform_indices = @transform_3, window_bounds = array<i64: 1, 128>}, {pipeline_mode = #tpu.pipeline_mode<synchronous>, transform_indices = @transform_4, window_bounds = array<i64: 1, 128>}, {pipeline_mode = #tpu.pipeline_mode<synchronous>, transform_indices = @transform_5, window_bounds = array<i64: 1, 128>}, {transform_indices = @transform_6, window_bounds = array<i64: 1, 20, 128>}]} {
    %c0 = arith.constant 0 : index
    %c0_0 = arith.constant 0 : index
    %c0_1 = arith.constant 0 : index
    %0 = vector.load %arg1[%c0, %c0_0, %c0_1] : memref<1x20x128xf32, #tpu.memory_space<vmem>>, vector<1x20x128xf32>
    %1 = vector.shape_cast %0 : vector<1x20x128xf32> to vector<20x128xf32>
    %c0_2 = arith.constant 0 : index
    %c0_3 = arith.constant 0 : index
    %c0_4 = arith.constant 0 : index
    %2 = vector.load %arg2[%c0_2, %c0_3, %c0_4] : memref<1x20x1xf32, #tpu.memory_space<vmem>>, vector<1x20x1xf32>
    %3 = vector.shape_cast %2 : vector<1x20x1xf32> to vector<20x1xf32>
    %4 = vector.broadcast %3 : vector<20x1xf32> to vector<20x128xf32>
    %5 = arith.mulf %1, %4 : vector<20x128xf32>
    %cst = arith.constant 0.000000e+00 : f32
    %6 = vector.broadcast %cst : f32 to vector<2x128xf32>
    %7 = tpu.concatenate %6, %5, %6 in 0 : vector<2x128xf32>, vector<20x128xf32>, vector<2x128xf32> -> vector<24x128xf32>
    %cst_5 = arith.constant 0.000000e+00 : f32
    %8 = vector.broadcast %cst_5 : f32 to vector<20x128xf32>
    %9 = vector.extract_strided_slice %7 {offsets = [0, 0], sizes = [20, 128], strides = [1, 1]} : vector<24x128xf32> to vector<20x128xf32>
    %10 = arith.truncf %9 : vector<20x128xf32> to vector<20x128xbf16>
    %c0_6 = arith.constant 0 : index
    %c0_7 = arith.constant 0 : index
    %c0_8 = arith.constant 0 : index
    %11 = vector.load %arg3[%c0_6, %c0_7, %c0_8] : memref<4x128x128xbf16, #tpu.memory_space<vmem>>, vector<1x128x128xbf16>
    %12 = vector.shape_cast %11 : vector<1x128x128xbf16> to vector<128x128xbf16>
    %cst_9 = arith.constant dense<0.000000e+00> : vector<20x128xf32>
    %13 = tpu.matmul %10, %12, %cst_9 {dimension_numbers = #tpu.dot_dimension_numbers<[1], [0], [0], [1], [0, 0, 1, 1], [], []>} : vector<20x128xbf16>, vector<128x128xbf16>, vector<20x128xf32> -> vector<20x128xf32>
    %14 = arith.addf %8, %13 : vector<20x128xf32>
    %15 = vector.extract_strided_slice %7 {offsets = [1, 0], sizes = [20, 128], strides = [1, 1]} : vector<24x128xf32> to vector<20x128xf32>
    %16 = arith.truncf %15 : vector<20x128xf32> to vector<20x128xbf16>
    %c1 = arith.constant 1 : index
    %c0_10 = arith.constant 0 : index
    %c0_11 = arith.constant 0 : index
    %17 = vector.load %arg3[%c1, %c0_10, %c0_11] : memref<4x128x128xbf16, #tpu.memory_space<vmem>>, vector<1x128x128xbf16>
    %18 = vector.shape_cast %17 : vector<1x128x128xbf16> to vector<128x128xbf16>
    %cst_12 = arith.constant dense<0.000000e+00> : vector<20x128xf32>
    %19 = tpu.matmul %16, %18, %cst_12 {dimension_numbers = #tpu.dot_dimension_numbers<[1], [0], [0], [1], [0, 0, 1, 1], [], []>} : vector<20x128xbf16>, vector<128x128xbf16>, vector<20x128xf32> -> vector<20x128xf32>
    %20 = arith.addf %14, %19 : vector<20x128xf32>
    %21 = vector.extract_strided_slice %7 {offsets = [2, 0], sizes = [20, 128], strides = [1, 1]} : vector<24x128xf32> to vector<20x128xf32>
    %22 = arith.truncf %21 : vector<20x128xf32> to vector<20x128xbf16>
    %c2 = arith.constant 2 : index
    %c0_13 = arith.constant 0 : index
    %c0_14 = arith.constant 0 : index
    %23 = vector.load %arg3[%c2, %c0_13, %c0_14] : memref<4x128x128xbf16, #tpu.memory_space<vmem>>, vector<1x128x128xbf16>
    %24 = vector.shape_cast %23 : vector<1x128x128xbf16> to vector<128x128xbf16>
    %cst_15 = arith.constant dense<0.000000e+00> : vector<20x128xf32>
    %25 = tpu.matmul %22, %24, %cst_15 {dimension_numbers = #tpu.dot_dimension_numbers<[1], [0], [0], [1], [0, 0, 1, 1], [], []>} : vector<20x128xbf16>, vector<128x128xbf16>, vector<20x128xf32> -> vector<20x128xf32>
    %26 = arith.addf %20, %25 : vector<20x128xf32>
    %27 = vector.extract_strided_slice %7 {offsets = [3, 0], sizes = [20, 128], strides = [1, 1]} : vector<24x128xf32> to vector<20x128xf32>
    %28 = arith.truncf %27 : vector<20x128xf32> to vector<20x128xbf16>
    %c3 = arith.constant 3 : index
    %c0_16 = arith.constant 0 : index
    %c0_17 = arith.constant 0 : index
    %29 = vector.load %arg3[%c3, %c0_16, %c0_17] : memref<4x128x128xbf16, #tpu.memory_space<vmem>>, vector<1x128x128xbf16>
    %30 = vector.shape_cast %29 : vector<1x128x128xbf16> to vector<128x128xbf16>
    %cst_18 = arith.constant dense<0.000000e+00> : vector<20x128xf32>
    %31 = tpu.matmul %28, %30, %cst_18 {dimension_numbers = #tpu.dot_dimension_numbers<[1], [0], [0], [1], [0, 0, 1, 1], [], []>} : vector<20x128xbf16>, vector<128x128xbf16>, vector<20x128xf32> -> vector<20x128xf32>
    %32 = arith.addf %26, %31 : vector<20x128xf32>
    %c0_19 = arith.constant 0 : index
    %c0_20 = arith.constant 0 : index
    %33 = vector.load %arg4[%c0_19, %c0_20] : memref<1x128xf32, #tpu.memory_space<vmem>>, vector<1x128xf32>
    %34 = vector.broadcast %33 : vector<1x128xf32> to vector<20x128xf32>
    %35 = arith.addf %32, %34 : vector<20x128xf32>
    %36 = arith.mulf %35, %35 : vector<20x128xf32>
    %37 = arith.mulf %35, %36 : vector<20x128xf32>
    %cst_21 = arith.constant 4.471500e-02 : f32
    %38 = vector.broadcast %cst_21 : f32 to vector<20x128xf32>
    %39 = arith.mulf %38, %37 : vector<20x128xf32>
    %40 = arith.addf %35, %39 : vector<20x128xf32>
    %cst_22 = arith.constant 0.797884583 : f32
    %41 = vector.broadcast %cst_22 : f32 to vector<20x128xf32>
    %42 = arith.mulf %41, %40 : vector<20x128xf32>
    %43 = math.tanh %42 : vector<20x128xf32>
    %cst_23 = arith.constant 1.000000e+00 : f32
    %44 = vector.broadcast %cst_23 : f32 to vector<20x128xf32>
    %45 = arith.addf %44, %43 : vector<20x128xf32>
    %cst_24 = arith.constant 5.000000e-01 : f32
    %46 = vector.broadcast %cst_24 : f32 to vector<20x128xf32>
    %47 = arith.mulf %46, %45 : vector<20x128xf32>
    %48 = arith.mulf %35, %47 : vector<20x128xf32>
    %49 = arith.addf %5, %48 : vector<20x128xf32>
    %c0_25 = arith.constant 0 : index
    %c0_26 = arith.constant 0 : index
    %50 = vector.load %arg5[%c0_25, %c0_26] : memref<1x128xf32, #tpu.memory_space<vmem>>, vector<1x128xf32>
    %c0_27 = arith.constant 0 : index
    %c0_28 = arith.constant 0 : index
    %51 = vector.load %arg6[%c0_27, %c0_28] : memref<1x128xf32, #tpu.memory_space<vmem>>, vector<1x128xf32>
    %cst_29 = arith.constant dense<0.000000e+00> : vector<20xf32>
    %52 = vector.multi_reduction <add>, %49, %cst_29 [1] : vector<20x128xf32> to vector<20xf32>
    %53 = vector.shape_cast %52 : vector<20xf32> to vector<20x1xf32>
    %cst_30 = arith.constant 1.280000e+02 : f32
    %54 = vector.broadcast %cst_30 : f32 to vector<20x1xf32>
    %55 = arith.divf %53, %54 : vector<20x1xf32>
    %56 = vector.broadcast %55 : vector<20x1xf32> to vector<20x128xf32>
    %57 = arith.subf %49, %56 : vector<20x128xf32>
    %58 = arith.mulf %57, %57 : vector<20x128xf32>
    %cst_31 = arith.constant dense<0.000000e+00> : vector<20xf32>
    %59 = vector.multi_reduction <add>, %58, %cst_31 [1] : vector<20x128xf32> to vector<20xf32>
    %60 = vector.shape_cast %59 : vector<20xf32> to vector<20x1xf32>
    %cst_32 = arith.constant 1.280000e+02 : f32
    %61 = vector.broadcast %cst_32 : f32 to vector<20x1xf32>
    %62 = arith.divf %60, %61 : vector<20x1xf32>
    %63 = vector.broadcast %55 : vector<20x1xf32> to vector<20x128xf32>
    %64 = arith.subf %49, %63 : vector<20x128xf32>
    %cst_33 = arith.constant 9.99999974E-6 : f32
    %65 = vector.broadcast %cst_33 : f32 to vector<20x1xf32>
    %66 = arith.addf %62, %65 : vector<20x1xf32>
    %67 = math.rsqrt %66 : vector<20x1xf32>
    %68 = vector.broadcast %67 : vector<20x1xf32> to vector<20x128xf32>
    %69 = arith.mulf %64, %68 : vector<20x128xf32>
    %70 = vector.broadcast %50 : vector<1x128xf32> to vector<20x128xf32>
    %71 = arith.mulf %69, %70 : vector<20x128xf32>
    %72 = vector.broadcast %51 : vector<1x128xf32> to vector<20x128xf32>
    %73 = arith.addf %71, %72 : vector<20x128xf32>
    %c0_34 = arith.constant 0 : index
    %c0_35 = arith.constant 0 : index
    %c0_36 = arith.constant 0 : index
    %74 = vector.load %arg7[%c0_34, %c0_35, %c0_36] : memref<1x20x128xf32, #tpu.memory_space<vmem>>, vector<1x20x128xf32>
    %75 = vector.shape_cast %74 : vector<1x20x128xf32> to vector<20x128xf32>
    %76 = vector.shape_cast %73 : vector<20x128xf32> to vector<1x20x128xf32>
    tpu.vector_store %arg7[%c0_34, %c0_35, %c0_36], %76 {strides = array<i32>} : memref<1x20x128xf32, #tpu.memory_space<vmem>>, vector<1x20x128xf32>,
    return
  }
  func.func @transform_0(%arg0: i32) -> (i32, i32, i32) {
    %c0_i32 = arith.constant 0 : i32
    %c0_i32_0 = arith.constant 0 : i32
    %c0_i32_1 = arith.constant 0 : i32
    return %arg0, %c0_i32, %c0_i32_0 : i32, i32, i32
  }
  func.func @transform_1(%arg0: i32) -> (i32, i32, i32) {
    %c0_i32 = arith.constant 0 : i32
    %c0_i32_0 = arith.constant 0 : i32
    %c0_i32_1 = arith.constant 0 : i32
    return %arg0, %c0_i32, %c0_i32_0 : i32, i32, i32
  }
  func.func @transform_2(%arg0: i32) -> (i32, i32, i32) {
    %c0_i32 = arith.constant 0 : i32
    %c0_i32_0 = arith.constant 0 : i32
    %c0_i32_1 = arith.constant 0 : i32
    %c0_i32_2 = arith.constant 0 : i32
    return %c0_i32, %c0_i32_0, %c0_i32_1 : i32, i32, i32
  }
  func.func @transform_3(%arg0: i32) -> (i32, i32) {
    %c0_i32 = arith.constant 0 : i32
    %c0_i32_0 = arith.constant 0 : i32
    %c0_i32_1 = arith.constant 0 : i32
    return %c0_i32, %c0_i32_0 : i32, i32
  }
  func.func @transform_4(%arg0: i32) -> (i32, i32) {
    %c0_i32 = arith.constant 0 : i32
    %c0_i32_0 = arith.constant 0 : i32
    %c0_i32_1 = arith.constant 0 : i32
    return %c0_i32, %c0_i32_0 : i32, i32
  }
  func.func @transform_5(%arg0: i32) -> (i32, i32) {
    %c0_i32 = arith.constant 0 : i32
    %c0_i32_0 = arith.constant 0 : i32
    %c0_i32_1 = arith.constant 0 : i32
    return %c0_i32, %c0_i32_0 : i32, i32
  }
  func.func @transform_6(%arg0: i32) -> (i32, i32, i32) {
    %c0_i32 = arith.constant 0 : i32
    %c0_i32_0 = arith.constant 0 : i32
    %c0_i32_1 = arith.constant 0 : i32
    return %arg0, %c0_i32, %c0_i32_0 : i32, i32, i32
  }
}

module attributes {stable_mosaic.version = 11 : i64} {
  func.func @_qkv_attn_kernel(%arg0: i32, %arg1: memref<1x20x128xf32, #tpu.memory_space<vmem>>, %arg2: memref<128x384xbf16, #tpu.memory_space<vmem>>, %arg3: memref<1x384xf32, #tpu.memory_space<vmem>>, %arg4: memref<1x1x20xf32, #tpu.memory_space<vmem>>, %arg5: memref<1x20x128xbf16, #tpu.memory_space<vmem>>) attributes {dimension_semantics = [#tpu.dimension_semantics<parallel>], iteration_bounds = array<i64: 2>, scalar_prefetch = 0 : i64, scratch_operands = 0 : i64, tpu.core_type = #tpu.core_type<tc>, window_params = [{transform_indices = @transform_0, window_bounds = array<i64: 1, 20, 128>}, {pipeline_mode = #tpu.pipeline_mode<synchronous>, transform_indices = @transform_1, window_bounds = array<i64: 128, 384>}, {pipeline_mode = #tpu.pipeline_mode<synchronous>, transform_indices = @transform_2, window_bounds = array<i64: 1, 384>}, {transform_indices = @transform_3, window_bounds = array<i64: 1, 1, 20>}, {transform_indices = @transform_4, window_bounds = array<i64: 1, 20, 128>}]} {
    %c0 = arith.constant 0 : index
    %c0_0 = arith.constant 0 : index
    %c0_1 = arith.constant 0 : index
    %0 = vector.load %arg1[%c0, %c0_0, %c0_1] : memref<1x20x128xf32, #tpu.memory_space<vmem>>, vector<1x20x128xf32>
    %1 = vector.shape_cast %0 : vector<1x20x128xf32> to vector<20x128xf32>
    %2 = arith.truncf %1 : vector<20x128xf32> to vector<20x128xbf16>
    %c0_2 = arith.constant 0 : index
    %c0_3 = arith.constant 0 : index
    %3 = vector.load %arg2[%c0_2, %c0_3] : memref<128x384xbf16, #tpu.memory_space<vmem>>, vector<128x384xbf16>
    %cst = arith.constant dense<0.000000e+00> : vector<20x384xf32>
    %4 = tpu.matmul %2, %3, %cst {dimension_numbers = #tpu.dot_dimension_numbers<[1], [0], [0], [1], [0, 0, 1, 1], [], []>} : vector<20x128xbf16>, vector<128x384xbf16>, vector<20x384xf32> -> vector<20x384xf32>
    %c0_4 = arith.constant 0 : index
    %c0_5 = arith.constant 0 : index
    %5 = vector.load %arg3[%c0_4, %c0_5] : memref<1x384xf32, #tpu.memory_space<vmem>>, vector<1x384xf32>
    %6 = vector.broadcast %5 : vector<1x384xf32> to vector<20x384xf32>
    %7 = arith.addf %4, %6 : vector<20x384xf32>
    %c0_6 = arith.constant 0 : index
    %c0_7 = arith.constant 0 : index
    %c0_8 = arith.constant 0 : index
    %8 = vector.load %arg4[%c0_6, %c0_7, %c0_8] : memref<1x1x20xf32, #tpu.memory_space<vmem>>, vector<1x1x20xf32>
    %9 = vector.shape_cast %8 : vector<1x1x20xf32> to vector<1x20xf32>
    %10 = vector.extract_strided_slice %7 {offsets = [0, 0], sizes = [20, 32], strides = [1, 1]} : vector<20x384xf32> to vector<20x32xf32>
    %11 = arith.truncf %10 : vector<20x32xf32> to vector<20x32xbf16>
    %12 = vector.extract_strided_slice %7 {offsets = [0, 128], sizes = [20, 32], strides = [1, 1]} : vector<20x384xf32> to vector<20x32xf32>
    %13 = arith.truncf %12 : vector<20x32xf32> to vector<20x32xbf16>
    %14 = vector.extract_strided_slice %7 {offsets = [0, 256], sizes = [20, 32], strides = [1, 1]} : vector<20x384xf32> to vector<20x32xf32>
    %15 = arith.truncf %14 : vector<20x32xf32> to vector<20x32xbf16>
    %cst_9 = arith.constant dense<0.000000e+00> : vector<20x20xf32>
    %16 = tpu.matmul %11, %13, %cst_9 {dimension_numbers = #tpu.dot_dimension_numbers<[1], [1], [0], [0], [0, 0, 1, 0], [], []>} : vector<20x32xbf16>, vector<20x32xbf16>, vector<20x20xf32> -> vector<20x20xf32>
    %cst_10 = arith.constant 0.176776692 : f32
    %17 = vector.broadcast %cst_10 : f32 to vector<20x20xf32>
    %18 = arith.mulf %16, %17 : vector<20x20xf32>
    %19 = vector.broadcast %9 : vector<1x20xf32> to vector<20x20xf32>
    %20 = arith.addf %18, %19 : vector<20x20xf32>
    %cst_11 = arith.constant dense<0xFF800000> : vector<20xf32>
    %21 = vector.multi_reduction <maximumf>, %20, %cst_11 [1] : vector<20x20xf32> to vector<20xf32>
    %22 = vector.shape_cast %21 : vector<20xf32> to vector<20x1xf32>
    %23 = vector.broadcast %22 : vector<20x1xf32> to vector<20x20xf32>
    %24 = arith.subf %20, %23 : vector<20x20xf32>
    %25 = math.exp %24 : vector<20x20xf32>
    %cst_12 = arith.constant dense<0.000000e+00> : vector<20xf32>
    %26 = vector.multi_reduction <add>, %25, %cst_12 [1] : vector<20x20xf32> to vector<20xf32>
    %27 = vector.shape_cast %26 : vector<20xf32> to vector<20x1xf32>
    %28 = vector.broadcast %27 : vector<20x1xf32> to vector<20x20xf32>
    %29 = arith.divf %25, %28 : vector<20x20xf32>
    %30 = arith.truncf %29 : vector<20x20xf32> to vector<20x20xbf16>
    %cst_13 = arith.constant dense<0.000000e+00> : vector<20x32xf32>
    %31 = tpu.matmul %30, %15, %cst_13 {dimension_numbers = #tpu.dot_dimension_numbers<[1], [0], [0], [1], [0, 0, 1, 1], [], []>} : vector<20x20xbf16>, vector<20x32xbf16>, vector<20x32xf32> -> vector<20x32xf32>
    %32 = arith.truncf %31 : vector<20x32xf32> to vector<20x32xbf16>
    %c0_14 = arith.constant 0 : index
    %c0_15 = arith.constant 0 : index
    %c0_16 = arith.constant 0 : index
    %33 = vector.load %arg5[%c0_14, %c0_15, %c0_16] : memref<1x20x128xbf16, #tpu.memory_space<vmem>>, vector<1x20x32xbf16>
    %34 = vector.shape_cast %33 : vector<1x20x32xbf16> to vector<20x32xbf16>
    %35 = vector.shape_cast %32 : vector<20x32xbf16> to vector<1x20x32xbf16>
    tpu.vector_store %arg5[%c0_14, %c0_15, %c0_16], %35 {strides = array<i32>} : memref<1x20x128xbf16, #tpu.memory_space<vmem>>, vector<1x20x32xbf16>,
    %36 = vector.extract_strided_slice %7 {offsets = [0, 32], sizes = [20, 32], strides = [1, 1]} : vector<20x384xf32> to vector<20x32xf32>
    %37 = arith.truncf %36 : vector<20x32xf32> to vector<20x32xbf16>
    %38 = vector.extract_strided_slice %7 {offsets = [0, 160], sizes = [20, 32], strides = [1, 1]} : vector<20x384xf32> to vector<20x32xf32>
    %39 = arith.truncf %38 : vector<20x32xf32> to vector<20x32xbf16>
    %40 = vector.extract_strided_slice %7 {offsets = [0, 288], sizes = [20, 32], strides = [1, 1]} : vector<20x384xf32> to vector<20x32xf32>
    %41 = arith.truncf %40 : vector<20x32xf32> to vector<20x32xbf16>
    %cst_17 = arith.constant dense<0.000000e+00> : vector<20x20xf32>
    %42 = tpu.matmul %37, %39, %cst_17 {dimension_numbers = #tpu.dot_dimension_numbers<[1], [1], [0], [0], [0, 0, 1, 0], [], []>} : vector<20x32xbf16>, vector<20x32xbf16>, vector<20x20xf32> -> vector<20x20xf32>
    %cst_18 = arith.constant 0.176776692 : f32
    %43 = vector.broadcast %cst_18 : f32 to vector<20x20xf32>
    %44 = arith.mulf %42, %43 : vector<20x20xf32>
    %45 = vector.broadcast %9 : vector<1x20xf32> to vector<20x20xf32>
    %46 = arith.addf %44, %45 : vector<20x20xf32>
    %cst_19 = arith.constant dense<0xFF800000> : vector<20xf32>
    %47 = vector.multi_reduction <maximumf>, %46, %cst_19 [1] : vector<20x20xf32> to vector<20xf32>
    %48 = vector.shape_cast %47 : vector<20xf32> to vector<20x1xf32>
    %49 = vector.broadcast %48 : vector<20x1xf32> to vector<20x20xf32>
    %50 = arith.subf %46, %49 : vector<20x20xf32>
    %51 = math.exp %50 : vector<20x20xf32>
    %cst_20 = arith.constant dense<0.000000e+00> : vector<20xf32>
    %52 = vector.multi_reduction <add>, %51, %cst_20 [1] : vector<20x20xf32> to vector<20xf32>
    %53 = vector.shape_cast %52 : vector<20xf32> to vector<20x1xf32>
    %54 = vector.broadcast %53 : vector<20x1xf32> to vector<20x20xf32>
    %55 = arith.divf %51, %54 : vector<20x20xf32>
    %56 = arith.truncf %55 : vector<20x20xf32> to vector<20x20xbf16>
    %cst_21 = arith.constant dense<0.000000e+00> : vector<20x32xf32>
    %57 = tpu.matmul %56, %41, %cst_21 {dimension_numbers = #tpu.dot_dimension_numbers<[1], [0], [0], [1], [0, 0, 1, 1], [], []>} : vector<20x20xbf16>, vector<20x32xbf16>, vector<20x32xf32> -> vector<20x32xf32>
    %58 = arith.truncf %57 : vector<20x32xf32> to vector<20x32xbf16>
    %c0_22 = arith.constant 0 : index
    %c0_23 = arith.constant 0 : index
    %c32 = arith.constant 32 : index
    %59 = vector.load %arg5[%c0_22, %c0_23, %c32] : memref<1x20x128xbf16, #tpu.memory_space<vmem>>, vector<1x20x32xbf16>
    %60 = vector.shape_cast %59 : vector<1x20x32xbf16> to vector<20x32xbf16>
    %61 = vector.shape_cast %58 : vector<20x32xbf16> to vector<1x20x32xbf16>
    tpu.vector_store %arg5[%c0_22, %c0_23, %c32], %61 {strides = array<i32>} : memref<1x20x128xbf16, #tpu.memory_space<vmem>>, vector<1x20x32xbf16>,
    %62 = vector.extract_strided_slice %7 {offsets = [0, 64], sizes = [20, 32], strides = [1, 1]} : vector<20x384xf32> to vector<20x32xf32>
    %63 = arith.truncf %62 : vector<20x32xf32> to vector<20x32xbf16>
    %64 = vector.extract_strided_slice %7 {offsets = [0, 192], sizes = [20, 32], strides = [1, 1]} : vector<20x384xf32> to vector<20x32xf32>
    %65 = arith.truncf %64 : vector<20x32xf32> to vector<20x32xbf16>
    %66 = vector.extract_strided_slice %7 {offsets = [0, 320], sizes = [20, 32], strides = [1, 1]} : vector<20x384xf32> to vector<20x32xf32>
    %67 = arith.truncf %66 : vector<20x32xf32> to vector<20x32xbf16>
    %cst_24 = arith.constant dense<0.000000e+00> : vector<20x20xf32>
    %68 = tpu.matmul %63, %65, %cst_24 {dimension_numbers = #tpu.dot_dimension_numbers<[1], [1], [0], [0], [0, 0, 1, 0], [], []>} : vector<20x32xbf16>, vector<20x32xbf16>, vector<20x20xf32> -> vector<20x20xf32>
    %cst_25 = arith.constant 0.176776692 : f32
    %69 = vector.broadcast %cst_25 : f32 to vector<20x20xf32>
    %70 = arith.mulf %68, %69 : vector<20x20xf32>
    %71 = vector.broadcast %9 : vector<1x20xf32> to vector<20x20xf32>
    %72 = arith.addf %70, %71 : vector<20x20xf32>
    %cst_26 = arith.constant dense<0xFF800000> : vector<20xf32>
    %73 = vector.multi_reduction <maximumf>, %72, %cst_26 [1] : vector<20x20xf32> to vector<20xf32>
    %74 = vector.shape_cast %73 : vector<20xf32> to vector<20x1xf32>
    %75 = vector.broadcast %74 : vector<20x1xf32> to vector<20x20xf32>
    %76 = arith.subf %72, %75 : vector<20x20xf32>
    %77 = math.exp %76 : vector<20x20xf32>
    %cst_27 = arith.constant dense<0.000000e+00> : vector<20xf32>
    %78 = vector.multi_reduction <add>, %77, %cst_27 [1] : vector<20x20xf32> to vector<20xf32>
    %79 = vector.shape_cast %78 : vector<20xf32> to vector<20x1xf32>
    %80 = vector.broadcast %79 : vector<20x1xf32> to vector<20x20xf32>
    %81 = arith.divf %77, %80 : vector<20x20xf32>
    %82 = arith.truncf %81 : vector<20x20xf32> to vector<20x20xbf16>
    %cst_28 = arith.constant dense<0.000000e+00> : vector<20x32xf32>
    %83 = tpu.matmul %82, %67, %cst_28 {dimension_numbers = #tpu.dot_dimension_numbers<[1], [0], [0], [1], [0, 0, 1, 1], [], []>} : vector<20x20xbf16>, vector<20x32xbf16>, vector<20x32xf32> -> vector<20x32xf32>
    %84 = arith.truncf %83 : vector<20x32xf32> to vector<20x32xbf16>
    %c0_29 = arith.constant 0 : index
    %c0_30 = arith.constant 0 : index
    %c64 = arith.constant 64 : index
    %85 = vector.load %arg5[%c0_29, %c0_30, %c64] : memref<1x20x128xbf16, #tpu.memory_space<vmem>>, vector<1x20x32xbf16>
    %86 = vector.shape_cast %85 : vector<1x20x32xbf16> to vector<20x32xbf16>
    %87 = vector.shape_cast %84 : vector<20x32xbf16> to vector<1x20x32xbf16>
    tpu.vector_store %arg5[%c0_29, %c0_30, %c64], %87 {strides = array<i32>} : memref<1x20x128xbf16, #tpu.memory_space<vmem>>, vector<1x20x32xbf16>,
    %88 = vector.extract_strided_slice %7 {offsets = [0, 96], sizes = [20, 32], strides = [1, 1]} : vector<20x384xf32> to vector<20x32xf32>
    %89 = arith.truncf %88 : vector<20x32xf32> to vector<20x32xbf16>
    %90 = vector.extract_strided_slice %7 {offsets = [0, 224], sizes = [20, 32], strides = [1, 1]} : vector<20x384xf32> to vector<20x32xf32>
    %91 = arith.truncf %90 : vector<20x32xf32> to vector<20x32xbf16>
    %92 = vector.extract_strided_slice %7 {offsets = [0, 352], sizes = [20, 32], strides = [1, 1]} : vector<20x384xf32> to vector<20x32xf32>
    %93 = arith.truncf %92 : vector<20x32xf32> to vector<20x32xbf16>
    %cst_31 = arith.constant dense<0.000000e+00> : vector<20x20xf32>
    %94 = tpu.matmul %89, %91, %cst_31 {dimension_numbers = #tpu.dot_dimension_numbers<[1], [1], [0], [0], [0, 0, 1, 0], [], []>} : vector<20x32xbf16>, vector<20x32xbf16>, vector<20x20xf32> -> vector<20x20xf32>
    %cst_32 = arith.constant 0.176776692 : f32
    %95 = vector.broadcast %cst_32 : f32 to vector<20x20xf32>
    %96 = arith.mulf %94, %95 : vector<20x20xf32>
    %97 = vector.broadcast %9 : vector<1x20xf32> to vector<20x20xf32>
    %98 = arith.addf %96, %97 : vector<20x20xf32>
    %cst_33 = arith.constant dense<0xFF800000> : vector<20xf32>
    %99 = vector.multi_reduction <maximumf>, %98, %cst_33 [1] : vector<20x20xf32> to vector<20xf32>
    %100 = vector.shape_cast %99 : vector<20xf32> to vector<20x1xf32>
    %101 = vector.broadcast %100 : vector<20x1xf32> to vector<20x20xf32>
    %102 = arith.subf %98, %101 : vector<20x20xf32>
    %103 = math.exp %102 : vector<20x20xf32>
    %cst_34 = arith.constant dense<0.000000e+00> : vector<20xf32>
    %104 = vector.multi_reduction <add>, %103, %cst_34 [1] : vector<20x20xf32> to vector<20xf32>
    %105 = vector.shape_cast %104 : vector<20xf32> to vector<20x1xf32>
    %106 = vector.broadcast %105 : vector<20x1xf32> to vector<20x20xf32>
    %107 = arith.divf %103, %106 : vector<20x20xf32>
    %108 = arith.truncf %107 : vector<20x20xf32> to vector<20x20xbf16>
    %cst_35 = arith.constant dense<0.000000e+00> : vector<20x32xf32>
    %109 = tpu.matmul %108, %93, %cst_35 {dimension_numbers = #tpu.dot_dimension_numbers<[1], [0], [0], [1], [0, 0, 1, 1], [], []>} : vector<20x20xbf16>, vector<20x32xbf16>, vector<20x32xf32> -> vector<20x32xf32>
    %110 = arith.truncf %109 : vector<20x32xf32> to vector<20x32xbf16>
    %c0_36 = arith.constant 0 : index
    %c0_37 = arith.constant 0 : index
    %c96 = arith.constant 96 : index
    %111 = vector.load %arg5[%c0_36, %c0_37, %c96] : memref<1x20x128xbf16, #tpu.memory_space<vmem>>, vector<1x20x32xbf16>
    %112 = vector.shape_cast %111 : vector<1x20x32xbf16> to vector<20x32xbf16>
    %113 = vector.shape_cast %110 : vector<20x32xbf16> to vector<1x20x32xbf16>
    tpu.vector_store %arg5[%c0_36, %c0_37, %c96], %113 {strides = array<i32>} : memref<1x20x128xbf16, #tpu.memory_space<vmem>>, vector<1x20x32xbf16>,
    return
  }
  func.func @transform_0(%arg0: i32) -> (i32, i32, i32) {
    %c0_i32 = arith.constant 0 : i32
    %c0_i32_0 = arith.constant 0 : i32
    %c0_i32_1 = arith.constant 0 : i32
    return %arg0, %c0_i32, %c0_i32_0 : i32, i32, i32
  }
  func.func @transform_1(%arg0: i32) -> (i32, i32) {
    %c0_i32 = arith.constant 0 : i32
    %c0_i32_0 = arith.constant 0 : i32
    %c0_i32_1 = arith.constant 0 : i32
    return %c0_i32, %c0_i32_0 : i32, i32
  }
  func.func @transform_2(%arg0: i32) -> (i32, i32) {
    %c0_i32 = arith.constant 0 : i32
    %c0_i32_0 = arith.constant 0 : i32
    %c0_i32_1 = arith.constant 0 : i32
    return %c0_i32, %c0_i32_0 : i32, i32
  }
  func.func @transform_3(%arg0: i32) -> (i32, i32, i32) {
    %c0_i32 = arith.constant 0 : i32
    %c0_i32_0 = arith.constant 0 : i32
    %c0_i32_1 = arith.constant 0 : i32
    return %arg0, %c0_i32, %c0_i32_0 : i32, i32, i32
  }
  func.func @transform_4(%arg0: i32) -> (i32, i32, i32) {
    %c0_i32 = arith.constant 0 : i32
    %c0_i32_0 = arith.constant 0 : i32
    %c0_i32_1 = arith.constant 0 : i32
    return %arg0, %c0_i32, %c0_i32_0 : i32, i32, i32
  }
}

module attributes {stable_mosaic.version = 11 : i64} {
  func.func @_post_attn_kernel(%arg0: i32, %arg1: memref<40x128xf32, #tpu.memory_space<vmem>>, %arg2: memref<40x128xbf16, #tpu.memory_space<vmem>>, %arg3: memref<128x128xbf16, #tpu.memory_space<vmem>>, %arg4: memref<1x128xf32, #tpu.memory_space<vmem>>, %arg5: memref<1x128xf32, #tpu.memory_space<vmem>>, %arg6: memref<1x128xf32, #tpu.memory_space<vmem>>, %arg7: memref<128x256xbf16, #tpu.memory_space<vmem>>, %arg8: memref<1x256xf32, #tpu.memory_space<vmem>>, %arg9: memref<256x128xbf16, #tpu.memory_space<vmem>>, %arg10: memref<1x128xf32, #tpu.memory_space<vmem>>, %arg11: memref<1x128xf32, #tpu.memory_space<vmem>>, %arg12: memref<1x128xf32, #tpu.memory_space<vmem>>, %arg13: memref<40x128xf32, #tpu.memory_space<vmem>>) attributes {dimension_semantics = [#tpu.dimension_semantics<parallel>], iteration_bounds = array<i64: 1>, scalar_prefetch = 0 : i64, scratch_operands = 0 : i64, tpu.core_type = #tpu.core_type<tc>, window_params = [{transform_indices = @transform_0, window_bounds = array<i64: 40, 128>}, {transform_indices = @transform_1, window_bounds = array<i64: 40, 128>}, {pipeline_mode = #tpu.pipeline_mode<synchronous>, transform_indices = @transform_2, window_bounds = array<i64: 128, 128>}, {pipeline_mode = #tpu.pipeline_mode<synchronous>, transform_indices = @transform_3, window_bounds = array<i64: 1, 128>}, {pipeline_mode = #tpu.pipeline_mode<synchronous>, transform_indices = @transform_4, window_bounds = array<i64: 1, 128>}, {pipeline_mode = #tpu.pipeline_mode<synchronous>, transform_indices = @transform_5, window_bounds = array<i64: 1, 128>}, {pipeline_mode = #tpu.pipeline_mode<synchronous>, transform_indices = @transform_6, window_bounds = array<i64: 128, 256>}, {pipeline_mode = #tpu.pipeline_mode<synchronous>, transform_indices = @transform_7, window_bounds = array<i64: 1, 256>}, {pipeline_mode = #tpu.pipeline_mode<synchronous>, transform_indices = @transform_8, window_bounds = array<i64: 256, 128>}, {pipeline_mode = #tpu.pipeline_mode<synchronous>, transform_indices = @transform_9, window_bounds = array<i64: 1, 128>}, {pipeline_mode = #tpu.pipeline_mode<synchronous>, transform_indices = @transform_10, window_bounds = array<i64: 1, 128>}, {pipeline_mode = #tpu.pipeline_mode<synchronous>, transform_indices = @transform_11, window_bounds = array<i64: 1, 128>}, {transform_indices = @transform_12, window_bounds = array<i64: 40, 128>}]} {
    %c0 = arith.constant 0 : index
    %c0_0 = arith.constant 0 : index
    %0 = vector.load %arg1[%c0, %c0_0] : memref<40x128xf32, #tpu.memory_space<vmem>>, vector<40x128xf32>
    %c0_1 = arith.constant 0 : index
    %c0_2 = arith.constant 0 : index
    %1 = vector.load %arg2[%c0_1, %c0_2] : memref<40x128xbf16, #tpu.memory_space<vmem>>, vector<40x128xbf16>
    %c0_3 = arith.constant 0 : index
    %c0_4 = arith.constant 0 : index
    %2 = vector.load %arg3[%c0_3, %c0_4] : memref<128x128xbf16, #tpu.memory_space<vmem>>, vector<128x128xbf16>
    %cst = arith.constant dense<0.000000e+00> : vector<40x128xf32>
    %3 = tpu.matmul %1, %2, %cst {dimension_numbers = #tpu.dot_dimension_numbers<[1], [0], [0], [1], [0, 0, 1, 1], [], []>} : vector<40x128xbf16>, vector<128x128xbf16>, vector<40x128xf32> -> vector<40x128xf32>
    %4 = arith.addf %0, %3 : vector<40x128xf32>
    %c0_5 = arith.constant 0 : index
    %c0_6 = arith.constant 0 : index
    %5 = vector.load %arg4[%c0_5, %c0_6] : memref<1x128xf32, #tpu.memory_space<vmem>>, vector<1x128xf32>
    %6 = vector.broadcast %5 : vector<1x128xf32> to vector<40x128xf32>
    %7 = arith.addf %4, %6 : vector<40x128xf32>
    %c0_7 = arith.constant 0 : index
    %c0_8 = arith.constant 0 : index
    %8 = vector.load %arg5[%c0_7, %c0_8] : memref<1x128xf32, #tpu.memory_space<vmem>>, vector<1x128xf32>
    %c0_9 = arith.constant 0 : index
    %c0_10 = arith.constant 0 : index
    %9 = vector.load %arg6[%c0_9, %c0_10] : memref<1x128xf32, #tpu.memory_space<vmem>>, vector<1x128xf32>
    %cst_11 = arith.constant dense<0.000000e+00> : vector<40xf32>
    %10 = vector.multi_reduction <add>, %7, %cst_11 [1] : vector<40x128xf32> to vector<40xf32>
    %11 = vector.shape_cast %10 : vector<40xf32> to vector<40x1xf32>
    %cst_12 = arith.constant 1.280000e+02 : f32
    %12 = vector.broadcast %cst_12 : f32 to vector<40x1xf32>
    %13 = arith.divf %11, %12 : vector<40x1xf32>
    %14 = vector.broadcast %13 : vector<40x1xf32> to vector<40x128xf32>
    %15 = arith.subf %7, %14 : vector<40x128xf32>
    %16 = arith.mulf %15, %15 : vector<40x128xf32>
    %cst_13 = arith.constant dense<0.000000e+00> : vector<40xf32>
    %17 = vector.multi_reduction <add>, %16, %cst_13 [1] : vector<40x128xf32> to vector<40xf32>
    %18 = vector.shape_cast %17 : vector<40xf32> to vector<40x1xf32>
    %cst_14 = arith.constant 1.280000e+02 : f32
    %19 = vector.broadcast %cst_14 : f32 to vector<40x1xf32>
    %20 = arith.divf %18, %19 : vector<40x1xf32>
    %21 = vector.broadcast %13 : vector<40x1xf32> to vector<40x128xf32>
    %22 = arith.subf %7, %21 : vector<40x128xf32>
    %cst_15 = arith.constant 9.99999974E-6 : f32
    %23 = vector.broadcast %cst_15 : f32 to vector<40x1xf32>
    %24 = arith.addf %20, %23 : vector<40x1xf32>
    %25 = math.rsqrt %24 : vector<40x1xf32>
    %26 = vector.broadcast %25 : vector<40x1xf32> to vector<40x128xf32>
    %27 = arith.mulf %22, %26 : vector<40x128xf32>
    %28 = vector.broadcast %8 : vector<1x128xf32> to vector<40x128xf32>
    %29 = arith.mulf %27, %28 : vector<40x128xf32>
    %30 = vector.broadcast %9 : vector<1x128xf32> to vector<40x128xf32>
    %31 = arith.addf %29, %30 : vector<40x128xf32>
    %32 = arith.truncf %31 : vector<40x128xf32> to vector<40x128xbf16>
    %c0_16 = arith.constant 0 : index
    %c0_17 = arith.constant 0 : index
    %33 = vector.load %arg7[%c0_16, %c0_17] : memref<128x256xbf16, #tpu.memory_space<vmem>>, vector<128x256xbf16>
    %cst_18 = arith.constant dense<0.000000e+00> : vector<40x256xf32>
    %34 = tpu.matmul %32, %33, %cst_18 {dimension_numbers = #tpu.dot_dimension_numbers<[1], [0], [0], [1], [0, 0, 1, 1], [], []>} : vector<40x128xbf16>, vector<128x256xbf16>, vector<40x256xf32> -> vector<40x256xf32>
    %c0_19 = arith.constant 0 : index
    %c0_20 = arith.constant 0 : index
    %35 = vector.load %arg8[%c0_19, %c0_20] : memref<1x256xf32, #tpu.memory_space<vmem>>, vector<1x256xf32>
    %36 = vector.broadcast %35 : vector<1x256xf32> to vector<40x256xf32>
    %37 = arith.addf %34, %36 : vector<40x256xf32>
    %38 = arith.mulf %37, %37 : vector<40x256xf32>
    %39 = arith.mulf %37, %38 : vector<40x256xf32>
    %cst_21 = arith.constant 4.471500e-02 : f32
    %40 = vector.broadcast %cst_21 : f32 to vector<40x256xf32>
    %41 = arith.mulf %40, %39 : vector<40x256xf32>
    %42 = arith.addf %37, %41 : vector<40x256xf32>
    %cst_22 = arith.constant 0.797884583 : f32
    %43 = vector.broadcast %cst_22 : f32 to vector<40x256xf32>
    %44 = arith.mulf %43, %42 : vector<40x256xf32>
    %45 = math.tanh %44 : vector<40x256xf32>
    %cst_23 = arith.constant 1.000000e+00 : f32
    %46 = vector.broadcast %cst_23 : f32 to vector<40x256xf32>
    %47 = arith.addf %46, %45 : vector<40x256xf32>
    %cst_24 = arith.constant 5.000000e-01 : f32
    %48 = vector.broadcast %cst_24 : f32 to vector<40x256xf32>
    %49 = arith.mulf %48, %47 : vector<40x256xf32>
    %50 = arith.mulf %37, %49 : vector<40x256xf32>
    %51 = arith.truncf %50 : vector<40x256xf32> to vector<40x256xbf16>
    %c0_25 = arith.constant 0 : index
    %c0_26 = arith.constant 0 : index
    %52 = vector.load %arg9[%c0_25, %c0_26] : memref<256x128xbf16, #tpu.memory_space<vmem>>, vector<256x128xbf16>
    %cst_27 = arith.constant dense<0.000000e+00> : vector<40x128xf32>
    %53 = tpu.matmul %51, %52, %cst_27 {dimension_numbers = #tpu.dot_dimension_numbers<[1], [0], [0], [1], [0, 0, 1, 1], [], []>} : vector<40x256xbf16>, vector<256x128xbf16>, vector<40x128xf32> -> vector<40x128xf32>
    %c0_28 = arith.constant 0 : index
    %c0_29 = arith.constant 0 : index
    %54 = vector.load %arg10[%c0_28, %c0_29] : memref<1x128xf32, #tpu.memory_space<vmem>>, vector<1x128xf32>
    %55 = vector.broadcast %54 : vector<1x128xf32> to vector<40x128xf32>
    %56 = arith.addf %53, %55 : vector<40x128xf32>
    %57 = arith.addf %31, %56 : vector<40x128xf32>
    %c0_30 = arith.constant 0 : index
    %c0_31 = arith.constant 0 : index
    %58 = vector.load %arg11[%c0_30, %c0_31] : memref<1x128xf32, #tpu.memory_space<vmem>>, vector<1x128xf32>
    %c0_32 = arith.constant 0 : index
    %c0_33 = arith.constant 0 : index
    %59 = vector.load %arg12[%c0_32, %c0_33] : memref<1x128xf32, #tpu.memory_space<vmem>>, vector<1x128xf32>
    %cst_34 = arith.constant dense<0.000000e+00> : vector<40xf32>
    %60 = vector.multi_reduction <add>, %57, %cst_34 [1] : vector<40x128xf32> to vector<40xf32>
    %61 = vector.shape_cast %60 : vector<40xf32> to vector<40x1xf32>
    %cst_35 = arith.constant 1.280000e+02 : f32
    %62 = vector.broadcast %cst_35 : f32 to vector<40x1xf32>
    %63 = arith.divf %61, %62 : vector<40x1xf32>
    %64 = vector.broadcast %63 : vector<40x1xf32> to vector<40x128xf32>
    %65 = arith.subf %57, %64 : vector<40x128xf32>
    %66 = arith.mulf %65, %65 : vector<40x128xf32>
    %cst_36 = arith.constant dense<0.000000e+00> : vector<40xf32>
    %67 = vector.multi_reduction <add>, %66, %cst_36 [1] : vector<40x128xf32> to vector<40xf32>
    %68 = vector.shape_cast %67 : vector<40xf32> to vector<40x1xf32>
    %cst_37 = arith.constant 1.280000e+02 : f32
    %69 = vector.broadcast %cst_37 : f32 to vector<40x1xf32>
    %70 = arith.divf %68, %69 : vector<40x1xf32>
    %71 = vector.broadcast %63 : vector<40x1xf32> to vector<40x128xf32>
    %72 = arith.subf %57, %71 : vector<40x128xf32>
    %cst_38 = arith.constant 9.99999974E-6 : f32
    %73 = vector.broadcast %cst_38 : f32 to vector<40x1xf32>
    %74 = arith.addf %70, %73 : vector<40x1xf32>
    %75 = math.rsqrt %74 : vector<40x1xf32>
    %76 = vector.broadcast %75 : vector<40x1xf32> to vector<40x128xf32>
    %77 = arith.mulf %72, %76 : vector<40x128xf32>
    %78 = vector.broadcast %58 : vector<1x128xf32> to vector<40x128xf32>
    %79 = arith.mulf %77, %78 : vector<40x128xf32>
    %80 = vector.broadcast %59 : vector<1x128xf32> to vector<40x128xf32>
    %81 = arith.addf %79, %80 : vector<40x128xf32>
    %c0_39 = arith.constant 0 : index
    %c0_40 = arith.constant 0 : index
    %82 = vector.load %arg13[%c0_39, %c0_40] : memref<40x128xf32, #tpu.memory_space<vmem>>, vector<40x128xf32>
    tpu.vector_store %arg13[%c0_39, %c0_40], %81 {strides = array<i32>} : memref<40x128xf32, #tpu.memory_space<vmem>>, vector<40x128xf32>,
    return
  }
  func.func @transform_0(%arg0: i32) -> (i32, i32) {
    %c0_i32 = arith.constant 0 : i32
    %c0_i32_0 = arith.constant 0 : i32
    return %arg0, %c0_i32 : i32, i32
  }
  func.func @transform_1(%arg0: i32) -> (i32, i32) {
    %c0_i32 = arith.constant 0 : i32
    %c0_i32_0 = arith.constant 0 : i32
    return %arg0, %c0_i32 : i32, i32
  }
  func.func @transform_2(%arg0: i32) -> (i32, i32) {
    %c0_i32 = arith.constant 0 : i32
    %c0_i32_0 = arith.constant 0 : i32
    %c0_i32_1 = arith.constant 0 : i32
    return %c0_i32, %c0_i32_0 : i32, i32
  }
  func.func @transform_3(%arg0: i32) -> (i32, i32) {
    %c0_i32 = arith.constant 0 : i32
    %c0_i32_0 = arith.constant 0 : i32
    %c0_i32_1 = arith.constant 0 : i32
    return %c0_i32, %c0_i32_0 : i32, i32
  }
  func.func @transform_4(%arg0: i32) -> (i32, i32) {
    %c0_i32 = arith.constant 0 : i32
    %c0_i32_0 = arith.constant 0 : i32
    %c0_i32_1 = arith.constant 0 : i32
    return %c0_i32, %c0_i32_0 : i32, i32
  }
  func.func @transform_5(%arg0: i32) -> (i32, i32) {
    %c0_i32 = arith.constant 0 : i32
    %c0_i32_0 = arith.constant 0 : i32
    %c0_i32_1 = arith.constant 0 : i32
    return %c0_i32, %c0_i32_0 : i32, i32
  }
  func.func @transform_6(%arg0: i32) -> (i32, i32) {
    %c0_i32 = arith.constant 0 : i32
    %c0_i32_0 = arith.constant 0 : i32
    %c0_i32_1 = arith.constant 0 : i32
    return %c0_i32, %c0_i32_0 : i32, i32
  }
  func.func @transform_7(%arg0: i32) -> (i32, i32) {
    %c0_i32 = arith.constant 0 : i32
    %c0_i32_0 = arith.constant 0 : i32
    %c0_i32_1 = arith.constant 0 : i32
    return %c0_i32, %c0_i32_0 : i32, i32
  }
  func.func @transform_8(%arg0: i32) -> (i32, i32) {
    %c0_i32 = arith.constant 0 : i32
    %c0_i32_0 = arith.constant 0 : i32
    %c0_i32_1 = arith.constant 0 : i32
    return %c0_i32, %c0_i32_0 : i32, i32
  }
  func.func @transform_9(%arg0: i32) -> (i32, i32) {
    %c0_i32 = arith.constant 0 : i32
    %c0_i32_0 = arith.constant 0 : i32
    %c0_i32_1 = arith.constant 0 : i32
    return %c0_i32, %c0_i32_0 : i32, i32
  }
  func.func @transform_10(%arg0: i32) -> (i32, i32) {
    %c0_i32 = arith.constant 0 : i32
    %c0_i32_0 = arith.constant 0 : i32
    %c0_i32_1 = arith.constant 0 : i32
    return %c0_i32, %c0_i32_0 : i32, i32
  }
  func.func @transform_11(%arg0: i32) -> (i32, i32) {
    %c0_i32 = arith.constant 0 : i32
    %c0_i32_0 = arith.constant 0 : i32
    %c0_i32_1 = arith.constant 0 : i32
    return %c0_i32, %c0_i32_0 : i32, i32
  }
  func.func @transform_12(%arg0: i32) -> (i32, i32) {
    %c0_i32 = arith.constant 0 : i32
    %c0_i32_0 = arith.constant 0 : i32
    return %arg0, %c0_i32 : i32, i32
  }
}

module attributes {stable_mosaic.version = 11 : i64} {
  func.func @_mean_cls_kernel(%arg0: i32, %arg1: memref<1x20x128xf32, #tpu.memory_space<vmem>>, %arg2: memref<1x1x1xf32, #tpu.memory_space<vmem>>, %arg3: memref<128x4xf32, #tpu.memory_space<vmem>>, %arg4: memref<1x4xf32, #tpu.memory_space<vmem>>, %arg5: memref<1x1x4xf32, #tpu.memory_space<vmem>>) attributes {dimension_semantics = [#tpu.dimension_semantics<parallel>], iteration_bounds = array<i64: 2>, scalar_prefetch = 0 : i64, scratch_operands = 0 : i64, tpu.core_type = #tpu.core_type<tc>, window_params = [{transform_indices = @transform_0, window_bounds = array<i64: 1, 20, 128>}, {transform_indices = @transform_1, window_bounds = array<i64: 1, 1, 1>}, {pipeline_mode = #tpu.pipeline_mode<synchronous>, transform_indices = @transform_2, window_bounds = array<i64: 128, 4>}, {pipeline_mode = #tpu.pipeline_mode<synchronous>, transform_indices = @transform_3, window_bounds = array<i64: 1, 4>}, {transform_indices = @transform_4, window_bounds = array<i64: 1, 1, 4>}]} {
    %c0 = arith.constant 0 : index
    %c0_0 = arith.constant 0 : index
    %c0_1 = arith.constant 0 : index
    %0 = vector.load %arg1[%c0, %c0_0, %c0_1] : memref<1x20x128xf32, #tpu.memory_space<vmem>>, vector<1x20x128xf32>
    %1 = vector.shape_cast %0 : vector<1x20x128xf32> to vector<20x128xf32>
    %c0_2 = arith.constant 0 : index
    %c0_3 = arith.constant 0 : index
    %c0_4 = arith.constant 0 : index
    %2 = vector.load %arg2[%c0_2, %c0_3, %c0_4] : memref<1x1x1xf32, #tpu.memory_space<vmem>>, vector<1x1x1xf32>
    %3 = vector.shape_cast %2 : vector<1x1x1xf32> to vector<1x1xf32>
    %4 = tpu.iota {dimensions = array<i32: 1>} : vector<1x20xi32>
    %5 = arith.sitofp %4 : vector<1x20xi32> to vector<1x20xf32>
    %6 = vector.broadcast %3 : vector<1x1xf32> to vector<1x20xf32>
    %7 = arith.cmpf olt, %5, %6 : vector<1x20xf32>
    %8 = arith.extui %7 : vector<1x20xi1> to vector<1x20xi32>
    %9 = arith.sitofp %8 : vector<1x20xi32> to vector<1x20xf32>
    %cst = arith.constant dense<0.000000e+00> : vector<1x128xf32>
    %10 = tpu.matmul %9, %1, %cst {dimension_numbers = #tpu.dot_dimension_numbers<[1], [0], [0], [1], [0, 0, 1, 1], [], []>} : vector<1x20xf32>, vector<20x128xf32>, vector<1x128xf32> -> vector<1x128xf32>
    %11 = vector.broadcast %3 : vector<1x1xf32> to vector<1x128xf32>
    %12 = arith.divf %10, %11 : vector<1x128xf32>
    %cst_5 = arith.constant 0.000000e+00 : f32
    %13 = vector.broadcast %cst_5 : f32 to vector<1x128xf32>
    %14 = arith.maximumf %12, %13 : vector<1x128xf32>
    %c0_6 = arith.constant 0 : index
    %c0_7 = arith.constant 0 : index
    %15 = vector.load %arg3[%c0_6, %c0_7] : memref<128x4xf32, #tpu.memory_space<vmem>>, vector<128x4xf32>
    %cst_8 = arith.constant dense<0.000000e+00> : vector<1x4xf32>
    %16 = tpu.matmul %14, %15, %cst_8 {dimension_numbers = #tpu.dot_dimension_numbers<[1], [0], [0], [1], [0, 0, 1, 1], [], []>} : vector<1x128xf32>, vector<128x4xf32>, vector<1x4xf32> -> vector<1x4xf32>
    %c0_9 = arith.constant 0 : index
    %c0_10 = arith.constant 0 : index
    %17 = vector.load %arg4[%c0_9, %c0_10] : memref<1x4xf32, #tpu.memory_space<vmem>>, vector<1x4xf32>
    %18 = arith.addf %16, %17 : vector<1x4xf32>
    %c0_11 = arith.constant 0 : index
    %c0_12 = arith.constant 0 : index
    %c0_13 = arith.constant 0 : index
    %19 = vector.load %arg5[%c0_11, %c0_12, %c0_13] : memref<1x1x4xf32, #tpu.memory_space<vmem>>, vector<1x1x4xf32>
    %20 = vector.shape_cast %19 : vector<1x1x4xf32> to vector<1x4xf32>
    %21 = vector.shape_cast %18 : vector<1x4xf32> to vector<1x1x4xf32>
    tpu.vector_store %arg5[%c0_11, %c0_12, %c0_13], %21 {strides = array<i32>} : memref<1x1x4xf32, #tpu.memory_space<vmem>>, vector<1x1x4xf32>,
    return
  }
  func.func @transform_0(%arg0: i32) -> (i32, i32, i32) {
    %c0_i32 = arith.constant 0 : i32
    %c0_i32_0 = arith.constant 0 : i32
    %c0_i32_1 = arith.constant 0 : i32
    return %arg0, %c0_i32, %c0_i32_0 : i32, i32, i32
  }
  func.func @transform_1(%arg0: i32) -> (i32, i32, i32) {
    %c0_i32 = arith.constant 0 : i32
    %c0_i32_0 = arith.constant 0 : i32
    %c0_i32_1 = arith.constant 0 : i32
    return %arg0, %c0_i32, %c0_i32_0 : i32, i32, i32
  }
  func.func @transform_2(%arg0: i32) -> (i32, i32) {
    %c0_i32 = arith.constant 0 : i32
    %c0_i32_0 = arith.constant 0 : i32
    %c0_i32_1 = arith.constant 0 : i32
    return %c0_i32, %c0_i32_0 : i32, i32
  }
  func.func @transform_3(%arg0: i32) -> (i32, i32) {
    %c0_i32 = arith.constant 0 : i32
    %c0_i32_0 = arith.constant 0 : i32
    %c0_i32_1 = arith.constant 0 : i32
    return %c0_i32, %c0_i32_0 : i32, i32
  }
  func.func @transform_4(%arg0: i32) -> (i32, i32, i32) {
    %c0_i32 = arith.constant 0 : i32
    %c0_i32_0 = arith.constant 0 : i32
    %c0_i32_1 = arith.constant 0 : i32
    return %arg0, %c0_i32, %c0_i32_0 : i32, i32, i32
  }
}

</mosaic_0001>

<llo_original>
// kernel: wav2vec2_emonet_forward.12
$region0: #{wav2vec2_emonet_forward.12}
  #allocation0 [shape = 'u32[]', space=smem, size = 0x4, offset = 0x4, fixed_abs, tag = 'smem constant byte address 0x4 - core index']
  #allocation1 [shape = 'u32[72,128]{1,0:T(1,128)}', space=vmem, size = 0x9000, scoped, tag = 'internal scratch']
  %s0 = inlined_call_operand.vmem [shape: f32[2,19,256], index: 0, kind: input, shape index: {}]
  %s1 = inlined_call_operand.vmem [shape: bf16[2,128,128], index: 1, kind: input, shape index: {}]
  %s2 = inlined_call_operand.vmem [shape: f32[2,1,1], index: 2, kind: input, shape index: {}]
  %s3 = inlined_call_operand.vmem [shape: f32[2,19,128], index: 3, kind: output, shape index: {0}]
  %s4 = inlined_call_operand.vmem [shape: f32[2,1,128], index: 4, kind: output, shape index: {1}]
  %5 = xla_tuple %s3, %s4
  %s6 = sld [smem:[#allocation0]]
  $region53: #{wav2vec2_emonet_forward.12} parent=0
    _
  %s8 = ssub.s32 1, %s6
  %s9 = scalar_select 0, %s8, %s6
  loop: start=0, step=1, limit=4
  $region2: #{wav2vec2_emonet_forward.12} parent=0 // loop_pre_header
    _
  $region3: #{wav2vec2_emonet_forward.12} parent=0 // loop_header
    %s11 = sphi 0, %s15
    %p12 = scmp.ge.s32.totalorder %s11, 4
    %s21 = sphi 0, %s23
    %s24 = sphi 0, %s21
    %s25 = sphi 0, %s24
    %s41 = sphi 0, %s25
    %s45 = sphi 0, %s45
    %s47 = sphi 0, %s45
    %s48 = sphi 0, %s47
    %s62 = sphi 0, %s48
    %s68 = sphi 0, %s70
    %s71 = sphi 0, %s68
    %s72 = sphi 0, %s71
    %s88 = sphi 0, %s72
    %s94 = sphi 0, %s96
    %s97 = sphi 0, %s94
    %s98 = sphi 0, %s97
    %s114 = sphi 0, %s98
    %s120 = sphi 0, %s122
    %s123 = sphi 0, %s120
    %s124 = sphi 0, %s123
    %s140 = sphi 0, %s124
  $region4: #{wav2vec2_emonet_forward.12} parent=0 // loop_header_branch
    %14 = sbr.rel (%p12) target = $region8
  $region5: #{wav2vec2_emonet_forward.12} parent=0 // loop_body
    %s16 = ssub.s32 %s11, 1
    %s17 = ssub.s32 %s11, 2
    %s18 = sadd.s32 %s11, 1
    %s19 = ssub.s32 %s11, %s18
    %p20 = scmp.eq.s32.totalorder %s19, 0
    %s22 = sadd.s32 %s21, 1
    %s23 = scalar_select %p20, %s21, %s22
    %p26 = pneg %p20
    %p27 = scmp.eq.s32.totalorder %s11, 1
    %p28 = por %p26, %p27
    %p29 = scmp.ne.s32.totalorder %s21, %s24
    %p30 = scmp.eq.s32.totalorder %s11, 0
    %p31 = por %p29, %p30
    %p32 = scmp.ne.s32.totalorder %s21, %s24
    %p33 = scmp.eq.s32.totalorder %s16, 1
    %p34 = por %p32, %p33
    %p35 = scmp.ne.s32.totalorder %s24, %s25
    %p36 = scmp.eq.s32.totalorder %s16, 0
    %p37 = por %p35, %p36
    %p38 = scmp.ne.s32.totalorder %s24, %s25
    %p39 = scmp.eq.s32.totalorder %s17, 1
    %p40 = por %p38, %p39
    %p42 = scmp.ne.s32.totalorder %s25, %s41
    %p43 = scmp.eq.s32.totalorder %s17, 0
    %p44 = por %p42, %p43
    %s46 = sadd.s32 %s45, 1
    %p49 = scmp.eq.s32.totalorder %s11, 1
    %p50 = scmp.ne.s32.totalorder %s45, %s47
    %p51 = scmp.eq.s32.totalorder %s11, 0
    %p52 = por %p50, %p51
    %p53 = scmp.ne.s32.totalorder %s45, %s47
    %p54 = scmp.eq.s32.totalorder %s16, 1
    %p55 = por %p53, %p54
    %p56 = scmp.ne.s32.totalorder %s47, %s48
    %p57 = scmp.eq.s32.totalorder %s16, 0
    %p58 = por %p56, %p57
    %p59 = scmp.ne.s32.totalorder %s47, %s48
    %p60 = scmp.eq.s32.totalorder %s17, 1
    %p61 = por %p59, %p60
    %p63 = scmp.ne.s32.totalorder %s48, %s62
    %p64 = scmp.eq.s32.totalorder %s17, 0
    %p65 = por %p63, %p64
    %s66 = ssub.s32 %s11, %s18
    %p67 = scmp.eq.s32.totalorder %s66, 0
    %s69 = sadd.s32 %s68, 1
    %s70 = scalar_select %p67, %s68, %s69
    %p73 = pneg %p67
    %p74 = scmp.eq.s32.totalorder %s11, 1
    %p75 = por %p73, %p74
    %p76 = scmp.ne.s32.totalorder %s68, %s71
    %p77 = scmp.eq.s32.totalorder %s11, 0
    %p78 = por %p76, %p77
    %p79 = scmp.ne.s32.totalorder %s68, %s71
    %p80 = scmp.eq.s32.totalorder %s16, 1
    %p81 = por %p79, %p80
    %p82 = scmp.ne.s32.totalorder %s71, %s72
    %p83 = scmp.eq.s32.totalorder %s16, 0
    %p84 = por %p82, %p83
    %p85 = scmp.ne.s32.totalorder %s71, %s72
    %p86 = scmp.eq.s32.totalorder %s17, 1
    %p87 = por %p85, %p86
    %p89 = scmp.ne.s32.totalorder %s72, %s88
    %p90 = scmp.eq.s32.totalorder %s17, 0
    %p91 = por %p89, %p90
    %s92 = ssub.s32 %s11, %s18
    %p93 = scmp.eq.s32.totalorder %s92, 0
    %s95 = sadd.s32 %s94, 1
    %s96 = scalar_select %p93, %s94, %s95
    %p99 = pneg %p93
    %p100 = scmp.eq.s32.totalorder %s11, 1
    %p101 = por %p99, %p100
    %p102 = scmp.ne.s32.totalorder %s94, %s97
    %p103 = scmp.eq.s32.totalorder %s11, 0
    %p104 = por %p102, %p103
    %p105 = scmp.ne.s32.totalorder %s94, %s97
    %p106 = scmp.eq.s32.totalorder %s16, 1
    %p107 = por %p105, %p106
    %p108 = scmp.ne.s32.totalorder %s97, %s98
    %p109 = scmp.eq.s32.totalorder %s16, 0
    %p110 = por %p108, %p109
    %p111 = scmp.ne.s32.totalorder %s97, %s98
    %p112 = scmp.eq.s32.totalorder %s17, 1
    %p113 = por %p111, %p112
    %p115 = scmp.ne.s32.totalorder %s98, %s114
    %p116 = scmp.eq.s32.totalorder %s17, 0
    %p117 = por %p115, %p116
    %s118 = ssub.s32 %s11, %s18
    %p119 = scmp.eq.s32.totalorder %s118, 0
    %s121 = sadd.s32 %s120, 1
    %s122 = scalar_select %p119, %s120, %s121
    %p125 = pneg %p119
    %p126 = scmp.eq.s32.totalorder %s11, 1
    %p127 = por %p125, %p126
    %p128 = scmp.ne.s32.totalorder %s120, %s123
    %p129 = scmp.eq.s32.totalorder %s11, 0
    %p130 = por %p128, %p129
    %p131 = scmp.ne.s32.totalorder %s120, %s123
    %p132 = scmp.eq.s32.totalorder %s16, 1
    %p133 = por %p131, %p132
    %p134 = scmp.ne.s32.totalorder %s123, %s124
    %p135 = scmp.eq.s32.totalorder %s16, 0
    %p136 = por %p134, %p135
    %p137 = scmp.ne.s32.totalorder %s123, %s124
    %p138 = scmp.eq.s32.totalorder %s17, 1
    %p139 = por %p137, %p138
    %p141 = scmp.ne.s32.totalorder %s124, %s140
    %p142 = scmp.eq.s32.totalorder %s17, 0
    %p143 = por %p141, %p142
    %p144 = scmp.le.s32.totalorder 1, %s11
    %p145 = scmp.lt.s32.totalorder %s11, 3
    %p146 = pnand %p144, %p145
    %p147 = pneg %p146
    // Predicated region
    $region9: #{wav2vec2_emonet_forward.12} parent=5 // pred_check
      _
    $region10: #{wav2vec2_emonet_forward.12} parent=5 // pred_check_branch
      %149 = sbr.rel (%p146) target = $region12
    $region11: #{wav2vec2_emonet_forward.12} parent=5 // pred_region
      %s150 = ssub.s32 %s11, 1
      // Predicated region
      $region13: #{wav2vec2_emonet_forward.12} parent=11 // pred_check
        %p151 = pneg %p58
      $region14: #{wav2vec2_emonet_forward.12} parent=11 // pred_check_branch
        %153 = sbr.rel (%p151) target = $region16
      $region15: #{wav2vec2_emonet_forward.12} parent=11 // pred_region
        _
      $region16: #{wav2vec2_emonet_forward.12} parent=11 // pred_fallthru
        _
    $region12: #{wav2vec2_emonet_forward.12} parent=5 // pred_fallthru
      _
    %p154 = scmp.lt.s32.totalorder %s11, 2
    // Predicated region
    $region17: #{wav2vec2_emonet_forward.12} parent=5 // pred_check
      %p155 = pneg %p154
    $region18: #{wav2vec2_emonet_forward.12} parent=5 // pred_check_branch
      %157 = sbr.rel (%p155) target = $region20
    $region19: #{wav2vec2_emonet_forward.12} parent=5 // pred_region
      // Predicated region
      $region21: #{wav2vec2_emonet_forward.12} parent=19 // pred_check
        %p158 = pneg %p31
      $region22: #{wav2vec2_emonet_forward.12} parent=19 // pred_check_branch
        %160 = sbr.rel (%p158) target = $region24
      $region23: #{wav2vec2_emonet_forward.12} parent=19 // pred_region
        %p161 = scmp.lt.s32.totalorder %s11, 1
        %s162 = scalar_select %p161, %s11, 1
        %s163 = smul.addr %s162, 6
        %s164 = smul.addr %s163, 8
        %s165 = scalar_lea.vmem %s0, %s164
      $region24: #{wav2vec2_emonet_forward.12} parent=19 // pred_fallthru
        _
      // Predicated region
      $region25: #{wav2vec2_emonet_forward.12} parent=19 // pred_check
        %p166 = pneg %p78
      $region26: #{wav2vec2_emonet_forward.12} parent=19 // pred_check_branch
        %168 = sbr.rel (%p166) target = $region28
      $region27: #{wav2vec2_emonet_forward.12} parent=19 // pred_region
        %p169 = scmp.lt.s32.totalorder %s11, 1
        %s170 = scalar_select %p169, %s11, 1
        %s171 = scalar_lea.vmem %s2, %s170
      $region28: #{wav2vec2_emonet_forward.12} parent=19 // pred_fallthru
        _
    $region20: #{wav2vec2_emonet_forward.12} parent=5 // pred_fallthru
      _
    %p172 = scmp.le.s32.totalorder 1, %s11
    %p173 = scmp.lt.s32.totalorder %s11, 3
    %p174 = pnand %p172, %p173
    %p175 = pneg %p174
    // Predicated region
    $region29: #{wav2vec2_emonet_forward.12} parent=5 // pred_check
      _
    $region30: #{wav2vec2_emonet_forward.12} parent=5 // pred_check_branch
      %177 = sbr.rel (%p174) target = $region32
    $region31: #{wav2vec2_emonet_forward.12} parent=5 // pred_region
      %s178 = ssub.s32 %s11, 1
      %p179 = scmp.lt.s32.totalorder %s16, 1
      %s180 = scalar_select %p179, %s16, 1
      %s181 = smul.addr %s180, 6
      %s182 = smul.addr %s181, 8
      %s183 = scalar_lea.vmem %s0, %s182
      %p184 = pneg %p37
      %p185 = pneg %p34
      %p186 = pneg %p58
      %p187 = pneg %p55
      %p188 = scmp.lt.s32.totalorder %s16, 1
      %s189 = scalar_select %p188, %s16, 1
      %s190 = scalar_lea.vmem %s2, %s189
      %p191 = pneg %p84
      %p192 = pneg %p81
      %p193 = pneg %p110
      %p194 = pneg %p107
      %p195 = scmp.lt.s32.totalorder %s16, 1
      %s196 = scalar_select %p195, %s16, 1
      %s197 = smul.addr %s196, 3
      %s198 = smul.addr %s197, 8
      %s199 = scalar_lea.vmem %s3, %s198
      %p200 = pneg %p136
      %p201 = pneg %p133
      %p202 = scmp.lt.s32.totalorder %s16, 1
      %s203 = scalar_select %p202, %s16, 1
      %s204 = scalar_lea.vmem %s4, %s203
      %p205 = scmp.lt.s32.totalorder %s16, 1
      %s206 = scalar_select %p205, %s16, 1
      %s207 = smul.addr %s206, 6
      %s208 = smul.addr %s207, 8
      %s209 = scalar_lea.vmem %s0, %s208
      %p210 = scmp.lt.s32.totalorder %s16, 1
      %s211 = scalar_select %p210, %s16, 1
      %s212 = scalar_lea.vmem %s2, %s211
      %p213 = scmp.lt.s32.totalorder %s16, 1
      %s214 = scalar_select %p213, %s16, 1
      %s215 = smul.addr %s214, 3
      %s216 = smul.addr %s215, 8
      %s217 = scalar_lea.vmem %s3, %s216
      %p218 = scmp.lt.s32.totalorder %s16, 1
      %s219 = scalar_select %p218, %s16, 1
      %s220 = scalar_lea.vmem %s4, %s219
      %v221 = vld [vmem:[%s209] sm:$0xff]
      %v222 = vld [vmem:[%s209 + $0x8] sm:$0xff]
      %v223 = vld [vmem:[%s209 + $0x10] sm:$0xff]
      %v224 = vld [vmem:[%s209 + $0x18] sm:$0xff]
      %v225 = vld [vmem:[%s209 + $0x20] sm:$0x7]
      %v226 = vld [vmem:[%s209 + $0x28] sm:$0x7]
      %v227 = vpack.c.bf16 %v223, %v221
      %v228 = vpack.c.bf16 %v225, %v225
      %v229 = vld [vmem:[%s1] sm:$0xf]
      %v230 = vld [vmem:[%s1 + $0x4] sm:$0xf]
      %v231 = vld [vmem:[%s1 + $0x8] sm:$0xf]
      %v232 = vld [vmem:[%s1 + $0xc] sm:$0xf]
      %v233 = vld [vmem:[%s1 + $0x10] sm:$0xf]
      %v234 = vld [vmem:[%s1 + $0x14] sm:$0xf]
      %v235 = vld [vmem:[%s1 + $0x18] sm:$0xf]
      %v236 = vld [vmem:[%s1 + $0x1c] sm:$0xf]
      %v237 = vld [vmem:[%s1 + $0x20] sm:$0xf]
      %v238 = vld [vmem:[%s1 + $0x24] sm:$0xf]
      %v239 = vld [vmem:[%s1 + $0x28] sm:$0xf]
      %v240 = vld [vmem:[%s1 + $0x2c] sm:$0xf]
      %v241 = vld [vmem:[%s1 + $0x30] sm:$0xf]
      %v242 = vld [vmem:[%s1 + $0x34] sm:$0xf]
      %v243 = vld [vmem:[%s1 + $0x38] sm:$0xf]
      %v244 = vld [vmem:[%s1 + $0x3c] sm:$0xf]
      %v245 = vpack.c.bf16 %v224, %v222
      %v246 = vpack.c.bf16 %v226, %v226
      %s247 = scalar_lea.vmem %s1, 64
      %v248 = vld [vmem:[%s247] sm:$0xf]
      %v249 = vld [vmem:[%s247 + $0x4] sm:$0xf]
      %v250 = vld [vmem:[%s247 + $0x8] sm:$0xf]
      %v251 = vld [vmem:[%s247 + $0xc] sm:$0xf]
      %v252 = vld [vmem:[%s247 + $0x10] sm:$0xf]
      %v253 = vld [vmem:[%s247 + $0x14] sm:$0xf]
      %v254 = vld [vmem:[%s247 + $0x18] sm:$0xf]
      %v255 = vld [vmem:[%s247 + $0x1c] sm:$0xf]
      %v256 = vld [vmem:[%s247 + $0x20] sm:$0xf]
      %v257 = vld [vmem:[%s247 + $0x24] sm:$0xf]
      %v258 = vld [vmem:[%s247 + $0x28] sm:$0xf]
      %v259 = vld [vmem:[%s247 + $0x2c] sm:$0xf]
      %v260 = vld [vmem:[%s247 + $0x30] sm:$0xf]
      %v261 = vld [vmem:[%s247 + $0x34] sm:$0xf]
      %v262 = vld [vmem:[%s247 + $0x38] sm:$0xf]
      %v263 = vld [vmem:[%s247 + $0x3c] sm:$0xf]
      %v280 = vunpack.c.l.b16 %v248
      %v281 = vunpack.c.l.b16 %v249
      %v282 = vunpack.c.l.b16 %v250
      %v283 = vunpack.c.l.b16 %v251
      %v284 = vunpack.c.l.b16 %v252
      %v285 = vunpack.c.l.b16 %v253
      %v286 = vunpack.c.l.b16 %v254
      %v287 = vunpack.c.l.b16 %v255
      %v288 = vunpack.c.l.b16 %v256
      %v289 = vunpack.c.l.b16 %v257
      %v290 = vunpack.c.l.b16 %v258
      %v291 = vunpack.c.l.b16 %v259
      %v292 = vunpack.c.l.b16 %v260
      %v293 = vunpack.c.l.b16 %v261
      %v294 = vunpack.c.l.b16 %v262
      %v295 = vunpack.c.l.b16 %v263
      %v296 = vpack.c.b16 %v281, %v280
      %v297 = vpack.c.b16 %v283, %v282
      %v298 = vpack.c.b16 %v285, %v284
      %v299 = vpack.c.b16 %v287, %v286
      %v300 = vpack.c.b16 %v289, %v288
      %v301 = vpack.c.b16 %v291, %v290
      %v302 = vpack.c.b16 %v293, %v292
      %v303 = vpack.c.b16 %v295, %v294
      %312 = vmatpush.bf16.msra.mxu0 %v303
      %313 = vmatpush.bf16.msra.mxu0 %v302
      %314 = vmatpush.bf16.msra.mxu0 %v301
      %315 = vmatpush.bf16.msra.mxu0 %v300
      %316 = vmatpush.bf16.msra.mxu0 %v299
      %317 = vmatpush.bf16.msra.mxu0 %v298
      %318 = vmatpush.bf16.msra.mxu0 %v297
      %319 = vmatpush.bf16.msra.mxu0 %v296
      %320 = vmatmul.bf16.gmra.mxu0 %v245
      %v321 = vpop.f32.mrf.mxu0
      %v322 = vadd.f32 0.0, %v321
      %v323 = vpop.f32.mrf.mxu0
      %v324 = vadd.f32 0.0, %v323
      %325 = vmatmul.bf16.gmra.mxu0 %v246
      %v326 = vpop.f32.mrf.mxu0
      %v327 = vadd.f32 0.0, %v326
      %v328 = vpop.f32.mrf.mxu0
      %329 = vdwg.mxu0
      %v346 = vunpack.c.l.b16 %v229
      %v347 = vunpack.c.l.b16 %v230
      %v348 = vunpack.c.l.b16 %v231
      %v349 = vunpack.c.l.b16 %v232
      %v350 = vunpack.c.l.b16 %v233
      %v351 = vunpack.c.l.b16 %v234
      %v352 = vunpack.c.l.b16 %v235
      %v353 = vunpack.c.l.b16 %v236
      %v354 = vunpack.c.l.b16 %v237
      %v355 = vunpack.c.l.b16 %v238
      %v356 = vunpack.c.l.b16 %v239
      %v357 = vunpack.c.l.b16 %v240
      %v358 = vunpack.c.l.b16 %v241
      %v359 = vunpack.c.l.b16 %v242
      %v360 = vunpack.c.l.b16 %v243
      %v361 = vunpack.c.l.b16 %v244
      %v362 = vpack.c.b16 %v347, %v346
      %v363 = vpack.c.b16 %v349, %v348
      %v364 = vpack.c.b16 %v351, %v350
      %v365 = vpack.c.b16 %v353, %v352
      %v366 = vpack.c.b16 %v355, %v354
      %v367 = vpack.c.b16 %v357, %v356
      %v368 = vpack.c.b16 %v359, %v358
      %v369 = vpack.c.b16 %v361, %v360
      %378 = vmatpush.bf16.msra.mxu0 %v369
      %379 = vmatpush.bf16.msra.mxu0 %v368
      %380 = vmatpush.bf16.msra.mxu0 %v367
      %381 = vmatpush.bf16.msra.mxu0 %v366
      %382 = vmatpush.bf16.msra.mxu0 %v365
      %383 = vmatpush.bf16.msra.mxu0 %v364
      %384 = vmatpush.bf16.msra.mxu0 %v363
      %385 = vmatpush.bf16.msra.mxu0 %v362
      %386 = vmatmul.bf16.gmra.mxu0 %v227
      %v387 = vpop.f32.mrf.mxu0
      %v388 = vadd.f32 %v322, %v387
      %v389 = vpop.f32.mrf.mxu0
      %v390 = vadd.f32 %v324, %v389
      %391 = vmatmul.bf16.gmra.mxu0 %v228
      %v392 = vpop.f32.mrf.mxu0
      %v393 = vadd.f32 %v327, %v392
      %v394 = vpop.f32.mrf.mxu0
      %395 = vdwg.mxu0
      %v396 = vmul.f32 %v388, %v388
      %v397 = vmul.f32 %v390, %v390
      %v398 = vmul.f32 %v393, %v393
      %v399 = vmul.f32 %v388, %v396
      %v400 = vmul.f32 %v390, %v397
      %v401 = vmul.f32 %v393, %v398
      %v402 = vmul.f32 %v399, 0.044715
      %v403 = vmul.f32 %v400, 0.044715
      %v404 = vmul.f32 %v401, 0.044715
      %v405 = vadd.f32 %v388, %v402
      %v406 = vadd.f32 %v390, %v403
      %v407 = vadd.f32 %v393, %v404
      %v408 = vmul.f32 %v405, 0.7978846
      %v409 = vmul.f32 %v406, 0.7978846
      %v410 = vmul.f32 %v407, 0.7978846
      %v411 = vtanh.pop %v408
      %v412 = vtanh.pop %v409
      %v413 = vtanh.pop %v410
      %v414 = vadd.f32 %v411, 1.0
      %v415 = vadd.f32 %v412, 1.0
      %v416 = vadd.f32 %v413, 1.0
      %v417 = vmul.f32 %v414, 0.5
      %v418 = vmul.f32 %v415, 0.5
      %v419 = vmul.f32 %v416, 0.5
      %v420 = vmul.f32 %v388, %v417
      %v421 = vmul.f32 %v390, %v418
      %v422 = vmul.f32 %v393, %v419
      %423 = vst [vmem:[%s217] sm:$0xff] %v420
      %424 = vst [vmem:[%s217 + $0x8] sm:$0xff] %v421
      %425 = vst [vmem:[%s217 + $0x10] sm:$0x7] %v422
      %v426 = vld [vmem:[%s212] sm:$0x1]
      %v427 = vlaneseq
      %v428 = vand.u32 %v427, 127
      %v429 = vcvt.s32.f32 %v428
      %431 = vset.pattern.permute.xlu0 0
      %432 = vperm.xlu0 %431, %v426
      %v433 = vpop.permute.xlu0 %432
      %v435 = vperm.slane %v433, 0
      %vm436 = vcmp.lt.f32.partialorder %v429, %v435
      %v437 = vsel %vm436, 1, 0
      %v438 = vcvt.s32.f32 %v437
      %vm439 = vcmask 154624
      %v441 = vsel %vm439, %v438, 0
      %vm443 = vcmask 1042432
      %v445 = vsel %vm443, %v422, 0
      %447 = vmatpush.msra.mxu0 0.0
      %448 = vmatpush.msra.mxu0 0.0
      %449 = vmatpush.msra.mxu0 0.0
      %450 = vmatpush.msra.mxu0 0.0
      %451 = vmatpush.msra.mxu0 0.0
      %452 = vmatpush.msra.mxu0 0.0
      %453 = vmatpush.msra.mxu0 0.0
      %454 = vmatpush.msra.mxu0 0.0
      %455 = vmatpush.msra.mxu0 0.0
      %456 = vmatpush.msra.mxu0 0.0
      %457 = vmatpush.msra.mxu0 0.0
      %458 = vmatpush.msra.mxu0 0.0
      %459 = vmatpush.msra.mxu0 0.0
      %460 = vmatpush.msra.mxu0 %v445
      %461 = vmatpush.msra.mxu0 %v421
      %462 = vmatpush.msra.mxu0 %v420
      %463 = vmatmul.f32.gmra.mxu0 %v441
      %v464 = vpop.f32.mrf.mxu0
      %v465 = vadd.f32 0.0, %v464
      %466 = vdwg.mxu0
      %v467 = vrcp.pop %v435
      %v468 = vmul.f32 %v435, %v467
      %v469 = vsub.f32 1.0, %v468
      %v470 = vmul.f32 %v467, %v469
      %v471 = vadd.f32 %v467, %v470
      %vm472 = vweird.f32 %v435
      %vm473 = vweird.f32 %v467
      %vm474 = vmor %vm472, %vm473
      %v475 = vsel %vm474, %v467, %v471
      %v476 = vand.u32 2147483647, %v435
      %vm477 = vcmp.eq.f32.partialorder %v476, 8.507059e+37
      %v478 = vand.u32 %v435, 2147483648
      %v479 = vor.u32 1.1754944e-38, %v478
      %v480 = vsel %vm477, %v479, %v475
      %v481 = vmul.f32 %v465, %v480
      %482 = vst [vmem:[%s220] sm:$0x1] %v481
      %p483 = scmp.lt.s32.totalorder %s16, 1
      %s484 = scalar_select %p483, %s16, 1
      %s485 = smul.addr %s484, 3
      %s486 = smul.addr %s485, 8
      %s487 = scalar_lea.vmem %s3, %s486
      %p488 = scmp.lt.s32.totalorder %s16, 1
      %s489 = scalar_select %p488, %s16, 1
      %s490 = scalar_lea.vmem %s4, %s489
      // Predicated region
      $region33: #{wav2vec2_emonet_forward.12} parent=31 // pred_check
        %p491 = pneg %p107
      $region34: #{wav2vec2_emonet_forward.12} parent=31 // pred_check_branch
        %493 = sbr.rel (%p491) target = $region36
      $region35: #{wav2vec2_emonet_forward.12} parent=31 // pred_region
        _
      $region36: #{wav2vec2_emonet_forward.12} parent=31 // pred_fallthru
        _
      // Predicated region
      $region37: #{wav2vec2_emonet_forward.12} parent=31 // pred_check
        %p494 = pneg %p133
      $region38: #{wav2vec2_emonet_forward.12} parent=31 // pred_check_branch
        %496 = sbr.rel (%p494) target = $region40
      $region39: #{wav2vec2_emonet_forward.12} parent=31 // pred_region
        _
      $region40: #{wav2vec2_emonet_forward.12} parent=31 // pred_fallthru
        _
    $region32: #{wav2vec2_emonet_forward.12} parent=5 // pred_fallthru
      _
    %p497 = scmp.le.s32.totalorder 2, %s11
    // Predicated region
    $region41: #{wav2vec2_emonet_forward.12} parent=5 // pred_check
      %p498 = pneg %p497
    $region42: #{wav2vec2_emonet_forward.12} parent=5 // pred_check_branch
      %500 = sbr.rel (%p498) target = $region44
    $region43: #{wav2vec2_emonet_forward.12} parent=5 // pred_region
      %s501 = ssub.s32 %s11, 2
      // Predicated region
      $region45: #{wav2vec2_emonet_forward.12} parent=43 // pred_check
        %p502 = pneg %p113
      $region46: #{wav2vec2_emonet_forward.12} parent=43 // pred_check_branch
        %504 = sbr.rel (%p502) target = $region48
      $region47: #{wav2vec2_emonet_forward.12} parent=43 // pred_region
        %p505 = scmp.lt.s32.totalorder %s17, 1
        %s506 = scalar_select %p505, %s17, 1
        %s507 = smul.addr %s506, 3
        %s508 = smul.addr %s507, 8
        %s509 = scalar_lea.vmem %s3, %s508
      $region48: #{wav2vec2_emonet_forward.12} parent=43 // pred_fallthru
        _
      // Predicated region
      $region49: #{wav2vec2_emonet_forward.12} parent=43 // pred_check
        %p510 = pneg %p139
      $region50: #{wav2vec2_emonet_forward.12} parent=43 // pred_check_branch
        %512 = sbr.rel (%p510) target = $region52
      $region51: #{wav2vec2_emonet_forward.12} parent=43 // pred_region
        %p513 = scmp.lt.s32.totalorder %s17, 1
        %s514 = scalar_select %p513, %s17, 1
        %s515 = scalar_lea.vmem %s4, %s514
      $region52: #{wav2vec2_emonet_forward.12} parent=43 // pred_fallthru
        _
    $region44: #{wav2vec2_emonet_forward.12} parent=5 // pred_fallthru
      _
  $region6: #{wav2vec2_emonet_forward.12} parent=0 // loop_footer
    %s15 = sadd.s32 1, %s11
  $region7: #{wav2vec2_emonet_forward.12} parent=0 // loop_footer_branch
    %10 = sbr.rel target = $region3
  $region8: #{wav2vec2_emonet_forward.12} parent=0 // loop_exit
    _

// kernel: wav2vec2_emonet_forward.13
$region0: #{wav2vec2_emonet_forward.13}
  #allocation0 [shape = 'u32[]', space=smem, size = 0x4, offset = 0x4, fixed_abs, tag = 'smem constant byte address 0x4 - core index']
  #allocation1 [shape = 'u32[72,128]{1,0:T(1,128)}', space=vmem, size = 0x9000, scoped, tag = 'internal scratch']
  %s0 = inlined_call_operand.vmem [shape: f32[40,128], index: 0, kind: input, shape index: {}]
  %s1 = inlined_call_operand.vmem [shape: f32[1,128], index: 1, kind: input, shape index: {}]
  %s2 = inlined_call_operand.vmem [shape: f32[1,128], index: 2, kind: input, shape index: {}]
  %s3 = inlined_call_operand.vmem [shape: bf16[128,128], index: 3, kind: input, shape index: {}]
  %s4 = inlined_call_operand.vmem [shape: f32[1,128], index: 4, kind: input, shape index: {}]
  %s5 = inlined_call_operand.vmem [shape: f32[40,128], index: 5, kind: output, shape index: {}]
  %s6 = sld [smem:[#allocation0]]
  $region30: #{wav2vec2_emonet_forward.13} parent=0
    _
  %s8 = ssub.s32 1, %s6
  %s9 = scalar_select 0, %s8, %s6
  // Predicated region
  $region2: #{wav2vec2_emonet_forward.13} parent=0 // pred_check
    _
  $region3: #{wav2vec2_emonet_forward.13} parent=0 // pred_check_branch
    %11 = sbr.rel (0) target = $region5
  $region4: #{wav2vec2_emonet_forward.13} parent=0 // pred_region
    _
  $region5: #{wav2vec2_emonet_forward.13} parent=0 // pred_fallthru
    _
  // Predicated region
  $region6: #{wav2vec2_emonet_forward.13} parent=0 // pred_check
    _
  $region7: #{wav2vec2_emonet_forward.13} parent=0 // pred_check_branch
    %13 = sbr.rel (0) target = $region9
  $region8: #{wav2vec2_emonet_forward.13} parent=0 // pred_region
    _
  $region9: #{wav2vec2_emonet_forward.13} parent=0 // pred_fallthru
    _
  // Predicated region
  $region10: #{wav2vec2_emonet_forward.13} parent=0 // pred_check
    _
  $region11: #{wav2vec2_emonet_forward.13} parent=0 // pred_check_branch
    %15 = sbr.rel (0) target = $region13
  $region12: #{wav2vec2_emonet_forward.13} parent=0 // pred_region
    _
  $region13: #{wav2vec2_emonet_forward.13} parent=0 // pred_fallthru
    _
  // Predicated region
  $region14: #{wav2vec2_emonet_forward.13} parent=0 // pred_check
    _
  $region15: #{wav2vec2_emonet_forward.13} parent=0 // pred_check_branch
    %17 = sbr.rel (0) target = $region17
  $region16: #{wav2vec2_emonet_forward.13} parent=0 // pred_region
    _
  $region17: #{wav2vec2_emonet_forward.13} parent=0 // pred_fallthru
    _
  // Predicated region
  $region18: #{wav2vec2_emonet_forward.13} parent=0 // pred_check
    _
  $region19: #{wav2vec2_emonet_forward.13} parent=0 // pred_check_branch
    %19 = sbr.rel (0) target = $region21
  $region20: #{wav2vec2_emonet_forward.13} parent=0 // pred_region
    _
  $region21: #{wav2vec2_emonet_forward.13} parent=0 // pred_fallthru
    _
  %v20 = vld [vmem:[%s0] sm:$0xff]
  %v21 = vld [vmem:[%s0 + $0x8] sm:$0xff]
  %v22 = vld [vmem:[%s0 + $0x10] sm:$0xff]
  %v23 = vld [vmem:[%s0 + $0x18] sm:$0xff]
  %v24 = vld [vmem:[%s0 + $0x20] sm:$0xff]
  %v25 = vld [vmem:[%s1] sm:$0x1]
  %v26 = vld [vmem:[%s2] sm:$0x1]
  %27 = vadd.xlane.f32.xlu0 %v20
  %v28 = vpop.xlane.xlu0 %27
  %29 = vadd.xlane.f32.xlu0 %v21
  %v30 = vpop.xlane.xlu0 %29
  %31 = vadd.xlane.f32.xlu0 %v22
  %v32 = vpop.xlane.xlu0 %31
  %33 = vadd.xlane.f32.xlu0 %v23
  %v34 = vpop.xlane.xlu0 %33
  %35 = vadd.xlane.f32.xlu0 %v24
  %v36 = vpop.xlane.xlu0 %35
  %v37 = vrcp.pop 128.0
  %v38 = vmul.f32 128.0, %v37
  %v39 = vsub.f32 1.0, %v38
  %v40 = vmul.f32 %v37, %v39
  %v41 = vadd.f32 %v37, %v40
  %vm42 = vweird.f32 %v37
  %v43 = vsel %vm42, %v37, %v41
  %v44 = vmul.f32 %v28, %v43
  %v45 = vmul.f32 %v30, %v43
  %v46 = vmul.f32 %v32, %v43
  %v47 = vmul.f32 %v34, %v43
  %v48 = vmul.f32 %v36, %v43
  %v49 = vsub.f32 %v20, %v44
  %v50 = vsub.f32 %v21, %v45
  %v51 = vsub.f32 %v22, %v46
  %v52 = vsub.f32 %v23, %v47
  %v53 = vsub.f32 %v24, %v48
  %v54 = vmul.f32 %v49, %v49
  %v55 = vmul.f32 %v50, %v50
  %v56 = vmul.f32 %v51, %v51
  %v57 = vmul.f32 %v52, %v52
  %v58 = vmul.f32 %v53, %v53
  %59 = vadd.xlane.f32.xlu0 %v54
  %v60 = vpop.xlane.xlu0 %59
  %61 = vadd.xlane.f32.xlu0 %v55
  %v62 = vpop.xlane.xlu0 %61
  %63 = vadd.xlane.f32.xlu0 %v56
  %v64 = vpop.xlane.xlu0 %63
  %65 = vadd.xlane.f32.xlu0 %v57
  %v66 = vpop.xlane.xlu0 %65
  %67 = vadd.xlane.f32.xlu0 %v58
  %v68 = vpop.xlane.xlu0 %67
  %v69 = vmul.f32 %v60, %v43
  %v70 = vmul.f32 %v62, %v43
  %v71 = vmul.f32 %v64, %v43
  %v72 = vmul.f32 %v66, %v43
  %v73 = vmul.f32 %v68, %v43
  %v74 = vadd.f32 %v69, 1e-05
  %v75 = vadd.f32 %v70, 1e-05
  %v76 = vadd.f32 %v71, 1e-05
  %v77 = vadd.f32 %v72, 1e-05
  %v78 = vadd.f32 %v73, 1e-05
  %v79 = vrsqrt.pop %v74
  %v80 = vmul.f32 %v79, %v74
  %v81 = vmul.f32 %v80, %v79
  %v82 = vmul.f32 0.5, %v81
  %v83 = vsub.f32 1.5, %v82
  %v84 = vmul.f32 %v79, %v83
  %vm85 = vweird.f32 %v74
  %vm86 = vweird.f32 %v79
  %vm87 = vmor %vm85, %vm86
  %v88 = vsel %vm87, %v79, %v84
  %v89 = vrsqrt.pop %v75
  %v90 = vmul.f32 %v89, %v75
  %v91 = vmul.f32 %v90, %v89
  %v92 = vmul.f32 0.5, %v91
  %v93 = vsub.f32 1.5, %v92
  %v94 = vmul.f32 %v89, %v93
  %vm95 = vweird.f32 %v75
  %vm96 = vweird.f32 %v89
  %vm97 = vmor %vm95, %vm96
  %v98 = vsel %vm97, %v89, %v94
  %v99 = vrsqrt.pop %v76
  %v100 = vmul.f32 %v99, %v76
  %v101 = vmul.f32 %v100, %v99
  %v102 = vmul.f32 0.5, %v101
  %v103 = vsub.f32 1.5, %v102
  %v104 = vmul.f32 %v99, %v103
  %vm105 = vweird.f32 %v76
  %vm106 = vweird.f32 %v99
  %vm107 = vmor %vm105, %vm106
  %v108 = vsel %vm107, %v99, %v104
  %v109 = vrsqrt.pop %v77
  %v110 = vmul.f32 %v109, %v77
  %v111 = vmul.f32 %v110, %v109
  %v112 = vmul.f32 0.5, %v111
  %v113 = vsub.f32 1.5, %v112
  %v114 = vmul.f32 %v109, %v113
  %vm115 = vweird.f32 %v77
  %vm116 = vweird.f32 %v109
  %vm117 = vmor %vm115, %vm116
  %v118 = vsel %vm117, %v109, %v114
  %v119 = vrsqrt.pop %v78
  %v120 = vmul.f32 %v119, %v78
  %v121 = vmul.f32 %v120, %v119
  %v122 = vmul.f32 0.5, %v121
  %v123 = vsub.f32 1.5, %v122
  %v124 = vmul.f32 %v119, %v123
  %vm125 = vweird.f32 %v78
  %vm126 = vweird.f32 %v119
  %vm127 = vmor %vm125, %vm126
  %v128 = vsel %vm127, %v119, %v124
  %v129 = vmul.f32 %v49, %v88
  %v130 = vmul.f32 %v50, %v98
  %v131 = vmul.f32 %v51, %v108
  %v132 = vmul.f32 %v52, %v118
  %v133 = vmul.f32 %v53, %v128
  %v135 = vperm.slane %v25, 0
  %v137 = vmul.f32 %v129, %v135
  %v138 = vmul.f32 %v130, %v135
  %v139 = vmul.f32 %v131, %v135
  %v140 = vmul.f32 %v132, %v135
  %v141 = vmul.f32 %v133, %v135
  %v143 = vperm.slane %v26, 0
  %v145 = vadd.f32 %v137, %v143
  %v146 = vadd.f32 %v138, %v143
  %v147 = vadd.f32 %v139, %v143
  %v148 = vadd.f32 %v140, %v143
  %v149 = vadd.f32 %v141, %v143
  %v150 = vpack.c.bf16 %v146, %v145
  %v151 = vpack.c.bf16 %v148, %v147
  %v152 = vpack.c.bf16 %v149, %v149
  %v153 = vld [vmem:[%s3] sm:$0xf]
  %v154 = vld [vmem:[%s3 + $0x4] sm:$0xf]
  %v155 = vld [vmem:[%s3 + $0x8] sm:$0xf]
  %v156 = vld [vmem:[%s3 + $0xc] sm:$0xf]
  %v157 = vld [vmem:[%s3 + $0x10] sm:$0xf]
  %v158 = vld [vmem:[%s3 + $0x14] sm:$0xf]
  %v159 = vld [vmem:[%s3 + $0x18] sm:$0xf]
  %v160 = vld [vmem:[%s3 + $0x1c] sm:$0xf]
  %v161 = vld [vmem:[%s3 + $0x20] sm:$0xf]
  %v162 = vld [vmem:[%s3 + $0x24] sm:$0xf]
  %v163 = vld [vmem:[%s3 + $0x28] sm:$0xf]
  %v164 = vld [vmem:[%s3 + $0x2c] sm:$0xf]
  %v165 = vld [vmem:[%s3 + $0x30] sm:$0xf]
  %v166 = vld [vmem:[%s3 + $0x34] sm:$0xf]
  %v167 = vld [vmem:[%s3 + $0x38] sm:$0xf]
  %v168 = vld [vmem:[%s3 + $0x3c] sm:$0xf]
  %v169 = vld [vmem:[%s4] sm:$0x1]
  %v171 = vperm.slane %v169, 0
  %v189 = vunpack.c.l.b16 %v153
  %v190 = vunpack.c.l.b16 %v154
  %v191 = vunpack.c.l.b16 %v155
  %v192 = vunpack.c.l.b16 %v156
  %v193 = vunpack.c.l.b16 %v157
  %v194 = vunpack.c.l.b16 %v158
  %v195 = vunpack.c.l.b16 %v159
  %v196 = vunpack.c.l.b16 %v160
  %v197 = vunpack.c.l.b16 %v161
  %v198 = vunpack.c.l.b16 %v162
  %v199 = vunpack.c.l.b16 %v163
  %v200 = vunpack.c.l.b16 %v164
  %v201 = vunpack.c.l.b16 %v165
  %v202 = vunpack.c.l.b16 %v166
  %v203 = vunpack.c.l.b16 %v167
  %v204 = vunpack.c.l.b16 %v168
  %v205 = vpack.c.b16 %v190, %v189
  %v206 = vpack.c.b16 %v192, %v191
  %v207 = vpack.c.b16 %v194, %v193
  %v208 = vpack.c.b16 %v196, %v195
  %v209 = vpack.c.b16 %v198, %v197
  %v210 = vpack.c.b16 %v200, %v199
  %v211 = vpack.c.b16 %v202, %v201
  %v212 = vpack.c.b16 %v204, %v203
  %221 = vmatpush.bf16.msra.mxu0 %v212
  %222 = vmatpush.bf16.msra.mxu0 %v211
  %223 = vmatpush.bf16.msra.mxu0 %v210
  %224 = vmatpush.bf16.msra.mxu0 %v209
  %225 = vmatpush.bf16.msra.mxu0 %v208
  %226 = vmatpush.bf16.msra.mxu0 %v207
  %227 = vmatpush.bf16.msra.mxu0 %v206
  %228 = vmatpush.bf16.msra.mxu0 %v205
  %229 = vmatmul.bf16.gmra.mxu0 %v150
  %v230 = vpop.f32.mrf.mxu0
  %v231 = vadd.f32 %v171, %v230
  %v232 = vpop.f32.mrf.mxu0
  %v233 = vadd.f32 %v171, %v232
  %234 = vmatmul.bf16.gmra.mxu0 %v151
  %v235 = vpop.f32.mrf.mxu0
  %v236 = vadd.f32 %v171, %v235
  %v237 = vpop.f32.mrf.mxu0
  %v238 = vadd.f32 %v171, %v237
  %239 = vmatmul.bf16.gmra.mxu0 %v152
  %v240 = vpop.f32.mrf.mxu0
  %v241 = vadd.f32 %v171, %v240
  %v242 = vpop.f32.mrf.mxu0
  %243 = vdwg.mxu0
  %244 = vst [vmem:[%s5] sm:$0xff] %v231
  %245 = vst [vmem:[%s5 + $0x8] sm:$0xff] %v233
  %246 = vst [vmem:[%s5 + $0x10] sm:$0xff] %v236
  %247 = vst [vmem:[%s5 + $0x18] sm:$0xff] %v238
  %248 = vst [vmem:[%s5 + $0x20] sm:$0xff] %v241
  // Predicated region
  $region22: #{wav2vec2_emonet_forward.13} parent=0 // pred_check
    _
  $region23: #{wav2vec2_emonet_forward.13} parent=0 // pred_check_branch
    %250 = sbr.rel (0) target = $region25
  $region24: #{wav2vec2_emonet_forward.13} parent=0 // pred_region
    _
  $region25: #{wav2vec2_emonet_forward.13} parent=0 // pred_fallthru
    _
  // Predicated region
  $region26: #{wav2vec2_emonet_forward.13} parent=0 // pred_check
    _
  $region27: #{wav2vec2_emonet_forward.13} parent=0 // pred_check_branch
    %252 = sbr.rel (0) target = $region29
  $region28: #{wav2vec2_emonet_forward.13} parent=0 // pred_region
    _
  $region29: #{wav2vec2_emonet_forward.13} parent=0 // pred_fallthru
    _

// kernel: wav2vec2_emonet_forward.10
$region0: #{wav2vec2_emonet_forward.10}
  #allocation0 [shape = 'u32[]', space=smem, size = 0x4, offset = 0x4, fixed_abs, tag = 'smem constant byte address 0x4 - core index']
  #allocation1 [shape = 'u32[72,128]{1,0:T(1,128)}', space=vmem, size = 0x9000, scoped, tag = 'internal scratch']
  %s0 = inlined_call_operand.vmem [shape: f32[2,79,10], index: 0, kind: input, shape index: {}]
  %s1 = inlined_call_operand.vmem [shape: bf16[10,128], index: 1, kind: input, shape index: {}]
  %s2 = inlined_call_operand.vmem [shape: f32[1,128], index: 2, kind: input, shape index: {}]
  %s3 = inlined_call_operand.vmem [shape: f32[1,128], index: 3, kind: input, shape index: {}]
  %s4 = inlined_call_operand.vmem [shape: f32[2,1,1], index: 4, kind: input, shape index: {}]
  %s5 = inlined_call_operand.vmem [shape: f32[2,79,128], index: 5, kind: output, shape index: {0}]
  %s6 = inlined_call_operand.vmem [shape: f32[2,1,128], index: 6, kind: output, shape index: {1}]
  %7 = xla_tuple %s5, %s6
  %s8 = sld [smem:[#allocation0]]
  $region61: #{wav2vec2_emonet_forward.10} parent=0
    _
  %s10 = ssub.s32 1, %s8
  %s11 = scalar_select 0, %s10, %s8
  loop: start=0, step=1, limit=4
  $region2: #{wav2vec2_emonet_forward.10} parent=0 // loop_pre_header
    _
  $region3: #{wav2vec2_emonet_forward.10} parent=0 // loop_header
    %s13 = sphi 0, %s17
    %p14 = scmp.ge.s32.totalorder %s13, 4
    %s23 = sphi 0, %s25
    %s26 = sphi 0, %s23
    %s27 = sphi 0, %s26
    %s43 = sphi 0, %s27
    %s47 = sphi 0, %s47
    %s49 = sphi 0, %s47
    %s50 = sphi 0, %s49
    %s64 = sphi 0, %s50
    %s68 = sphi 0, %s68
    %s70 = sphi 0, %s68
    %s71 = sphi 0, %s70
    %s85 = sphi 0, %s71
    %s89 = sphi 0, %s89
    %s91 = sphi 0, %s89
    %s92 = sphi 0, %s91
    %s106 = sphi 0, %s92
    %s112 = sphi 0, %s114
    %s115 = sphi 0, %s112
    %s116 = sphi 0, %s115
    %s132 = sphi 0, %s116
    %s138 = sphi 0, %s140
    %s141 = sphi 0, %s138
    %s142 = sphi 0, %s141
    %s158 = sphi 0, %s142
    %s164 = sphi 0, %s166
    %s167 = sphi 0, %s164
    %s168 = sphi 0, %s167
    %s184 = sphi 0, %s168
  $region4: #{wav2vec2_emonet_forward.10} parent=0 // loop_header_branch
    %16 = sbr.rel (%p14) target = $region8
  $region5: #{wav2vec2_emonet_forward.10} parent=0 // loop_body
    %s18 = ssub.s32 %s13, 1
    %s19 = ssub.s32 %s13, 2
    %s20 = sadd.s32 %s13, 1
    %s21 = ssub.s32 %s13, %s20
    %p22 = scmp.eq.s32.totalorder %s21, 0
    %s24 = sadd.s32 %s23, 1
    %s25 = scalar_select %p22, %s23, %s24
    %p28 = pneg %p22
    %p29 = scmp.eq.s32.totalorder %s13, 1
    %p30 = por %p28, %p29
    %p31 = scmp.ne.s32.totalorder %s23, %s26
    %p32 = scmp.eq.s32.totalorder %s13, 0
    %p33 = por %p31, %p32
    %p34 = scmp.ne.s32.totalorder %s23, %s26
    %p35 = scmp.eq.s32.totalorder %s18, 1
    %p36 = por %p34, %p35
    %p37 = scmp.ne.s32.totalorder %s26, %s27
    %p38 = scmp.eq.s32.totalorder %s18, 0
    %p39 = por %p37, %p38
    %p40 = scmp.ne.s32.totalorder %s26, %s27
    %p41 = scmp.eq.s32.totalorder %s19, 1
    %p42 = por %p40, %p41
    %p44 = scmp.ne.s32.totalorder %s27, %s43
    %p45 = scmp.eq.s32.totalorder %s19, 0
    %p46 = por %p44, %p45
    %s48 = sadd.s32 %s47, 1
    %p51 = scmp.eq.s32.totalorder %s13, 1
    %p52 = scmp.ne.s32.totalorder %s47, %s49
    %p53 = scmp.eq.s32.totalorder %s13, 0
    %p54 = por %p52, %p53
    %p55 = scmp.ne.s32.totalorder %s47, %s49
    %p56 = scmp.eq.s32.totalorder %s18, 1
    %p57 = por %p55, %p56
    %p58 = scmp.ne.s32.totalorder %s49, %s50
    %p59 = scmp.eq.s32.totalorder %s18, 0
    %p60 = por %p58, %p59
    %p61 = scmp.ne.s32.totalorder %s49, %s50
    %p62 = scmp.eq.s32.totalorder %s19, 1
    %p63 = por %p61, %p62
    %p65 = scmp.ne.s32.totalorder %s50, %s64
    %p66 = scmp.eq.s32.totalorder %s19, 0
    %p67 = por %p65, %p66
    %s69 = sadd.s32 %s68, 1
    %p72 = scmp.eq.s32.totalorder %s13, 1
    %p73 = scmp.ne.s32.totalorder %s68, %s70
    %p74 = scmp.eq.s32.totalorder %s13, 0
    %p75 = por %p73, %p74
    %p76 = scmp.ne.s32.totalorder %s68, %s70
    %p77 = scmp.eq.s32.totalorder %s18, 1
    %p78 = por %p76, %p77
    %p79 = scmp.ne.s32.totalorder %s70, %s71
    %p80 = scmp.eq.s32.totalorder %s18, 0
    %p81 = por %p79, %p80
    %p82 = scmp.ne.s32.totalorder %s70, %s71
    %p83 = scmp.eq.s32.totalorder %s19, 1
    %p84 = por %p82, %p83
    %p86 = scmp.ne.s32.totalorder %s71, %s85
    %p87 = scmp.eq.s32.totalorder %s19, 0
    %p88 = por %p86, %p87
    %s90 = sadd.s32 %s89, 1
    %p93 = scmp.eq.s32.totalorder %s13, 1
    %p94 = scmp.ne.s32.totalorder %s89, %s91
    %p95 = scmp.eq.s32.totalorder %s13, 0
    %p96 = por %p94, %p95
    %p97 = scmp.ne.s32.totalorder %s89, %s91
    %p98 = scmp.eq.s32.totalorder %s18, 1
    %p99 = por %p97, %p98
    %p100 = scmp.ne.s32.totalorder %s91, %s92
    %p101 = scmp.eq.s32.totalorder %s18, 0
    %p102 = por %p100, %p101
    %p103 = scmp.ne.s32.totalorder %s91, %s92
    %p104 = scmp.eq.s32.totalorder %s19, 1
    %p105 = por %p103, %p104
    %p107 = scmp.ne.s32.totalorder %s92, %s106
    %p108 = scmp.eq.s32.totalorder %s19, 0
    %p109 = por %p107, %p108
    %s110 = ssub.s32 %s13, %s20
    %p111 = scmp.eq.s32.totalorder %s110, 0
    %s113 = sadd.s32 %s112, 1
    %s114 = scalar_select %p111, %s112, %s113
    %p117 = pneg %p111
    %p118 = scmp.eq.s32.totalorder %s13, 1
    %p119 = por %p117, %p118
    %p120 = scmp.ne.s32.totalorder %s112, %s115
    %p121 = scmp.eq.s32.totalorder %s13, 0
    %p122 = por %p120, %p121
    %p123 = scmp.ne.s32.totalorder %s112, %s115
    %p124 = scmp.eq.s32.totalorder %s18, 1
    %p125 = por %p123, %p124
    %p126 = scmp.ne.s32.totalorder %s115, %s116
    %p127 = scmp.eq.s32.totalorder %s18, 0
    %p128 = por %p126, %p127
    %p129 = scmp.ne.s32.totalorder %s115, %s116
    %p130 = scmp.eq.s32.totalorder %s19, 1
    %p131 = por %p129, %p130
    %p133 = scmp.ne.s32.totalorder %s116, %s132
    %p134 = scmp.eq.s32.totalorder %s19, 0
    %p135 = por %p133, %p134
    %s136 = ssub.s32 %s13, %s20
    %p137 = scmp.eq.s32.totalorder %s136, 0
    %s139 = sadd.s32 %s138, 1
    %s140 = scalar_select %p137, %s138, %s139
    %p143 = pneg %p137
    %p144 = scmp.eq.s32.totalorder %s13, 1
    %p145 = por %p143, %p144
    %p146 = scmp.ne.s32.totalorder %s138, %s141
    %p147 = scmp.eq.s32.totalorder %s13, 0
    %p148 = por %p146, %p147
    %p149 = scmp.ne.s32.totalorder %s138, %s141
    %p150 = scmp.eq.s32.totalorder %s18, 1
    %p151 = por %p149, %p150
    %p152 = scmp.ne.s32.totalorder %s141, %s142
    %p153 = scmp.eq.s32.totalorder %s18, 0
    %p154 = por %p152, %p153
    %p155 = scmp.ne.s32.totalorder %s141, %s142
    %p156 = scmp.eq.s32.totalorder %s19, 1
    %p157 = por %p155, %p156
    %p159 = scmp.ne.s32.totalorder %s142, %s158
    %p160 = scmp.eq.s32.totalorder %s19, 0
    %p161 = por %p159, %p160
    %s162 = ssub.s32 %s13, %s20
    %p163 = scmp.eq.s32.totalorder %s162, 0
    %s165 = sadd.s32 %s164, 1
    %s166 = scalar_select %p163, %s164, %s165
    %p169 = pneg %p163
    %p170 = scmp.eq.s32.totalorder %s13, 1
    %p171 = por %p169, %p170
    %p172 = scmp.ne.s32.totalorder %s164, %s167
    %p173 = scmp.eq.s32.totalorder %s13, 0
    %p174 = por %p172, %p173
    %p175 = scmp.ne.s32.totalorder %s164, %s167
    %p176 = scmp.eq.s32.totalorder %s18, 1
    %p177 = por %p175, %p176
    %p178 = scmp.ne.s32.totalorder %s167, %s168
    %p179 = scmp.eq.s32.totalorder %s18, 0
    %p180 = por %p178, %p179
    %p181 = scmp.ne.s32.totalorder %s167, %s168
    %p182 = scmp.eq.s32.totalorder %s19, 1
    %p183 = por %p181, %p182
    %p185 = scmp.ne.s32.totalorder %s168, %s184
    %p186 = scmp.eq.s32.totalorder %s19, 0
    %p187 = por %p185, %p186
    %p188 = scmp.le.s32.totalorder 1, %s13
    %p189 = scmp.lt.s32.totalorder %s13, 3
    %p190 = pnand %p188, %p189
    %p191 = pneg %p190
    // Predicated region
    $region9: #{wav2vec2_emonet_forward.10} parent=5 // pred_check
      _
    $region10: #{wav2vec2_emonet_forward.10} parent=5 // pred_check_branch
      %193 = sbr.rel (%p190) target = $region12
    $region11: #{wav2vec2_emonet_forward.10} parent=5 // pred_region
      %s194 = ssub.s32 %s13, 1
      // Predicated region
      $region13: #{wav2vec2_emonet_forward.10} parent=11 // pred_check
        %p195 = pneg %p60
      $region14: #{wav2vec2_emonet_forward.10} parent=11 // pred_check_branch
        %197 = sbr.rel (%p195) target = $region16
      $region15: #{wav2vec2_emonet_forward.10} parent=11 // pred_region
        _
      $region16: #{wav2vec2_emonet_forward.10} parent=11 // pred_fallthru
        _
      // Predicated region
      $region17: #{wav2vec2_emonet_forward.10} parent=11 // pred_check
        %p198 = pneg %p81
      $region18: #{wav2vec2_emonet_forward.10} parent=11 // pred_check_branch
        %200 = sbr.rel (%p198) target = $region20
      $region19: #{wav2vec2_emonet_forward.10} parent=11 // pred_region
        _
      $region20: #{wav2vec2_emonet_forward.10} parent=11 // pred_fallthru
        _
      // Predicated region
      $region21: #{wav2vec2_emonet_forward.10} parent=11 // pred_check
        %p201 = pneg %p102
      $region22: #{wav2vec2_emonet_forward.10} parent=11 // pred_check_branch
        %203 = sbr.rel (%p201) target = $region24
      $region23: #{wav2vec2_emonet_forward.10} parent=11 // pred_region
        _
      $region24: #{wav2vec2_emonet_forward.10} parent=11 // pred_fallthru
        _
    $region12: #{wav2vec2_emonet_forward.10} parent=5 // pred_fallthru
      _
    %p204 = scmp.lt.s32.totalorder %s13, 2
    // Predicated region
    $region25: #{wav2vec2_emonet_forward.10} parent=5 // pred_check
      %p205 = pneg %p204
    $region26: #{wav2vec2_emonet_forward.10} parent=5 // pred_check_branch
      %207 = sbr.rel (%p205) target = $region28
    $region27: #{wav2vec2_emonet_forward.10} parent=5 // pred_region
      // Predicated region
      $region29: #{wav2vec2_emonet_forward.10} parent=27 // pred_check
        %p208 = pneg %p33
      $region30: #{wav2vec2_emonet_forward.10} parent=27 // pred_check_branch
        %210 = sbr.rel (%p208) target = $region32
      $region31: #{wav2vec2_emonet_forward.10} parent=27 // pred_region
        %p211 = scmp.lt.s32.totalorder %s13, 1
        %s212 = scalar_select %p211, %s13, 1
        %s213 = smul.addr %s212, 10
        %s214 = smul.addr %s213, 8
        %s215 = scalar_lea.vmem %s0, %s214
      $region32: #{wav2vec2_emonet_forward.10} parent=27 // pred_fallthru
        _
      // Predicated region
      $region33: #{wav2vec2_emonet_forward.10} parent=27 // pred_check
        %p216 = pneg %p122
      $region34: #{wav2vec2_emonet_forward.10} parent=27 // pred_check_branch
        %218 = sbr.rel (%p216) target = $region36
      $region35: #{wav2vec2_emonet_forward.10} parent=27 // pred_region
        %p219 = scmp.lt.s32.totalorder %s13, 1
        %s220 = scalar_select %p219, %s13, 1
        %s221 = scalar_lea.vmem %s4, %s220
      $region36: #{wav2vec2_emonet_forward.10} parent=27 // pred_fallthru
        _
    $region28: #{wav2vec2_emonet_forward.10} parent=5 // pred_fallthru
      _
    %p222 = scmp.le.s32.totalorder 1, %s13
    %p223 = scmp.lt.s32.totalorder %s13, 3
    %p224 = pnand %p222, %p223
    %p225 = pneg %p224
    // Predicated region
    $region37: #{wav2vec2_emonet_forward.10} parent=5 // pred_check
      _
    $region38: #{wav2vec2_emonet_forward.10} parent=5 // pred_check_branch
      %227 = sbr.rel (%p224) target = $region40
    $region39: #{wav2vec2_emonet_forward.10} parent=5 // pred_region
      %s228 = ssub.s32 %s13, 1
      %p229 = scmp.lt.s32.totalorder %s18, 1
      %s230 = scalar_select %p229, %s18, 1
      %s231 = smul.addr %s230, 10
      %s232 = smul.addr %s231, 8
      %s233 = scalar_lea.vmem %s0, %s232
      %p234 = pneg %p39
      %p235 = pneg %p36
      %p236 = pneg %p60
      %p237 = pneg %p57
      %p238 = pneg %p81
      %p239 = pneg %p78
      %p240 = pneg %p102
      %p241 = pneg %p99
      %p242 = scmp.lt.s32.totalorder %s18, 1
      %s243 = scalar_select %p242, %s18, 1
      %s244 = scalar_lea.vmem %s4, %s243
      %p245 = pneg %p128
      %p246 = pneg %p125
      %p247 = pneg %p154
      %p248 = pneg %p151
      %p249 = scmp.lt.s32.totalorder %s18, 1
      %s250 = scalar_select %p249, %s18, 1
      %s251 = smul.addr %s250, 10
      %s252 = smul.addr %s251, 8
      %s253 = scalar_lea.vmem %s5, %s252
      %p254 = pneg %p180
      %p255 = pneg %p177
      %p256 = scmp.lt.s32.totalorder %s18, 1
      %s257 = scalar_select %p256, %s18, 1
      %s258 = scalar_lea.vmem %s6, %s257
      %p259 = scmp.lt.s32.totalorder %s18, 1
      %s260 = scalar_select %p259, %s18, 1
      %s261 = smul.addr %s260, 10
      %s262 = smul.addr %s261, 8
      %s263 = scalar_lea.vmem %s0, %s262
      %p264 = scmp.lt.s32.totalorder %s18, 1
      %s265 = scalar_select %p264, %s18, 1
      %s266 = scalar_lea.vmem %s4, %s265
      %p267 = scmp.lt.s32.totalorder %s18, 1
      %s268 = scalar_select %p267, %s18, 1
      %s269 = smul.addr %s268, 10
      %s270 = smul.addr %s269, 8
      %s271 = scalar_lea.vmem %s5, %s270
      %p272 = scmp.lt.s32.totalorder %s18, 1
      %s273 = scalar_select %p272, %s18, 1
      %s274 = scalar_lea.vmem %s6, %s273
      %v276 = vld [vmem:[%s263] sm:$0xff]
      %v277 = vld [vmem:[%s263 + $0x8] sm:$0xff]
      %v278 = vld [vmem:[%s263 + $0x10] sm:$0xff]
      %v279 = vld [vmem:[%s263 + $0x18] sm:$0xff]
      %v280 = vld [vmem:[%s263 + $0x20] sm:$0xff]
      %v281 = vld [vmem:[%s263 + $0x28] sm:$0xff]
      %v282 = vld [vmem:[%s263 + $0x30] sm:$0xff]
      %v283 = vld [vmem:[%s263 + $0x38] sm:$0xff]
      %v284 = vld [vmem:[%s263 + $0x40] sm:$0xff]
      %v285 = vld [vmem:[%s263 + $0x48] sm:$0x7f]
      %v286 = vpack.c.bf16 %v277, %v276
      %v287 = vpack.c.bf16 %v279, %v278
      %v288 = vpack.c.bf16 %v281, %v280
      %v289 = vpack.c.bf16 %v283, %v282
      %v290 = vpack.c.bf16 %v285, %v284
      %v291 = vld [vmem:[%s1] sm:$0xf]
      %v292 = vld [vmem:[%s1 + $0x4] sm:$0x1]
      %v295 = vunpack.c.l.b16 %v291
      %v296 = vunpack.c.l.b16 %v292
      %v297 = vpack.c.b16 %v296, %v295
      %vm298 = vcmask 80896
      %v300 = vsel %vm298, %v286, 0
      %v303 = vsel %vm298, %v287, 0
      %v306 = vsel %vm298, %v288, 0
      %v309 = vsel %vm298, %v289, 0
      %v312 = vsel %vm298, %v290, 0
      %vm314 = vcmask 1044480
      %v316 = vsel %vm314, %v297, 0
      %318 = vmatpush.bf16.msra.mxu0 0
      %319 = vmatpush.bf16.msra.mxu0 0
      %320 = vmatpush.bf16.msra.mxu0 0
      %321 = vmatpush.bf16.msra.mxu0 0
      %322 = vmatpush.bf16.msra.mxu0 0
      %323 = vmatpush.bf16.msra.mxu0 0
      %324 = vmatpush.bf16.msra.mxu0 0
      %325 = vmatpush.bf16.msra.mxu0 %v316
      %326 = vmatmul.bf16.gmra.mxu0 %v300
      %v327 = vpop.f32.mrf.mxu0
      %v328 = vadd.f32 0.0, %v327
      %v329 = vpop.f32.mrf.mxu0
      %v330 = vadd.f32 0.0, %v329
      %331 = vmatmul.bf16.gmra.mxu0 %v303
      %v332 = vpop.f32.mrf.mxu0
      %v333 = vadd.f32 0.0, %v332
      %v334 = vpop.f32.mrf.mxu0
      %v335 = vadd.f32 0.0, %v334
      %336 = vmatmul.bf16.gmra.mxu0 %v306
      %v337 = vpop.f32.mrf.mxu0
      %v338 = vadd.f32 0.0, %v337
      %v339 = vpop.f32.mrf.mxu0
      %v340 = vadd.f32 0.0, %v339
      %341 = vmatmul.bf16.gmra.mxu0 %v309
      %v342 = vpop.f32.mrf.mxu0
      %v343 = vadd.f32 0.0, %v342
      %v344 = vpop.f32.mrf.mxu0
      %v345 = vadd.f32 0.0, %v344
      %346 = vmatmul.bf16.gmra.mxu0 %v312
      %v347 = vpop.f32.mrf.mxu0
      %v348 = vadd.f32 0.0, %v347
      %v349 = vpop.f32.mrf.mxu0
      %v350 = vadd.f32 0.0, %v349
      %351 = vdwg.mxu0
      %v352 = vadd.f32 %v328, %v330
      %v353 = vadd.f32 %v352, %v333
      %v354 = vadd.f32 %v353, %v335
      %v355 = vadd.f32 %v354, %v338
      %v356 = vadd.f32 %v355, %v340
      %v357 = vadd.f32 %v356, %v343
      %v358 = vadd.f32 %v357, %v345
      %v359 = vadd.f32 %v358, %v348
      %vm360 = vcmask 1046528
      %v361 = vsel %vm360, %v350, 0.0
      %v362 = vadd.f32 %v359, %v361
      %v363 = vrot.slane %v362, 4
      %v364 = vadd.f32 %v362, %v363
      %v365 = vrot.slane %v364, 2
      %v366 = vadd.f32 %v364, %v365
      %v367 = vrot.slane %v366, 1
      %v368 = vadd.f32 %v366, %v367
      %v369 = vrcp.pop 79.0
      %v370 = vmul.f32 79.0, %v369
      %v371 = vsub.f32 1.0, %v370
      %v372 = vmul.f32 %v369, %v371
      %v373 = vadd.f32 %v369, %v372
      %vm374 = vweird.f32 %v369
      %v375 = vsel %vm374, %v369, %v373
      %v376 = vmul.f32 %v368, %v375
      %v377 = vsub.f32 %v328, %v376
      %v378 = vsub.f32 %v330, %v376
      %v379 = vsub.f32 %v333, %v376
      %v380 = vsub.f32 %v335, %v376
      %v381 = vsub.f32 %v338, %v376
      %v382 = vsub.f32 %v340, %v376
      %v383 = vsub.f32 %v343, %v376
      %v384 = vsub.f32 %v345, %v376
      %v385 = vsub.f32 %v348, %v376
      %v386 = vsub.f32 %v350, %v376
      %v387 = vmul.f32 %v377, %v377
      %v388 = vmul.f32 %v378, %v378
      %v389 = vmul.f32 %v379, %v379
      %v390 = vmul.f32 %v380, %v380
      %v391 = vmul.f32 %v381, %v381
      %v392 = vmul.f32 %v382, %v382
      %v393 = vmul.f32 %v383, %v383
      %v394 = vmul.f32 %v384, %v384
      %v395 = vmul.f32 %v385, %v385
      %v396 = vmul.f32 %v386, %v386
      %v397 = vadd.f32 %v387, %v388
      %v398 = vadd.f32 %v397, %v389
      %v399 = vadd.f32 %v398, %v390
      %v400 = vadd.f32 %v399, %v391
      %v401 = vadd.f32 %v400, %v392
      %v402 = vadd.f32 %v401, %v393
      %v403 = vadd.f32 %v402, %v394
      %v404 = vadd.f32 %v403, %v395
      %v405 = vsel %vm360, %v396, 0.0
      %v406 = vadd.f32 %v404, %v405
      %v407 = vrot.slane %v406, 4
      %v408 = vadd.f32 %v406, %v407
      %v409 = vrot.slane %v408, 2
      %v410 = vadd.f32 %v408, %v409
      %v411 = vrot.slane %v410, 1
      %v412 = vadd.f32 %v410, %v411
      %v413 = vmul.f32 %v412, %v375
      %v414 = vadd.f32 %v413, 1e-05
      %v415 = vrsqrt.pop %v414
      %v416 = vmul.f32 %v415, %v414
      %v417 = vmul.f32 %v416, %v415
      %v418 = vmul.f32 0.5, %v417
      %v419 = vsub.f32 1.5, %v418
      %v420 = vmul.f32 %v415, %v419
      %vm421 = vweird.f32 %v414
      %vm422 = vweird.f32 %v415
      %vm423 = vmor %vm421, %vm422
      %v424 = vsel %vm423, %v415, %v420
      %v425 = vmul.f32 %v377, %v424
      %v426 = vmul.f32 %v378, %v424
      %v427 = vmul.f32 %v379, %v424
      %v428 = vmul.f32 %v380, %v424
      %v429 = vmul.f32 %v381, %v424
      %v430 = vmul.f32 %v382, %v424
      %v431 = vmul.f32 %v383, %v424
      %v432 = vmul.f32 %v384, %v424
      %v433 = vmul.f32 %v385, %v424
      %v434 = vmul.f32 %v386, %v424
      %v435 = vld [vmem:[%s2] sm:$0x1]
      %v437 = vperm.slane %v435, 0
      %v439 = vmul.f32 %v425, %v437
      %v440 = vmul.f32 %v426, %v437
      %v441 = vmul.f32 %v427, %v437
      %v442 = vmul.f32 %v428, %v437
      %v443 = vmul.f32 %v429, %v437
      %v444 = vmul.f32 %v430, %v437
      %v445 = vmul.f32 %v431, %v437
      %v446 = vmul.f32 %v432, %v437
      %v447 = vmul.f32 %v433, %v437
      %v448 = vmul.f32 %v434, %v437
      %v449 = vld [vmem:[%s3] sm:$0x1]
      %v451 = vperm.slane %v449, 0
      %v453 = vadd.f32 %v439, %v451
      %v454 = vadd.f32 %v440, %v451
      %v455 = vadd.f32 %v441, %v451
      %v456 = vadd.f32 %v442, %v451
      %v457 = vadd.f32 %v443, %v451
      %v458 = vadd.f32 %v444, %v451
      %v459 = vadd.f32 %v445, %v451
      %v460 = vadd.f32 %v446, %v451
      %v461 = vadd.f32 %v447, %v451
      %v462 = vadd.f32 %v448, %v451
      %v463 = vmul.f32 %v453, %v453
      %v464 = vmul.f32 %v454, %v454
      %v465 = vmul.f32 %v455, %v455
      %v466 = vmul.f32 %v456, %v456
      %v467 = vmul.f32 %v457, %v457
      %v468 = vmul.f32 %v458, %v458
      %v469 = vmul.f32 %v459, %v459
      %v470 = vmul.f32 %v460, %v460
      %v471 = vmul.f32 %v461, %v461
      %v472 = vmul.f32 %v462, %v462
      %v473 = vmul.f32 %v453, %v463
      %v474 = vmul.f32 %v454, %v464
      %v475 = vmul.f32 %v455, %v465
      %v476 = vmul.f32 %v456, %v466
      %v477 = vmul.f32 %v457, %v467
      %v478 = vmul.f32 %v458, %v468
      %v479 = vmul.f32 %v459, %v469
      %v480 = vmul.f32 %v460, %v470
      %v481 = vmul.f32 %v461, %v471
      %v482 = vmul.f32 %v462, %v472
      %v483 = vmul.f32 %v473, 0.044715
      %v484 = vmul.f32 %v474, 0.044715
      %v485 = vmul.f32 %v475, 0.044715
      %v486 = vmul.f32 %v476, 0.044715
      %v487 = vmul.f32 %v477, 0.044715
      %v488 = vmul.f32 %v478, 0.044715
      %v489 = vmul.f32 %v479, 0.044715
      %v490 = vmul.f32 %v480, 0.044715
      %v491 = vmul.f32 %v481, 0.044715
      %v492 = vmul.f32 %v482, 0.044715
      %v493 = vadd.f32 %v453, %v483
      %v494 = vadd.f32 %v454, %v484
      %v495 = vadd.f32 %v455, %v485
      %v496 = vadd.f32 %v456, %v486
      %v497 = vadd.f32 %v457, %v487
      %v498 = vadd.f32 %v458, %v488
      %v499 = vadd.f32 %v459, %v489
      %v500 = vadd.f32 %v460, %v490
      %v501 = vadd.f32 %v461, %v491
      %v502 = vadd.f32 %v462, %v492
      %v503 = vmul.f32 %v493, 0.7978846
      %v504 = vmul.f32 %v494, 0.7978846
      %v505 = vmul.f32 %v495, 0.7978846
      %v506 = vmul.f32 %v496, 0.7978846
      %v507 = vmul.f32 %v497, 0.7978846
      %v508 = vmul.f32 %v498, 0.7978846
      %v509 = vmul.f32 %v499, 0.7978846
      %v510 = vmul.f32 %v500, 0.7978846
      %v511 = vmul.f32 %v501, 0.7978846
      %v512 = vmul.f32 %v502, 0.7978846
      %v513 = vtanh.pop %v503
      %v514 = vtanh.pop %v504
      %v515 = vtanh.pop %v505
      %v516 = vtanh.pop %v506
      %v517 = vtanh.pop %v507
      %v518 = vtanh.pop %v508
      %v519 = vtanh.pop %v509
      %v520 = vtanh.pop %v510
      %v521 = vtanh.pop %v511
      %v522 = vtanh.pop %v512
      %v523 = vadd.f32 %v513, 1.0
      %v524 = vadd.f32 %v514, 1.0
      %v525 = vadd.f32 %v515, 1.0
      %v526 = vadd.f32 %v516, 1.0
      %v527 = vadd.f32 %v517, 1.0
      %v528 = vadd.f32 %v518, 1.0
      %v529 = vadd.f32 %v519, 1.0
      %v530 = vadd.f32 %v520, 1.0
      %v531 = vadd.f32 %v521, 1.0
      %v532 = vadd.f32 %v522, 1.0
      %v533 = vmul.f32 %v523, 0.5
      %v534 = vmul.f32 %v524, 0.5
      %v535 = vmul.f32 %v525, 0.5
      %v536 = vmul.f32 %v526, 0.5
      %v537 = vmul.f32 %v527, 0.5
      %v538 = vmul.f32 %v528, 0.5
      %v539 = vmul.f32 %v529, 0.5
      %v540 = vmul.f32 %v530, 0.5
      %v541 = vmul.f32 %v531, 0.5
      %v542 = vmul.f32 %v532, 0.5
      %v543 = vmul.f32 %v453, %v533
      %v544 = vmul.f32 %v454, %v534
      %v545 = vmul.f32 %v455, %v535
      %v546 = vmul.f32 %v456, %v536
      %v547 = vmul.f32 %v457, %v537
      %v548 = vmul.f32 %v458, %v538
      %v549 = vmul.f32 %v459, %v539
      %v550 = vmul.f32 %v460, %v540
      %v551 = vmul.f32 %v461, %v541
      %v552 = vmul.f32 %v462, %v542
      %553 = vst [vmem:[%s271] sm:$0xff] %v543
      %554 = vst [vmem:[%s271 + $0x8] sm:$0xff] %v544
      %555 = vst [vmem:[%s271 + $0x10] sm:$0xff] %v545
      %556 = vst [vmem:[%s271 + $0x18] sm:$0xff] %v546
      %557 = vst [vmem:[%s271 + $0x20] sm:$0xff] %v547
      %558 = vst [vmem:[%s271 + $0x28] sm:$0xff] %v548
      %559 = vst [vmem:[%s271 + $0x30] sm:$0xff] %v549
      %560 = vst [vmem:[%s271 + $0x38] sm:$0xff] %v550
      %561 = vst [vmem:[%s271 + $0x40] sm:$0xff] %v551
      %562 = vst [vmem:[%s271 + $0x48] sm:$0x7f] %v552
      %v563 = vld [vmem:[%s266] sm:$0x1]
      %v564 = vlaneseq
      %v565 = vand.u32 %v564, 127
      %v566 = vcvt.s32.f32 %v565
      %568 = vset.pattern.permute.xlu0 0
      %569 = vperm.xlu0 %568, %v563
      %v570 = vpop.permute.xlu0 %569
      %v572 = vperm.slane %v570, 0
      %vm573 = vcmp.lt.f32.partialorder %v566, %v572
      %v574 = vsel %vm573, 1, 0
      %v575 = vcvt.s32.f32 %v574
      %vm576 = vcmask 646144
      %v578 = vsel %vm576, %v575, 0
      %v581 = vsel %vm360, %v552, 0
      %583 = vmatpush.msra.mxu0 0.0
      %584 = vmatpush.msra.mxu0 0.0
      %585 = vmatpush.msra.mxu0 0.0
      %586 = vmatpush.msra.mxu0 0.0
      %587 = vmatpush.msra.mxu0 0.0
      %588 = vmatpush.msra.mxu0 0.0
      %589 = vmatpush.msra.mxu0 %v581
      %590 = vmatpush.msra.mxu0 %v551
      %591 = vmatpush.msra.mxu0 %v550
      %592 = vmatpush.msra.mxu0 %v549
      %593 = vmatpush.msra.mxu0 %v548
      %594 = vmatpush.msra.mxu0 %v547
      %595 = vmatpush.msra.mxu0 %v546
      %596 = vmatpush.msra.mxu0 %v545
      %597 = vmatpush.msra.mxu0 %v544
      %598 = vmatpush.msra.mxu0 %v543
      %599 = vmatmul.f32.gmra.mxu0 %v578
      %v600 = vpop.f32.mrf.mxu0
      %v601 = vadd.f32 0.0, %v600
      %602 = vdwg.mxu0
      %v603 = vrcp.pop %v572
      %v604 = vmul.f32 %v572, %v603
      %v605 = vsub.f32 1.0, %v604
      %v606 = vmul.f32 %v603, %v605
      %v607 = vadd.f32 %v603, %v606
      %vm608 = vweird.f32 %v572
      %vm609 = vweird.f32 %v603
      %vm610 = vmor %vm608, %vm609
      %v611 = vsel %vm610, %v603, %v607
      %v612 = vand.u32 2147483647, %v572
      %vm613 = vcmp.eq.f32.partialorder %v612, 8.507059e+37
      %v614 = vand.u32 %v572, 2147483648
      %v615 = vor.u32 1.1754944e-38, %v614
      %v616 = vsel %vm613, %v615, %v611
      %v617 = vmul.f32 %v601, %v616
      %618 = vst [vmem:[%s274] sm:$0x1] %v617
      %p619 = scmp.lt.s32.totalorder %s18, 1
      %s620 = scalar_select %p619, %s18, 1
      %s621 = smul.addr %s620, 10
      %s622 = smul.addr %s621, 8
      %s623 = scalar_lea.vmem %s5, %s622
      %p624 = scmp.lt.s32.totalorder %s18, 1
      %s625 = scalar_select %p624, %s18, 1
      %s626 = scalar_lea.vmem %s6, %s625
      // Predicated region
      $region41: #{wav2vec2_emonet_forward.10} parent=39 // pred_check
        %p627 = pneg %p151
      $region42: #{wav2vec2_emonet_forward.10} parent=39 // pred_check_branch
        %629 = sbr.rel (%p627) target = $region44
      $region43: #{wav2vec2_emonet_forward.10} parent=39 // pred_region
        _
      $region44: #{wav2vec2_emonet_forward.10} parent=39 // pred_fallthru
        _
      // Predicated region
      $region45: #{wav2vec2_emonet_forward.10} parent=39 // pred_check
        %p630 = pneg %p177
      $region46: #{wav2vec2_emonet_forward.10} parent=39 // pred_check_branch
        %632 = sbr.rel (%p630) target = $region48
      $region47: #{wav2vec2_emonet_forward.10} parent=39 // pred_region
        _
      $region48: #{wav2vec2_emonet_forward.10} parent=39 // pred_fallthru
        _
    $region40: #{wav2vec2_emonet_forward.10} parent=5 // pred_fallthru
      _
    %p633 = scmp.le.s32.totalorder 2, %s13
    // Predicated region
    $region49: #{wav2vec2_emonet_forward.10} parent=5 // pred_check
      %p634 = pneg %p633
    $region50: #{wav2vec2_emonet_forward.10} parent=5 // pred_check_branch
      %636 = sbr.rel (%p634) target = $region52
    $region51: #{wav2vec2_emonet_forward.10} parent=5 // pred_region
      %s637 = ssub.s32 %s13, 2
      // Predicated region
      $region53: #{wav2vec2_emonet_forward.10} parent=51 // pred_check
        %p638 = pneg %p157
      $region54: #{wav2vec2_emonet_forward.10} parent=51 // pred_check_branch
        %640 = sbr.rel (%p638) target = $region56
      $region55: #{wav2vec2_emonet_forward.10} parent=51 // pred_region
        %p641 = scmp.lt.s32.totalorder %s19, 1
        %s642 = scalar_select %p641, %s19, 1
        %s643 = smul.addr %s642, 10
        %s644 = smul.addr %s643, 8
        %s645 = scalar_lea.vmem %s5, %s644
      $region56: #{wav2vec2_emonet_forward.10} parent=51 // pred_fallthru
        _
      // Predicated region
      $region57: #{wav2vec2_emonet_forward.10} parent=51 // pred_check
        %p646 = pneg %p183
      $region58: #{wav2vec2_emonet_forward.10} parent=51 // pred_check_branch
        %648 = sbr.rel (%p646) target = $region60
      $region59: #{wav2vec2_emonet_forward.10} parent=51 // pred_region
        %p649 = scmp.lt.s32.totalorder %s19, 1
        %s650 = scalar_select %p649, %s19, 1
        %s651 = scalar_lea.vmem %s6, %s650
      $region60: #{wav2vec2_emonet_forward.10} parent=51 // pred_fallthru
        _
    $region52: #{wav2vec2_emonet_forward.10} parent=5 // pred_fallthru
      _
  $region6: #{wav2vec2_emonet_forward.10} parent=0 // loop_footer
    %s17 = sadd.s32 1, %s13
  $region7: #{wav2vec2_emonet_forward.10} parent=0 // loop_footer_branch
    %12 = sbr.rel target = $region3
  $region8: #{wav2vec2_emonet_forward.10} parent=0 // loop_exit
    _

// kernel: wav2vec2_emonet_forward.11
$region0: #{wav2vec2_emonet_forward.11}
  #allocation0 [shape = 'u32[]', space=smem, size = 0x4, offset = 0x4, fixed_abs, tag = 'smem constant byte address 0x4 - core index']
  #allocation1 [shape = 'u32[72,128]{1,0:T(1,128)}', space=vmem, size = 0x9000, scoped, tag = 'internal scratch']
  %s0 = inlined_call_operand.vmem [shape: f32[2,40,256], index: 0, kind: input, shape index: {}]
  %s1 = inlined_call_operand.vmem [shape: bf16[3,128,128], index: 1, kind: input, shape index: {}]
  %s2 = inlined_call_operand.vmem [shape: f32[2,1,1], index: 2, kind: input, shape index: {}]
  %s3 = inlined_call_operand.vmem [shape: f32[2,39,128], index: 3, kind: output, shape index: {0}]
  %s4 = inlined_call_operand.vmem [shape: f32[2,1,128], index: 4, kind: output, shape index: {1}]
  %5 = xla_tuple %s3, %s4
  %s6 = sld [smem:[#allocation0]]
  $region53: #{wav2vec2_emonet_forward.11} parent=0
    _
  %s8 = ssub.s32 1, %s6
  %s9 = scalar_select 0, %s8, %s6
  loop: start=0, step=1, limit=4
  $region2: #{wav2vec2_emonet_forward.11} parent=0 // loop_pre_header
    _
  $region3: #{wav2vec2_emonet_forward.11} parent=0 // loop_header
    %s11 = sphi 0, %s15
    %p12 = scmp.ge.s32.totalorder %s11, 4
    %s21 = sphi 0, %s23
    %s24 = sphi 0, %s21
    %s25 = sphi 0, %s24
    %s41 = sphi 0, %s25
    %s45 = sphi 0, %s45
    %s47 = sphi 0, %s45
    %s48 = sphi 0, %s47
    %s62 = sphi 0, %s48
    %s68 = sphi 0, %s70
    %s71 = sphi 0, %s68
    %s72 = sphi 0, %s71
    %s88 = sphi 0, %s72
    %s94 = sphi 0, %s96
    %s97 = sphi 0, %s94
    %s98 = sphi 0, %s97
    %s114 = sphi 0, %s98
    %s120 = sphi 0, %s122
    %s123 = sphi 0, %s120
    %s124 = sphi 0, %s123
    %s140 = sphi 0, %s124
  $region4: #{wav2vec2_emonet_forward.11} parent=0 // loop_header_branch
    %14 = sbr.rel (%p12) target = $region8
  $region5: #{wav2vec2_emonet_forward.11} parent=0 // loop_body
    %s16 = ssub.s32 %s11, 1
    %s17 = ssub.s32 %s11, 2
    %s18 = sadd.s32 %s11, 1
    %s19 = ssub.s32 %s11, %s18
    %p20 = scmp.eq.s32.totalorder %s19, 0
    %s22 = sadd.s32 %s21, 1
    %s23 = scalar_select %p20, %s21, %s22
    %p26 = pneg %p20
    %p27 = scmp.eq.s32.totalorder %s11, 1
    %p28 = por %p26, %p27
    %p29 = scmp.ne.s32.totalorder %s21, %s24
    %p30 = scmp.eq.s32.totalorder %s11, 0
    %p31 = por %p29, %p30
    %p32 = scmp.ne.s32.totalorder %s21, %s24
    %p33 = scmp.eq.s32.totalorder %s16, 1
    %p34 = por %p32, %p33
    %p35 = scmp.ne.s32.totalorder %s24, %s25
    %p36 = scmp.eq.s32.totalorder %s16, 0
    %p37 = por %p35, %p36
    %p38 = scmp.ne.s32.totalorder %s24, %s25
    %p39 = scmp.eq.s32.totalorder %s17, 1
    %p40 = por %p38, %p39
    %p42 = scmp.ne.s32.totalorder %s25, %s41
    %p43 = scmp.eq.s32.totalorder %s17, 0
    %p44 = por %p42, %p43
    %s46 = sadd.s32 %s45, 1
    %p49 = scmp.eq.s32.totalorder %s11, 1
    %p50 = scmp.ne.s32.totalorder %s45, %s47
    %p51 = scmp.eq.s32.totalorder %s11, 0
    %p52 = por %p50, %p51
    %p53 = scmp.ne.s32.totalorder %s45, %s47
    %p54 = scmp.eq.s32.totalorder %s16, 1
    %p55 = por %p53, %p54
    %p56 = scmp.ne.s32.totalorder %s47, %s48
    %p57 = scmp.eq.s32.totalorder %s16, 0
    %p58 = por %p56, %p57
    %p59 = scmp.ne.s32.totalorder %s47, %s48
    %p60 = scmp.eq.s32.totalorder %s17, 1
    %p61 = por %p59, %p60
    %p63 = scmp.ne.s32.totalorder %s48, %s62
    %p64 = scmp.eq.s32.totalorder %s17, 0
    %p65 = por %p63, %p64
    %s66 = ssub.s32 %s11, %s18
    %p67 = scmp.eq.s32.totalorder %s66, 0
    %s69 = sadd.s32 %s68, 1
    %s70 = scalar_select %p67, %s68, %s69
    %p73 = pneg %p67
    %p74 = scmp.eq.s32.totalorder %s11, 1
    %p75 = por %p73, %p74
    %p76 = scmp.ne.s32.totalorder %s68, %s71
    %p77 = scmp.eq.s32.totalorder %s11, 0
    %p78 = por %p76, %p77
    %p79 = scmp.ne.s32.totalorder %s68, %s71
    %p80 = scmp.eq.s32.totalorder %s16, 1
    %p81 = por %p79, %p80
    %p82 = scmp.ne.s32.totalorder %s71, %s72
    %p83 = scmp.eq.s32.totalorder %s16, 0
    %p84 = por %p82, %p83
    %p85 = scmp.ne.s32.totalorder %s71, %s72
    %p86 = scmp.eq.s32.totalorder %s17, 1
    %p87 = por %p85, %p86
    %p89 = scmp.ne.s32.totalorder %s72, %s88
    %p90 = scmp.eq.s32.totalorder %s17, 0
    %p91 = por %p89, %p90
    %s92 = ssub.s32 %s11, %s18
    %p93 = scmp.eq.s32.totalorder %s92, 0
    %s95 = sadd.s32 %s94, 1
    %s96 = scalar_select %p93, %s94, %s95
    %p99 = pneg %p93
    %p100 = scmp.eq.s32.totalorder %s11, 1
    %p101 = por %p99, %p100
    %p102 = scmp.ne.s32.totalorder %s94, %s97
    %p103 = scmp.eq.s32.totalorder %s11, 0
    %p104 = por %p102, %p103
    %p105 = scmp.ne.s32.totalorder %s94, %s97
    %p106 = scmp.eq.s32.totalorder %s16, 1
    %p107 = por %p105, %p106
    %p108 = scmp.ne.s32.totalorder %s97, %s98
    %p109 = scmp.eq.s32.totalorder %s16, 0
    %p110 = por %p108, %p109
    %p111 = scmp.ne.s32.totalorder %s97, %s98
    %p112 = scmp.eq.s32.totalorder %s17, 1
    %p113 = por %p111, %p112
    %p115 = scmp.ne.s32.totalorder %s98, %s114
    %p116 = scmp.eq.s32.totalorder %s17, 0
    %p117 = por %p115, %p116
    %s118 = ssub.s32 %s11, %s18
    %p119 = scmp.eq.s32.totalorder %s118, 0
    %s121 = sadd.s32 %s120, 1
    %s122 = scalar_select %p119, %s120, %s121
    %p125 = pneg %p119
    %p126 = scmp.eq.s32.totalorder %s11, 1
    %p127 = por %p125, %p126
    %p128 = scmp.ne.s32.totalorder %s120, %s123
    %p129 = scmp.eq.s32.totalorder %s11, 0
    %p130 = por %p128, %p129
    %p131 = scmp.ne.s32.totalorder %s120, %s123
    %p132 = scmp.eq.s32.totalorder %s16, 1
    %p133 = por %p131, %p132
    %p134 = scmp.ne.s32.totalorder %s123, %s124
    %p135 = scmp.eq.s32.totalorder %s16, 0
    %p136 = por %p134, %p135
    %p137 = scmp.ne.s32.totalorder %s123, %s124
    %p138 = scmp.eq.s32.totalorder %s17, 1
    %p139 = por %p137, %p138
    %p141 = scmp.ne.s32.totalorder %s124, %s140
    %p142 = scmp.eq.s32.totalorder %s17, 0
    %p143 = por %p141, %p142
    %p144 = scmp.le.s32.totalorder 1, %s11
    %p145 = scmp.lt.s32.totalorder %s11, 3
    %p146 = pnand %p144, %p145
    %p147 = pneg %p146
    // Predicated region
    $region9: #{wav2vec2_emonet_forward.11} parent=5 // pred_check
      _
    $region10: #{wav2vec2_emonet_forward.11} parent=5 // pred_check_branch
      %149 = sbr.rel (%p146) target = $region12
    $region11: #{wav2vec2_emonet_forward.11} parent=5 // pred_region
      %s150 = ssub.s32 %s11, 1
      // Predicated region
      $region13: #{wav2vec2_emonet_forward.11} parent=11 // pred_check
        %p151 = pneg %p58
      $region14: #{wav2vec2_emonet_forward.11} parent=11 // pred_check_branch
        %153 = sbr.rel (%p151) target = $region16
      $region15: #{wav2vec2_emonet_forward.11} parent=11 // pred_region
        _
      $region16: #{wav2vec2_emonet_forward.11} parent=11 // pred_fallthru
        _
    $region12: #{wav2vec2_emonet_forward.11} parent=5 // pred_fallthru
      _
    %p154 = scmp.lt.s32.totalorder %s11, 2
    // Predicated region
    $region17: #{wav2vec2_emonet_forward.11} parent=5 // pred_check
      %p155 = pneg %p154
    $region18: #{wav2vec2_emonet_forward.11} parent=5 // pred_check_branch
      %157 = sbr.rel (%p155) target = $region20
    $region19: #{wav2vec2_emonet_forward.11} parent=5 // pred_region
      // Predicated region
      $region21: #{wav2vec2_emonet_forward.11} parent=19 // pred_check
        %p158 = pneg %p31
      $region22: #{wav2vec2_emonet_forward.11} parent=19 // pred_check_branch
        %160 = sbr.rel (%p158) target = $region24
      $region23: #{wav2vec2_emonet_forward.11} parent=19 // pred_region
        %p161 = scmp.lt.s32.totalorder %s11, 1
        %s162 = scalar_select %p161, %s11, 1
        %s163 = smul.addr %s162, 10
        %s164 = smul.addr %s163, 8
        %s165 = scalar_lea.vmem %s0, %s164
      $region24: #{wav2vec2_emonet_forward.11} parent=19 // pred_fallthru
        _
      // Predicated region
      $region25: #{wav2vec2_emonet_forward.11} parent=19 // pred_check
        %p166 = pneg %p78
      $region26: #{wav2vec2_emonet_forward.11} parent=19 // pred_check_branch
        %168 = sbr.rel (%p166) target = $region28
      $region27: #{wav2vec2_emonet_forward.11} parent=19 // pred_region
        %p169 = scmp.lt.s32.totalorder %s11, 1
        %s170 = scalar_select %p169, %s11, 1
        %s171 = scalar_lea.vmem %s2, %s170
      $region28: #{wav2vec2_emonet_forward.11} parent=19 // pred_fallthru
        _
    $region20: #{wav2vec2_emonet_forward.11} parent=5 // pred_fallthru
      _
    %p172 = scmp.le.s32.totalorder 1, %s11
    %p173 = scmp.lt.s32.totalorder %s11, 3
    %p174 = pnand %p172, %p173
    %p175 = pneg %p174
    // Predicated region
    $region29: #{wav2vec2_emonet_forward.11} parent=5 // pred_check
      _
    $region30: #{wav2vec2_emonet_forward.11} parent=5 // pred_check_branch
      %177 = sbr.rel (%p174) target = $region32
    $region31: #{wav2vec2_emonet_forward.11} parent=5 // pred_region
      %s178 = ssub.s32 %s11, 1
      %p179 = scmp.lt.s32.totalorder %s16, 1
      %s180 = scalar_select %p179, %s16, 1
      %s181 = smul.addr %s180, 10
      %s182 = smul.addr %s181, 8
      %s183 = scalar_lea.vmem %s0, %s182
      %p184 = pneg %p37
      %p185 = pneg %p34
      %p186 = pneg %p58
      %p187 = pneg %p55
      %p188 = scmp.lt.s32.totalorder %s16, 1
      %s189 = scalar_select %p188, %s16, 1
      %s190 = scalar_lea.vmem %s2, %s189
      %p191 = pneg %p84
      %p192 = pneg %p81
      %p193 = pneg %p110
      %p194 = pneg %p107
      %p195 = scmp.lt.s32.totalorder %s16, 1
      %s196 = scalar_select %p195, %s16, 1
      %s197 = smul.addr %s196, 5
      %s198 = smul.addr %s197, 8
      %s199 = scalar_lea.vmem %s3, %s198
      %p200 = pneg %p136
      %p201 = pneg %p133
      %p202 = scmp.lt.s32.totalorder %s16, 1
      %s203 = scalar_select %p202, %s16, 1
      %s204 = scalar_lea.vmem %s4, %s203
      %p205 = scmp.lt.s32.totalorder %s16, 1
      %s206 = scalar_select %p205, %s16, 1
      %s207 = smul.addr %s206, 10
      %s208 = smul.addr %s207, 8
      %s209 = scalar_lea.vmem %s0, %s208
      %p210 = scmp.lt.s32.totalorder %s16, 1
      %s211 = scalar_select %p210, %s16, 1
      %s212 = scalar_lea.vmem %s2, %s211
      %p213 = scmp.lt.s32.totalorder %s16, 1
      %s214 = scalar_select %p213, %s16, 1
      %s215 = smul.addr %s214, 5
      %s216 = smul.addr %s215, 8
      %s217 = scalar_lea.vmem %s3, %s216
      %p218 = scmp.lt.s32.totalorder %s16, 1
      %s219 = scalar_select %p218, %s16, 1
      %s220 = scalar_lea.vmem %s4, %s219
      %v221 = vld [vmem:[%s209] sm:$0xff]
      %v222 = vld [vmem:[%s209 + $0x8] sm:$0xff]
      %v223 = vld [vmem:[%s209 + $0x10] sm:$0xff]
      %v224 = vld [vmem:[%s209 + $0x18] sm:$0xff]
      %v225 = vld [vmem:[%s209 + $0x20] sm:$0xff]
      %v226 = vld [vmem:[%s209 + $0x28] sm:$0xff]
      %v227 = vld [vmem:[%s209 + $0x30] sm:$0xff]
      %v228 = vld [vmem:[%s209 + $0x38] sm:$0xff]
      %v229 = vld [vmem:[%s209 + $0x40] sm:$0xff]
      %v230 = vld [vmem:[%s209 + $0x48] sm:$0xff]
      %v231 = vpack.c.bf16 %v223, %v221
      %v232 = vpack.c.bf16 %v227, %v225
      %v233 = vpack.c.bf16 %v229, %v229
      %v234 = vld [vmem:[%s1] sm:$0xf]
      %v235 = vld [vmem:[%s1 + $0x4] sm:$0xf]
      %v236 = vld [vmem:[%s1 + $0x8] sm:$0xf]
      %v237 = vld [vmem:[%s1 + $0xc] sm:$0xf]
      %v238 = vld [vmem:[%s1 + $0x10] sm:$0xf]
      %v239 = vld [vmem:[%s1 + $0x14] sm:$0xf]
      %v240 = vld [vmem:[%s1 + $0x18] sm:$0xf]
      %v241 = vld [vmem:[%s1 + $0x1c] sm:$0xf]
      %v242 = vld [vmem:[%s1 + $0x20] sm:$0xf]
      %v243 = vld [vmem:[%s1 + $0x24] sm:$0xf]
      %v244 = vld [vmem:[%s1 + $0x28] sm:$0xf]
      %v245 = vld [vmem:[%s1 + $0x2c] sm:$0xf]
      %v246 = vld [vmem:[%s1 + $0x30] sm:$0xf]
      %v247 = vld [vmem:[%s1 + $0x34] sm:$0xf]
      %v248 = vld [vmem:[%s1 + $0x38] sm:$0xf]
      %v249 = vld [vmem:[%s1 + $0x3c] sm:$0xf]
      %v250 = vpack.c.bf16 %v224, %v222
      %v251 = vpack.c.bf16 %v228, %v226
      %v252 = vpack.c.bf16 %v230, %v230
      %s253 = scalar_lea.vmem %s1, 64
      %v254 = vld [vmem:[%s253] sm:$0xf]
      %v255 = vld [vmem:[%s253 + $0x4] sm:$0xf]
      %v256 = vld [vmem:[%s253 + $0x8] sm:$0xf]
      %v257 = vld [vmem:[%s253 + $0xc] sm:$0xf]
      %v258 = vld [vmem:[%s253 + $0x10] sm:$0xf]
      %v259 = vld [vmem:[%s253 + $0x14] sm:$0xf]
      %v260 = vld [vmem:[%s253 + $0x18] sm:$0xf]
      %v261 = vld [vmem:[%s253 + $0x1c] sm:$0xf]
      %v262 = vld [vmem:[%s253 + $0x20] sm:$0xf]
      %v263 = vld [vmem:[%s253 + $0x24] sm:$0xf]
      %v264 = vld [vmem:[%s253 + $0x28] sm:$0xf]
      %v265 = vld [vmem:[%s253 + $0x2c] sm:$0xf]
      %v266 = vld [vmem:[%s253 + $0x30] sm:$0xf]
      %v267 = vld [vmem:[%s253 + $0x34] sm:$0xf]
      %v268 = vld [vmem:[%s253 + $0x38] sm:$0xf]
      %v269 = vld [vmem:[%s253 + $0x3c] sm:$0xf]
      %v286 = vunpack.c.l.b16 %v254
      %v287 = vunpack.c.l.b16 %v255
      %v288 = vunpack.c.l.b16 %v256
      %v289 = vunpack.c.l.b16 %v257
      %v290 = vunpack.c.l.b16 %v258
      %v291 = vunpack.c.l.b16 %v259
      %v292 = vunpack.c.l.b16 %v260
      %v293 = vunpack.c.l.b16 %v261
      %v294 = vunpack.c.l.b16 %v262
      %v295 = vunpack.c.l.b16 %v263
      %v296 = vunpack.c.l.b16 %v264
      %v297 = vunpack.c.l.b16 %v265
      %v298 = vunpack.c.l.b16 %v266
      %v299 = vunpack.c.l.b16 %v267
      %v300 = vunpack.c.l.b16 %v268
      %v301 = vunpack.c.l.b16 %v269
      %v302 = vpack.c.b16 %v287, %v286
      %v303 = vpack.c.b16 %v289, %v288
      %v304 = vpack.c.b16 %v291, %v290
      %v305 = vpack.c.b16 %v293, %v292
      %v306 = vpack.c.b16 %v295, %v294
      %v307 = vpack.c.b16 %v297, %v296
      %v308 = vpack.c.b16 %v299, %v298
      %v309 = vpack.c.b16 %v301, %v300
      %318 = vmatpush.bf16.msra.mxu0 %v309
      %319 = vmatpush.bf16.msra.mxu0 %v308
      %320 = vmatpush.bf16.msra.mxu0 %v307
      %321 = vmatpush.bf16.msra.mxu0 %v306
      %322 = vmatpush.bf16.msra.mxu0 %v305
      %323 = vmatpush.bf16.msra.mxu0 %v304
      %324 = vmatpush.bf16.msra.mxu0 %v303
      %325 = vmatpush.bf16.msra.mxu0 %v302
      %326 = vmatmul.bf16.gmra.mxu0 %v250
      %v327 = vpop.f32.mrf.mxu0
      %v328 = vadd.f32 0.0, %v327
      %v329 = vpop.f32.mrf.mxu0
      %v330 = vadd.f32 0.0, %v329
      %331 = vmatmul.bf16.gmra.mxu0 %v251
      %v332 = vpop.f32.mrf.mxu0
      %v333 = vadd.f32 0.0, %v332
      %v334 = vpop.f32.mrf.mxu0
      %v335 = vadd.f32 0.0, %v334
      %336 = vmatmul.bf16.gmra.mxu0 %v252
      %v337 = vpop.f32.mrf.mxu0
      %v338 = vadd.f32 0.0, %v337
      %v339 = vpop.f32.mrf.mxu0
      %340 = vdwg.mxu0
      %v357 = vunpack.c.l.b16 %v234
      %v358 = vunpack.c.l.b16 %v235
      %v359 = vunpack.c.l.b16 %v236
      %v360 = vunpack.c.l.b16 %v237
      %v361 = vunpack.c.l.b16 %v238
      %v362 = vunpack.c.l.b16 %v239
      %v363 = vunpack.c.l.b16 %v240
      %v364 = vunpack.c.l.b16 %v241
      %v365 = vunpack.c.l.b16 %v242
      %v366 = vunpack.c.l.b16 %v243
      %v367 = vunpack.c.l.b16 %v244
      %v368 = vunpack.c.l.b16 %v245
      %v369 = vunpack.c.l.b16 %v246
      %v370 = vunpack.c.l.b16 %v247
      %v371 = vunpack.c.l.b16 %v248
      %v372 = vunpack.c.l.b16 %v249
      %v373 = vpack.c.b16 %v358, %v357
      %v374 = vpack.c.b16 %v360, %v359
      %v375 = vpack.c.b16 %v362, %v361
      %v376 = vpack.c.b16 %v364, %v363
      %v377 = vpack.c.b16 %v366, %v365
      %v378 = vpack.c.b16 %v368, %v367
      %v379 = vpack.c.b16 %v370, %v369
      %v380 = vpack.c.b16 %v372, %v371
      %389 = vmatpush.bf16.msra.mxu0 %v380
      %390 = vmatpush.bf16.msra.mxu0 %v379
      %391 = vmatpush.bf16.msra.mxu0 %v378
      %392 = vmatpush.bf16.msra.mxu0 %v377
      %393 = vmatpush.bf16.msra.mxu0 %v376
      %394 = vmatpush.bf16.msra.mxu0 %v375
      %395 = vmatpush.bf16.msra.mxu0 %v374
      %396 = vmatpush.bf16.msra.mxu0 %v373
      %397 = vmatmul.bf16.gmra.mxu0 %v231
      %v398 = vpop.f32.mrf.mxu0
      %v399 = vadd.f32 %v328, %v398
      %v400 = vpop.f32.mrf.mxu0
      %v401 = vadd.f32 %v330, %v400
      %402 = vmatmul.bf16.gmra.mxu0 %v232
      %v403 = vpop.f32.mrf.mxu0
      %v404 = vadd.f32 %v333, %v403
      %v405 = vpop.f32.mrf.mxu0
      %v406 = vadd.f32 %v335, %v405
      %407 = vmatmul.bf16.gmra.mxu0 %v233
      %v408 = vpop.f32.mrf.mxu0
      %v409 = vadd.f32 %v338, %v408
      %v410 = vpop.f32.mrf.mxu0
      %411 = vdwg.mxu0
      %s412 = scalar_lea.vmem %s1, 128
      %v413 = vld [vmem:[%s412] sm:$0xf]
      %v414 = vld [vmem:[%s412 + $0x4] sm:$0xf]
      %v415 = vld [vmem:[%s412 + $0x8] sm:$0xf]
      %v416 = vld [vmem:[%s412 + $0xc] sm:$0xf]
      %v417 = vld [vmem:[%s412 + $0x10] sm:$0xf]
      %v418 = vld [vmem:[%s412 + $0x14] sm:$0xf]
      %v419 = vld [vmem:[%s412 + $0x18] sm:$0xf]
      %v420 = vld [vmem:[%s412 + $0x1c] sm:$0xf]
      %v421 = vld [vmem:[%s412 + $0x20] sm:$0xf]
      %v422 = vld [vmem:[%s412 + $0x24] sm:$0xf]
      %v423 = vld [vmem:[%s412 + $0x28] sm:$0xf]
      %v424 = vld [vmem:[%s412 + $0x2c] sm:$0xf]
      %v425 = vld [vmem:[%s412 + $0x30] sm:$0xf]
      %v426 = vld [vmem:[%s412 + $0x34] sm:$0xf]
      %v427 = vld [vmem:[%s412 + $0x38] sm:$0xf]
      %v428 = vld [vmem:[%s412 + $0x3c] sm:$0xf]
      %vm429 = vsmask.f32 7424
      %v431 = vshrl.u32 %v231, 16
      %v433 = vshll.u32 %v231, 16
      %v435 = vrot.slane %v433, 1
      %v436 = vor.u32 %v431, %v435
      %v438 = vshll.u32 %v232, 16
      %v440 = vrot.slane %v438, 1
      %v441 = vsel %vm429, %v436, %v440
      %v442 = vshrl.u32 %v232, 16
      %v444 = vor.u32 %v442, %v440
      %v446 = vshll.u32 %v233, 16
      %v448 = vrot.slane %v446, 1
      %v449 = vsel %vm429, %v444, %v448
      %v450 = vshrl.u32 %v233, 16
      %v452 = vor.u32 %v450, %v448
      %v472 = vunpack.c.l.b16 %v413
      %v473 = vunpack.c.l.b16 %v414
      %v474 = vunpack.c.l.b16 %v415
      %v475 = vunpack.c.l.b16 %v416
      %v476 = vunpack.c.l.b16 %v417
      %v477 = vunpack.c.l.b16 %v418
      %v478 = vunpack.c.l.b16 %v419
      %v479 = vunpack.c.l.b16 %v420
      %v480 = vunpack.c.l.b16 %v421
      %v481 = vunpack.c.l.b16 %v422
      %v482 = vunpack.c.l.b16 %v423
      %v483 = vunpack.c.l.b16 %v424
      %v484 = vunpack.c.l.b16 %v425
      %v485 = vunpack.c.l.b16 %v426
      %v486 = vunpack.c.l.b16 %v427
      %v487 = vunpack.c.l.b16 %v428
      %v488 = vpack.c.b16 %v473, %v472
      %v489 = vpack.c.b16 %v475, %v474
      %v490 = vpack.c.b16 %v477, %v476
      %v491 = vpack.c.b16 %v479, %v478
      %v492 = vpack.c.b16 %v481, %v480
      %v493 = vpack.c.b16 %v483, %v482
      %v494 = vpack.c.b16 %v485, %v484
      %v495 = vpack.c.b16 %v487, %v486
      %504 = vmatpush.bf16.msra.mxu0 %v495
      %505 = vmatpush.bf16.msra.mxu0 %v494
      %506 = vmatpush.bf16.msra.mxu0 %v493
      %507 = vmatpush.bf16.msra.mxu0 %v492
      %508 = vmatpush.bf16.msra.mxu0 %v491
      %509 = vmatpush.bf16.msra.mxu0 %v490
      %510 = vmatpush.bf16.msra.mxu0 %v489
      %511 = vmatpush.bf16.msra.mxu0 %v488
      %512 = vmatmul.bf16.gmra.mxu0 %v441
      %v513 = vpop.f32.mrf.mxu0
      %v514 = vadd.f32 0.0, %v513
      %v515 = vpop.f32.mrf.mxu0
      %v516 = vadd.f32 0.0, %v515
      %517 = vmatmul.bf16.gmra.mxu0 %v449
      %v518 = vpop.f32.mrf.mxu0
      %v519 = vadd.f32 0.0, %v518
      %v520 = vpop.f32.mrf.mxu0
      %v521 = vadd.f32 0.0, %v520
      %522 = vmatmul.bf16.gmra.mxu0 %v452
      %v523 = vpop.f32.mrf.mxu0
      %v524 = vadd.f32 0.0, %v523
      %v525 = vpop.f32.mrf.mxu0
      %526 = vdwg.mxu0
      %v527 = vadd.f32 %v399, %v514
      %v528 = vadd.f32 %v401, %v516
      %v529 = vadd.f32 %v404, %v519
      %v530 = vadd.f32 %v406, %v521
      %v531 = vadd.f32 %v409, %v524
      %v532 = vmul.f32 %v527, %v527
      %v533 = vmul.f32 %v528, %v528
      %v534 = vmul.f32 %v529, %v529
      %v535 = vmul.f32 %v530, %v530
      %v536 = vmul.f32 %v531, %v531
      %v537 = vmul.f32 %v527, %v532
      %v538 = vmul.f32 %v528, %v533
      %v539 = vmul.f32 %v529, %v534
      %v540 = vmul.f32 %v530, %v535
      %v541 = vmul.f32 %v531, %v536
      %v542 = vmul.f32 %v537, 0.044715
      %v543 = vmul.f32 %v538, 0.044715
      %v544 = vmul.f32 %v539, 0.044715
      %v545 = vmul.f32 %v540, 0.044715
      %v546 = vmul.f32 %v541, 0.044715
      %v547 = vadd.f32 %v527, %v542
      %v548 = vadd.f32 %v528, %v543
      %v549 = vadd.f32 %v529, %v544
      %v550 = vadd.f32 %v530, %v545
      %v551 = vadd.f32 %v531, %v546
      %v552 = vmul.f32 %v547, 0.7978846
      %v553 = vmul.f32 %v548, 0.7978846
      %v554 = vmul.f32 %v549, 0.7978846
      %v555 = vmul.f32 %v550, 0.7978846
      %v556 = vmul.f32 %v551, 0.7978846
      %v557 = vtanh.pop %v552
      %v558 = vtanh.pop %v553
      %v559 = vtanh.pop %v554
      %v560 = vtanh.pop %v555
      %v561 = vtanh.pop %v556
      %v562 = vadd.f32 %v557, 1.0
      %v563 = vadd.f32 %v558, 1.0
      %v564 = vadd.f32 %v559, 1.0
      %v565 = vadd.f32 %v560, 1.0
      %v566 = vadd.f32 %v561, 1.0
      %v567 = vmul.f32 %v562, 0.5
      %v568 = vmul.f32 %v563, 0.5
      %v569 = vmul.f32 %v564, 0.5
      %v570 = vmul.f32 %v565, 0.5
      %v571 = vmul.f32 %v566, 0.5
      %v572 = vmul.f32 %v527, %v567
      %v573 = vmul.f32 %v528, %v568
      %v574 = vmul.f32 %v529, %v569
      %v575 = vmul.f32 %v530, %v570
      %v576 = vmul.f32 %v531, %v571
      %577 = vst [vmem:[%s217] sm:$0xff] %v572
      %578 = vst [vmem:[%s217 + $0x8] sm:$0xff] %v573
      %579 = vst [vmem:[%s217 + $0x10] sm:$0xff] %v574
      %580 = vst [vmem:[%s217 + $0x18] sm:$0xff] %v575
      %581 = vst [vmem:[%s217 + $0x20] sm:$0x7f] %v576
      %v582 = vld [vmem:[%s212] sm:$0x1]
      %v583 = vlaneseq
      %v584 = vand.u32 %v583, 127
      %v585 = vcvt.s32.f32 %v584
      %587 = vset.pattern.permute.xlu0 0
      %588 = vperm.xlu0 %587, %v582
      %v589 = vpop.permute.xlu0 %588
      %v591 = vperm.slane %v589, 0
      %vm592 = vcmp.lt.f32.partialorder %v585, %v591
      %v593 = vsel %vm592, 1, 0
      %v594 = vcvt.s32.f32 %v593
      %vm595 = vcmask 318464
      %v597 = vsel %vm595, %v594, 0
      %vm599 = vcmask 1046528
      %v601 = vsel %vm599, %v576, 0
      %603 = vmatpush.msra.mxu0 0.0
      %604 = vmatpush.msra.mxu0 0.0
      %605 = vmatpush.msra.mxu0 0.0
      %606 = vmatpush.msra.mxu0 0.0
      %607 = vmatpush.msra.mxu0 0.0
      %608 = vmatpush.msra.mxu0 0.0
      %609 = vmatpush.msra.mxu0 0.0
      %610 = vmatpush.msra.mxu0 0.0
      %611 = vmatpush.msra.mxu0 0.0
      %612 = vmatpush.msra.mxu0 0.0
      %613 = vmatpush.msra.mxu0 0.0
      %614 = vmatpush.msra.mxu0 %v601
      %615 = vmatpush.msra.mxu0 %v575
      %616 = vmatpush.msra.mxu0 %v574
      %617 = vmatpush.msra.mxu0 %v573
      %618 = vmatpush.msra.mxu0 %v572
      %619 = vmatmul.f32.gmra.mxu0 %v597
      %v620 = vpop.f32.mrf.mxu0
      %v621 = vadd.f32 0.0, %v620
      %622 = vdwg.mxu0
      %v623 = vrcp.pop %v591
      %v624 = vmul.f32 %v591, %v623
      %v625 = vsub.f32 1.0, %v624
      %v626 = vmul.f32 %v623, %v625
      %v627 = vadd.f32 %v623, %v626
      %vm628 = vweird.f32 %v591
      %vm629 = vweird.f32 %v623
      %vm630 = vmor %vm628, %vm629
      %v631 = vsel %vm630, %v623, %v627
      %v632 = vand.u32 2147483647, %v591
      %vm633 = vcmp.eq.f32.partialorder %v632, 8.507059e+37
      %v634 = vand.u32 %v591, 2147483648
      %v635 = vor.u32 1.1754944e-38, %v634
      %v636 = vsel %vm633, %v635, %v631
      %v637 = vmul.f32 %v621, %v636
      %638 = vst [vmem:[%s220] sm:$0x1] %v637
      %p639 = scmp.lt.s32.totalorder %s16, 1
      %s640 = scalar_select %p639, %s16, 1
      %s641 = smul.addr %s640, 5
      %s642 = smul.addr %s641, 8
      %s643 = scalar_lea.vmem %s3, %s642
      %p644 = scmp.lt.s32.totalorder %s16, 1
      %s645 = scalar_select %p644, %s16, 1
      %s646 = scalar_lea.vmem %s4, %s645
      // Predicated region
      $region33: #{wav2vec2_emonet_forward.11} parent=31 // pred_check
        %p647 = pneg %p107
      $region34: #{wav2vec2_emonet_forward.11} parent=31 // pred_check_branch
        %649 = sbr.rel (%p647) target = $region36
      $region35: #{wav2vec2_emonet_forward.11} parent=31 // pred_region
        _
      $region36: #{wav2vec2_emonet_forward.11} parent=31 // pred_fallthru
        _
      // Predicated region
      $region37: #{wav2vec2_emonet_forward.11} parent=31 // pred_check
        %p650 = pneg %p133
      $region38: #{wav2vec2_emonet_forward.11} parent=31 // pred_check_branch
        %652 = sbr.rel (%p650) target = $region40
      $region39: #{wav2vec2_emonet_forward.11} parent=31 // pred_region
        _
      $region40: #{wav2vec2_emonet_forward.11} parent=31 // pred_fallthru
        _
    $region32: #{wav2vec2_emonet_forward.11} parent=5 // pred_fallthru
      _
    %p653 = scmp.le.s32.totalorder 2, %s11
    // Predicated region
    $region41: #{wav2vec2_emonet_forward.11} parent=5 // pred_check
      %p654 = pneg %p653
    $region42: #{wav2vec2_emonet_forward.11} parent=5 // pred_check_branch
      %656 = sbr.rel (%p654) target = $region44
    $region43: #{wav2vec2_emonet_forward.11} parent=5 // pred_region
      %s657 = ssub.s32 %s11, 2
      // Predicated region
      $region45: #{wav2vec2_emonet_forward.11} parent=43 // pred_check
        %p658 = pneg %p113
      $region46: #{wav2vec2_emonet_forward.11} parent=43 // pred_check_branch
        %660 = sbr.rel (%p658) target = $region48
      $region47: #{wav2vec2_emonet_forward.11} parent=43 // pred_region
        %p661 = scmp.lt.s32.totalorder %s17, 1
        %s662 = scalar_select %p661, %s17, 1
        %s663 = smul.addr %s662, 5
        %s664 = smul.addr %s663, 8
        %s665 = scalar_lea.vmem %s3, %s664
      $region48: #{wav2vec2_emonet_forward.11} parent=43 // pred_fallthru
        _
      // Predicated region
      $region49: #{wav2vec2_emonet_forward.11} parent=43 // pred_check
        %p666 = pneg %p139
      $region50: #{wav2vec2_emonet_forward.11} parent=43 // pred_check_branch
        %668 = sbr.rel (%p666) target = $region52
      $region51: #{wav2vec2_emonet_forward.11} parent=43 // pred_region
        %p669 = scmp.lt.s32.totalorder %s17, 1
        %s670 = scalar_select %p669, %s17, 1
        %s671 = scalar_lea.vmem %s4, %s670
      $region52: #{wav2vec2_emonet_forward.11} parent=43 // pred_fallthru
        _
    $region44: #{wav2vec2_emonet_forward.11} parent=5 // pred_fallthru
      _
  $region6: #{wav2vec2_emonet_forward.11} parent=0 // loop_footer
    %s15 = sadd.s32 1, %s11
  $region7: #{wav2vec2_emonet_forward.11} parent=0 // loop_footer_branch
    %10 = sbr.rel target = $region3
  $region8: #{wav2vec2_emonet_forward.11} parent=0 // loop_exit
    _

// kernel: wav2vec2_emonet_forward.14
$region0: #{wav2vec2_emonet_forward.14}
  #allocation0 [shape = 'u32[]', space=smem, size = 0x4, offset = 0x4, fixed_abs, tag = 'smem constant byte address 0x4 - core index']
  #allocation1 [shape = 'u32[72,128]{1,0:T(1,128)}', space=vmem, size = 0x9000, scoped, tag = 'internal scratch']
  %s0 = inlined_call_operand.vmem [shape: f32[2,20,128], index: 0, kind: input, shape index: {}]
  %s1 = inlined_call_operand.vmem [shape: f32[2,20,1], index: 1, kind: input, shape index: {}]
  %s2 = inlined_call_operand.vmem [shape: bf16[4,128,128], index: 2, kind: input, shape index: {}]
  %s3 = inlined_call_operand.vmem [shape: f32[1,128], index: 3, kind: input, shape index: {}]
  %s4 = inlined_call_operand.vmem [shape: f32[1,128], index: 4, kind: input, shape index: {}]
  %s5 = inlined_call_operand.vmem [shape: f32[1,128], index: 5, kind: input, shape index: {}]
  %s6 = inlined_call_operand.vmem [shape: f32[2,20,128], index: 6, kind: output, shape index: {}]
  %s7 = sld [smem:[#allocation0]]
  $region57: #{wav2vec2_emonet_forward.14} parent=0
    _
  %s9 = ssub.s32 1, %s7
  %s10 = scalar_select 0, %s9, %s7
  loop: start=0, step=1, limit=4
  $region2: #{wav2vec2_emonet_forward.14} parent=0 // loop_pre_header
    _
  $region3: #{wav2vec2_emonet_forward.14} parent=0 // loop_header
    %s12 = sphi 0, %s16
    %p13 = scmp.ge.s32.totalorder %s12, 4
    %s22 = sphi 0, %s24
    %s25 = sphi 0, %s22
    %s26 = sphi 0, %s25
    %s42 = sphi 0, %s26
    %s48 = sphi 0, %s50
    %s51 = sphi 0, %s48
    %s52 = sphi 0, %s51
    %s68 = sphi 0, %s52
    %s72 = sphi 0, %s72
    %s74 = sphi 0, %s72
    %s75 = sphi 0, %s74
    %s89 = sphi 0, %s75
    %s93 = sphi 0, %s93
    %s95 = sphi 0, %s93
    %s96 = sphi 0, %s95
    %s110 = sphi 0, %s96
    %s114 = sphi 0, %s114
    %s116 = sphi 0, %s114
    %s117 = sphi 0, %s116
    %s131 = sphi 0, %s117
    %s135 = sphi 0, %s135
    %s137 = sphi 0, %s135
    %s138 = sphi 0, %s137
    %s152 = sphi 0, %s138
    %s158 = sphi 0, %s160
    %s161 = sphi 0, %s158
    %s162 = sphi 0, %s161
    %s178 = sphi 0, %s162
  $region4: #{wav2vec2_emonet_forward.14} parent=0 // loop_header_branch
    %15 = sbr.rel (%p13) target = $region8
  $region5: #{wav2vec2_emonet_forward.14} parent=0 // loop_body
    %s17 = ssub.s32 %s12, 1
    %s18 = ssub.s32 %s12, 2
    %s19 = sadd.s32 %s12, 1
    %s20 = ssub.s32 %s12, %s19
    %p21 = scmp.eq.s32.totalorder %s20, 0
    %s23 = sadd.s32 %s22, 1
    %s24 = scalar_select %p21, %s22, %s23
    %p27 = pneg %p21
    %p28 = scmp.eq.s32.totalorder %s12, 1
    %p29 = por %p27, %p28
    %p30 = scmp.ne.s32.totalorder %s22, %s25
    %p31 = scmp.eq.s32.totalorder %s12, 0
    %p32 = por %p30, %p31
    %p33 = scmp.ne.s32.totalorder %s22, %s25
    %p34 = scmp.eq.s32.totalorder %s17, 1
    %p35 = por %p33, %p34
    %p36 = scmp.ne.s32.totalorder %s25, %s26
    %p37 = scmp.eq.s32.totalorder %s17, 0
    %p38 = por %p36, %p37
    %p39 = scmp.ne.s32.totalorder %s25, %s26
    %p40 = scmp.eq.s32.totalorder %s18, 1
    %p41 = por %p39, %p40
    %p43 = scmp.ne.s32.totalorder %s26, %s42
    %p44 = scmp.eq.s32.totalorder %s18, 0
    %p45 = por %p43, %p44
    %s46 = ssub.s32 %s12, %s19
    %p47 = scmp.eq.s32.totalorder %s46, 0
    %s49 = sadd.s32 %s48, 1
    %s50 = scalar_select %p47, %s48, %s49
    %p53 = pneg %p47
    %p54 = scmp.eq.s32.totalorder %s12, 1
    %p55 = por %p53, %p54
    %p56 = scmp.ne.s32.totalorder %s48, %s51
    %p57 = scmp.eq.s32.totalorder %s12, 0
    %p58 = por %p56, %p57
    %p59 = scmp.ne.s32.totalorder %s48, %s51
    %p60 = scmp.eq.s32.totalorder %s17, 1
    %p61 = por %p59, %p60
    %p62 = scmp.ne.s32.totalorder %s51, %s52
    %p63 = scmp.eq.s32.totalorder %s17, 0
    %p64 = por %p62, %p63
    %p65 = scmp.ne.s32.totalorder %s51, %s52
    %p66 = scmp.eq.s32.totalorder %s18, 1
    %p67 = por %p65, %p66
    %p69 = scmp.ne.s32.totalorder %s52, %s68
    %p70 = scmp.eq.s32.totalorder %s18, 0
    %p71 = por %p69, %p70
    %s73 = sadd.s32 %s72, 1
    %p76 = scmp.eq.s32.totalorder %s12, 1
    %p77 = scmp.ne.s32.totalorder %s72, %s74
    %p78 = scmp.eq.s32.totalorder %s12, 0
    %p79 = por %p77, %p78
    %p80 = scmp.ne.s32.totalorder %s72, %s74
    %p81 = scmp.eq.s32.totalorder %s17, 1
    %p82 = por %p80, %p81
    %p83 = scmp.ne.s32.totalorder %s74, %s75
    %p84 = scmp.eq.s32.totalorder %s17, 0
    %p85 = por %p83, %p84
    %p86 = scmp.ne.s32.totalorder %s74, %s75
    %p87 = scmp.eq.s32.totalorder %s18, 1
    %p88 = por %p86, %p87
    %p90 = scmp.ne.s32.totalorder %s75, %s89
    %p91 = scmp.eq.s32.totalorder %s18, 0
    %p92 = por %p90, %p91
    %s94 = sadd.s32 %s93, 1
    %p97 = scmp.eq.s32.totalorder %s12, 1
    %p98 = scmp.ne.s32.totalorder %s93, %s95
    %p99 = scmp.eq.s32.totalorder %s12, 0
    %p100 = por %p98, %p99
    %p101 = scmp.ne.s32.totalorder %s93, %s95
    %p102 = scmp.eq.s32.totalorder %s17, 1
    %p103 = por %p101, %p102
    %p104 = scmp.ne.s32.totalorder %s95, %s96
    %p105 = scmp.eq.s32.totalorder %s17, 0
    %p106 = por %p104, %p105
    %p107 = scmp.ne.s32.totalorder %s95, %s96
    %p108 = scmp.eq.s32.totalorder %s18, 1
    %p109 = por %p107, %p108
    %p111 = scmp.ne.s32.totalorder %s96, %s110
    %p112 = scmp.eq.s32.totalorder %s18, 0
    %p113 = por %p111, %p112
    %s115 = sadd.s32 %s114, 1
    %p118 = scmp.eq.s32.totalorder %s12, 1
    %p119 = scmp.ne.s32.totalorder %s114, %s116
    %p120 = scmp.eq.s32.totalorder %s12, 0
    %p121 = por %p119, %p120
    %p122 = scmp.ne.s32.totalorder %s114, %s116
    %p123 = scmp.eq.s32.totalorder %s17, 1
    %p124 = por %p122, %p123
    %p125 = scmp.ne.s32.totalorder %s116, %s117
    %p126 = scmp.eq.s32.totalorder %s17, 0
    %p127 = por %p125, %p126
    %p128 = scmp.ne.s32.totalorder %s116, %s117
    %p129 = scmp.eq.s32.totalorder %s18, 1
    %p130 = por %p128, %p129
    %p132 = scmp.ne.s32.totalorder %s117, %s131
    %p133 = scmp.eq.s32.totalorder %s18, 0
    %p134 = por %p132, %p133
    %s136 = sadd.s32 %s135, 1
    %p139 = scmp.eq.s32.totalorder %s12, 1
    %p140 = scmp.ne.s32.totalorder %s135, %s137
    %p141 = scmp.eq.s32.totalorder %s12, 0
    %p142 = por %p140, %p141
    %p143 = scmp.ne.s32.totalorder %s135, %s137
    %p144 = scmp.eq.s32.totalorder %s17, 1
    %p145 = por %p143, %p144
    %p146 = scmp.ne.s32.totalorder %s137, %s138
    %p147 = scmp.eq.s32.totalorder %s17, 0
    %p148 = por %p146, %p147
    %p149 = scmp.ne.s32.totalorder %s137, %s138
    %p150 = scmp.eq.s32.totalorder %s18, 1
    %p151 = por %p149, %p150
    %p153 = scmp.ne.s32.totalorder %s138, %s152
    %p154 = scmp.eq.s32.totalorder %s18, 0
    %p155 = por %p153, %p154
    %s156 = ssub.s32 %s12, %s19
    %p157 = scmp.eq.s32.totalorder %s156, 0
    %s159 = sadd.s32 %s158, 1
    %s160 = scalar_select %p157, %s158, %s159
    %p163 = pneg %p157
    %p164 = scmp.eq.s32.totalorder %s12, 1
    %p165 = por %p163, %p164
    %p166 = scmp.ne.s32.totalorder %s158, %s161
    %p167 = scmp.eq.s32.totalorder %s12, 0
    %p168 = por %p166, %p167
    %p169 = scmp.ne.s32.totalorder %s158, %s161
    %p170 = scmp.eq.s32.totalorder %s17, 1
    %p171 = por %p169, %p170
    %p172 = scmp.ne.s32.totalorder %s161, %s162
    %p173 = scmp.eq.s32.totalorder %s17, 0
    %p174 = por %p172, %p173
    %p175 = scmp.ne.s32.totalorder %s161, %s162
    %p176 = scmp.eq.s32.totalorder %s18, 1
    %p177 = por %p175, %p176
    %p179 = scmp.ne.s32.totalorder %s162, %s178
    %p180 = scmp.eq.s32.totalorder %s18, 0
    %p181 = por %p179, %p180
    %p182 = scmp.le.s32.totalorder 1, %s12
    %p183 = scmp.lt.s32.totalorder %s12, 3
    %p184 = pnand %p182, %p183
    %p185 = pneg %p184
    // Predicated region
    $region9: #{wav2vec2_emonet_forward.14} parent=5 // pred_check
      _
    $region10: #{wav2vec2_emonet_forward.14} parent=5 // pred_check_branch
      %187 = sbr.rel (%p184) target = $region12
    $region11: #{wav2vec2_emonet_forward.14} parent=5 // pred_region
      %s188 = ssub.s32 %s12, 1
      // Predicated region
      $region13: #{wav2vec2_emonet_forward.14} parent=11 // pred_check
        %p189 = pneg %p85
      $region14: #{wav2vec2_emonet_forward.14} parent=11 // pred_check_branch
        %191 = sbr.rel (%p189) target = $region16
      $region15: #{wav2vec2_emonet_forward.14} parent=11 // pred_region
        _
      $region16: #{wav2vec2_emonet_forward.14} parent=11 // pred_fallthru
        _
      // Predicated region
      $region17: #{wav2vec2_emonet_forward.14} parent=11 // pred_check
        %p192 = pneg %p106
      $region18: #{wav2vec2_emonet_forward.14} parent=11 // pred_check_branch
        %194 = sbr.rel (%p192) target = $region20
      $region19: #{wav2vec2_emonet_forward.14} parent=11 // pred_region
        _
      $region20: #{wav2vec2_emonet_forward.14} parent=11 // pred_fallthru
        _
      // Predicated region
      $region21: #{wav2vec2_emonet_forward.14} parent=11 // pred_check
        %p195 = pneg %p127
      $region22: #{wav2vec2_emonet_forward.14} parent=11 // pred_check_branch
        %197 = sbr.rel (%p195) target = $region24
      $region23: #{wav2vec2_emonet_forward.14} parent=11 // pred_region
        _
      $region24: #{wav2vec2_emonet_forward.14} parent=11 // pred_fallthru
        _
      // Predicated region
      $region25: #{wav2vec2_emonet_forward.14} parent=11 // pred_check
        %p198 = pneg %p148
      $region26: #{wav2vec2_emonet_forward.14} parent=11 // pred_check_branch
        %200 = sbr.rel (%p198) target = $region28
      $region27: #{wav2vec2_emonet_forward.14} parent=11 // pred_region
        _
      $region28: #{wav2vec2_emonet_forward.14} parent=11 // pred_fallthru
        _
    $region12: #{wav2vec2_emonet_forward.14} parent=5 // pred_fallthru
      _
    %p201 = scmp.lt.s32.totalorder %s12, 2
    // Predicated region
    $region29: #{wav2vec2_emonet_forward.14} parent=5 // pred_check
      %p202 = pneg %p201
    $region30: #{wav2vec2_emonet_forward.14} parent=5 // pred_check_branch
      %204 = sbr.rel (%p202) target = $region32
    $region31: #{wav2vec2_emonet_forward.14} parent=5 // pred_region
      // Predicated region
      $region33: #{wav2vec2_emonet_forward.14} parent=31 // pred_check
        %p205 = pneg %p32
      $region34: #{wav2vec2_emonet_forward.14} parent=31 // pred_check_branch
        %207 = sbr.rel (%p205) target = $region36
      $region35: #{wav2vec2_emonet_forward.14} parent=31 // pred_region
        %p208 = scmp.lt.s32.totalorder %s12, 1
        %s209 = scalar_select %p208, %s12, 1
        %s210 = smul.addr %s209, 3
        %s211 = smul.addr %s210, 8
        %s212 = scalar_lea.vmem %s0, %s211
      $region36: #{wav2vec2_emonet_forward.14} parent=31 // pred_fallthru
        _
      // Predicated region
      $region37: #{wav2vec2_emonet_forward.14} parent=31 // pred_check
        %p213 = pneg %p58
      $region38: #{wav2vec2_emonet_forward.14} parent=31 // pred_check_branch
        %215 = sbr.rel (%p213) target = $region40
      $region39: #{wav2vec2_emonet_forward.14} parent=31 // pred_region
        %p216 = scmp.lt.s32.totalorder %s12, 1
        %s217 = scalar_select %p216, %s12, 1
        %s218 = smul.addr %s217, 3
        %s219 = smul.addr %s218, 8
        %s220 = scalar_lea.vmem %s1, %s219
      $region40: #{wav2vec2_emonet_forward.14} parent=31 // pred_fallthru
        _
    $region32: #{wav2vec2_emonet_forward.14} parent=5 // pred_fallthru
      _
    %p221 = scmp.le.s32.totalorder 1, %s12
    %p222 = scmp.lt.s32.totalorder %s12, 3
    %p223 = pnand %p221, %p222
    %p224 = pneg %p223
    // Predicated region
    $region41: #{wav2vec2_emonet_forward.14} parent=5 // pred_check
      _
    $region42: #{wav2vec2_emonet_forward.14} parent=5 // pred_check_branch
      %226 = sbr.rel (%p223) target = $region44
    $region43: #{wav2vec2_emonet_forward.14} parent=5 // pred_region
      %s227 = ssub.s32 %s12, 1
      %p228 = scmp.lt.s32.totalorder %s17, 1
      %s229 = scalar_select %p228, %s17, 1
      %s230 = smul.addr %s229, 3
      %s231 = smul.addr %s230, 8
      %s232 = scalar_lea.vmem %s0, %s231
      %p233 = pneg %p38
      %p234 = pneg %p35
      %p235 = scmp.lt.s32.totalorder %s17, 1
      %s236 = scalar_select %p235, %s17, 1
      %s237 = smul.addr %s236, 3
      %s238 = smul.addr %s237, 8
      %s239 = scalar_lea.vmem %s1, %s238
      %p240 = pneg %p64
      %p241 = pneg %p61
      %p242 = pneg %p85
      %p243 = pneg %p82
      %p244 = pneg %p106
      %p245 = pneg %p103
      %p246 = pneg %p127
      %p247 = pneg %p124
      %p248 = pneg %p148
      %p249 = pneg %p145
      %p250 = pneg %p174
      %p251 = pneg %p171
      %p252 = scmp.lt.s32.totalorder %s17, 1
      %s253 = scalar_select %p252, %s17, 1
      %s254 = smul.addr %s253, 3
      %s255 = smul.addr %s254, 8
      %s256 = scalar_lea.vmem %s6, %s255
      %p257 = scmp.lt.s32.totalorder %s17, 1
      %s258 = scalar_select %p257, %s17, 1
      %s259 = smul.addr %s258, 3
      %s260 = smul.addr %s259, 8
      %s261 = scalar_lea.vmem %s0, %s260
      %p262 = scmp.lt.s32.totalorder %s17, 1
      %s263 = scalar_select %p262, %s17, 1
      %s264 = smul.addr %s263, 3
      %s265 = smul.addr %s264, 8
      %s266 = scalar_lea.vmem %s1, %s265
      %p267 = scmp.lt.s32.totalorder %s17, 1
      %s268 = scalar_select %p267, %s17, 1
      %s269 = smul.addr %s268, 3
      %s270 = smul.addr %s269, 8
      %s271 = scalar_lea.vmem %s6, %s270
      %v272 = vld [vmem:[%s261] sm:$0xff]
      %v273 = vld [vmem:[%s261 + $0x8] sm:$0xff]
      %v274 = vld [vmem:[%s261 + $0x10] sm:$0xf]
      %v275 = vld [vmem:[%s266] sm:$0xff]
      %v276 = vld [vmem:[%s266 + $0x8] sm:$0xff]
      %v277 = vld [vmem:[%s266 + $0x10] sm:$0xf]
      %279 = vset.pattern.permute.xlu0 0
      %280 = vperm.xlu0 %279, %v275
      %v281 = vpop.permute.xlu0 %280
      %284 = vset.pattern.permute.xlu0 0
      %285 = vperm.xlu0 %284, %v276
      %v286 = vpop.permute.xlu0 %285
      %289 = vset.pattern.permute.xlu0 0
      %290 = vperm.xlu0 %289, %v277
      %v291 = vpop.permute.xlu0 %290
      %v293 = vmul.f32 %v272, %v281
      %v294 = vmul.f32 %v273, %v286
      %v295 = vmul.f32 %v274, %v291
      %vm299 = vcmask 1041408
      %v300 = vrot.slane %v293, 6
      %v301 = vrot.slane %v294, 6
      %v302 = vsel %vm299, %v300, %v301
      %v303 = vrot.slane %v295, 6
      %v304 = vsel %vm299, %v301, %v303
      %v308 = vsel %vm299, 0.0, %v300
      %vm309 = vcmask 1045504
      %v310 = vsel %vm309, %v304, 0.0
      %v311 = vpack.c.bf16 %v302, %v308
      %v312 = vpack.c.bf16 %v310, %v310
      %v313 = vld [vmem:[%s2] sm:$0xf]
      %v314 = vld [vmem:[%s2 + $0x4] sm:$0xf]
      %v315 = vld [vmem:[%s2 + $0x8] sm:$0xf]
      %v316 = vld [vmem:[%s2 + $0xc] sm:$0xf]
      %v317 = vld [vmem:[%s2 + $0x10] sm:$0xf]
      %v318 = vld [vmem:[%s2 + $0x14] sm:$0xf]
      %v319 = vld [vmem:[%s2 + $0x18] sm:$0xf]
      %v320 = vld [vmem:[%s2 + $0x1c] sm:$0xf]
      %v321 = vld [vmem:[%s2 + $0x20] sm:$0xf]
      %v322 = vld [vmem:[%s2 + $0x24] sm:$0xf]
      %v323 = vld [vmem:[%s2 + $0x28] sm:$0xf]
      %v324 = vld [vmem:[%s2 + $0x2c] sm:$0xf]
      %v325 = vld [vmem:[%s2 + $0x30] sm:$0xf]
      %v326 = vld [vmem:[%s2 + $0x34] sm:$0xf]
      %v327 = vld [vmem:[%s2 + $0x38] sm:$0xf]
      %v328 = vld [vmem:[%s2 + $0x3c] sm:$0xf]
      %s329 = scalar_lea.vmem %s2, 64
      %v330 = vld [vmem:[%s329] sm:$0xf]
      %v331 = vld [vmem:[%s329 + $0x4] sm:$0xf]
      %v332 = vld [vmem:[%s329 + $0x8] sm:$0xf]
      %v333 = vld [vmem:[%s329 + $0xc] sm:$0xf]
      %v334 = vld [vmem:[%s329 + $0x10] sm:$0xf]
      %v335 = vld [vmem:[%s329 + $0x14] sm:$0xf]
      %v336 = vld [vmem:[%s329 + $0x18] sm:$0xf]
      %v337 = vld [vmem:[%s329 + $0x1c] sm:$0xf]
      %v338 = vld [vmem:[%s329 + $0x20] sm:$0xf]
      %v339 = vld [vmem:[%s329 + $0x24] sm:$0xf]
      %v340 = vld [vmem:[%s329 + $0x28] sm:$0xf]
      %v341 = vld [vmem:[%s329 + $0x2c] sm:$0xf]
      %v342 = vld [vmem:[%s329 + $0x30] sm:$0xf]
      %v343 = vld [vmem:[%s329 + $0x34] sm:$0xf]
      %v344 = vld [vmem:[%s329 + $0x38] sm:$0xf]
      %v345 = vld [vmem:[%s329 + $0x3c] sm:$0xf]
      %vm346 = vsmask.f32 7424
      %v348 = vshrl.u32 %v311, 16
      %v350 = vshll.u32 %v311, 16
      %v352 = vrot.slane %v350, 1
      %v353 = vor.u32 %v348, %v352
      %v355 = vshll.u32 %v312, 16
      %v357 = vrot.slane %v355, 1
      %v358 = vsel %vm346, %v353, %v357
      %v359 = vshrl.u32 %v312, 16
      %v361 = vor.u32 %v359, %v357
      %v380 = vunpack.c.l.b16 %v330
      %v381 = vunpack.c.l.b16 %v331
      %v382 = vunpack.c.l.b16 %v332
      %v383 = vunpack.c.l.b16 %v333
      %v384 = vunpack.c.l.b16 %v334
      %v385 = vunpack.c.l.b16 %v335
      %v386 = vunpack.c.l.b16 %v336
      %v387 = vunpack.c.l.b16 %v337
      %v388 = vunpack.c.l.b16 %v338
      %v389 = vunpack.c.l.b16 %v339
      %v390 = vunpack.c.l.b16 %v340
      %v391 = vunpack.c.l.b16 %v341
      %v392 = vunpack.c.l.b16 %v342
      %v393 = vunpack.c.l.b16 %v343
      %v394 = vunpack.c.l.b16 %v344
      %v395 = vunpack.c.l.b16 %v345
      %v396 = vpack.c.b16 %v381, %v380
      %v397 = vpack.c.b16 %v383, %v382
      %v398 = vpack.c.b16 %v385, %v384
      %v399 = vpack.c.b16 %v387, %v386
      %v400 = vpack.c.b16 %v389, %v388
      %v401 = vpack.c.b16 %v391, %v390
      %v402 = vpack.c.b16 %v393, %v392
      %v403 = vpack.c.b16 %v395, %v394
      %412 = vmatpush.bf16.msra.mxu0 %v403
      %413 = vmatpush.bf16.msra.mxu0 %v402
      %414 = vmatpush.bf16.msra.mxu0 %v401
      %415 = vmatpush.bf16.msra.mxu0 %v400
      %416 = vmatpush.bf16.msra.mxu0 %v399
      %417 = vmatpush.bf16.msra.mxu0 %v398
      %418 = vmatpush.bf16.msra.mxu0 %v397
      %419 = vmatpush.bf16.msra.mxu0 %v396
      %420 = vmatmul.bf16.gmra.mxu0 %v358
      %v421 = vpop.f32.mrf.mxu0
      %v422 = vadd.f32 0.0, %v421
      %v423 = vpop.f32.mrf.mxu0
      %v424 = vadd.f32 0.0, %v423
      %425 = vmatmul.bf16.gmra.mxu0 %v361
      %v426 = vpop.f32.mrf.mxu0
      %v427 = vadd.f32 0.0, %v426
      %v428 = vpop.f32.mrf.mxu0
      %429 = vdwg.mxu0
      %v446 = vunpack.c.l.b16 %v313
      %v447 = vunpack.c.l.b16 %v314
      %v448 = vunpack.c.l.b16 %v315
      %v449 = vunpack.c.l.b16 %v316
      %v450 = vunpack.c.l.b16 %v317
      %v451 = vunpack.c.l.b16 %v318
      %v452 = vunpack.c.l.b16 %v319
      %v453 = vunpack.c.l.b16 %v320
      %v454 = vunpack.c.l.b16 %v321
      %v455 = vunpack.c.l.b16 %v322
      %v456 = vunpack.c.l.b16 %v323
      %v457 = vunpack.c.l.b16 %v324
      %v458 = vunpack.c.l.b16 %v325
      %v459 = vunpack.c.l.b16 %v326
      %v460 = vunpack.c.l.b16 %v327
      %v461 = vunpack.c.l.b16 %v328
      %v462 = vpack.c.b16 %v447, %v446
      %v463 = vpack.c.b16 %v449, %v448
      %v464 = vpack.c.b16 %v451, %v450
      %v465 = vpack.c.b16 %v453, %v452
      %v466 = vpack.c.b16 %v455, %v454
      %v467 = vpack.c.b16 %v457, %v456
      %v468 = vpack.c.b16 %v459, %v458
      %v469 = vpack.c.b16 %v461, %v460
      %478 = vmatpush.bf16.msra.mxu0 %v469
      %479 = vmatpush.bf16.msra.mxu0 %v468
      %480 = vmatpush.bf16.msra.mxu0 %v467
      %481 = vmatpush.bf16.msra.mxu0 %v466
      %482 = vmatpush.bf16.msra.mxu0 %v465
      %483 = vmatpush.bf16.msra.mxu0 %v464
      %484 = vmatpush.bf16.msra.mxu0 %v463
      %485 = vmatpush.bf16.msra.mxu0 %v462
      %486 = vmatmul.bf16.gmra.mxu0 %v311
      %v487 = vpop.f32.mrf.mxu0
      %v488 = vadd.f32 %v422, %v487
      %v489 = vpop.f32.mrf.mxu0
      %v490 = vadd.f32 %v424, %v489
      %491 = vmatmul.bf16.gmra.mxu0 %v312
      %v492 = vpop.f32.mrf.mxu0
      %v493 = vadd.f32 %v427, %v492
      %v494 = vpop.f32.mrf.mxu0
      %495 = vdwg.mxu0
      %s496 = scalar_lea.vmem %s2, 128
      %v497 = vld [vmem:[%s496] sm:$0xf]
      %v498 = vld [vmem:[%s496 + $0x4] sm:$0xf]
      %v499 = vld [vmem:[%s496 + $0x8] sm:$0xf]
      %v500 = vld [vmem:[%s496 + $0xc] sm:$0xf]
      %v501 = vld [vmem:[%s496 + $0x10] sm:$0xf]
      %v502 = vld [vmem:[%s496 + $0x14] sm:$0xf]
      %v503 = vld [vmem:[%s496 + $0x18] sm:$0xf]
      %v504 = vld [vmem:[%s496 + $0x1c] sm:$0xf]
      %v505 = vld [vmem:[%s496 + $0x20] sm:$0xf]
      %v506 = vld [vmem:[%s496 + $0x24] sm:$0xf]
      %v507 = vld [vmem:[%s496 + $0x28] sm:$0xf]
      %v508 = vld [vmem:[%s496 + $0x2c] sm:$0xf]
      %v509 = vld [vmem:[%s496 + $0x30] sm:$0xf]
      %v510 = vld [vmem:[%s496 + $0x34] sm:$0xf]
      %v511 = vld [vmem:[%s496 + $0x38] sm:$0xf]
      %v512 = vld [vmem:[%s496 + $0x3c] sm:$0xf]
      %vm515 = vcmask 1046528
      %v516 = vrot.slane %v311, 1
      %v517 = vrot.slane %v312, 1
      %v518 = vsel %vm515, %v516, %v517
      %v537 = vunpack.c.l.b16 %v497
      %v538 = vunpack.c.l.b16 %v498
      %v539 = vunpack.c.l.b16 %v499
      %v540 = vunpack.c.l.b16 %v500
      %v541 = vunpack.c.l.b16 %v501
      %v542 = vunpack.c.l.b16 %v502
      %v543 = vunpack.c.l.b16 %v503
      %v544 = vunpack.c.l.b16 %v504
      %v545 = vunpack.c.l.b16 %v505
      %v546 = vunpack.c.l.b16 %v506
      %v547 = vunpack.c.l.b16 %v507
      %v548 = vunpack.c.l.b16 %v508
      %v549 = vunpack.c.l.b16 %v509
      %v550 = vunpack.c.l.b16 %v510
      %v551 = vunpack.c.l.b16 %v511
      %v552 = vunpack.c.l.b16 %v512
      %v553 = vpack.c.b16 %v538, %v537
      %v554 = vpack.c.b16 %v540, %v539
      %v555 = vpack.c.b16 %v542, %v541
      %v556 = vpack.c.b16 %v544, %v543
      %v557 = vpack.c.b16 %v546, %v545
      %v558 = vpack.c.b16 %v548, %v547
      %v559 = vpack.c.b16 %v550, %v549
      %v560 = vpack.c.b16 %v552, %v551
      %569 = vmatpush.bf16.msra.mxu0 %v560
      %570 = vmatpush.bf16.msra.mxu0 %v559
      %571 = vmatpush.bf16.msra.mxu0 %v558
      %572 = vmatpush.bf16.msra.mxu0 %v557
      %573 = vmatpush.bf16.msra.mxu0 %v556
      %574 = vmatpush.bf16.msra.mxu0 %v555
      %575 = vmatpush.bf16.msra.mxu0 %v554
      %576 = vmatpush.bf16.msra.mxu0 %v553
      %577 = vmatmul.bf16.gmra.mxu0 %v518
      %v578 = vpop.f32.mrf.mxu0
      %v579 = vadd.f32 0.0, %v578
      %v580 = vpop.f32.mrf.mxu0
      %v581 = vadd.f32 0.0, %v580
      %582 = vmatmul.bf16.gmra.mxu0 %v517
      %v583 = vpop.f32.mrf.mxu0
      %v584 = vadd.f32 0.0, %v583
      %v585 = vpop.f32.mrf.mxu0
      %586 = vdwg.mxu0
      %v587 = vadd.f32 %v488, %v579
      %v588 = vadd.f32 %v490, %v581
      %v589 = vadd.f32 %v493, %v584
      %s590 = scalar_lea.vmem %s2, 192
      %v591 = vld [vmem:[%s590] sm:$0xf]
      %v592 = vld [vmem:[%s590 + $0x4] sm:$0xf]
      %v593 = vld [vmem:[%s590 + $0x8] sm:$0xf]
      %v594 = vld [vmem:[%s590 + $0xc] sm:$0xf]
      %v595 = vld [vmem:[%s590 + $0x10] sm:$0xf]
      %v596 = vld [vmem:[%s590 + $0x14] sm:$0xf]
      %v597 = vld [vmem:[%s590 + $0x18] sm:$0xf]
      %v598 = vld [vmem:[%s590 + $0x1c] sm:$0xf]
      %v599 = vld [vmem:[%s590 + $0x20] sm:$0xf]
      %v600 = vld [vmem:[%s590 + $0x24] sm:$0xf]
      %v601 = vld [vmem:[%s590 + $0x28] sm:$0xf]
      %v602 = vld [vmem:[%s590 + $0x2c] sm:$0xf]
      %v603 = vld [vmem:[%s590 + $0x30] sm:$0xf]
      %v604 = vld [vmem:[%s590 + $0x34] sm:$0xf]
      %v605 = vld [vmem:[%s590 + $0x38] sm:$0xf]
      %v606 = vld [vmem:[%s590 + $0x3c] sm:$0xf]
      %vm607 = vsmask.f32 6400
      %v608 = vrot.slane %v348, 1
      %v609 = vrot.slane %v350, 2
      %v610 = vor.u32 %v608, %v609
      %v611 = vrot.slane %v359, 1
      %v612 = vrot.slane %v355, 2
      %v613 = vor.u32 %v611, %v612
      %v614 = vsel %vm607, %v610, %v613
      %v633 = vunpack.c.l.b16 %v591
      %v634 = vunpack.c.l.b16 %v592
      %v635 = vunpack.c.l.b16 %v593
      %v636 = vunpack.c.l.b16 %v594
      %v637 = vunpack.c.l.b16 %v595
      %v638 = vunpack.c.l.b16 %v596
      %v639 = vunpack.c.l.b16 %v597
      %v640 = vunpack.c.l.b16 %v598
      %v641 = vunpack.c.l.b16 %v599
      %v642 = vunpack.c.l.b16 %v600
      %v643 = vunpack.c.l.b16 %v601
      %v644 = vunpack.c.l.b16 %v602
      %v645 = vunpack.c.l.b16 %v603
      %v646 = vunpack.c.l.b16 %v604
      %v647 = vunpack.c.l.b16 %v605
      %v648 = vunpack.c.l.b16 %v606
      %v649 = vpack.c.b16 %v634, %v633
      %v650 = vpack.c.b16 %v636, %v635
      %v651 = vpack.c.b16 %v638, %v637
      %v652 = vpack.c.b16 %v640, %v639
      %v653 = vpack.c.b16 %v642, %v641
      %v654 = vpack.c.b16 %v644, %v643
      %v655 = vpack.c.b16 %v646, %v645
      %v656 = vpack.c.b16 %v648, %v647
      %665 = vmatpush.bf16.msra.mxu0 %v656
      %666 = vmatpush.bf16.msra.mxu0 %v655
      %667 = vmatpush.bf16.msra.mxu0 %v654
      %668 = vmatpush.bf16.msra.mxu0 %v653
      %669 = vmatpush.bf16.msra.mxu0 %v652
      %670 = vmatpush.bf16.msra.mxu0 %v651
      %671 = vmatpush.bf16.msra.mxu0 %v650
      %672 = vmatpush.bf16.msra.mxu0 %v649
      %673 = vmatmul.bf16.gmra.mxu0 %v614
      %v674 = vpop.f32.mrf.mxu0
      %v675 = vadd.f32 0.0, %v674
      %v676 = vpop.f32.mrf.mxu0
      %v677 = vadd.f32 0.0, %v676
      %678 = vmatmul.bf16.gmra.mxu0 %v613
      %v679 = vpop.f32.mrf.mxu0
      %v680 = vadd.f32 0.0, %v679
      %v681 = vpop.f32.mrf.mxu0
      %682 = vdwg.mxu0
      %v683 = vadd.f32 %v587, %v675
      %v684 = vadd.f32 %v588, %v677
      %v685 = vadd.f32 %v589, %v680
      %v686 = vld [vmem:[%s3] sm:$0x1]
      %v688 = vperm.slane %v686, 0
      %v690 = vadd.f32 %v683, %v688
      %v691 = vadd.f32 %v684, %v688
      %v692 = vadd.f32 %v685, %v688
      %v693 = vmul.f32 %v690, %v690
      %v694 = vmul.f32 %v691, %v691
      %v695 = vmul.f32 %v692, %v692
      %v696 = vmul.f32 %v690, %v693
      %v697 = vmul.f32 %v691, %v694
      %v698 = vmul.f32 %v692, %v695
      %v699 = vmul.f32 %v696, 0.044715
      %v700 = vmul.f32 %v697, 0.044715
      %v701 = vmul.f32 %v698, 0.044715
      %v702 = vadd.f32 %v690, %v699
      %v703 = vadd.f32 %v691, %v700
      %v704 = vadd.f32 %v692, %v701
      %v705 = vmul.f32 %v702, 0.7978846
      %v706 = vmul.f32 %v703, 0.7978846
      %v707 = vmul.f32 %v704, 0.7978846
      %v708 = vtanh.pop %v705
      %v709 = vtanh.pop %v706
      %v710 = vtanh.pop %v707
      %v711 = vadd.f32 %v708, 1.0
      %v712 = vadd.f32 %v709, 1.0
      %v713 = vadd.f32 %v710, 1.0
      %v714 = vmul.f32 %v711, 0.5
      %v715 = vmul.f32 %v712, 0.5
      %v716 = vmul.f32 %v713, 0.5
      %v717 = vmul.f32 %v690, %v714
      %v718 = vmul.f32 %v691, %v715
      %v719 = vmul.f32 %v692, %v716
      %v720 = vadd.f32 %v293, %v717
      %v721 = vadd.f32 %v294, %v718
      %v722 = vadd.f32 %v295, %v719
      %v723 = vld [vmem:[%s4] sm:$0x1]
      %v724 = vld [vmem:[%s5] sm:$0x1]
      %725 = vadd.xlane.f32.xlu0 %v720
      %v726 = vpop.xlane.xlu0 %725
      %727 = vadd.xlane.f32.xlu0 %v721
      %v728 = vpop.xlane.xlu0 %727
      %vm729 = vcmask 1043456
      %v730 = vsel %vm729, %v722, 0.0
      %731 = vadd.xlane.f32.xlu0 %v730
      %v732 = vpop.xlane.xlu0 %731
      %v733 = vrcp.pop 128.0
      %v734 = vmul.f32 128.0, %v733
      %v735 = vsub.f32 1.0, %v734
      %v736 = vmul.f32 %v733, %v735
      %v737 = vadd.f32 %v733, %v736
      %vm738 = vweird.f32 %v733
      %v739 = vsel %vm738, %v733, %v737
      %v740 = vmul.f32 %v726, %v739
      %v741 = vmul.f32 %v728, %v739
      %v742 = vmul.f32 %v732, %v739
      %v743 = vsub.f32 %v720, %v740
      %v744 = vsub.f32 %v721, %v741
      %v745 = vsub.f32 %v722, %v742
      %v746 = vmul.f32 %v743, %v743
      %v747 = vmul.f32 %v744, %v744
      %v748 = vmul.f32 %v745, %v745
      %749 = vadd.xlane.f32.xlu0 %v746
      %v750 = vpop.xlane.xlu0 %749
      %751 = vadd.xlane.f32.xlu0 %v747
      %v752 = vpop.xlane.xlu0 %751
      %v753 = vsel %vm729, %v748, 0.0
      %754 = vadd.xlane.f32.xlu0 %v753
      %v755 = vpop.xlane.xlu0 %754
      %v756 = vmul.f32 %v750, %v739
      %v757 = vmul.f32 %v752, %v739
      %v758 = vmul.f32 %v755, %v739
      %v759 = vadd.f32 %v756, 1e-05
      %v760 = vadd.f32 %v757, 1e-05
      %v761 = vadd.f32 %v758, 1e-05
      %v762 = vrsqrt.pop %v759
      %v763 = vmul.f32 %v762, %v759
      %v764 = vmul.f32 %v763, %v762
      %v765 = vmul.f32 0.5, %v764
      %v766 = vsub.f32 1.5, %v765
      %v767 = vmul.f32 %v762, %v766
      %vm768 = vweird.f32 %v759
      %vm769 = vweird.f32 %v762
      %vm770 = vmor %vm768, %vm769
      %v771 = vsel %vm770, %v762, %v767
      %v772 = vrsqrt.pop %v760
      %v773 = vmul.f32 %v772, %v760
      %v774 = vmul.f32 %v773, %v772
      %v775 = vmul.f32 0.5, %v774
      %v776 = vsub.f32 1.5, %v775
      %v777 = vmul.f32 %v772, %v776
      %vm778 = vweird.f32 %v760
      %vm779 = vweird.f32 %v772
      %vm780 = vmor %vm778, %vm779
      %v781 = vsel %vm780, %v772, %v777
      %v782 = vrsqrt.pop %v761
      %v783 = vmul.f32 %v782, %v761
      %v784 = vmul.f32 %v783, %v782
      %v785 = vmul.f32 0.5, %v784
      %v786 = vsub.f32 1.5, %v785
      %v787 = vmul.f32 %v782, %v786
      %vm788 = vweird.f32 %v761
      %vm789 = vweird.f32 %v782
      %vm790 = vmor %vm788, %vm789
      %v791 = vsel %vm790, %v782, %v787
      %v792 = vmul.f32 %v743, %v771
      %v793 = vmul.f32 %v744, %v781
      %v794 = vmul.f32 %v745, %v791
      %v796 = vperm.slane %v723, 0
      %v798 = vmul.f32 %v792, %v796
      %v799 = vmul.f32 %v793, %v796
      %v800 = vmul.f32 %v794, %v796
      %v802 = vperm.slane %v724, 0
      %v804 = vadd.f32 %v798, %v802
      %v805 = vadd.f32 %v799, %v802
      %v806 = vadd.f32 %v800, %v802
      %807 = vst [vmem:[%s271] sm:$0xff] %v804
      %808 = vst [vmem:[%s271 + $0x8] sm:$0xff] %v805
      %809 = vst [vmem:[%s271 + $0x10] sm:$0xf] %v806
      %p810 = scmp.lt.s32.totalorder %s17, 1
      %s811 = scalar_select %p810, %s17, 1
      %s812 = smul.addr %s811, 3
      %s813 = smul.addr %s812, 8
      %s814 = scalar_lea.vmem %s6, %s813
      // Predicated region
      $region45: #{wav2vec2_emonet_forward.14} parent=43 // pred_check
        %p815 = pneg %p171
      $region46: #{wav2vec2_emonet_forward.14} parent=43 // pred_check_branch
        %817 = sbr.rel (%p815) target = $region48
      $region47: #{wav2vec2_emonet_forward.14} parent=43 // pred_region
        _
      $region48: #{wav2vec2_emonet_forward.14} parent=43 // pred_fallthru
        _
    $region44: #{wav2vec2_emonet_forward.14} parent=5 // pred_fallthru
      _
    %p818 = scmp.le.s32.totalorder 2, %s12
    // Predicated region
    $region49: #{wav2vec2_emonet_forward.14} parent=5 // pred_check
      %p819 = pneg %p818
    $region50: #{wav2vec2_emonet_forward.14} parent=5 // pred_check_branch
      %821 = sbr.rel (%p819) target = $region52
    $region51: #{wav2vec2_emonet_forward.14} parent=5 // pred_region
      %s822 = ssub.s32 %s12, 2
      // Predicated region
      $region53: #{wav2vec2_emonet_forward.14} parent=51 // pred_check
        %p823 = pneg %p177
      $region54: #{wav2vec2_emonet_forward.14} parent=51 // pred_check_branch
        %825 = sbr.rel (%p823) target = $region56
      $region55: #{wav2vec2_emonet_forward.14} parent=51 // pred_region
        %p826 = scmp.lt.s32.totalorder %s18, 1
        %s827 = scalar_select %p826, %s18, 1
        %s828 = smul.addr %s827, 3
        %s829 = smul.addr %s828, 8
        %s830 = scalar_lea.vmem %s6, %s829
      $region56: #{wav2vec2_emonet_forward.14} parent=51 // pred_fallthru
        _
    $region52: #{wav2vec2_emonet_forward.14} parent=5 // pred_fallthru
      _
  $region6: #{wav2vec2_emonet_forward.14} parent=0 // loop_footer
    %s16 = sadd.s32 1, %s12
  $region7: #{wav2vec2_emonet_forward.14} parent=0 // loop_footer_branch
    %11 = sbr.rel target = $region3
  $region8: #{wav2vec2_emonet_forward.14} parent=0 // loop_exit
    _

// kernel: wav2vec2_emonet_forward.15
$region0: #{wav2vec2_emonet_forward.15}
  #allocation0 [shape = 'u32[]', space=smem, size = 0x4, offset = 0x4, fixed_abs, tag = 'smem constant byte address 0x4 - core index']
  #allocation1 [shape = 'u32[72,128]{1,0:T(1,128)}', space=vmem, size = 0x9000, scoped, tag = 'internal scratch']
  %s0 = inlined_call_operand.vmem [shape: f32[2,20,128], index: 0, kind: input, shape index: {}]
  %s1 = inlined_call_operand.vmem [shape: bf16[128,384], index: 1, kind: input, shape index: {}]
  %s2 = inlined_call_operand.vmem [shape: f32[1,384], index: 2, kind: input, shape index: {}]
  %s3 = inlined_call_operand.vmem [shape: f32[2,1,20], index: 3, kind: input, shape index: {}]
  %s4 = inlined_call_operand.vmem [shape: bf16[2,20,128], index: 4, kind: output, shape index: {}]
  %s5 = sld [smem:[#allocation0]]
  $region49: #{wav2vec2_emonet_forward.15} parent=0
    _
  %s7 = ssub.s32 1, %s5
  %s8 = scalar_select 0, %s7, %s5
  loop: start=0, step=1, limit=4
  $region2: #{wav2vec2_emonet_forward.15} parent=0 // loop_pre_header
    _
  $region3: #{wav2vec2_emonet_forward.15} parent=0 // loop_header
    %s10 = sphi 0, %s14
    %p11 = scmp.ge.s32.totalorder %s10, 4
    %s20 = sphi 0, %s22
    %s23 = sphi 0, %s20
    %s24 = sphi 0, %s23
    %s40 = sphi 0, %s24
    %s44 = sphi 0, %s44
    %s46 = sphi 0, %s44
    %s47 = sphi 0, %s46
    %s61 = sphi 0, %s47
    %s65 = sphi 0, %s65
    %s67 = sphi 0, %s65
    %s68 = sphi 0, %s67
    %s82 = sphi 0, %s68
    %s88 = sphi 0, %s90
    %s91 = sphi 0, %s88
    %s92 = sphi 0, %s91
    %s108 = sphi 0, %s92
    %s114 = sphi 0, %s116
    %s117 = sphi 0, %s114
    %s118 = sphi 0, %s117
    %s134 = sphi 0, %s118
  $region4: #{wav2vec2_emonet_forward.15} parent=0 // loop_header_branch
    %13 = sbr.rel (%p11) target = $region8
  $region5: #{wav2vec2_emonet_forward.15} parent=0 // loop_body
    %s15 = ssub.s32 %s10, 1
    %s16 = ssub.s32 %s10, 2
    %s17 = sadd.s32 %s10, 1
    %s18 = ssub.s32 %s10, %s17
    %p19 = scmp.eq.s32.totalorder %s18, 0
    %s21 = sadd.s32 %s20, 1
    %s22 = scalar_select %p19, %s20, %s21
    %p25 = pneg %p19
    %p26 = scmp.eq.s32.totalorder %s10, 1
    %p27 = por %p25, %p26
    %p28 = scmp.ne.s32.totalorder %s20, %s23
    %p29 = scmp.eq.s32.totalorder %s10, 0
    %p30 = por %p28, %p29
    %p31 = scmp.ne.s32.totalorder %s20, %s23
    %p32 = scmp.eq.s32.totalorder %s15, 1
    %p33 = por %p31, %p32
    %p34 = scmp.ne.s32.totalorder %s23, %s24
    %p35 = scmp.eq.s32.totalorder %s15, 0
    %p36 = por %p34, %p35
    %p37 = scmp.ne.s32.totalorder %s23, %s24
    %p38 = scmp.eq.s32.totalorder %s16, 1
    %p39 = por %p37, %p38
    %p41 = scmp.ne.s32.totalorder %s24, %s40
    %p42 = scmp.eq.s32.totalorder %s16, 0
    %p43 = por %p41, %p42
    %s45 = sadd.s32 %s44, 1
    %p48 = scmp.eq.s32.totalorder %s10, 1
    %p49 = scmp.ne.s32.totalorder %s44, %s46
    %p50 = scmp.eq.s32.totalorder %s10, 0
    %p51 = por %p49, %p50
    %p52 = scmp.ne.s32.totalorder %s44, %s46
    %p53 = scmp.eq.s32.totalorder %s15, 1
    %p54 = por %p52, %p53
    %p55 = scmp.ne.s32.totalorder %s46, %s47
    %p56 = scmp.eq.s32.totalorder %s15, 0
    %p57 = por %p55, %p56
    %p58 = scmp.ne.s32.totalorder %s46, %s47
    %p59 = scmp.eq.s32.totalorder %s16, 1
    %p60 = por %p58, %p59
    %p62 = scmp.ne.s32.totalorder %s47, %s61
    %p63 = scmp.eq.s32.totalorder %s16, 0
    %p64 = por %p62, %p63
    %s66 = sadd.s32 %s65, 1
    %p69 = scmp.eq.s32.totalorder %s10, 1
    %p70 = scmp.ne.s32.totalorder %s65, %s67
    %p71 = scmp.eq.s32.totalorder %s10, 0
    %p72 = por %p70, %p71
    %p73 = scmp.ne.s32.totalorder %s65, %s67
    %p74 = scmp.eq.s32.totalorder %s15, 1
    %p75 = por %p73, %p74
    %p76 = scmp.ne.s32.totalorder %s67, %s68
    %p77 = scmp.eq.s32.totalorder %s15, 0
    %p78 = por %p76, %p77
    %p79 = scmp.ne.s32.totalorder %s67, %s68
    %p80 = scmp.eq.s32.totalorder %s16, 1
    %p81 = por %p79, %p80
    %p83 = scmp.ne.s32.totalorder %s68, %s82
    %p84 = scmp.eq.s32.totalorder %s16, 0
    %p85 = por %p83, %p84
    %s86 = ssub.s32 %s10, %s17
    %p87 = scmp.eq.s32.totalorder %s86, 0
    %s89 = sadd.s32 %s88, 1
    %s90 = scalar_select %p87, %s88, %s89
    %p93 = pneg %p87
    %p94 = scmp.eq.s32.totalorder %s10, 1
    %p95 = por %p93, %p94
    %p96 = scmp.ne.s32.totalorder %s88, %s91
    %p97 = scmp.eq.s32.totalorder %s10, 0
    %p98 = por %p96, %p97
    %p99 = scmp.ne.s32.totalorder %s88, %s91
    %p100 = scmp.eq.s32.totalorder %s15, 1
    %p101 = por %p99, %p100
    %p102 = scmp.ne.s32.totalorder %s91, %s92
    %p103 = scmp.eq.s32.totalorder %s15, 0
    %p104 = por %p102, %p103
    %p105 = scmp.ne.s32.totalorder %s91, %s92
    %p106 = scmp.eq.s32.totalorder %s16, 1
    %p107 = por %p105, %p106
    %p109 = scmp.ne.s32.totalorder %s92, %s108
    %p110 = scmp.eq.s32.totalorder %s16, 0
    %p111 = por %p109, %p110
    %s112 = ssub.s32 %s10, %s17
    %p113 = scmp.eq.s32.totalorder %s112, 0
    %s115 = sadd.s32 %s114, 1
    %s116 = scalar_select %p113, %s114, %s115
    %p119 = pneg %p113
    %p120 = scmp.eq.s32.totalorder %s10, 1
    %p121 = por %p119, %p120
    %p122 = scmp.ne.s32.totalorder %s114, %s117
    %p123 = scmp.eq.s32.totalorder %s10, 0
    %p124 = por %p122, %p123
    %p125 = scmp.ne.s32.totalorder %s114, %s117
    %p126 = scmp.eq.s32.totalorder %s15, 1
    %p127 = por %p125, %p126
    %p128 = scmp.ne.s32.totalorder %s117, %s118
    %p129 = scmp.eq.s32.totalorder %s15, 0
    %p130 = por %p128, %p129
    %p131 = scmp.ne.s32.totalorder %s117, %s118
    %p132 = scmp.eq.s32.totalorder %s16, 1
    %p133 = por %p131, %p132
    %p135 = scmp.ne.s32.totalorder %s118, %s134
    %p136 = scmp.eq.s32.totalorder %s16, 0
    %p137 = por %p135, %p136
    %p138 = scmp.le.s32.totalorder 1, %s10
    %p139 = scmp.lt.s32.totalorder %s10, 3
    %p140 = pnand %p138, %p139
    %p141 = pneg %p140
    // Predicated region
    $region9: #{wav2vec2_emonet_forward.15} parent=5 // pred_check
      _
    $region10: #{wav2vec2_emonet_forward.15} parent=5 // pred_check_branch
      %143 = sbr.rel (%p140) target = $region12
    $region11: #{wav2vec2_emonet_forward.15} parent=5 // pred_region
      %s144 = ssub.s32 %s10, 1
      // Predicated region
      $region13: #{wav2vec2_emonet_forward.15} parent=11 // pred_check
        %p145 = pneg %p57
      $region14: #{wav2vec2_emonet_forward.15} parent=11 // pred_check_branch
        %147 = sbr.rel (%p145) target = $region16
      $region15: #{wav2vec2_emonet_forward.15} parent=11 // pred_region
        _
      $region16: #{wav2vec2_emonet_forward.15} parent=11 // pred_fallthru
        _
      // Predicated region
      $region17: #{wav2vec2_emonet_forward.15} parent=11 // pred_check
        %p148 = pneg %p78
      $region18: #{wav2vec2_emonet_forward.15} parent=11 // pred_check_branch
        %150 = sbr.rel (%p148) target = $region20
      $region19: #{wav2vec2_emonet_forward.15} parent=11 // pred_region
        _
      $region20: #{wav2vec2_emonet_forward.15} parent=11 // pred_fallthru
        _
    $region12: #{wav2vec2_emonet_forward.15} parent=5 // pred_fallthru
      _
    %p151 = scmp.lt.s32.totalorder %s10, 2
    // Predicated region
    $region21: #{wav2vec2_emonet_forward.15} parent=5 // pred_check
      %p152 = pneg %p151
    $region22: #{wav2vec2_emonet_forward.15} parent=5 // pred_check_branch
      %154 = sbr.rel (%p152) target = $region24
    $region23: #{wav2vec2_emonet_forward.15} parent=5 // pred_region
      // Predicated region
      $region25: #{wav2vec2_emonet_forward.15} parent=23 // pred_check
        %p155 = pneg %p30
      $region26: #{wav2vec2_emonet_forward.15} parent=23 // pred_check_branch
        %157 = sbr.rel (%p155) target = $region28
      $region27: #{wav2vec2_emonet_forward.15} parent=23 // pred_region
        %p158 = scmp.lt.s32.totalorder %s10, 1
        %s159 = scalar_select %p158, %s10, 1
        %s160 = smul.addr %s159, 3
        %s161 = smul.addr %s160, 8
        %s162 = scalar_lea.vmem %s0, %s161
      $region28: #{wav2vec2_emonet_forward.15} parent=23 // pred_fallthru
        _
      // Predicated region
      $region29: #{wav2vec2_emonet_forward.15} parent=23 // pred_check
        %p163 = pneg %p98
      $region30: #{wav2vec2_emonet_forward.15} parent=23 // pred_check_branch
        %165 = sbr.rel (%p163) target = $region32
      $region31: #{wav2vec2_emonet_forward.15} parent=23 // pred_region
        %p166 = scmp.lt.s32.totalorder %s10, 1
        %s167 = scalar_select %p166, %s10, 1
        %s168 = scalar_lea.vmem %s3, %s167
      $region32: #{wav2vec2_emonet_forward.15} parent=23 // pred_fallthru
        _
    $region24: #{wav2vec2_emonet_forward.15} parent=5 // pred_fallthru
      _
    %p169 = scmp.le.s32.totalorder 1, %s10
    %p170 = scmp.lt.s32.totalorder %s10, 3
    %p171 = pnand %p169, %p170
    %p172 = pneg %p171
    // Predicated region
    $region33: #{wav2vec2_emonet_forward.15} parent=5 // pred_check
      _
    $region34: #{wav2vec2_emonet_forward.15} parent=5 // pred_check_branch
      %174 = sbr.rel (%p171) target = $region36
    $region35: #{wav2vec2_emonet_forward.15} parent=5 // pred_region
      %s175 = ssub.s32 %s10, 1
      %p176 = scmp.lt.s32.totalorder %s15, 1
      %s177 = scalar_select %p176, %s15, 1
      %s178 = smul.addr %s177, 3
      %s179 = smul.addr %s178, 8
      %s180 = scalar_lea.vmem %s0, %s179
      %p181 = pneg %p36
      %p182 = pneg %p33
      %p183 = pneg %p57
      %p184 = pneg %p54
      %p185 = pneg %p78
      %p186 = pneg %p75
      %p187 = scmp.lt.s32.totalorder %s15, 1
      %s188 = scalar_select %p187, %s15, 1
      %s189 = scalar_lea.vmem %s3, %s188
      %p190 = pneg %p104
      %p191 = pneg %p101
      %p192 = pneg %p130
      %p193 = pneg %p127
      %p194 = scmp.lt.s32.totalorder %s15, 1
      %s195 = scalar_select %p194, %s15, 1
      %s196 = smul.addr %s195, 3
      %s197 = smul.addr %s196, 4
      %s198 = scalar_lea.vmem %s4, %s197
      %p199 = scmp.lt.s32.totalorder %s15, 1
      %s200 = scalar_select %p199, %s15, 1
      %s201 = smul.addr %s200, 3
      %s202 = smul.addr %s201, 8
      %s203 = scalar_lea.vmem %s0, %s202
      %p204 = scmp.lt.s32.totalorder %s15, 1
      %s205 = scalar_select %p204, %s15, 1
      %s206 = scalar_lea.vmem %s3, %s205
      %p207 = scmp.lt.s32.totalorder %s15, 1
      %s208 = scalar_select %p207, %s15, 1
      %s209 = smul.addr %s208, 3
      %s210 = smul.addr %s209, 4
      %s211 = scalar_lea.vmem %s4, %s210
      %v213 = vld [vmem:[%s203] sm:$0xff]
      %v214 = vld [vmem:[%s203 + $0x8] sm:$0xff]
      %v215 = vld [vmem:[%s203 + $0x10] sm:$0xf]
      %v216 = vpack.c.bf16 %v214, %v213
      %v217 = vpack.c.bf16 %v215, %v215
      %v218 = vld [vmem:[%s1] sm:$0xff]
      %v219 = vld [vmem:[%s1 + $0x8] sm:$0xf]
      %v220 = vld [vmem:[%s1 + $0xc] sm:$0xff]
      %v221 = vld [vmem:[%s1 + $0x14] sm:$0xf]
      %v222 = vld [vmem:[%s1 + $0x18] sm:$0xff]
      %v223 = vld [vmem:[%s1 + $0x20] sm:$0xf]
      %v224 = vld [vmem:[%s1 + $0x24] sm:$0xff]
      %v225 = vld [vmem:[%s1 + $0x2c] sm:$0xf]
      %v226 = vld [vmem:[%s1 + $0x30] sm:$0xff]
      %v227 = vld [vmem:[%s1 + $0x38] sm:$0xf]
      %v228 = vld [vmem:[%s1 + $0x3c] sm:$0xff]
      %v229 = vld [vmem:[%s1 + $0x44] sm:$0xf]
      %v230 = vld [vmem:[%s1 + $0x48] sm:$0xff]
      %v231 = vld [vmem:[%s1 + $0x50] sm:$0xf]
      %v232 = vld [vmem:[%s1 + $0x54] sm:$0xff]
      %v233 = vld [vmem:[%s1 + $0x5c] sm:$0xf]
      %v234 = vld [vmem:[%s1 + $0x60] sm:$0xff]
      %v235 = vld [vmem:[%s1 + $0x68] sm:$0xf]
      %v236 = vld [vmem:[%s1 + $0x6c] sm:$0xff]
      %v237 = vld [vmem:[%s1 + $0x74] sm:$0xf]
      %v238 = vld [vmem:[%s1 + $0x78] sm:$0xff]
      %v239 = vld [vmem:[%s1 + $0x80] sm:$0xf]
      %v240 = vld [vmem:[%s1 + $0x84] sm:$0xff]
      %v241 = vld [vmem:[%s1 + $0x8c] sm:$0xf]
      %v242 = vld [vmem:[%s1 + $0x90] sm:$0xff]
      %v243 = vld [vmem:[%s1 + $0x98] sm:$0xf]
      %v244 = vld [vmem:[%s1 + $0x9c] sm:$0xff]
      %v245 = vld [vmem:[%s1 + $0xa4] sm:$0xf]
      %v246 = vld [vmem:[%s1 + $0xa8] sm:$0xff]
      %v247 = vld [vmem:[%s1 + $0xb0] sm:$0xf]
      %v248 = vld [vmem:[%s1 + $0xb4] sm:$0xff]
      %v249 = vld [vmem:[%s1 + $0xbc] sm:$0xf]
      %v250 = vld [vmem:[%s2] sm:$0x7]
      %v252 = vperm.slane %v250, 0
      %v253 = vperm.slane %v250, 1
      %v254 = vperm.slane %v250, 2
      %v290 = vunpack.c.l.b16 %v218
      %v291 = vunpack.c.h.b16 %v218
      %v292 = vunpack.c.l.b16 %v219
      %v293 = vunpack.c.l.b16 %v220
      %v294 = vunpack.c.h.b16 %v220
      %v295 = vunpack.c.l.b16 %v221
      %v296 = vunpack.c.l.b16 %v222
      %v297 = vunpack.c.h.b16 %v222
      %v298 = vunpack.c.l.b16 %v223
      %v299 = vunpack.c.l.b16 %v224
      %v300 = vunpack.c.h.b16 %v224
      %v301 = vunpack.c.l.b16 %v225
      %v302 = vunpack.c.l.b16 %v226
      %v303 = vunpack.c.h.b16 %v226
      %v304 = vunpack.c.l.b16 %v227
      %v305 = vunpack.c.l.b16 %v228
      %v306 = vunpack.c.h.b16 %v228
      %v307 = vunpack.c.l.b16 %v229
      %v308 = vunpack.c.l.b16 %v230
      %v309 = vunpack.c.h.b16 %v230
      %v310 = vunpack.c.l.b16 %v231
      %v311 = vunpack.c.l.b16 %v232
      %v312 = vunpack.c.h.b16 %v232
      %v313 = vunpack.c.l.b16 %v233
      %v314 = vunpack.c.l.b16 %v234
      %v315 = vunpack.c.h.b16 %v234
      %v316 = vunpack.c.l.b16 %v235
      %v317 = vunpack.c.l.b16 %v236
      %v318 = vunpack.c.h.b16 %v236
      %v319 = vunpack.c.l.b16 %v237
      %v320 = vunpack.c.l.b16 %v238
      %v321 = vunpack.c.h.b16 %v238
      %v322 = vunpack.c.l.b16 %v239
      %v323 = vunpack.c.l.b16 %v240
      %v324 = vunpack.c.h.b16 %v240
      %v325 = vunpack.c.l.b16 %v241
      %v326 = vunpack.c.l.b16 %v242
      %v327 = vunpack.c.h.b16 %v242
      %v328 = vunpack.c.l.b16 %v243
      %v329 = vunpack.c.l.b16 %v244
      %v330 = vunpack.c.h.b16 %v244
      %v331 = vunpack.c.l.b16 %v245
      %v332 = vunpack.c.l.b16 %v246
      %v333 = vunpack.c.h.b16 %v246
      %v334 = vunpack.c.l.b16 %v247
      %v335 = vunpack.c.l.b16 %v248
      %v336 = vunpack.c.h.b16 %v248
      %v337 = vunpack.c.l.b16 %v249
      %v338 = vpack.c.b16 %v293, %v290
      %v339 = vpack.c.b16 %v294, %v291
      %v340 = vpack.c.b16 %v295, %v292
      %v341 = vpack.c.b16 %v299, %v296
      %v342 = vpack.c.b16 %v300, %v297
      %v343 = vpack.c.b16 %v301, %v298
      %v344 = vpack.c.b16 %v305, %v302
      %v345 = vpack.c.b16 %v306, %v303
      %v346 = vpack.c.b16 %v307, %v304
      %v347 = vpack.c.b16 %v311, %v308
      %v348 = vpack.c.b16 %v312, %v309
      %v349 = vpack.c.b16 %v313, %v310
      %v350 = vpack.c.b16 %v317, %v314
      %v351 = vpack.c.b16 %v318, %v315
      %v352 = vpack.c.b16 %v319, %v316
      %v353 = vpack.c.b16 %v323, %v320
      %v354 = vpack.c.b16 %v324, %v321
      %v355 = vpack.c.b16 %v325, %v322
      %v356 = vpack.c.b16 %v329, %v326
      %v357 = vpack.c.b16 %v330, %v327
      %v358 = vpack.c.b16 %v331, %v328
      %v359 = vpack.c.b16 %v335, %v332
      %v360 = vpack.c.b16 %v336, %v333
      %v361 = vpack.c.b16 %v337, %v334
      %386 = vmatpush.bf16.msra.mxu0 %v359
      %387 = vmatpush.bf16.msra.mxu0 %v356
      %388 = vmatpush.bf16.msra.mxu0 %v353
      %389 = vmatpush.bf16.msra.mxu0 %v350
      %390 = vmatpush.bf16.msra.mxu0 %v347
      %391 = vmatpush.bf16.msra.mxu0 %v344
      %392 = vmatpush.bf16.msra.mxu0 %v341
      %393 = vmatpush.bf16.msra.mxu0 %v338
      %394 = vmatmul.bf16.gmra.mxu0 %v216
      %v395 = vpop.f32.mrf.mxu0
      %v396 = vadd.f32 %v252, %v395
      %v397 = vpop.f32.mrf.mxu0
      %v398 = vadd.f32 %v252, %v397
      %399 = vmatmul.bf16.gmra.mxu0 %v217
      %v400 = vpop.f32.mrf.mxu0
      %v401 = vadd.f32 %v252, %v400
      %v402 = vpop.f32.mrf.mxu0
      %403 = vdwg.mxu0
      %404 = vmatpush.bf16.msra.mxu0 %v360
      %405 = vmatpush.bf16.msra.mxu0 %v357
      %406 = vmatpush.bf16.msra.mxu0 %v354
      %407 = vmatpush.bf16.msra.mxu0 %v351
      %408 = vmatpush.bf16.msra.mxu0 %v348
      %409 = vmatpush.bf16.msra.mxu0 %v345
      %410 = vmatpush.bf16.msra.mxu0 %v342
      %411 = vmatpush.bf16.msra.mxu0 %v339
      %412 = vmatmul.bf16.gmra.mxu0 %v216
      %v413 = vpop.f32.mrf.mxu0
      %v414 = vadd.f32 %v253, %v413
      %v415 = vpop.f32.mrf.mxu0
      %v416 = vadd.f32 %v253, %v415
      %417 = vmatmul.bf16.gmra.mxu0 %v217
      %v418 = vpop.f32.mrf.mxu0
      %v419 = vadd.f32 %v253, %v418
      %v420 = vpop.f32.mrf.mxu0
      %421 = vdwg.mxu0
      %422 = vmatpush.bf16.msra.mxu0 %v361
      %423 = vmatpush.bf16.msra.mxu0 %v358
      %424 = vmatpush.bf16.msra.mxu0 %v355
      %425 = vmatpush.bf16.msra.mxu0 %v352
      %426 = vmatpush.bf16.msra.mxu0 %v349
      %427 = vmatpush.bf16.msra.mxu0 %v346
      %428 = vmatpush.bf16.msra.mxu0 %v343
      %429 = vmatpush.bf16.msra.mxu0 %v340
      %430 = vmatmul.bf16.gmra.mxu0 %v216
      %v431 = vpop.f32.mrf.mxu0
      %v432 = vadd.f32 %v254, %v431
      %v433 = vpop.f32.mrf.mxu0
      %v434 = vadd.f32 %v254, %v433
      %435 = vmatmul.bf16.gmra.mxu0 %v217
      %v436 = vpop.f32.mrf.mxu0
      %v437 = vadd.f32 %v254, %v436
      %v438 = vpop.f32.mrf.mxu0
      %439 = vdwg.mxu0
      %v440 = vld [vmem:[%s206] sm:$0x1]
      %v441 = vpack.c.bf16 %v398, %v396
      %v442 = vpack.c.bf16 %v401, %v401
      %v443 = vpack.c.bf16 %v416, %v414
      %v444 = vpack.c.bf16 %v419, %v419
      %v445 = vpack.c.bf16 %v434, %v432
      %v446 = vpack.c.bf16 %v437, %v437
      %vm447 = vcmask 261120
      %v449 = vsel %vm447, %v441, 0
      %v452 = vsel %vm447, %v442, 0
      %v455 = vsel %vm447, %v443, 0
      %v458 = vsel %vm447, %v444, 0
      %460 = vmatpush.bf16.xpose.msra.mxu0 0
      %461 = vmatpush.bf16.xpose.msra.mxu0 0
      %462 = vmatpush.bf16.xpose.msra.mxu0 0
      %463 = vmatpush.bf16.xpose.msra.mxu0 0
      %464 = vmatpush.bf16.xpose.msra.mxu0 0
      %465 = vmatpush.bf16.xpose.msra.mxu0 0
      %466 = vmatpush.bf16.xpose.msra.mxu0 %v458
      %467 = vmatpush.bf16.xpose.msra.mxu0 %v455
      %468 = vmatmul.bf16.gmra.mxu0 %v449
      %v469 = vpop.f32.mrf.mxu0
      %v470 = vadd.f32 0.0, %v469
      %v471 = vpop.f32.mrf.mxu0
      %v472 = vadd.f32 0.0, %v471
      %473 = vmatmul.bf16.gmra.mxu0 %v452
      %v474 = vpop.f32.mrf.mxu0
      %v475 = vadd.f32 0.0, %v474
      %v476 = vpop.f32.mrf.mxu0
      %477 = vdwg.mxu0
      %v478 = vmul.f32 %v470, 0.17677669
      %v479 = vmul.f32 %v472, 0.17677669
      %v480 = vmul.f32 %v475, 0.17677669
      %v482 = vperm.slane %v440, 0
      %v484 = vadd.f32 %v478, %v482
      %v485 = vadd.f32 %v479, %v482
      %v486 = vadd.f32 %v480, %v482
      %vm487 = vcmask 162816
      %v488 = vsel %vm487, %v484, -inf
      %489 = vmax.xlane.f32.xlu0 %v488
      %v490 = vpop.xlane.xlu0 %489
      %v491 = vsel %vm487, %v485, -inf
      %492 = vmax.xlane.f32.xlu0 %v491
      %v493 = vpop.xlane.xlu0 %492
      %vm494 = vcmask 158720
      %v495 = vsel %vm494, %v486, -inf
      %496 = vmax.xlane.f32.xlu0 %v495
      %v497 = vpop.xlane.xlu0 %496
      %v498 = vsub.f32 %v484, %v490
      %v499 = vsub.f32 %v485, %v493
      %v500 = vsub.f32 %v486, %v497
      %v501 = vmul.f32 %v498, 1.442695
      %v502 = vpow.pop %v501
      %v503 = vmul.f32 %v499, 1.442695
      %v504 = vpow.pop %v503
      %v505 = vmul.f32 %v500, 1.442695
      %v506 = vpow.pop %v505
      %v507 = vsel %vm487, %v502, 0.0
      %508 = vadd.xlane.f32.xlu0 %v507
      %v509 = vpop.xlane.xlu0 %508
      %v510 = vsel %vm487, %v504, 0.0
      %511 = vadd.xlane.f32.xlu0 %v510
      %v512 = vpop.xlane.xlu0 %511
      %v513 = vsel %vm494, %v506, 0.0
      %514 = vadd.xlane.f32.xlu0 %v513
      %v515 = vpop.xlane.xlu0 %514
      %v516 = vrcp.pop %v509
      %v517 = vmul.f32 %v509, %v516
      %v518 = vsub.f32 1.0, %v517
      %v519 = vmul.f32 %v516, %v518
      %v520 = vadd.f32 %v516, %v519
      %vm521 = vweird.f32 %v509
      %vm522 = vweird.f32 %v516
      %vm523 = vmor %vm521, %vm522
      %v524 = vsel %vm523, %v516, %v520
      %v525 = vand.u32 2147483647, %v509
      %vm526 = vcmp.eq.f32.partialorder %v525, 8.507059e+37
      %v527 = vand.u32 %v509, 2147483648
      %v528 = vor.u32 1.1754944e-38, %v527
      %v529 = vsel %vm526, %v528, %v524
      %v530 = vmul.f32 %v502, %v529
      %v531 = vrcp.pop %v512
      %v532 = vmul.f32 %v512, %v531
      %v533 = vsub.f32 1.0, %v532
      %v534 = vmul.f32 %v531, %v533
      %v535 = vadd.f32 %v531, %v534
      %vm536 = vweird.f32 %v512
      %vm537 = vweird.f32 %v531
      %vm538 = vmor %vm536, %vm537
      %v539 = vsel %vm538, %v531, %v535
      %v540 = vand.u32 2147483647, %v512
      %vm541 = vcmp.eq.f32.partialorder %v540, 8.507059e+37
      %v542 = vand.u32 %v512, 2147483648
      %v543 = vor.u32 1.1754944e-38, %v542
      %v544 = vsel %vm541, %v543, %v539
      %v545 = vmul.f32 %v504, %v544
      %v546 = vrcp.pop %v515
      %v547 = vmul.f32 %v515, %v546
      %v548 = vsub.f32 1.0, %v547
      %v549 = vmul.f32 %v546, %v548
      %v550 = vadd.f32 %v546, %v549
      %vm551 = vweird.f32 %v515
      %vm552 = vweird.f32 %v546
      %vm553 = vmor %vm551, %vm552
      %v554 = vsel %vm553, %v546, %v550
      %v555 = vand.u32 2147483647, %v515
      %vm556 = vcmp.eq.f32.partialorder %v555, 8.507059e+37
      %v557 = vand.u32 %v515, 2147483648
      %v558 = vor.u32 1.1754944e-38, %v557
      %v559 = vsel %vm556, %v558, %v554
      %v560 = vmul.f32 %v506, %v559
      %v561 = vpack.c.bf16 %v545, %v530
      %v562 = vpack.c.bf16 %v560, %v560
      %v564 = vsel %vm487, %v561, 0
      %v567 = vsel %vm487, %v562, 0
      %vm569 = vcmask 1041408
      %v571 = vsel %vm569, %v446, 0
      %573 = vmatpush.bf16.msra.mxu0 0
      %574 = vmatpush.bf16.msra.mxu0 0
      %575 = vmatpush.bf16.msra.mxu0 0
      %576 = vmatpush.bf16.msra.mxu0 0
      %577 = vmatpush.bf16.msra.mxu0 0
      %578 = vmatpush.bf16.msra.mxu0 0
      %579 = vmatpush.bf16.msra.mxu0 %v571
      %580 = vmatpush.bf16.msra.mxu0 %v445
      %581 = vmatmul.bf16.gmra.mxu0 %v564
      %v582 = vpop.f32.mrf.mxu0
      %v583 = vadd.f32 0.0, %v582
      %v584 = vpop.f32.mrf.mxu0
      %v585 = vadd.f32 0.0, %v584
      %586 = vmatmul.bf16.gmra.mxu0 %v567
      %v587 = vpop.f32.mrf.mxu0
      %v588 = vadd.f32 0.0, %v587
      %v589 = vpop.f32.mrf.mxu0
      %590 = vdwg.mxu0
      %v591 = vpack.c.bf16 %v583, %v583
      %v592 = vpack.c.bf16 %v585, %v585
      %v593 = vpack.c.bf16 %v588, %v588
      %vm594 = vcmask 257024
      %595 = vst.msk [vmem:[%s211] sm:$0xf] %vm594, %v591
      %596 = vst.msk [vmem:[%s211 + $0x4] sm:$0xf] %vm594, %v592
      %vm597 = vcmask 254976
      %598 = vst.msk [vmem:[%s211 + $0x8] sm:$0x3] %vm597, %v593
      %601 = vrot.lane.b32.xlu0 %v441, 96
      %v602 = vpop.permute.xlu0 %601
      %603 = vrot.lane.b32.xlu0 %v442, 96
      %v604 = vpop.permute.xlu0 %603
      %607 = vrot.lane.b32.xlu0 %v443, 96
      %v608 = vpop.permute.xlu0 %607
      %609 = vrot.lane.b32.xlu0 %v444, 96
      %v610 = vpop.permute.xlu0 %609
      %v612 = vsel %vm447, %v602, 0
      %v615 = vsel %vm447, %v604, 0
      %v618 = vsel %vm447, %v608, 0
      %v621 = vsel %vm447, %v610, 0
      %623 = vmatpush.bf16.xpose.msra.mxu0 0
      %624 = vmatpush.bf16.xpose.msra.mxu0 0
      %625 = vmatpush.bf16.xpose.msra.mxu0 0
      %626 = vmatpush.bf16.xpose.msra.mxu0 0
      %627 = vmatpush.bf16.xpose.msra.mxu0 0
      %628 = vmatpush.bf16.xpose.msra.mxu0 0
      %629 = vmatpush.bf16.xpose.msra.mxu0 %v621
      %630 = vmatpush.bf16.xpose.msra.mxu0 %v618
      %631 = vmatmul.bf16.gmra.mxu0 %v612
      %v632 = vpop.f32.mrf.mxu0
      %v633 = vadd.f32 0.0, %v632
      %v634 = vpop.f32.mrf.mxu0
      %v635 = vadd.f32 0.0, %v634
      %636 = vmatmul.bf16.gmra.mxu0 %v615
      %v637 = vpop.f32.mrf.mxu0
      %v638 = vadd.f32 0.0, %v637
      %v639 = vpop.f32.mrf.mxu0
      %640 = vdwg.mxu0
      %v641 = vmul.f32 %v633, 0.17677669
      %v642 = vmul.f32 %v635, 0.17677669
      %v643 = vmul.f32 %v638, 0.17677669
      %v644 = vadd.f32 %v641, %v482
      %v645 = vadd.f32 %v642, %v482
      %v646 = vadd.f32 %v643, %v482
      %v647 = vsel %vm487, %v644, -inf
      %648 = vmax.xlane.f32.xlu0 %v647
      %v649 = vpop.xlane.xlu0 %648
      %v650 = vsel %vm487, %v645, -inf
      %651 = vmax.xlane.f32.xlu0 %v650
      %v652 = vpop.xlane.xlu0 %651
      %v653 = vsel %vm494, %v646, -inf
      %654 = vmax.xlane.f32.xlu0 %v653
      %v655 = vpop.xlane.xlu0 %654
      %v656 = vsub.f32 %v644, %v649
      %v657 = vsub.f32 %v645, %v652
      %v658 = vsub.f32 %v646, %v655
      %v659 = vmul.f32 %v656, 1.442695
      %v660 = vpow.pop %v659
      %v661 = vmul.f32 %v657, 1.442695
      %v662 = vpow.pop %v661
      %v663 = vmul.f32 %v658, 1.442695
      %v664 = vpow.pop %v663
      %v665 = vsel %vm487, %v660, 0.0
      %666 = vadd.xlane.f32.xlu0 %v665
      %v667 = vpop.xlane.xlu0 %666
      %v668 = vsel %vm487, %v662, 0.0
      %669 = vadd.xlane.f32.xlu0 %v668
      %v670 = vpop.xlane.xlu0 %669
      %v671 = vsel %vm494, %v664, 0.0
      %672 = vadd.xlane.f32.xlu0 %v671
      %v673 = vpop.xlane.xlu0 %672
      %v674 = vrcp.pop %v667
      %v675 = vmul.f32 %v667, %v674
      %v676 = vsub.f32 1.0, %v675
      %v677 = vmul.f32 %v674, %v676
      %v678 = vadd.f32 %v674, %v677
      %vm679 = vweird.f32 %v667
      %vm680 = vweird.f32 %v674
      %vm681 = vmor %vm679, %vm680
      %v682 = vsel %vm681, %v674, %v678
      %v683 = vand.u32 2147483647, %v667
      %vm684 = vcmp.eq.f32.partialorder %v683, 8.507059e+37
      %v685 = vand.u32 %v667, 2147483648
      %v686 = vor.u32 1.1754944e-38, %v685
      %v687 = vsel %vm684, %v686, %v682
      %v688 = vmul.f32 %v660, %v687
      %v689 = vrcp.pop %v670
      %v690 = vmul.f32 %v670, %v689
      %v691 = vsub.f32 1.0, %v690
      %v692 = vmul.f32 %v689, %v691
      %v693 = vadd.f32 %v689, %v692
      %vm694 = vweird.f32 %v670
      %vm695 = vweird.f32 %v689
      %vm696 = vmor %vm694, %vm695
      %v697 = vsel %vm696, %v689, %v693
      %v698 = vand.u32 2147483647, %v670
      %vm699 = vcmp.eq.f32.partialorder %v698, 8.507059e+37
      %v700 = vand.u32 %v670, 2147483648
      %v701 = vor.u32 1.1754944e-38, %v700
      %v702 = vsel %vm699, %v701, %v697
      %v703 = vmul.f32 %v662, %v702
      %v704 = vrcp.pop %v673
      %v705 = vmul.f32 %v673, %v704
      %v706 = vsub.f32 1.0, %v705
      %v707 = vmul.f32 %v704, %v706
      %v708 = vadd.f32 %v704, %v707
      %vm709 = vweird.f32 %v673
      %vm710 = vweird.f32 %v704
      %vm711 = vmor %vm709, %vm710
      %v712 = vsel %vm711, %v704, %v708
      %v713 = vand.u32 2147483647, %v673
      %vm714 = vcmp.eq.f32.partialorder %v713, 8.507059e+37
      %v715 = vand.u32 %v673, 2147483648
      %v716 = vor.u32 1.1754944e-38, %v715
      %v717 = vsel %vm714, %v716, %v712
      %v718 = vmul.f32 %v664, %v717
      %v719 = vpack.c.bf16 %v703, %v688
      %v720 = vpack.c.bf16 %v718, %v718
      %723 = vrot.lane.b32.xlu0 %v445, 96
      %v724 = vpop.permute.xlu0 %723
      %725 = vrot.lane.b32.xlu0 %v446, 96
      %v726 = vpop.permute.xlu0 %725
      %v729 = vsel %vm487, %v719, 0
      %v732 = vsel %vm487, %v720, 0
      %v735 = vsel %vm569, %v726, 0
      %737 = vmatpush.bf16.msra.mxu0 0
      %738 = vmatpush.bf16.msra.mxu0 0
      %739 = vmatpush.bf16.msra.mxu0 0
      %740 = vmatpush.bf16.msra.mxu0 0
      %741 = vmatpush.bf16.msra.mxu0 0
      %742 = vmatpush.bf16.msra.mxu0 0
      %743 = vmatpush.bf16.msra.mxu0 %v735
      %744 = vmatpush.bf16.msra.mxu0 %v724
      %745 = vmatmul.bf16.gmra.mxu0 %v729
      %v746 = vpop.f32.mrf.mxu0
      %v747 = vadd.f32 0.0, %v746
      %v748 = vpop.f32.mrf.mxu0
      %v749 = vadd.f32 0.0, %v748
      %750 = vmatmul.bf16.gmra.mxu0 %v732
      %v751 = vpop.f32.mrf.mxu0
      %v752 = vadd.f32 0.0, %v751
      %v753 = vpop.f32.mrf.mxu0
      %754 = vdwg.mxu0
      %v755 = vpack.c.bf16 %v747, %v747
      %v756 = vpack.c.bf16 %v749, %v749
      %v757 = vpack.c.bf16 %v752, %v752
      %761 = vrot.lane.b32.xlu0 %v755, 32
      %v762 = vpop.permute.xlu0 %761
      %763 = vrot.lane.b32.xlu0 %v756, 32
      %v764 = vpop.permute.xlu0 %763
      %765 = vrot.lane.b32.xlu0 %v757, 32
      %v766 = vpop.permute.xlu0 %765
      %vm770 = vcmask 519424
      %771 = vst.msk [vmem:[%s211] sm:$0xf] %vm770, %v762
      %772 = vst.msk [vmem:[%s211 + $0x4] sm:$0xf] %vm770, %v764
      %vm773 = vcmask 517376
      %774 = vst.msk [vmem:[%s211 + $0x8] sm:$0x3] %vm773, %v766
      %775 = vrot.lane.b32.xlu0 %v441, 64
      %v776 = vpop.permute.xlu0 %775
      %777 = vrot.lane.b32.xlu0 %v442, 64
      %v778 = vpop.permute.xlu0 %777
      %779 = vrot.lane.b32.xlu0 %v443, 64
      %v780 = vpop.permute.xlu0 %779
      %781 = vrot.lane.b32.xlu0 %v444, 64
      %v782 = vpop.permute.xlu0 %781
      %v784 = vsel %vm447, %v776, 0
      %v787 = vsel %vm447, %v778, 0
      %v790 = vsel %vm447, %v780, 0
      %v793 = vsel %vm447, %v782, 0
      %795 = vmatpush.bf16.xpose.msra.mxu0 0
      %796 = vmatpush.bf16.xpose.msra.mxu0 0
      %797 = vmatpush.bf16.xpose.msra.mxu0 0
      %798 = vmatpush.bf16.xpose.msra.mxu0 0
      %799 = vmatpush.bf16.xpose.msra.mxu0 0
      %800 = vmatpush.bf16.xpose.msra.mxu0 0
      %801 = vmatpush.bf16.xpose.msra.mxu0 %v793
      %802 = vmatpush.bf16.xpose.msra.mxu0 %v790
      %803 = vmatmul.bf16.gmra.mxu0 %v784
      %v804 = vpop.f32.mrf.mxu0
      %v805 = vadd.f32 0.0, %v804
      %v806 = vpop.f32.mrf.mxu0
      %v807 = vadd.f32 0.0, %v806
      %808 = vmatmul.bf16.gmra.mxu0 %v787
      %v809 = vpop.f32.mrf.mxu0
      %v810 = vadd.f32 0.0, %v809
      %v811 = vpop.f32.mrf.mxu0
      %812 = vdwg.mxu0
      %v813 = vmul.f32 %v805, 0.17677669
      %v814 = vmul.f32 %v807, 0.17677669
      %v815 = vmul.f32 %v810, 0.17677669
      %v816 = vadd.f32 %v813, %v482
      %v817 = vadd.f32 %v814, %v482
      %v818 = vadd.f32 %v815, %v482
      %v819 = vsel %vm487, %v816, -inf
      %820 = vmax.xlane.f32.xlu0 %v819
      %v821 = vpop.xlane.xlu0 %820
      %v822 = vsel %vm487, %v817, -inf
      %823 = vmax.xlane.f32.xlu0 %v822
      %v824 = vpop.xlane.xlu0 %823
      %v825 = vsel %vm494, %v818, -inf
      %826 = vmax.xlane.f32.xlu0 %v825
      %v827 = vpop.xlane.xlu0 %826
      %v828 = vsub.f32 %v816, %v821
      %v829 = vsub.f32 %v817, %v824
      %v830 = vsub.f32 %v818, %v827
      %v831 = vmul.f32 %v828, 1.442695
      %v832 = vpow.pop %v831
      %v833 = vmul.f32 %v829, 1.442695
      %v834 = vpow.pop %v833
      %v835 = vmul.f32 %v830, 1.442695
      %v836 = vpow.pop %v835
      %v837 = vsel %vm487, %v832, 0.0
      %838 = vadd.xlane.f32.xlu0 %v837
      %v839 = vpop.xlane.xlu0 %838
      %v840 = vsel %vm487, %v834, 0.0
      %841 = vadd.xlane.f32.xlu0 %v840
      %v842 = vpop.xlane.xlu0 %841
      %v843 = vsel %vm494, %v836, 0.0
      %844 = vadd.xlane.f32.xlu0 %v843
      %v845 = vpop.xlane.xlu0 %844
      %v846 = vrcp.pop %v839
      %v847 = vmul.f32 %v839, %v846
      %v848 = vsub.f32 1.0, %v847
      %v849 = vmul.f32 %v846, %v848
      %v850 = vadd.f32 %v846, %v849
      %vm851 = vweird.f32 %v839
      %vm852 = vweird.f32 %v846
      %vm853 = vmor %vm851, %vm852
      %v854 = vsel %vm853, %v846, %v850
      %v855 = vand.u32 2147483647, %v839
      %vm856 = vcmp.eq.f32.partialorder %v855, 8.507059e+37
      %v857 = vand.u32 %v839, 2147483648
      %v858 = vor.u32 1.1754944e-38, %v857
      %v859 = vsel %vm856, %v858, %v854
      %v860 = vmul.f32 %v832, %v859
      %v861 = vrcp.pop %v842
      %v862 = vmul.f32 %v842, %v861
      %v863 = vsub.f32 1.0, %v862
      %v864 = vmul.f32 %v861, %v863
      %v865 = vadd.f32 %v861, %v864
      %vm866 = vweird.f32 %v842
      %vm867 = vweird.f32 %v861
      %vm868 = vmor %vm866, %vm867
      %v869 = vsel %vm868, %v861, %v865
      %v870 = vand.u32 2147483647, %v842
      %vm871 = vcmp.eq.f32.partialorder %v870, 8.507059e+37
      %v872 = vand.u32 %v842, 2147483648
      %v873 = vor.u32 1.1754944e-38, %v872
      %v874 = vsel %vm871, %v873, %v869
      %v875 = vmul.f32 %v834, %v874
      %v876 = vrcp.pop %v845
      %v877 = vmul.f32 %v845, %v876
      %v878 = vsub.f32 1.0, %v877
      %v879 = vmul.f32 %v876, %v878
      %v880 = vadd.f32 %v876, %v879
      %vm881 = vweird.f32 %v845
      %vm882 = vweird.f32 %v876
      %vm883 = vmor %vm881, %vm882
      %v884 = vsel %vm883, %v876, %v880
      %v885 = vand.u32 2147483647, %v845
      %vm886 = vcmp.eq.f32.partialorder %v885, 8.507059e+37
      %v887 = vand.u32 %v845, 2147483648
      %v888 = vor.u32 1.1754944e-38, %v887
      %v889 = vsel %vm886, %v888, %v884
      %v890 = vmul.f32 %v836, %v889
      %v891 = vpack.c.bf16 %v875, %v860
      %v892 = vpack.c.bf16 %v890, %v890
      %893 = vrot.lane.b32.xlu0 %v445, 64
      %v894 = vpop.permute.xlu0 %893
      %895 = vrot.lane.b32.xlu0 %v446, 64
      %v896 = vpop.permute.xlu0 %895
      %v899 = vsel %vm487, %v891, 0
      %v902 = vsel %vm487, %v892, 0
      %v905 = vsel %vm569, %v896, 0
      %907 = vmatpush.bf16.msra.mxu0 0
      %908 = vmatpush.bf16.msra.mxu0 0
      %909 = vmatpush.bf16.msra.mxu0 0
      %910 = vmatpush.bf16.msra.mxu0 0
      %911 = vmatpush.bf16.msra.mxu0 0
      %912 = vmatpush.bf16.msra.mxu0 0
      %913 = vmatpush.bf16.msra.mxu0 %v905
      %914 = vmatpush.bf16.msra.mxu0 %v894
      %915 = vmatmul.bf16.gmra.mxu0 %v899
      %v916 = vpop.f32.mrf.mxu0
      %v917 = vadd.f32 0.0, %v916
      %v918 = vpop.f32.mrf.mxu0
      %v919 = vadd.f32 0.0, %v918
      %920 = vmatmul.bf16.gmra.mxu0 %v902
      %v921 = vpop.f32.mrf.mxu0
      %v922 = vadd.f32 0.0, %v921
      %v923 = vpop.f32.mrf.mxu0
      %924 = vdwg.mxu0
      %v925 = vpack.c.bf16 %v917, %v917
      %v926 = vpack.c.bf16 %v919, %v919
      %v927 = vpack.c.bf16 %v922, %v922
      %931 = vrot.lane.b32.xlu0 %v925, 64
      %v932 = vpop.permute.xlu0 %931
      %933 = vrot.lane.b32.xlu0 %v926, 64
      %v934 = vpop.permute.xlu0 %933
      %935 = vrot.lane.b32.xlu0 %v927, 64
      %v936 = vpop.permute.xlu0 %935
      %vm940 = vcmask 781824
      %941 = vst.msk [vmem:[%s211] sm:$0xf] %vm940, %v932
      %942 = vst.msk [vmem:[%s211 + $0x4] sm:$0xf] %vm940, %v934
      %vm943 = vcmask 779776
      %944 = vst.msk [vmem:[%s211 + $0x8] sm:$0x3] %vm943, %v936
      %945 = vrot.lane.b32.xlu0 %v441, 32
      %v946 = vpop.permute.xlu0 %945
      %947 = vrot.lane.b32.xlu0 %v442, 32
      %v948 = vpop.permute.xlu0 %947
      %949 = vrot.lane.b32.xlu0 %v443, 32
      %v950 = vpop.permute.xlu0 %949
      %951 = vrot.lane.b32.xlu0 %v444, 32
      %v952 = vpop.permute.xlu0 %951
      %v954 = vsel %vm447, %v946, 0
      %v957 = vsel %vm447, %v948, 0
      %v960 = vsel %vm447, %v950, 0
      %v963 = vsel %vm447, %v952, 0
      %965 = vmatpush.bf16.xpose.msra.mxu0 0
      %966 = vmatpush.bf16.xpose.msra.mxu0 0
      %967 = vmatpush.bf16.xpose.msra.mxu0 0
      %968 = vmatpush.bf16.xpose.msra.mxu0 0
      %969 = vmatpush.bf16.xpose.msra.mxu0 0
      %970 = vmatpush.bf16.xpose.msra.mxu0 0
      %971 = vmatpush.bf16.xpose.msra.mxu0 %v963
      %972 = vmatpush.bf16.xpose.msra.mxu0 %v960
      %973 = vmatmul.bf16.gmra.mxu0 %v954
      %v974 = vpop.f32.mrf.mxu0
      %v975 = vadd.f32 0.0, %v974
      %v976 = vpop.f32.mrf.mxu0
      %v977 = vadd.f32 0.0, %v976
      %978 = vmatmul.bf16.gmra.mxu0 %v957
      %v979 = vpop.f32.mrf.mxu0
      %v980 = vadd.f32 0.0, %v979
      %v981 = vpop.f32.mrf.mxu0
      %982 = vdwg.mxu0
      %v983 = vmul.f32 %v975, 0.17677669
      %v984 = vmul.f32 %v977, 0.17677669
      %v985 = vmul.f32 %v980, 0.17677669
      %v986 = vadd.f32 %v983, %v482
      %v987 = vadd.f32 %v984, %v482
      %v988 = vadd.f32 %v985, %v482
      %v989 = vsel %vm487, %v986, -inf
      %990 = vmax.xlane.f32.xlu0 %v989
      %v991 = vpop.xlane.xlu0 %990
      %v992 = vsel %vm487, %v987, -inf
      %993 = vmax.xlane.f32.xlu0 %v992
      %v994 = vpop.xlane.xlu0 %993
      %v995 = vsel %vm494, %v988, -inf
      %996 = vmax.xlane.f32.xlu0 %v995
      %v997 = vpop.xlane.xlu0 %996
      %v998 = vsub.f32 %v986, %v991
      %v999 = vsub.f32 %v987, %v994
      %v1000 = vsub.f32 %v988, %v997
      %v1001 = vmul.f32 %v998, 1.442695
      %v1002 = vpow.pop %v1001
      %v1003 = vmul.f32 %v999, 1.442695
      %v1004 = vpow.pop %v1003
      %v1005 = vmul.f32 %v1000, 1.442695
      %v1006 = vpow.pop %v1005
      %v1007 = vsel %vm487, %v1002, 0.0
      %1008 = vadd.xlane.f32.xlu0 %v1007
      %v1009 = vpop.xlane.xlu0 %1008
      %v1010 = vsel %vm487, %v1004, 0.0
      %1011 = vadd.xlane.f32.xlu0 %v1010
      %v1012 = vpop.xlane.xlu0 %1011
      %v1013 = vsel %vm494, %v1006, 0.0
      %1014 = vadd.xlane.f32.xlu0 %v1013
      %v1015 = vpop.xlane.xlu0 %1014
      %v1016 = vrcp.pop %v1009
      %v1017 = vmul.f32 %v1009, %v1016
      %v1018 = vsub.f32 1.0, %v1017
      %v1019 = vmul.f32 %v1016, %v1018
      %v1020 = vadd.f32 %v1016, %v1019
      %vm1021 = vweird.f32 %v1009
      %vm1022 = vweird.f32 %v1016
      %vm1023 = vmor %vm1021, %vm1022
      %v1024 = vsel %vm1023, %v1016, %v1020
      %v1025 = vand.u32 2147483647, %v1009
      %vm1026 = vcmp.eq.f32.partialorder %v1025, 8.507059e+37
      %v1027 = vand.u32 %v1009, 2147483648
      %v1028 = vor.u32 1.1754944e-38, %v1027
      %v1029 = vsel %vm1026, %v1028, %v1024
      %v1030 = vmul.f32 %v1002, %v1029
      %v1031 = vrcp.pop %v1012
      %v1032 = vmul.f32 %v1012, %v1031
      %v1033 = vsub.f32 1.0, %v1032
      %v1034 = vmul.f32 %v1031, %v1033
      %v1035 = vadd.f32 %v1031, %v1034
      %vm1036 = vweird.f32 %v1012
      %vm1037 = vweird.f32 %v1031
      %vm1038 = vmor %vm1036, %vm1037
      %v1039 = vsel %vm1038, %v1031, %v1035
      %v1040 = vand.u32 2147483647, %v1012
      %vm1041 = vcmp.eq.f32.partialorder %v1040, 8.507059e+37
      %v1042 = vand.u32 %v1012, 2147483648
      %v1043 = vor.u32 1.1754944e-38, %v1042
      %v1044 = vsel %vm1041, %v1043, %v1039
      %v1045 = vmul.f32 %v1004, %v1044
      %v1046 = vrcp.pop %v1015
      %v1047 = vmul.f32 %v1015, %v1046
      %v1048 = vsub.f32 1.0, %v1047
      %v1049 = vmul.f32 %v1046, %v1048
      %v1050 = vadd.f32 %v1046, %v1049
      %vm1051 = vweird.f32 %v1015
      %vm1052 = vweird.f32 %v1046
      %vm1053 = vmor %vm1051, %vm1052
      %v1054 = vsel %vm1053, %v1046, %v1050
      %v1055 = vand.u32 2147483647, %v1015
      %vm1056 = vcmp.eq.f32.partialorder %v1055, 8.507059e+37
      %v1057 = vand.u32 %v1015, 2147483648
      %v1058 = vor.u32 1.1754944e-38, %v1057
      %v1059 = vsel %vm1056, %v1058, %v1054
      %v1060 = vmul.f32 %v1006, %v1059
      %v1061 = vpack.c.bf16 %v1045, %v1030
      %v1062 = vpack.c.bf16 %v1060, %v1060
      %1063 = vrot.lane.b32.xlu0 %v445, 32
      %v1064 = vpop.permute.xlu0 %1063
      %1065 = vrot.lane.b32.xlu0 %v446, 32
      %v1066 = vpop.permute.xlu0 %1065
      %v1069 = vsel %vm487, %v1061, 0
      %v1072 = vsel %vm487, %v1062, 0
      %v1075 = vsel %vm569, %v1066, 0
      %1077 = vmatpush.bf16.msra.mxu0 0
      %1078 = vmatpush.bf16.msra.mxu0 0
      %1079 = vmatpush.bf16.msra.mxu0 0
      %1080 = vmatpush.bf16.msra.mxu0 0
      %1081 = vmatpush.bf16.msra.mxu0 0
      %1082 = vmatpush.bf16.msra.mxu0 0
      %1083 = vmatpush.bf16.msra.mxu0 %v1075
      %1084 = vmatpush.bf16.msra.mxu0 %v1064
      %1085 = vmatmul.bf16.gmra.mxu0 %v1069
      %v1086 = vpop.f32.mrf.mxu0
      %v1087 = vadd.f32 0.0, %v1086
      %v1088 = vpop.f32.mrf.mxu0
      %v1089 = vadd.f32 0.0, %v1088
      %1090 = vmatmul.bf16.gmra.mxu0 %v1072
      %v1091 = vpop.f32.mrf.mxu0
      %v1092 = vadd.f32 0.0, %v1091
      %v1093 = vpop.f32.mrf.mxu0
      %1094 = vdwg.mxu0
      %v1095 = vpack.c.bf16 %v1087, %v1087
      %v1096 = vpack.c.bf16 %v1089, %v1089
      %v1097 = vpack.c.bf16 %v1092, %v1092
      %1101 = vrot.lane.b32.xlu0 %v1095, 96
      %v1102 = vpop.permute.xlu0 %1101
      %1103 = vrot.lane.b32.xlu0 %v1096, 96
      %v1104 = vpop.permute.xlu0 %1103
      %1105 = vrot.lane.b32.xlu0 %v1097, 96
      %v1106 = vpop.permute.xlu0 %1105
      %vm1110 = vcmask 1044224
      %1111 = vst.msk [vmem:[%s211] sm:$0xf] %vm1110, %v1102
      %1112 = vst.msk [vmem:[%s211 + $0x4] sm:$0xf] %vm1110, %v1104
      %vm1113 = vcmask 1042176
      %1114 = vst.msk [vmem:[%s211 + $0x8] sm:$0x3] %vm1113, %v1106
      %p1115 = scmp.lt.s32.totalorder %s15, 1
      %s1116 = scalar_select %p1115, %s15, 1
      %s1117 = smul.addr %s1116, 3
      %s1118 = smul.addr %s1117, 4
      %s1119 = scalar_lea.vmem %s4, %s1118
      // Predicated region
      $region37: #{wav2vec2_emonet_forward.15} parent=35 // pred_check
        %p1120 = pneg %p127
      $region38: #{wav2vec2_emonet_forward.15} parent=35 // pred_check_branch
        %1122 = sbr.rel (%p1120) target = $region40
      $region39: #{wav2vec2_emonet_forward.15} parent=35 // pred_region
        _
      $region40: #{wav2vec2_emonet_forward.15} parent=35 // pred_fallthru
        _
    $region36: #{wav2vec2_emonet_forward.15} parent=5 // pred_fallthru
      _
    %p1123 = scmp.le.s32.totalorder 2, %s10
    // Predicated region
    $region41: #{wav2vec2_emonet_forward.15} parent=5 // pred_check
      %p1124 = pneg %p1123
    $region42: #{wav2vec2_emonet_forward.15} parent=5 // pred_check_branch
      %1126 = sbr.rel (%p1124) target = $region44
    $region43: #{wav2vec2_emonet_forward.15} parent=5 // pred_region
      %s1127 = ssub.s32 %s10, 2
      // Predicated region
      $region45: #{wav2vec2_emonet_forward.15} parent=43 // pred_check
        %p1128 = pneg %p133
      $region46: #{wav2vec2_emonet_forward.15} parent=43 // pred_check_branch
        %1130 = sbr.rel (%p1128) target = $region48
      $region47: #{wav2vec2_emonet_forward.15} parent=43 // pred_region
        %p1131 = scmp.lt.s32.totalorder %s16, 1
        %s1132 = scalar_select %p1131, %s16, 1
        %s1133 = smul.addr %s1132, 3
        %s1134 = smul.addr %s1133, 4
        %s1135 = scalar_lea.vmem %s4, %s1134
      $region48: #{wav2vec2_emonet_forward.15} parent=43 // pred_fallthru
        _
    $region44: #{wav2vec2_emonet_forward.15} parent=5 // pred_fallthru
      _
  $region6: #{wav2vec2_emonet_forward.15} parent=0 // loop_footer
    %s14 = sadd.s32 1, %s10
  $region7: #{wav2vec2_emonet_forward.15} parent=0 // loop_footer_branch
    %9 = sbr.rel target = $region3
  $region8: #{wav2vec2_emonet_forward.15} parent=0 // loop_exit
    _

// kernel: wav2vec2_emonet_forward.16
$region0: #{wav2vec2_emonet_forward.16}
  #allocation0 [shape = 'u32[]', space=smem, size = 0x4, offset = 0x4, fixed_abs, tag = 'smem constant byte address 0x4 - core index']
  #allocation1 [shape = 'u32[72,128]{1,0:T(1,128)}', space=vmem, size = 0x9000, scoped, tag = 'internal scratch']
  %s0 = inlined_call_operand.vmem [shape: f32[40,128], index: 0, kind: input, shape index: {}]
  %s1 = inlined_call_operand.vmem [shape: bf16[40,128], index: 1, kind: input, shape index: {}]
  %s2 = inlined_call_operand.vmem [shape: bf16[128,128], index: 2, kind: input, shape index: {}]
  %s3 = inlined_call_operand.vmem [shape: f32[1,128], index: 3, kind: input, shape index: {}]
  %s4 = inlined_call_operand.vmem [shape: f32[1,128], index: 4, kind: input, shape index: {}]
  %s5 = inlined_call_operand.vmem [shape: f32[1,128], index: 5, kind: input, shape index: {}]
  %s6 = inlined_call_operand.vmem [shape: bf16[128,256], index: 6, kind: input, shape index: {}]
  %s7 = inlined_call_operand.vmem [shape: f32[1,256], index: 7, kind: input, shape index: {}]
  %s8 = inlined_call_operand.vmem [shape: bf16[256,128], index: 8, kind: input, shape index: {}]
  %s9 = inlined_call_operand.vmem [shape: f32[1,128], index: 9, kind: input, shape index: {}]
  %s10 = inlined_call_operand.vmem [shape: f32[1,128], index: 10, kind: input, shape index: {}]
  %s11 = inlined_call_operand.vmem [shape: f32[1,128], index: 11, kind: input, shape index: {}]
  %s12 = inlined_call_operand.vmem [shape: f32[40,128], index: 12, kind: output, shape index: {}]
  %s13 = sld [smem:[#allocation0]]
  $region58: #{wav2vec2_emonet_forward.16} parent=0
    _
  %s15 = ssub.s32 1, %s13
  %s16 = scalar_select 0, %s15, %s13
  // Predicated region
  $region2: #{wav2vec2_emonet_forward.16} parent=0 // pred_check
    _
  $region3: #{wav2vec2_emonet_forward.16} parent=0 // pred_check_branch
    %18 = sbr.rel (0) target = $region5
  $region4: #{wav2vec2_emonet_forward.16} parent=0 // pred_region
    _
  $region5: #{wav2vec2_emonet_forward.16} parent=0 // pred_fallthru
    _
  // Predicated region
  $region6: #{wav2vec2_emonet_forward.16} parent=0 // pred_check
    _
  $region7: #{wav2vec2_emonet_forward.16} parent=0 // pred_check_branch
    %20 = sbr.rel (0) target = $region9
  $region8: #{wav2vec2_emonet_forward.16} parent=0 // pred_region
    _
  $region9: #{wav2vec2_emonet_forward.16} parent=0 // pred_fallthru
    _
  // Predicated region
  $region10: #{wav2vec2_emonet_forward.16} parent=0 // pred_check
    _
  $region11: #{wav2vec2_emonet_forward.16} parent=0 // pred_check_branch
    %22 = sbr.rel (0) target = $region13
  $region12: #{wav2vec2_emonet_forward.16} parent=0 // pred_region
    _
  $region13: #{wav2vec2_emonet_forward.16} parent=0 // pred_fallthru
    _
  // Predicated region
  $region14: #{wav2vec2_emonet_forward.16} parent=0 // pred_check
    _
  $region15: #{wav2vec2_emonet_forward.16} parent=0 // pred_check_branch
    %24 = sbr.rel (0) target = $region17
  $region16: #{wav2vec2_emonet_forward.16} parent=0 // pred_region
    _
  $region17: #{wav2vec2_emonet_forward.16} parent=0 // pred_fallthru
    _
  // Predicated region
  $region18: #{wav2vec2_emonet_forward.16} parent=0 // pred_check
    _
  $region19: #{wav2vec2_emonet_forward.16} parent=0 // pred_check_branch
    %26 = sbr.rel (0) target = $region21
  $region20: #{wav2vec2_emonet_forward.16} parent=0 // pred_region
    _
  $region21: #{wav2vec2_emonet_forward.16} parent=0 // pred_fallthru
    _
  // Predicated region
  $region22: #{wav2vec2_emonet_forward.16} parent=0 // pred_check
    _
  $region23: #{wav2vec2_emonet_forward.16} parent=0 // pred_check_branch
    %28 = sbr.rel (0) target = $region25
  $region24: #{wav2vec2_emonet_forward.16} parent=0 // pred_region
    _
  $region25: #{wav2vec2_emonet_forward.16} parent=0 // pred_fallthru
    _
  // Predicated region
  $region26: #{wav2vec2_emonet_forward.16} parent=0 // pred_check
    _
  $region27: #{wav2vec2_emonet_forward.16} parent=0 // pred_check_branch
    %30 = sbr.rel (0) target = $region29
  $region28: #{wav2vec2_emonet_forward.16} parent=0 // pred_region
    _
  $region29: #{wav2vec2_emonet_forward.16} parent=0 // pred_fallthru
    _
  // Predicated region
  $region30: #{wav2vec2_emonet_forward.16} parent=0 // pred_check
    _
  $region31: #{wav2vec2_emonet_forward.16} parent=0 // pred_check_branch
    %32 = sbr.rel (0) target = $region33
  $region32: #{wav2vec2_emonet_forward.16} parent=0 // pred_region
    _
  $region33: #{wav2vec2_emonet_forward.16} parent=0 // pred_fallthru
    _
  // Predicated region
  $region34: #{wav2vec2_emonet_forward.16} parent=0 // pred_check
    _
  $region35: #{wav2vec2_emonet_forward.16} parent=0 // pred_check_branch
    %34 = sbr.rel (0) target = $region37
  $region36: #{wav2vec2_emonet_forward.16} parent=0 // pred_region
    _
  $region37: #{wav2vec2_emonet_forward.16} parent=0 // pred_fallthru
    _
  // Predicated region
  $region38: #{wav2vec2_emonet_forward.16} parent=0 // pred_check
    _
  $region39: #{wav2vec2_emonet_forward.16} parent=0 // pred_check_branch
    %36 = sbr.rel (0) target = $region41
  $region40: #{wav2vec2_emonet_forward.16} parent=0 // pred_region
    _
  $region41: #{wav2vec2_emonet_forward.16} parent=0 // pred_fallthru
    _
  // Predicated region
  $region42: #{wav2vec2_emonet_forward.16} parent=0 // pred_check
    _
  $region43: #{wav2vec2_emonet_forward.16} parent=0 // pred_check_branch
    %38 = sbr.rel (0) target = $region45
  $region44: #{wav2vec2_emonet_forward.16} parent=0 // pred_region
    _
  $region45: #{wav2vec2_emonet_forward.16} parent=0 // pred_fallthru
    _
  // Predicated region
  $region46: #{wav2vec2_emonet_forward.16} parent=0 // pred_check
    _
  $region47: #{wav2vec2_emonet_forward.16} parent=0 // pred_check_branch
    %40 = sbr.rel (0) target = $region49
  $region48: #{wav2vec2_emonet_forward.16} parent=0 // pred_region
    _
  $region49: #{wav2vec2_emonet_forward.16} parent=0 // pred_fallthru
    _
  %v41 = vld [vmem:[%s0] sm:$0xff]
  %v42 = vld [vmem:[%s0 + $0x8] sm:$0xff]
  %v43 = vld [vmem:[%s0 + $0x10] sm:$0xff]
  %v44 = vld [vmem:[%s0 + $0x18] sm:$0xff]
  %v45 = vld [vmem:[%s0 + $0x20] sm:$0xff]
  %v46 = vld [vmem:[%s1] sm:$0xf]
  %v47 = vld [vmem:[%s1 + $0x4] sm:$0xf]
  %v48 = vld [vmem:[%s1 + $0x8] sm:$0xf]
  %v49 = vld [vmem:[%s1 + $0xc] sm:$0xf]
  %v50 = vld [vmem:[%s1 + $0x10] sm:$0xf]
  %v51 = vld [vmem:[%s2] sm:$0xf]
  %v52 = vld [vmem:[%s2 + $0x4] sm:$0xf]
  %v53 = vld [vmem:[%s2 + $0x8] sm:$0xf]
  %v54 = vld [vmem:[%s2 + $0xc] sm:$0xf]
  %v55 = vld [vmem:[%s2 + $0x10] sm:$0xf]
  %v56 = vld [vmem:[%s2 + $0x14] sm:$0xf]
  %v57 = vld [vmem:[%s2 + $0x18] sm:$0xf]
  %v58 = vld [vmem:[%s2 + $0x1c] sm:$0xf]
  %v59 = vld [vmem:[%s2 + $0x20] sm:$0xf]
  %v60 = vld [vmem:[%s2 + $0x24] sm:$0xf]
  %v61 = vld [vmem:[%s2 + $0x28] sm:$0xf]
  %v62 = vld [vmem:[%s2 + $0x2c] sm:$0xf]
  %v63 = vld [vmem:[%s2 + $0x30] sm:$0xf]
  %v64 = vld [vmem:[%s2 + $0x34] sm:$0xf]
  %v65 = vld [vmem:[%s2 + $0x38] sm:$0xf]
  %v66 = vld [vmem:[%s2 + $0x3c] sm:$0xf]
  %v72 = vunpack.c.l.b16 %v46
  %v73 = vunpack.c.l.b16 %v47
  %v74 = vunpack.c.l.b16 %v48
  %v75 = vunpack.c.l.b16 %v49
  %v76 = vunpack.c.l.b16 %v50
  %v77 = vpack.c.b16 %v73, %v72
  %v78 = vpack.c.b16 %v75, %v74
  %v79 = vpack.c.b16 %v76, %v76
  %v99 = vunpack.c.l.b16 %v51
  %v100 = vunpack.c.l.b16 %v52
  %v101 = vunpack.c.l.b16 %v53
  %v102 = vunpack.c.l.b16 %v54
  %v103 = vunpack.c.l.b16 %v55
  %v104 = vunpack.c.l.b16 %v56
  %v105 = vunpack.c.l.b16 %v57
  %v106 = vunpack.c.l.b16 %v58
  %v107 = vunpack.c.l.b16 %v59
  %v108 = vunpack.c.l.b16 %v60
  %v109 = vunpack.c.l.b16 %v61
  %v110 = vunpack.c.l.b16 %v62
  %v111 = vunpack.c.l.b16 %v63
  %v112 = vunpack.c.l.b16 %v64
  %v113 = vunpack.c.l.b16 %v65
  %v114 = vunpack.c.l.b16 %v66
  %v115 = vpack.c.b16 %v100, %v99
  %v116 = vpack.c.b16 %v102, %v101
  %v117 = vpack.c.b16 %v104, %v103
  %v118 = vpack.c.b16 %v106, %v105
  %v119 = vpack.c.b16 %v108, %v107
  %v120 = vpack.c.b16 %v110, %v109
  %v121 = vpack.c.b16 %v112, %v111
  %v122 = vpack.c.b16 %v114, %v113
  %131 = vmatpush.bf16.msra.mxu0 %v122
  %132 = vmatpush.bf16.msra.mxu0 %v121
  %133 = vmatpush.bf16.msra.mxu0 %v120
  %134 = vmatpush.bf16.msra.mxu0 %v119
  %135 = vmatpush.bf16.msra.mxu0 %v118
  %136 = vmatpush.bf16.msra.mxu0 %v117
  %137 = vmatpush.bf16.msra.mxu0 %v116
  %138 = vmatpush.bf16.msra.mxu0 %v115
  %139 = vmatmul.bf16.gmra.mxu0 %v77
  %v140 = vpop.f32.mrf.mxu0
  %v141 = vadd.f32 0.0, %v140
  %v142 = vpop.f32.mrf.mxu0
  %v143 = vadd.f32 0.0, %v142
  %144 = vmatmul.bf16.gmra.mxu0 %v78
  %v145 = vpop.f32.mrf.mxu0
  %v146 = vadd.f32 0.0, %v145
  %v147 = vpop.f32.mrf.mxu0
  %v148 = vadd.f32 0.0, %v147
  %149 = vmatmul.bf16.gmra.mxu0 %v79
  %v150 = vpop.f32.mrf.mxu0
  %v151 = vadd.f32 0.0, %v150
  %v152 = vpop.f32.mrf.mxu0
  %153 = vdwg.mxu0
  %v154 = vadd.f32 %v41, %v141
  %v155 = vadd.f32 %v42, %v143
  %v156 = vadd.f32 %v43, %v146
  %v157 = vadd.f32 %v44, %v148
  %v158 = vadd.f32 %v45, %v151
  %v159 = vld [vmem:[%s3] sm:$0x1]
  %v161 = vperm.slane %v159, 0
  %v163 = vadd.f32 %v154, %v161
  %v164 = vadd.f32 %v155, %v161
  %v165 = vadd.f32 %v156, %v161
  %v166 = vadd.f32 %v157, %v161
  %v167 = vadd.f32 %v158, %v161
  %v168 = vld [vmem:[%s4] sm:$0x1]
  %v169 = vld [vmem:[%s5] sm:$0x1]
  %170 = vadd.xlane.f32.xlu0 %v163
  %v171 = vpop.xlane.xlu0 %170
  %172 = vadd.xlane.f32.xlu0 %v164
  %v173 = vpop.xlane.xlu0 %172
  %174 = vadd.xlane.f32.xlu0 %v165
  %v175 = vpop.xlane.xlu0 %174
  %176 = vadd.xlane.f32.xlu0 %v166
  %v177 = vpop.xlane.xlu0 %176
  %178 = vadd.xlane.f32.xlu0 %v167
  %v179 = vpop.xlane.xlu0 %178
  %v180 = vrcp.pop 128.0
  %v181 = vmul.f32 128.0, %v180
  %v182 = vsub.f32 1.0, %v181
  %v183 = vmul.f32 %v180, %v182
  %v184 = vadd.f32 %v180, %v183
  %vm185 = vweird.f32 %v180
  %v186 = vsel %vm185, %v180, %v184
  %v187 = vmul.f32 %v171, %v186
  %v188 = vmul.f32 %v173, %v186
  %v189 = vmul.f32 %v175, %v186
  %v190 = vmul.f32 %v177, %v186
  %v191 = vmul.f32 %v179, %v186
  %v192 = vsub.f32 %v163, %v187
  %v193 = vsub.f32 %v164, %v188
  %v194 = vsub.f32 %v165, %v189
  %v195 = vsub.f32 %v166, %v190
  %v196 = vsub.f32 %v167, %v191
  %v197 = vmul.f32 %v192, %v192
  %v198 = vmul.f32 %v193, %v193
  %v199 = vmul.f32 %v194, %v194
  %v200 = vmul.f32 %v195, %v195
  %v201 = vmul.f32 %v196, %v196
  %202 = vadd.xlane.f32.xlu0 %v197
  %v203 = vpop.xlane.xlu0 %202
  %204 = vadd.xlane.f32.xlu0 %v198
  %v205 = vpop.xlane.xlu0 %204
  %206 = vadd.xlane.f32.xlu0 %v199
  %v207 = vpop.xlane.xlu0 %206
  %208 = vadd.xlane.f32.xlu0 %v200
  %v209 = vpop.xlane.xlu0 %208
  %210 = vadd.xlane.f32.xlu0 %v201
  %v211 = vpop.xlane.xlu0 %210
  %v212 = vmul.f32 %v203, %v186
  %v213 = vmul.f32 %v205, %v186
  %v214 = vmul.f32 %v207, %v186
  %v215 = vmul.f32 %v209, %v186
  %v216 = vmul.f32 %v211, %v186
  %v217 = vadd.f32 %v212, 1e-05
  %v218 = vadd.f32 %v213, 1e-05
  %v219 = vadd.f32 %v214, 1e-05
  %v220 = vadd.f32 %v215, 1e-05
  %v221 = vadd.f32 %v216, 1e-05
  %v222 = vrsqrt.pop %v217
  %v223 = vmul.f32 %v222, %v217
  %v224 = vmul.f32 %v223, %v222
  %v225 = vmul.f32 0.5, %v224
  %v226 = vsub.f32 1.5, %v225
  %v227 = vmul.f32 %v222, %v226
  %vm228 = vweird.f32 %v217
  %vm229 = vweird.f32 %v222
  %vm230 = vmor %vm228, %vm229
  %v231 = vsel %vm230, %v222, %v227
  %v232 = vrsqrt.pop %v218
  %v233 = vmul.f32 %v232, %v218
  %v234 = vmul.f32 %v233, %v232
  %v235 = vmul.f32 0.5, %v234
  %v236 = vsub.f32 1.5, %v235
  %v237 = vmul.f32 %v232, %v236
  %vm238 = vweird.f32 %v218
  %vm239 = vweird.f32 %v232
  %vm240 = vmor %vm238, %vm239
  %v241 = vsel %vm240, %v232, %v237
  %v242 = vrsqrt.pop %v219
  %v243 = vmul.f32 %v242, %v219
  %v244 = vmul.f32 %v243, %v242
  %v245 = vmul.f32 0.5, %v244
  %v246 = vsub.f32 1.5, %v245
  %v247 = vmul.f32 %v242, %v246
  %vm248 = vweird.f32 %v219
  %vm249 = vweird.f32 %v242
  %vm250 = vmor %vm248, %vm249
  %v251 = vsel %vm250, %v242, %v247
  %v252 = vrsqrt.pop %v220
  %v253 = vmul.f32 %v252, %v220
  %v254 = vmul.f32 %v253, %v252
  %v255 = vmul.f32 0.5, %v254
  %v256 = vsub.f32 1.5, %v255
  %v257 = vmul.f32 %v252, %v256
  %vm258 = vweird.f32 %v220
  %vm259 = vweird.f32 %v252
  %vm260 = vmor %vm258, %vm259
  %v261 = vsel %vm260, %v252, %v257
  %v262 = vrsqrt.pop %v221
  %v263 = vmul.f32 %v262, %v221
  %v264 = vmul.f32 %v263, %v262
  %v265 = vmul.f32 0.5, %v264
  %v266 = vsub.f32 1.5, %v265
  %v267 = vmul.f32 %v262, %v266
  %vm268 = vweird.f32 %v221
  %vm269 = vweird.f32 %v262
  %vm270 = vmor %vm268, %vm269
  %v271 = vsel %vm270, %v262, %v267
  %v272 = vmul.f32 %v192, %v231
  %v273 = vmul.f32 %v193, %v241
  %v274 = vmul.f32 %v194, %v251
  %v275 = vmul.f32 %v195, %v261
  %v276 = vmul.f32 %v196, %v271
  %v278 = vperm.slane %v168, 0
  %v280 = vmul.f32 %v272, %v278
  %v281 = vmul.f32 %v273, %v278
  %v282 = vmul.f32 %v274, %v278
  %v283 = vmul.f32 %v275, %v278
  %v284 = vmul.f32 %v276, %v278
  %v286 = vperm.slane %v169, 0
  %v288 = vadd.f32 %v280, %v286
  %v289 = vadd.f32 %v281, %v286
  %v290 = vadd.f32 %v282, %v286
  %v291 = vadd.f32 %v283, %v286
  %v292 = vadd.f32 %v284, %v286
  %v293 = vpack.c.bf16 %v289, %v288
  %v294 = vpack.c.bf16 %v291, %v290
  %v295 = vpack.c.bf16 %v292, %v292
  %v296 = vld [vmem:[%s6] sm:$0xff]
  %v297 = vld [vmem:[%s6 + $0x8] sm:$0xff]
  %v298 = vld [vmem:[%s6 + $0x10] sm:$0xff]
  %v299 = vld [vmem:[%s6 + $0x18] sm:$0xff]
  %v300 = vld [vmem:[%s6 + $0x20] sm:$0xff]
  %v301 = vld [vmem:[%s6 + $0x28] sm:$0xff]
  %v302 = vld [vmem:[%s6 + $0x30] sm:$0xff]
  %v303 = vld [vmem:[%s6 + $0x38] sm:$0xff]
  %v304 = vld [vmem:[%s6 + $0x40] sm:$0xff]
  %v305 = vld [vmem:[%s6 + $0x48] sm:$0xff]
  %v306 = vld [vmem:[%s6 + $0x50] sm:$0xff]
  %v307 = vld [vmem:[%s6 + $0x58] sm:$0xff]
  %v308 = vld [vmem:[%s6 + $0x60] sm:$0xff]
  %v309 = vld [vmem:[%s6 + $0x68] sm:$0xff]
  %v310 = vld [vmem:[%s6 + $0x70] sm:$0xff]
  %v311 = vld [vmem:[%s6 + $0x78] sm:$0xff]
  %v312 = vld [vmem:[%s7] sm:$0x3]
  %v314 = vperm.slane %v312, 0
  %v315 = vperm.slane %v312, 1
  %v334 = vunpack.c.l.b16 %v296
  %v335 = vunpack.c.h.b16 %v296
  %v336 = vunpack.c.l.b16 %v297
  %v337 = vunpack.c.h.b16 %v297
  %v338 = vunpack.c.l.b16 %v298
  %v339 = vunpack.c.h.b16 %v298
  %v340 = vunpack.c.l.b16 %v299
  %v341 = vunpack.c.h.b16 %v299
  %v342 = vunpack.c.l.b16 %v300
  %v343 = vunpack.c.h.b16 %v300
  %v344 = vunpack.c.l.b16 %v301
  %v345 = vunpack.c.h.b16 %v301
  %v346 = vunpack.c.l.b16 %v302
  %v347 = vunpack.c.h.b16 %v302
  %v348 = vunpack.c.l.b16 %v303
  %v349 = vunpack.c.h.b16 %v303
  %v350 = vunpack.c.l.b16 %v304
  %v351 = vunpack.c.h.b16 %v304
  %v352 = vunpack.c.l.b16 %v305
  %v353 = vunpack.c.h.b16 %v305
  %v354 = vunpack.c.l.b16 %v306
  %v355 = vunpack.c.h.b16 %v306
  %v356 = vunpack.c.l.b16 %v307
  %v357 = vunpack.c.h.b16 %v307
  %v358 = vunpack.c.l.b16 %v308
  %v359 = vunpack.c.h.b16 %v308
  %v360 = vunpack.c.l.b16 %v309
  %v361 = vunpack.c.h.b16 %v309
  %v362 = vunpack.c.l.b16 %v310
  %v363 = vunpack.c.h.b16 %v310
  %v364 = vunpack.c.l.b16 %v311
  %v365 = vunpack.c.h.b16 %v311
  %v366 = vpack.c.b16 %v336, %v334
  %v367 = vpack.c.b16 %v337, %v335
  %v368 = vpack.c.b16 %v340, %v338
  %v369 = vpack.c.b16 %v341, %v339
  %v370 = vpack.c.b16 %v344, %v342
  %v371 = vpack.c.b16 %v345, %v343
  %v372 = vpack.c.b16 %v348, %v346
  %v373 = vpack.c.b16 %v349, %v347
  %v374 = vpack.c.b16 %v352, %v350
  %v375 = vpack.c.b16 %v353, %v351
  %v376 = vpack.c.b16 %v356, %v354
  %v377 = vpack.c.b16 %v357, %v355
  %v378 = vpack.c.b16 %v360, %v358
  %v379 = vpack.c.b16 %v361, %v359
  %v380 = vpack.c.b16 %v364, %v362
  %v381 = vpack.c.b16 %v365, %v363
  %398 = vmatpush.bf16.msra.mxu0 %v380
  %399 = vmatpush.bf16.msra.mxu0 %v378
  %400 = vmatpush.bf16.msra.mxu0 %v376
  %401 = vmatpush.bf16.msra.mxu0 %v374
  %402 = vmatpush.bf16.msra.mxu0 %v372
  %403 = vmatpush.bf16.msra.mxu0 %v370
  %404 = vmatpush.bf16.msra.mxu0 %v368
  %405 = vmatpush.bf16.msra.mxu0 %v366
  %406 = vmatmul.bf16.gmra.mxu0 %v293
  %v407 = vpop.f32.mrf.mxu0
  %v408 = vadd.f32 %v314, %v407
  %v409 = vpop.f32.mrf.mxu0
  %v410 = vadd.f32 %v314, %v409
  %411 = vmatmul.bf16.gmra.mxu0 %v294
  %v412 = vpop.f32.mrf.mxu0
  %v413 = vadd.f32 %v314, %v412
  %v414 = vpop.f32.mrf.mxu0
  %v415 = vadd.f32 %v314, %v414
  %416 = vmatmul.bf16.gmra.mxu0 %v295
  %v417 = vpop.f32.mrf.mxu0
  %v418 = vadd.f32 %v314, %v417
  %v419 = vpop.f32.mrf.mxu0
  %420 = vdwg.mxu0
  %421 = vmatpush.bf16.msra.mxu0 %v381
  %422 = vmatpush.bf16.msra.mxu0 %v379
  %423 = vmatpush.bf16.msra.mxu0 %v377
  %424 = vmatpush.bf16.msra.mxu0 %v375
  %425 = vmatpush.bf16.msra.mxu0 %v373
  %426 = vmatpush.bf16.msra.mxu0 %v371
  %427 = vmatpush.bf16.msra.mxu0 %v369
  %428 = vmatpush.bf16.msra.mxu0 %v367
  %429 = vmatmul.bf16.gmra.mxu0 %v293
  %v430 = vpop.f32.mrf.mxu0
  %v431 = vadd.f32 %v315, %v430
  %v432 = vpop.f32.mrf.mxu0
  %v433 = vadd.f32 %v315, %v432
  %434 = vmatmul.bf16.gmra.mxu0 %v294
  %v435 = vpop.f32.mrf.mxu0
  %v436 = vadd.f32 %v315, %v435
  %v437 = vpop.f32.mrf.mxu0
  %v438 = vadd.f32 %v315, %v437
  %439 = vmatmul.bf16.gmra.mxu0 %v295
  %v440 = vpop.f32.mrf.mxu0
  %v441 = vadd.f32 %v315, %v440
  %v442 = vpop.f32.mrf.mxu0
  %443 = vdwg.mxu0
  %v444 = vmul.f32 %v408, %v408
  %v445 = vmul.f32 %v431, %v431
  %v446 = vmul.f32 %v410, %v410
  %v447 = vmul.f32 %v433, %v433
  %v448 = vmul.f32 %v413, %v413
  %v449 = vmul.f32 %v436, %v436
  %v450 = vmul.f32 %v415, %v415
  %v451 = vmul.f32 %v438, %v438
  %v452 = vmul.f32 %v418, %v418
  %v453 = vmul.f32 %v441, %v441
  %v454 = vmul.f32 %v408, %v444
  %v455 = vmul.f32 %v431, %v445
  %v456 = vmul.f32 %v410, %v446
  %v457 = vmul.f32 %v433, %v447
  %v458 = vmul.f32 %v413, %v448
  %v459 = vmul.f32 %v436, %v449
  %v460 = vmul.f32 %v415, %v450
  %v461 = vmul.f32 %v438, %v451
  %v462 = vmul.f32 %v418, %v452
  %v463 = vmul.f32 %v441, %v453
  %v464 = vmul.f32 %v454, 0.044715
  %v465 = vmul.f32 %v455, 0.044715
  %v466 = vmul.f32 %v456, 0.044715
  %v467 = vmul.f32 %v457, 0.044715
  %v468 = vmul.f32 %v458, 0.044715
  %v469 = vmul.f32 %v459, 0.044715
  %v470 = vmul.f32 %v460, 0.044715
  %v471 = vmul.f32 %v461, 0.044715
  %v472 = vmul.f32 %v462, 0.044715
  %v473 = vmul.f32 %v463, 0.044715
  %v474 = vadd.f32 %v408, %v464
  %v475 = vadd.f32 %v431, %v465
  %v476 = vadd.f32 %v410, %v466
  %v477 = vadd.f32 %v433, %v467
  %v478 = vadd.f32 %v413, %v468
  %v479 = vadd.f32 %v436, %v469
  %v480 = vadd.f32 %v415, %v470
  %v481 = vadd.f32 %v438, %v471
  %v482 = vadd.f32 %v418, %v472
  %v483 = vadd.f32 %v441, %v473
  %v484 = vmul.f32 %v474, 0.7978846
  %v485 = vmul.f32 %v475, 0.7978846
  %v486 = vmul.f32 %v476, 0.7978846
  %v487 = vmul.f32 %v477, 0.7978846
  %v488 = vmul.f32 %v478, 0.7978846
  %v489 = vmul.f32 %v479, 0.7978846
  %v490 = vmul.f32 %v480, 0.7978846
  %v491 = vmul.f32 %v481, 0.7978846
  %v492 = vmul.f32 %v482, 0.7978846
  %v493 = vmul.f32 %v483, 0.7978846
  %v494 = vtanh.pop %v484
  %v495 = vtanh.pop %v485
  %v496 = vtanh.pop %v486
  %v497 = vtanh.pop %v487
  %v498 = vtanh.pop %v488
  %v499 = vtanh.pop %v489
  %v500 = vtanh.pop %v490
  %v501 = vtanh.pop %v491
  %v502 = vtanh.pop %v492
  %v503 = vtanh.pop %v493
  %v504 = vadd.f32 %v494, 1.0
  %v505 = vadd.f32 %v495, 1.0
  %v506 = vadd.f32 %v496, 1.0
  %v507 = vadd.f32 %v497, 1.0
  %v508 = vadd.f32 %v498, 1.0
  %v509 = vadd.f32 %v499, 1.0
  %v510 = vadd.f32 %v500, 1.0
  %v511 = vadd.f32 %v501, 1.0
  %v512 = vadd.f32 %v502, 1.0
  %v513 = vadd.f32 %v503, 1.0
  %v514 = vmul.f32 %v504, 0.5
  %v515 = vmul.f32 %v505, 0.5
  %v516 = vmul.f32 %v506, 0.5
  %v517 = vmul.f32 %v507, 0.5
  %v518 = vmul.f32 %v508, 0.5
  %v519 = vmul.f32 %v509, 0.5
  %v520 = vmul.f32 %v510, 0.5
  %v521 = vmul.f32 %v511, 0.5
  %v522 = vmul.f32 %v512, 0.5
  %v523 = vmul.f32 %v513, 0.5
  %v524 = vmul.f32 %v408, %v514
  %v525 = vmul.f32 %v431, %v515
  %v526 = vmul.f32 %v410, %v516
  %v527 = vmul.f32 %v433, %v517
  %v528 = vmul.f32 %v413, %v518
  %v529 = vmul.f32 %v436, %v519
  %v530 = vmul.f32 %v415, %v520
  %v531 = vmul.f32 %v438, %v521
  %v532 = vmul.f32 %v418, %v522
  %v533 = vmul.f32 %v441, %v523
  %v534 = vpack.c.bf16 %v526, %v524
  %v535 = vpack.c.bf16 %v527, %v525
  %v536 = vpack.c.bf16 %v530, %v528
  %v537 = vpack.c.bf16 %v531, %v529
  %v538 = vpack.c.bf16 %v532, %v532
  %v539 = vpack.c.bf16 %v533, %v533
  %v540 = vld [vmem:[%s8] sm:$0xf]
  %v541 = vld [vmem:[%s8 + $0x4] sm:$0xf]
  %v542 = vld [vmem:[%s8 + $0x8] sm:$0xf]
  %v543 = vld [vmem:[%s8 + $0xc] sm:$0xf]
  %v544 = vld [vmem:[%s8 + $0x10] sm:$0xf]
  %v545 = vld [vmem:[%s8 + $0x14] sm:$0xf]
  %v546 = vld [vmem:[%s8 + $0x18] sm:$0xf]
  %v547 = vld [vmem:[%s8 + $0x1c] sm:$0xf]
  %v548 = vld [vmem:[%s8 + $0x20] sm:$0xf]
  %v549 = vld [vmem:[%s8 + $0x24] sm:$0xf]
  %v550 = vld [vmem:[%s8 + $0x28] sm:$0xf]
  %v551 = vld [vmem:[%s8 + $0x2c] sm:$0xf]
  %v552 = vld [vmem:[%s8 + $0x30] sm:$0xf]
  %v553 = vld [vmem:[%s8 + $0x34] sm:$0xf]
  %v554 = vld [vmem:[%s8 + $0x38] sm:$0xf]
  %v555 = vld [vmem:[%s8 + $0x3c] sm:$0xf]
  %v556 = vld [vmem:[%s8 + $0x40] sm:$0xf]
  %v557 = vld [vmem:[%s8 + $0x44] sm:$0xf]
  %v558 = vld [vmem:[%s8 + $0x48] sm:$0xf]
  %v559 = vld [vmem:[%s8 + $0x4c] sm:$0xf]
  %v560 = vld [vmem:[%s8 + $0x50] sm:$0xf]
  %v561 = vld [vmem:[%s8 + $0x54] sm:$0xf]
  %v562 = vld [vmem:[%s8 + $0x58] sm:$0xf]
  %v563 = vld [vmem:[%s8 + $0x5c] sm:$0xf]
  %v564 = vld [vmem:[%s8 + $0x60] sm:$0xf]
  %v565 = vld [vmem:[%s8 + $0x64] sm:$0xf]
  %v566 = vld [vmem:[%s8 + $0x68] sm:$0xf]
  %v567 = vld [vmem:[%s8 + $0x6c] sm:$0xf]
  %v568 = vld [vmem:[%s8 + $0x70] sm:$0xf]
  %v569 = vld [vmem:[%s8 + $0x74] sm:$0xf]
  %v570 = vld [vmem:[%s8 + $0x78] sm:$0xf]
  %v571 = vld [vmem:[%s8 + $0x7c] sm:$0xf]
  %v572 = vld [vmem:[%s9] sm:$0x1]
  %v574 = vperm.slane %v572, 0
  %v608 = vunpack.c.l.b16 %v540
  %v609 = vunpack.c.l.b16 %v541
  %v610 = vunpack.c.l.b16 %v542
  %v611 = vunpack.c.l.b16 %v543
  %v612 = vunpack.c.l.b16 %v544
  %v613 = vunpack.c.l.b16 %v545
  %v614 = vunpack.c.l.b16 %v546
  %v615 = vunpack.c.l.b16 %v547
  %v616 = vunpack.c.l.b16 %v548
  %v617 = vunpack.c.l.b16 %v549
  %v618 = vunpack.c.l.b16 %v550
  %v619 = vunpack.c.l.b16 %v551
  %v620 = vunpack.c.l.b16 %v552
  %v621 = vunpack.c.l.b16 %v553
  %v622 = vunpack.c.l.b16 %v554
  %v623 = vunpack.c.l.b16 %v555
  %v624 = vunpack.c.l.b16 %v556
  %v625 = vunpack.c.l.b16 %v557
  %v626 = vunpack.c.l.b16 %v558
  %v627 = vunpack.c.l.b16 %v559
  %v628 = vunpack.c.l.b16 %v560
  %v629 = vunpack.c.l.b16 %v561
  %v630 = vunpack.c.l.b16 %v562
  %v631 = vunpack.c.l.b16 %v563
  %v632 = vunpack.c.l.b16 %v564
  %v633 = vunpack.c.l.b16 %v565
  %v634 = vunpack.c.l.b16 %v566
  %v635 = vunpack.c.l.b16 %v567
  %v636 = vunpack.c.l.b16 %v568
  %v637 = vunpack.c.l.b16 %v569
  %v638 = vunpack.c.l.b16 %v570
  %v639 = vunpack.c.l.b16 %v571
  %v640 = vpack.c.b16 %v609, %v608
  %v641 = vpack.c.b16 %v611, %v610
  %v642 = vpack.c.b16 %v613, %v612
  %v643 = vpack.c.b16 %v615, %v614
  %v644 = vpack.c.b16 %v617, %v616
  %v645 = vpack.c.b16 %v619, %v618
  %v646 = vpack.c.b16 %v621, %v620
  %v647 = vpack.c.b16 %v623, %v622
  %v648 = vpack.c.b16 %v625, %v624
  %v649 = vpack.c.b16 %v627, %v626
  %v650 = vpack.c.b16 %v629, %v628
  %v651 = vpack.c.b16 %v631, %v630
  %v652 = vpack.c.b16 %v633, %v632
  %v653 = vpack.c.b16 %v635, %v634
  %v654 = vpack.c.b16 %v637, %v636
  %v655 = vpack.c.b16 %v639, %v638
  %672 = vmatpush.bf16.msra.mxu0 %v647
  %673 = vmatpush.bf16.msra.mxu0 %v646
  %674 = vmatpush.bf16.msra.mxu0 %v645
  %675 = vmatpush.bf16.msra.mxu0 %v644
  %676 = vmatpush.bf16.msra.mxu0 %v643
  %677 = vmatpush.bf16.msra.mxu0 %v642
  %678 = vmatpush.bf16.msra.mxu0 %v641
  %679 = vmatpush.bf16.msra.mxu0 %v640
  %680 = vmatmul.bf16.gmra.mxu0 %v534
  %v681 = vpop.f32.mrf.mxu0
  %v682 = vadd.f32 %v574, %v681
  %v683 = vpop.f32.mrf.mxu0
  %v684 = vadd.f32 %v574, %v683
  %685 = vmatmul.bf16.gmra.mxu0 %v536
  %v686 = vpop.f32.mrf.mxu0
  %v687 = vadd.f32 %v574, %v686
  %v688 = vpop.f32.mrf.mxu0
  %v689 = vadd.f32 %v574, %v688
  %690 = vmatmul.bf16.gmra.mxu0 %v538
  %v691 = vpop.f32.mrf.mxu0
  %v692 = vadd.f32 %v574, %v691
  %v693 = vpop.f32.mrf.mxu0
  %694 = vdwg.mxu0
  %695 = vmatpush.bf16.msra.mxu0 %v655
  %696 = vmatpush.bf16.msra.mxu0 %v654
  %697 = vmatpush.bf16.msra.mxu0 %v653
  %698 = vmatpush.bf16.msra.mxu0 %v652
  %699 = vmatpush.bf16.msra.mxu0 %v651
  %700 = vmatpush.bf16.msra.mxu0 %v650
  %701 = vmatpush.bf16.msra.mxu0 %v649
  %702 = vmatpush.bf16.msra.mxu0 %v648
  %703 = vmatmul.bf16.gmra.mxu0 %v535
  %v704 = vpop.f32.mrf.mxu0
  %v705 = vadd.f32 %v682, %v704
  %v706 = vpop.f32.mrf.mxu0
  %v707 = vadd.f32 %v684, %v706
  %708 = vmatmul.bf16.gmra.mxu0 %v537
  %v709 = vpop.f32.mrf.mxu0
  %v710 = vadd.f32 %v687, %v709
  %v711 = vpop.f32.mrf.mxu0
  %v712 = vadd.f32 %v689, %v711
  %713 = vmatmul.bf16.gmra.mxu0 %v539
  %v714 = vpop.f32.mrf.mxu0
  %v715 = vadd.f32 %v692, %v714
  %v716 = vpop.f32.mrf.mxu0
  %717 = vdwg.mxu0
  %v718 = vadd.f32 %v288, %v705
  %v719 = vadd.f32 %v289, %v707
  %v720 = vadd.f32 %v290, %v710
  %v721 = vadd.f32 %v291, %v712
  %v722 = vadd.f32 %v292, %v715
  %v723 = vld [vmem:[%s10] sm:$0x1]
  %v724 = vld [vmem:[%s11] sm:$0x1]
  %725 = vadd.xlane.f32.xlu0 %v718
  %v726 = vpop.xlane.xlu0 %725
  %727 = vadd.xlane.f32.xlu0 %v719
  %v728 = vpop.xlane.xlu0 %727
  %729 = vadd.xlane.f32.xlu0 %v720
  %v730 = vpop.xlane.xlu0 %729
  %731 = vadd.xlane.f32.xlu0 %v721
  %v732 = vpop.xlane.xlu0 %731
  %733 = vadd.xlane.f32.xlu0 %v722
  %v734 = vpop.xlane.xlu0 %733
  %v735 = vmul.f32 %v726, %v186
  %v736 = vmul.f32 %v728, %v186
  %v737 = vmul.f32 %v730, %v186
  %v738 = vmul.f32 %v732, %v186
  %v739 = vmul.f32 %v734, %v186
  %v740 = vsub.f32 %v718, %v735
  %v741 = vsub.f32 %v719, %v736
  %v742 = vsub.f32 %v720, %v737
  %v743 = vsub.f32 %v721, %v738
  %v744 = vsub.f32 %v722, %v739
  %v745 = vmul.f32 %v740, %v740
  %v746 = vmul.f32 %v741, %v741
  %v747 = vmul.f32 %v742, %v742
  %v748 = vmul.f32 %v743, %v743
  %v749 = vmul.f32 %v744, %v744
  %750 = vadd.xlane.f32.xlu0 %v745
  %v751 = vpop.xlane.xlu0 %750
  %752 = vadd.xlane.f32.xlu0 %v746
  %v753 = vpop.xlane.xlu0 %752
  %754 = vadd.xlane.f32.xlu0 %v747
  %v755 = vpop.xlane.xlu0 %754
  %756 = vadd.xlane.f32.xlu0 %v748
  %v757 = vpop.xlane.xlu0 %756
  %758 = vadd.xlane.f32.xlu0 %v749
  %v759 = vpop.xlane.xlu0 %758
  %v760 = vmul.f32 %v751, %v186
  %v761 = vmul.f32 %v753, %v186
  %v762 = vmul.f32 %v755, %v186
  %v763 = vmul.f32 %v757, %v186
  %v764 = vmul.f32 %v759, %v186
  %v765 = vadd.f32 %v760, 1e-05
  %v766 = vadd.f32 %v761, 1e-05
  %v767 = vadd.f32 %v762, 1e-05
  %v768 = vadd.f32 %v763, 1e-05
  %v769 = vadd.f32 %v764, 1e-05
  %v770 = vrsqrt.pop %v765
  %v771 = vmul.f32 %v770, %v765
  %v772 = vmul.f32 %v771, %v770
  %v773 = vmul.f32 0.5, %v772
  %v774 = vsub.f32 1.5, %v773
  %v775 = vmul.f32 %v770, %v774
  %vm776 = vweird.f32 %v765
  %vm777 = vweird.f32 %v770
  %vm778 = vmor %vm776, %vm777
  %v779 = vsel %vm778, %v770, %v775
  %v780 = vrsqrt.pop %v766
  %v781 = vmul.f32 %v780, %v766
  %v782 = vmul.f32 %v781, %v780
  %v783 = vmul.f32 0.5, %v782
  %v784 = vsub.f32 1.5, %v783
  %v785 = vmul.f32 %v780, %v784
  %vm786 = vweird.f32 %v766
  %vm787 = vweird.f32 %v780
  %vm788 = vmor %vm786, %vm787
  %v789 = vsel %vm788, %v780, %v785
  %v790 = vrsqrt.pop %v767
  %v791 = vmul.f32 %v790, %v767
  %v792 = vmul.f32 %v791, %v790
  %v793 = vmul.f32 0.5, %v792
  %v794 = vsub.f32 1.5, %v793
  %v795 = vmul.f32 %v790, %v794
  %vm796 = vweird.f32 %v767
  %vm797 = vweird.f32 %v790
  %vm798 = vmor %vm796, %vm797
  %v799 = vsel %vm798, %v790, %v795
  %v800 = vrsqrt.pop %v768
  %v801 = vmul.f32 %v800, %v768
  %v802 = vmul.f32 %v801, %v800
  %v803 = vmul.f32 0.5, %v802
  %v804 = vsub.f32 1.5, %v803
  %v805 = vmul.f32 %v800, %v804
  %vm806 = vweird.f32 %v768
  %vm807 = vweird.f32 %v800
  %vm808 = vmor %vm806, %vm807
  %v809 = vsel %vm808, %v800, %v805
  %v810 = vrsqrt.pop %v769
  %v811 = vmul.f32 %v810, %v769
  %v812 = vmul.f32 %v811, %v810
  %v813 = vmul.f32 0.5, %v812
  %v814 = vsub.f32 1.5, %v813
  %v815 = vmul.f32 %v810, %v814
  %vm816 = vweird.f32 %v769
  %vm817 = vweird.f32 %v810
  %vm818 = vmor %vm816, %vm817
  %v819 = vsel %vm818, %v810, %v815
  %v820 = vmul.f32 %v740, %v779
  %v821 = vmul.f32 %v741, %v789
  %v822 = vmul.f32 %v742, %v799
  %v823 = vmul.f32 %v743, %v809
  %v824 = vmul.f32 %v744, %v819
  %v826 = vperm.slane %v723, 0
  %v828 = vmul.f32 %v820, %v826
  %v829 = vmul.f32 %v821, %v826
  %v830 = vmul.f32 %v822, %v826
  %v831 = vmul.f32 %v823, %v826
  %v832 = vmul.f32 %v824, %v826
  %v834 = vperm.slane %v724, 0
  %v836 = vadd.f32 %v828, %v834
  %v837 = vadd.f32 %v829, %v834
  %v838 = vadd.f32 %v830, %v834
  %v839 = vadd.f32 %v831, %v834
  %v840 = vadd.f32 %v832, %v834
  %841 = vst [vmem:[%s12] sm:$0xff] %v836
  %842 = vst [vmem:[%s12 + $0x8] sm:$0xff] %v837
  %843 = vst [vmem:[%s12 + $0x10] sm:$0xff] %v838
  %844 = vst [vmem:[%s12 + $0x18] sm:$0xff] %v839
  %845 = vst [vmem:[%s12 + $0x20] sm:$0xff] %v840
  // Predicated region
  $region50: #{wav2vec2_emonet_forward.16} parent=0 // pred_check
    _
  $region51: #{wav2vec2_emonet_forward.16} parent=0 // pred_check_branch
    %847 = sbr.rel (0) target = $region53
  $region52: #{wav2vec2_emonet_forward.16} parent=0 // pred_region
    _
  $region53: #{wav2vec2_emonet_forward.16} parent=0 // pred_fallthru
    _
  // Predicated region
  $region54: #{wav2vec2_emonet_forward.16} parent=0 // pred_check
    _
  $region55: #{wav2vec2_emonet_forward.16} parent=0 // pred_check_branch
    %849 = sbr.rel (0) target = $region57
  $region56: #{wav2vec2_emonet_forward.16} parent=0 // pred_region
    _
  $region57: #{wav2vec2_emonet_forward.16} parent=0 // pred_fallthru
    _

// kernel: wav2vec2_emonet_forward.19
$region0: #{wav2vec2_emonet_forward.19}
  #allocation0 [shape = 'u32[]', space=smem, size = 0x4, offset = 0x4, fixed_abs, tag = 'smem constant byte address 0x4 - core index']
  #allocation1 [shape = 'u32[72,128]{1,0:T(1,128)}', space=vmem, size = 0x9000, scoped, tag = 'internal scratch']
  %s0 = inlined_call_operand.vmem [shape: f32[2,20,128], index: 0, kind: input, shape index: {}]
  %s1 = inlined_call_operand.vmem [shape: f32[2,1,1], index: 1, kind: input, shape index: {}]
  %s2 = inlined_call_operand.vmem [shape: f32[128,4], index: 2, kind: input, shape index: {}]
  %s3 = inlined_call_operand.vmem [shape: f32[1,4], index: 3, kind: input, shape index: {}]
  %s4 = inlined_call_operand.hbm [shape: f32[2,1,4], index: 4, kind: output, shape index: {}]
  %s5 = sld [smem:[#allocation0]]
  $region49: #{wav2vec2_emonet_forward.19} parent=0
    _
  %s7 = ssub.s32 1, %s5
  %s8 = scalar_select 0, %s7, %s5
  $region1: #{wav2vec2_emonet_forward.19} parent=0
    #allocation2 [shape = 'u8[1024]{0}', space=vmem, size = 0x400, scoped, tag = 'output window, operand 0']
    #allocation3 [shape = 's32[2]{0}', space=sflag, size = 0x8, scoped, tag = 'scoped memory for wav2vec2_emonet_forward.19']
    %9 = vsyncpa [#allocation3], 0
    %s10 = scalar_lea.sflag [#allocation3], 1
    %11 = vsyncpa %s10, 0
    loop: start=0, step=1, limit=4
    $region2: #{wav2vec2_emonet_forward.19} parent=1 // loop_pre_header
      _
    $region3: #{wav2vec2_emonet_forward.19} parent=1 // loop_header
      %s13 = sphi 0, %s17
      %p14 = scmp.ge.s32.totalorder %s13, 4
      %s23 = sphi 0, %s25
      %s26 = sphi 0, %s23
      %s27 = sphi 0, %s26
      %s43 = sphi 0, %s27
      %s49 = sphi 0, %s51
      %s52 = sphi 0, %s49
      %s53 = sphi 0, %s52
      %s69 = sphi 0, %s53
      %s73 = sphi 0, %s73
      %s75 = sphi 0, %s73
      %s76 = sphi 0, %s75
      %s90 = sphi 0, %s76
      %s94 = sphi 0, %s94
      %s96 = sphi 0, %s94
      %s97 = sphi 0, %s96
      %s111 = sphi 0, %s97
      %s117 = sphi 0, %s119
      %s120 = sphi 0, %s117
      %s121 = sphi 0, %s120
      %s137 = sphi 0, %s121
    $region4: #{wav2vec2_emonet_forward.19} parent=1 // loop_header_branch
      %16 = sbr.rel (%p14) target = $region8
    $region5: #{wav2vec2_emonet_forward.19} parent=1 // loop_body
      %s18 = ssub.s32 %s13, 1
      %s19 = ssub.s32 %s13, 2
      %s20 = sadd.s32 %s13, 1
      %s21 = ssub.s32 %s13, %s20
      %p22 = scmp.eq.s32.totalorder %s21, 0
      %s24 = sadd.s32 %s23, 1
      %s25 = scalar_select %p22, %s23, %s24
      %p28 = pneg %p22
      %p29 = scmp.eq.s32.totalorder %s13, 1
      %p30 = por %p28, %p29
      %p31 = scmp.ne.s32.totalorder %s23, %s26
      %p32 = scmp.eq.s32.totalorder %s13, 0
      %p33 = por %p31, %p32
      %p34 = scmp.ne.s32.totalorder %s23, %s26
      %p35 = scmp.eq.s32.totalorder %s18, 1
      %p36 = por %p34, %p35
      %p37 = scmp.ne.s32.totalorder %s26, %s27
      %p38 = scmp.eq.s32.totalorder %s18, 0
      %p39 = por %p37, %p38
      %p40 = scmp.ne.s32.totalorder %s26, %s27
      %p41 = scmp.eq.s32.totalorder %s19, 1
      %p42 = por %p40, %p41
      %p44 = scmp.ne.s32.totalorder %s27, %s43
      %p45 = scmp.eq.s32.totalorder %s19, 0
      %p46 = por %p44, %p45
      %s47 = ssub.s32 %s13, %s20
      %p48 = scmp.eq.s32.totalorder %s47, 0
      %s50 = sadd.s32 %s49, 1
      %s51 = scalar_select %p48, %s49, %s50
      %p54 = pneg %p48
      %p55 = scmp.eq.s32.totalorder %s13, 1
      %p56 = por %p54, %p55
      %p57 = scmp.ne.s32.totalorder %s49, %s52
      %p58 = scmp.eq.s32.totalorder %s13, 0
      %p59 = por %p57, %p58
      %p60 = scmp.ne.s32.totalorder %s49, %s52
      %p61 = scmp.eq.s32.totalorder %s18, 1
      %p62 = por %p60, %p61
      %p63 = scmp.ne.s32.totalorder %s52, %s53
      %p64 = scmp.eq.s32.totalorder %s18, 0
      %p65 = por %p63, %p64
      %p66 = scmp.ne.s32.totalorder %s52, %s53
      %p67 = scmp.eq.s32.totalorder %s19, 1
      %p68 = por %p66, %p67
      %p70 = scmp.ne.s32.totalorder %s53, %s69
      %p71 = scmp.eq.s32.totalorder %s19, 0
      %p72 = por %p70, %p71
      %s74 = sadd.s32 %s73, 1
      %p77 = scmp.eq.s32.totalorder %s13, 1
      %p78 = scmp.ne.s32.totalorder %s73, %s75
      %p79 = scmp.eq.s32.totalorder %s13, 0
      %p80 = por %p78, %p79
      %p81 = scmp.ne.s32.totalorder %s73, %s75
      %p82 = scmp.eq.s32.totalorder %s18, 1
      %p83 = por %p81, %p82
      %p84 = scmp.ne.s32.totalorder %s75, %s76
      %p85 = scmp.eq.s32.totalorder %s18, 0
      %p86 = por %p84, %p85
      %p87 = scmp.ne.s32.totalorder %s75, %s76
      %p88 = scmp.eq.s32.totalorder %s19, 1
      %p89 = por %p87, %p88
      %p91 = scmp.ne.s32.totalorder %s76, %s90
      %p92 = scmp.eq.s32.totalorder %s19, 0
      %p93 = por %p91, %p92
      %s95 = sadd.s32 %s94, 1
      %p98 = scmp.eq.s32.totalorder %s13, 1
      %p99 = scmp.ne.s32.totalorder %s94, %s96
      %p100 = scmp.eq.s32.totalorder %s13, 0
      %p101 = por %p99, %p100
      %p102 = scmp.ne.s32.totalorder %s94, %s96
      %p103 = scmp.eq.s32.totalorder %s18, 1
      %p104 = por %p102, %p103
      %p105 = scmp.ne.s32.totalorder %s96, %s97
      %p106 = scmp.eq.s32.totalorder %s18, 0
      %p107 = por %p105, %p106
      %p108 = scmp.ne.s32.totalorder %s96, %s97
      %p109 = scmp.eq.s32.totalorder %s19, 1
      %p110 = por %p108, %p109
      %p112 = scmp.ne.s32.totalorder %s97, %s111
      %p113 = scmp.eq.s32.totalorder %s19, 0
      %p114 = por %p112, %p113
      %s115 = ssub.s32 %s13, %s20
      %p116 = scmp.eq.s32.totalorder %s115, 0
      %s118 = sadd.s32 %s117, 1
      %s119 = scalar_select %p116, %s117, %s118
      %p122 = pneg %p116
      %p123 = scmp.eq.s32.totalorder %s13, 1
      %p124 = por %p122, %p123
      %p125 = scmp.ne.s32.totalorder %s117, %s120
      %p126 = scmp.eq.s32.totalorder %s13, 0
      %p127 = por %p125, %p126
      %p128 = scmp.ne.s32.totalorder %s117, %s120
      %p129 = scmp.eq.s32.totalorder %s18, 1
      %p130 = por %p128, %p129
      %p131 = scmp.ne.s32.totalorder %s120, %s121
      %p132 = scmp.eq.s32.totalorder %s18, 0
      %p133 = por %p131, %p132
      %p134 = scmp.ne.s32.totalorder %s120, %s121
      %p135 = scmp.eq.s32.totalorder %s19, 1
      %p136 = por %p134, %p135
      %p138 = scmp.ne.s32.totalorder %s121, %s137
      %p139 = scmp.eq.s32.totalorder %s19, 0
      %p140 = por %p138, %p139
      %p141 = scmp.le.s32.totalorder 1, %s13
      %p142 = scmp.lt.s32.totalorder %s13, 3
      %p143 = pnand %p141, %p142
      %p144 = pneg %p143
      // Predicated region
      $region9: #{wav2vec2_emonet_forward.19} parent=5 // pred_check
        _
      $region10: #{wav2vec2_emonet_forward.19} parent=5 // pred_check_branch
        %146 = sbr.rel (%p143) target = $region12
      $region11: #{wav2vec2_emonet_forward.19} parent=5 // pred_region
        %s147 = ssub.s32 %s13, 1
        // Predicated region
        $region13: #{wav2vec2_emonet_forward.19} parent=11 // pred_check
          %p148 = pneg %p86
        $region14: #{wav2vec2_emonet_forward.19} parent=11 // pred_check_branch
          %150 = sbr.rel (%p148) target = $region16
        $region15: #{wav2vec2_emonet_forward.19} parent=11 // pred_region
          _
        $region16: #{wav2vec2_emonet_forward.19} parent=11 // pred_fallthru
          _
        // Predicated region
        $region17: #{wav2vec2_emonet_forward.19} parent=11 // pred_check
          %p151 = pneg %p107
        $region18: #{wav2vec2_emonet_forward.19} parent=11 // pred_check_branch
          %153 = sbr.rel (%p151) target = $region20
        $region19: #{wav2vec2_emonet_forward.19} parent=11 // pred_region
          _
        $region20: #{wav2vec2_emonet_forward.19} parent=11 // pred_fallthru
          _
      $region12: #{wav2vec2_emonet_forward.19} parent=5 // pred_fallthru
        _
      %p154 = scmp.lt.s32.totalorder %s13, 2
      // Predicated region
      $region21: #{wav2vec2_emonet_forward.19} parent=5 // pred_check
        %p155 = pneg %p154
      $region22: #{wav2vec2_emonet_forward.19} parent=5 // pred_check_branch
        %157 = sbr.rel (%p155) target = $region24
      $region23: #{wav2vec2_emonet_forward.19} parent=5 // pred_region
        // Predicated region
        $region25: #{wav2vec2_emonet_forward.19} parent=23 // pred_check
          %p158 = pneg %p33
        $region26: #{wav2vec2_emonet_forward.19} parent=23 // pred_check_branch
          %160 = sbr.rel (%p158) target = $region28
        $region27: #{wav2vec2_emonet_forward.19} parent=23 // pred_region
          %p161 = scmp.lt.s32.totalorder %s13, 1
          %s162 = scalar_select %p161, %s13, 1
          %s163 = smul.addr %s162, 3
          %s164 = smul.addr %s163, 8
          %s165 = scalar_lea.vmem %s0, %s164
        $region28: #{wav2vec2_emonet_forward.19} parent=23 // pred_fallthru
          _
        // Predicated region
        $region29: #{wav2vec2_emonet_forward.19} parent=23 // pred_check
          %p166 = pneg %p59
        $region30: #{wav2vec2_emonet_forward.19} parent=23 // pred_check_branch
          %168 = sbr.rel (%p166) target = $region32
        $region31: #{wav2vec2_emonet_forward.19} parent=23 // pred_region
          %p169 = scmp.lt.s32.totalorder %s13, 1
          %s170 = scalar_select %p169, %s13, 1
          %s171 = scalar_lea.vmem %s1, %s170
        $region32: #{wav2vec2_emonet_forward.19} parent=23 // pred_fallthru
          _
      $region24: #{wav2vec2_emonet_forward.19} parent=5 // pred_fallthru
        _
      %p172 = scmp.le.s32.totalorder 1, %s13
      %p173 = scmp.lt.s32.totalorder %s13, 3
      %p174 = pnand %p172, %p173
      %p175 = pneg %p174
      // Predicated region
      $region33: #{wav2vec2_emonet_forward.19} parent=5 // pred_check
        _
      $region34: #{wav2vec2_emonet_forward.19} parent=5 // pred_check_branch
        %177 = sbr.rel (%p174) target = $region36
      $region35: #{wav2vec2_emonet_forward.19} parent=5 // pred_region
        %s178 = ssub.s32 %s13, 1
        %p179 = scmp.lt.s32.totalorder %s18, 1
        %s180 = scalar_select %p179, %s18, 1
        %s181 = smul.addr %s180, 3
        %s182 = smul.addr %s181, 8
        %s183 = scalar_lea.vmem %s0, %s182
        %p184 = pneg %p39
        %p185 = pneg %p36
        %p186 = scmp.lt.s32.totalorder %s18, 1
        %s187 = scalar_select %p186, %s18, 1
        %s188 = scalar_lea.vmem %s1, %s187
        %p189 = pneg %p65
        %p190 = pneg %p62
        %p191 = pneg %p86
        %p192 = pneg %p83
        %p193 = pneg %p107
        %p194 = pneg %p104
        %p195 = pneg %p133
        %p196 = pneg %p130
        %s197 = sand.u32 %s120, 1
        %s198 = scalar_lea.sflag [#allocation3], %s197
        %s199 = sand.u32 %s120, 1
        %s200 = scalar_lea.vmem [#allocation2], %s199
        %p201 = scmp.lt.s32.totalorder %s18, 1
        %s202 = scalar_select %p201, %s18, 1
        %s203 = smul.addr %s202, 3
        %s204 = smul.addr %s203, 8
        %s205 = scalar_lea.vmem %s0, %s204
        %p206 = scmp.lt.s32.totalorder %s18, 1
        %s207 = scalar_select %p206, %s18, 1
        %s208 = scalar_lea.vmem %s1, %s207
        %v209 = vld [vmem:[%s205] sm:$0xff]
        %v210 = vld [vmem:[%s205 + $0x8] sm:$0xff]
        %v211 = vld [vmem:[%s205 + $0x10] sm:$0xf]
        %v212 = vld [vmem:[%s208] sm:$0x1]
        %v213 = vlaneseq
        %v214 = vand.u32 %v213, 127
        %v215 = vcvt.s32.f32 %v214
        %217 = vset.pattern.permute.xlu0 0
        %218 = vperm.xlu0 %217, %v212
        %v219 = vpop.permute.xlu0 %218
        %v221 = vperm.slane %v219, 0
        %vm222 = vcmp.lt.f32.partialorder %v215, %v221
        %v223 = vsel %vm222, 1, 0
        %v224 = vcvt.s32.f32 %v223
        %vm225 = vcmask 162816
        %v227 = vsel %vm225, %v224, 0
        %vm229 = vcmask 1043456
        %v231 = vsel %vm229, %v211, 0
        %233 = vmatpush.msra.mxu0 0.0
        %234 = vmatpush.msra.mxu0 0.0
        %235 = vmatpush.msra.mxu0 0.0
        %236 = vmatpush.msra.mxu0 0.0
        %237 = vmatpush.msra.mxu0 0.0
        %238 = vmatpush.msra.mxu0 0.0
        %239 = vmatpush.msra.mxu0 0.0
        %240 = vmatpush.msra.mxu0 0.0
        %241 = vmatpush.msra.mxu0 0.0
        %242 = vmatpush.msra.mxu0 0.0
        %243 = vmatpush.msra.mxu0 0.0
        %244 = vmatpush.msra.mxu0 0.0
        %245 = vmatpush.msra.mxu0 0.0
        %246 = vmatpush.msra.mxu0 %v231
        %247 = vmatpush.msra.mxu0 %v210
        %248 = vmatpush.msra.mxu0 %v209
        %249 = vmatmul.f32.gmra.mxu0 %v227
        %v250 = vpop.f32.mrf.mxu0
        %v251 = vadd.f32 0.0, %v250
        %252 = vdwg.mxu0
        %v253 = vrcp.pop %v221
        %v254 = vmul.f32 %v221, %v253
        %v255 = vsub.f32 1.0, %v254
        %v256 = vmul.f32 %v253, %v255
        %v257 = vadd.f32 %v253, %v256
        %vm258 = vweird.f32 %v221
        %vm259 = vweird.f32 %v253
        %vm260 = vmor %vm258, %vm259
        %v261 = vsel %vm260, %v253, %v257
        %v262 = vand.u32 2147483647, %v221
        %vm263 = vcmp.eq.f32.partialorder %v262, 8.507059e+37
        %v264 = vand.u32 %v221, 2147483648
        %v265 = vor.u32 1.1754944e-38, %v264
        %v266 = vsel %vm263, %v265, %v261
        %v267 = vmul.f32 %v251, %v266
        %v268 = vmax.f32 %v267, 0.0
        %v269 = vld [vmem:[%s2] sm:$0xff]
        %v270 = vld [vmem:[%s2 + $0x8] sm:$0xff]
        %v271 = vld [vmem:[%s2 + $0x10] sm:$0xff]
        %v272 = vld [vmem:[%s2 + $0x18] sm:$0xff]
        %v273 = vld [vmem:[%s2 + $0x20] sm:$0xff]
        %v274 = vld [vmem:[%s2 + $0x28] sm:$0xff]
        %v275 = vld [vmem:[%s2 + $0x30] sm:$0xff]
        %v276 = vld [vmem:[%s2 + $0x38] sm:$0xff]
        %v277 = vld [vmem:[%s2 + $0x40] sm:$0xff]
        %v278 = vld [vmem:[%s2 + $0x48] sm:$0xff]
        %v279 = vld [vmem:[%s2 + $0x50] sm:$0xff]
        %v280 = vld [vmem:[%s2 + $0x58] sm:$0xff]
        %v281 = vld [vmem:[%s2 + $0x60] sm:$0xff]
        %v282 = vld [vmem:[%s2 + $0x68] sm:$0xff]
        %v283 = vld [vmem:[%s2 + $0x70] sm:$0xff]
        %v284 = vld [vmem:[%s2 + $0x78] sm:$0xff]
        %v285 = vld [vmem:[%s3] sm:$0x1]
        %286 = vmatpush.msra.mxu0 %v284
        %287 = vmatpush.msra.mxu0 %v283
        %288 = vmatpush.msra.mxu0 %v282
        %289 = vmatpush.msra.mxu0 %v281
        %290 = vmatpush.msra.mxu0 %v280
        %291 = vmatpush.msra.mxu0 %v279
        %292 = vmatpush.msra.mxu0 %v278
        %293 = vmatpush.msra.mxu0 %v277
        %294 = vmatpush.msra.mxu0 %v276
        %295 = vmatpush.msra.mxu0 %v275
        %296 = vmatpush.msra.mxu0 %v274
        %297 = vmatpush.msra.mxu0 %v273
        %298 = vmatpush.msra.mxu0 %v272
        %299 = vmatpush.msra.mxu0 %v271
        %300 = vmatpush.msra.mxu0 %v270
        %301 = vmatpush.msra.mxu0 %v269
        %302 = vmatmul.f32.gmra.mxu0 %v268
        %v303 = vpop.f32.mrf.mxu0
        %v304 = vadd.f32 %v285, %v303
        %305 = vdwg.mxu0
        %vm306 = vcmask 24576
        %307 = vst.msk [vmem:[%s200] sm:$0x1] %vm306, %v304
        %s308 = sand.u32 %s120, 1
        %s309 = scalar_lea.sflag [#allocation3], %s308
        %s310 = sand.u32 %s120, 1
        %s311 = scalar_lea.vmem [#allocation2], %s310
        // Predicated region
        $region37: #{wav2vec2_emonet_forward.19} parent=35 // pred_check
          %p312 = pneg %p130
        $region38: #{wav2vec2_emonet_forward.19} parent=35 // pred_check_branch
          %314 = sbr.rel (%p312) target = $region40
        $region39: #{wav2vec2_emonet_forward.19} parent=35 // pred_region
          %316 = vsyncadd %s309, 0
          %s317 = scalar_lea.hbm %s4, %s18
          %s319 = sshll.u32 %s311, 4
          %s320 = int_to_ptr.vmem [resolvable:$true] %s319
          %s321 = sshll.u32 %s317, 4
          %s322 = int_to_ptr.hbm [resolvable:$true] %s321
          %324 = dma.vmem_to_hbm [thread:$0]  %s320, 16, %s322, %s309
        $region40: #{wav2vec2_emonet_forward.19} parent=35 // pred_fallthru
          _
      $region36: #{wav2vec2_emonet_forward.19} parent=5 // pred_fallthru
        _
      %p325 = scmp.le.s32.totalorder 2, %s13
      // Predicated region
      $region41: #{wav2vec2_emonet_forward.19} parent=5 // pred_check
        %p326 = pneg %p325
      $region42: #{wav2vec2_emonet_forward.19} parent=5 // pred_check_branch
        %328 = sbr.rel (%p326) target = $region44
      $region43: #{wav2vec2_emonet_forward.19} parent=5 // pred_region
        %s329 = ssub.s32 %s13, 2
        // Predicated region
        $region45: #{wav2vec2_emonet_forward.19} parent=43 // pred_check
          %p330 = pneg %p136
        $region46: #{wav2vec2_emonet_forward.19} parent=43 // pred_check_branch
          %332 = sbr.rel (%p330) target = $region48
        $region47: #{wav2vec2_emonet_forward.19} parent=43 // pred_region
          %s333 = sand.u32 %s121, 1
          %s334 = scalar_lea.sflag [#allocation3], %s333
          %s335 = sand.u32 %s121, 1
          %s336 = scalar_lea.vmem [#allocation2], %s335
          %338 = dma.done %s334, 16
        $region48: #{wav2vec2_emonet_forward.19} parent=43 // pred_fallthru
          _
      $region44: #{wav2vec2_emonet_forward.19} parent=5 // pred_fallthru
        _
    $region6: #{wav2vec2_emonet_forward.19} parent=1 // loop_footer
      %s17 = sadd.s32 1, %s13
    $region7: #{wav2vec2_emonet_forward.19} parent=1 // loop_footer_branch
      %12 = sbr.rel target = $region3
    $region8: #{wav2vec2_emonet_forward.19} parent=1 // loop_exit
      _
    %339 = vsyncpa [#allocation3], 1
    %s340 = scalar_lea.sflag [#allocation3], 1
    %341 = vsyncpa %s340, 1

</llo_original>
